<compile_context>
chip_gen: v7x
topology: tpu7x:2x2x1
jax: 0.10.0
libtpu: 0.0.40
codegen_flags: <defaults>
</compile_context>

<pallas_src>
import functools

import jax
import jax.numpy as jnp
from jax import lax
from jax.experimental import pallas as pl
from jax.experimental.pallas import tpu as pltpu


def _round_up(x, m):
    return (x + m - 1) // m * m


def basic_block_kernel(x_ref, w1_ref, s1_ref, b1_ref, w2_ref, s2_ref, b2_ref,
                       out_ref, xpad_ref, h1pad_ref, patch_ref,
                       *, H, W, C, Wp, B, Nb):
    """Fused BasicBlock forward for Nb images per grid step.

    x_ref      : (Nb, H, W, C)  bf16  input block (C = channels padded to 128)
    w1/w2_ref  : (9*C, C)       bf16  im2col weights, rows = (kh, kw, ci), cols = co
    s*/b*_ref  : (1, C)         f32   folded eval-mode BN scale / bias
    out_ref    : (Nb, H, W, C)  bf16  output block
    xpad_ref   : (Lpad, C)      bf16  flat, row-pitch-Wp padded x
    h1pad_ref  : (Lpad, C)      bf16  flat, row-pitch-Wp padded relu(bn1(conv1))
    patch_ref  : (H*Wp, 9*C)    bf16  im2col patch matrix (reused by both convs)
    """
    M = H * Wp                 # rows per im2col dot (includes Wp-W junk cols / row)
    data0 = B + Wp             # flat offset of the first data row
    Lpad = xpad_ref.shape[0]
    tail = Lpad - (data0 + M)

    # Head (leading slack + top halo row) and tail (bottom halo + tap overrun)
    # must read as zero.  Staging below only ever writes [data0, data0 + M),
    # so these stay zero; re-zeroed unconditionally each step (cheap) so it is
    # megacore-safe (each core owns its own scratch instance).
    zhead = jnp.zeros((data0, C), jnp.bfloat16)
    ztail = jnp.zeros((tail, C), jnp.bfloat16)
    for ref in (xpad_ref, h1pad_ref):
        ref[pl.ds(0, data0), :] = zhead
        ref[pl.ds(data0 + M, tail), :] = ztail

    # Keep-mask over the pitch-Wp rows: columns >= W are the zero gap that
    # implements the conv's width padding (hoisted out of the image loop).
    keep = lax.broadcasted_iota(jnp.int32, (H, Wp, C), 1) < W
    zgap = jnp.zeros((H, Wp - W, C), jnp.bfloat16)

    # Per-tap contiguous row-slice offsets into the flat padded buffers.
    offs = [B - 1 + kh * Wp + kw for kh in range(3) for kw in range(3)]

    def conv3x3(pad_ref, w_ref):
        # im2col: 9 contiguous, lane-aligned copies into the patch scratch ...
        for t, off in enumerate(offs):
            patch_ref[:, t * C:(t + 1) * C] = pad_ref[pl.ds(off, M), :]
        # ... then a single K = 9C MXU dot; accumulation stays inside the MXU.
        return jnp.dot(patch_ref[...], w_ref[...],
                       preferred_element_type=jnp.float32)       # (M, C) f32

    for b in range(Nb):
        xb = x_ref[b]                                            # (H, W, C) bf16

        # ---- stage x: width-pad to pitch Wp, one aligned contiguous store ---
        xw = jnp.concatenate([xb, zgap], axis=1)                 # (H, Wp, C)
        xpad_ref[pl.ds(data0, M), :] = xw.reshape(M, C)

        # ---- conv1 + BN1 + ReLU (BN applied once to the full accumulator) ---
        acc1 = conv3x3(xpad_ref, w1_ref)
        h1 = jnp.maximum(acc1 * s1_ref[...] + b1_ref[...], 0.0)
        h1 = jnp.where(keep, h1.reshape(H, Wp, C), 0.0)          # kill gap cols
        h1pad_ref[pl.ds(data0, M), :] = h1.astype(jnp.bfloat16).reshape(M, C)

        # ---- conv2 + BN2 + residual add -------------------------------------
        acc2 = conv3x3(h1pad_ref, w2_ref)
        y = acc2 * s2_ref[...] + b2_ref[...]
        y = y.reshape(H, Wp, C)[:, :W, :] + xb.astype(jnp.float32)
        out_ref[b] = y.astype(out_ref.dtype)


def basic_block_forward(x_nchw, w1, g1, be1, m1, v1, w2, g2, be2, m2, v2,
                        eps=1e-5):
    """NCHW wrapper around the NHWC Pallas kernel (stride=1, no downsample)."""
    N, Cin, H, W = x_nchw.shape
    Cout = w1.shape[0]
    assert Cin == Cout, "default BasicBlock (downsample=None) needs Cin==Cout"
    # TODO(synk): stride != 1 / downsample path and train-mode batch statistics
    # are not implemented (module defaults: stride=1, downsample=None, eval BN).

    C = _round_up(max(Cin, Cout), 128)        # lane-dense channel dim
    Wp = _round_up(W + 2, 8)                  # padded row pitch (aligned reshapes)
    B = 8                                     # leading zero slack (tap offsets >= 0)
    M = H * Wp
    Lpad = _round_up(B + (H + 2) * Wp + 1, 8)

    # Batch blocking: amortize per-grid-step overhead but keep >= 2 grid steps
    # so both v7x TensorCores get work under dimension_semantics=("parallel",).
    Nb = 1
    for cand in (8, 4, 2):
        if N % cand == 0 and N // cand >= 2:
            Nb = cand
            break
    grid = (N // Nb,)

    # Layout plumbing: one transpose + one pad per side.  In a full network you
    # would keep activations NHWC / channel-padded between blocks instead.
    x_nhwc = jnp.transpose(x_nchw, (0, 2, 3, 1)).astype(jnp.bfloat16)
    x_p = jnp.pad(x_nhwc, ((0, 0), (0, 0), (0, 0), (0, C - Cin)))

    def prep_w(w):  # (Cout, Cin, 3, 3) -> (9*C, C), rows = (kh, kw, ci), cols = co
        wt = jnp.transpose(w, (2, 3, 1, 0))
        wt = jnp.pad(wt, ((0, 0), (0, 0), (0, C - Cin), (0, C - Cout)))
        return wt.reshape(9 * C, C).astype(jnp.bfloat16)

    w1_p, w2_p = prep_w(w1), prep_w(w2)

    # Fold eval-mode BatchNorm into per-channel scale/bias (kept in f32).
    inv1 = g1 / jnp.sqrt(v1 + eps)
    inv2 = g2 / jnp.sqrt(v2 + eps)

    def prep_sb(s, b):
        s = jnp.pad(s.astype(jnp.float32), (0, C - Cout)).reshape(1, C)
        b = jnp.pad(b.astype(jnp.float32), (0, C - Cout)).reshape(1, C)
        return s, b

    s1, b1 = prep_sb(inv1, be1 - m1 * inv1)
    s2, b2 = prep_sb(inv2, be2 - m2 * inv2)

    kernel = functools.partial(basic_block_kernel, H=H, W=W, C=C, Wp=Wp, B=B,
                               Nb=Nb)

    flops = 2 * 2 * N * M * (9 * C) * C            # two im2col dots per image
    bytes_accessed = (N * H * W * C * 2            # x (bf16)
                      + N * H * W * C * 2          # out (bf16)
                      + 2 * 9 * C * C * 2          # both weight slabs (bf16)
                      + 4 * C * 4)                 # scale / bias (f32)

    out_nhwc = pl.pallas_call(
        kernel,
        out_shape=jax.ShapeDtypeStruct((N, H, W, C), jnp.bfloat16),
        grid_spec=pltpu.PrefetchScalarGridSpec(
            num_scalar_prefetch=0,
            grid=grid,
            in_specs=[
                pl.BlockSpec((Nb, H, W, C), lambda n: (n, 0, 0, 0)),
                pl.BlockSpec((9 * C, C), lambda n: (0, 0)),
                pl.BlockSpec((1, C), lambda n: (0, 0)),
                pl.BlockSpec((1, C), lambda n: (0, 0)),
                pl.BlockSpec((9 * C, C), lambda n: (0, 0)),
                pl.BlockSpec((1, C), lambda n: (0, 0)),
                pl.BlockSpec((1, C), lambda n: (0, 0)),
            ],
            out_specs=pl.BlockSpec((Nb, H, W, C), lambda n: (n, 0, 0, 0)),
            scratch_shapes=[pltpu.VMEM((Lpad, C), jnp.bfloat16),
                            pltpu.VMEM((Lpad, C), jnp.bfloat16),
                            pltpu.VMEM((M, 9 * C), jnp.bfloat16)],
        ),
        compiler_params=pltpu.CompilerParams(
            dimension_semantics=("parallel",)),
        cost_estimate=pl.CostEstimate(flops=flops, transcendentals=0,
                                      bytes_accessed=bytes_accessed),
    )(x_p, w1_p, s1, b1, w2_p, s2, b2)

    out = out_nhwc[..., :Cout].astype(jnp.float32)   # drop padded channels
    return jnp.transpose(out, (0, 3, 1, 2)).astype(x_nchw.dtype)


def reference_forward(x, w1, s1, b1, w2, s2, b2):
    """Pure-JAX NCHW reference mirroring the kernel's bf16 quantization points
    (bf16 inputs/weights/intermediate, f32 accumulation, f32 folded BN)."""
    dn = ("NCHW", "OIHW", "NCHW")
    y = lax.conv_general_dilated(x, w1, (1, 1), ((1, 1), (1, 1)),
                                 dimension_numbers=dn,
                                 precision=lax.Precision.HIGHEST)
    y = y * s1[None, :, None, None] + b1[None, :, None, None]
    y = jnp.maximum(y, 0.0)
    y = y.astype(jnp.bfloat16).astype(jnp.float32)   # kernel feeds bf16 to MXU
    y = lax.conv_general_dilated(y, w2, (1, 1), ((1, 1), (1, 1)),
                                 dimension_numbers=dn,
                                 precision=lax.Precision.HIGHEST)
    y = y * s2[None, :, None, None] + b2[None, :, None, None]
    return y + x


if __name__ == "__main__":
    # Small, module-consistent shapes: batch=2, channels=4, spatial=16x16.
    N, Cc, H, W = 2, 4, 16, 16

    key = jax.random.PRNGKey(0)
    ks = jax.random.split(key, 11)
    x = jax.random.normal(ks[0], (N, Cc, H, W), jnp.float32)

    # conv3x3 weights: (Cout, Cin, 3, 3), bias=False
    w1 = jax.random.normal(ks[1], (Cc, Cc, 3, 3), jnp.float32) * 0.2
    w2 = jax.random.normal(ks[2], (Cc, Cc, 3, 3), jnp.float32) * 0.2
    # BatchNorm params (eval mode)
    g1 = 1.0 + 0.1 * jax.random.normal(ks[3], (Cc,), jnp.float32)
    be1 = 0.1 * jax.random.normal(ks[4], (Cc,), jnp.float32)
    m1 = 0.1 * jax.random.normal(ks[5], (Cc,), jnp.float32)
    v1 = 0.5 + jnp.abs(jax.random.normal(ks[6], (Cc,), jnp.float32))
    g2 = 1.0 + 0.1 * jax.random.normal(ks[7], (Cc,), jnp.float32)
    be2 = 0.1 * jax.random.normal(ks[8], (Cc,), jnp.float32)
    m2 = 0.1 * jax.random.normal(ks[9], (Cc,), jnp.float32)
    v2 = 0.5 + jnp.abs(jax.random.normal(ks[10], (Cc,), jnp.float32))

    out = basic_block_forward(x, w1, g1, be1, m1, v1, w2, g2, be2, m2, v2)
    out = jax.block_until_ready(out)

    # Correctness check against a pure-JAX reference with matching bf16
    # quantization of inputs / weights / intermediate activation.  Kernel
    # output is bf16 (perf feedback), so tolerances include one bf16 ULP.
    eps = 1e-5
    inv1 = g1 / jnp.sqrt(v1 + eps)
    inv2 = g2 / jnp.sqrt(v2 + eps)
    x_q = x.astype(jnp.bfloat16).astype(jnp.float32)
    w1_q = w1.astype(jnp.bfloat16).astype(jnp.float32)
    w2_q = w2.astype(jnp.bfloat16).astype(jnp.float32)
    ref = reference_forward(x_q, w1_q, inv1, be1 - m1 * inv1,
                            w2_q, inv2, be2 - m2 * inv2)
    assert out.shape == (N, Cc, H, W)
    err = float(jnp.max(jnp.abs(out - ref)))
    assert jnp.allclose(out, ref, atol=3e-2, rtol=3e-2), err

    print("KERNEL_OK")
</pallas_src>

<mosaic_0001>
module attributes {stable_mosaic.version = 11 : i64} {
  func.func @basic_block_kernel(%arg0: i32, %arg1: memref<1x16x16x128xbf16, #tpu.memory_space<vmem>>, %arg2: memref<1152x128xbf16, #tpu.memory_space<vmem>>, %arg3: memref<1x128xf32, #tpu.memory_space<vmem>>, %arg4: memref<1x128xf32, #tpu.memory_space<vmem>>, %arg5: memref<1152x128xbf16, #tpu.memory_space<vmem>>, %arg6: memref<1x128xf32, #tpu.memory_space<vmem>>, %arg7: memref<1x128xf32, #tpu.memory_space<vmem>>, %arg8: memref<1x16x16x128xbf16, #tpu.memory_space<vmem>>, %arg9: memref<448x128xbf16, #tpu.memory_space<vmem>>, %arg10: memref<448x128xbf16, #tpu.memory_space<vmem>>, %arg11: memref<384x1152xbf16, #tpu.memory_space<vmem>>) attributes {dimension_semantics = [#tpu.dimension_semantics<parallel>], iteration_bounds = array<i64: 2>, scalar_prefetch = 0 : i64, scratch_operands = 3 : i64, tpu.core_type = #tpu.core_type<tc>, window_params = [{transform_indices = @transform_0, window_bounds = array<i64: 1, 16, 16, 128>}, {pipeline_mode = #tpu.pipeline_mode<synchronous>, transform_indices = @transform_1, window_bounds = array<i64: 1152, 128>}, {pipeline_mode = #tpu.pipeline_mode<synchronous>, transform_indices = @transform_2, window_bounds = array<i64: 1, 128>}, {pipeline_mode = #tpu.pipeline_mode<synchronous>, transform_indices = @transform_3, window_bounds = array<i64: 1, 128>}, {pipeline_mode = #tpu.pipeline_mode<synchronous>, transform_indices = @transform_4, window_bounds = array<i64: 1152, 128>}, {pipeline_mode = #tpu.pipeline_mode<synchronous>, transform_indices = @transform_5, window_bounds = array<i64: 1, 128>}, {pipeline_mode = #tpu.pipeline_mode<synchronous>, transform_indices = @transform_6, window_bounds = array<i64: 1, 128>}, {transform_indices = @transform_7, window_bounds = array<i64: 1, 16, 16, 128>}]} {
    %cst = arith.constant 0.000000e+00 : bf16
    %0 = vector.broadcast %cst : bf16 to vector<32x128xbf16>
    %cst_0 = arith.constant 0.000000e+00 : bf16
    %1 = vector.broadcast %cst_0 : bf16 to vector<32x128xbf16>
    %c0 = arith.constant 0 : index
    %c0_1 = arith.constant 0 : index
    %2 = vector.load %arg9[%c0, %c0_1] : memref<448x128xbf16, #tpu.memory_space<vmem>>, vector<32x128xbf16>
    tpu.vector_store %arg9[%c0, %c0_1], %0 {strides = array<i32>} : memref<448x128xbf16, #tpu.memory_space<vmem>>, vector<32x128xbf16>,
    %c416 = arith.constant 416 : index
    %c0_2 = arith.constant 0 : index
    %3 = vector.load %arg9[%c416, %c0_2] : memref<448x128xbf16, #tpu.memory_space<vmem>>, vector<32x128xbf16>
    tpu.vector_store %arg9[%c416, %c0_2], %1 {strides = array<i32>} : memref<448x128xbf16, #tpu.memory_space<vmem>>, vector<32x128xbf16>,
    %c0_3 = arith.constant 0 : index
    %c0_4 = arith.constant 0 : index
    %4 = vector.load %arg10[%c0_3, %c0_4] : memref<448x128xbf16, #tpu.memory_space<vmem>>, vector<32x128xbf16>
    tpu.vector_store %arg10[%c0_3, %c0_4], %0 {strides = array<i32>} : memref<448x128xbf16, #tpu.memory_space<vmem>>, vector<32x128xbf16>,
    %c416_5 = arith.constant 416 : index
    %c0_6 = arith.constant 0 : index
    %5 = vector.load %arg10[%c416_5, %c0_6] : memref<448x128xbf16, #tpu.memory_space<vmem>>, vector<32x128xbf16>
    tpu.vector_store %arg10[%c416_5, %c0_6], %1 {strides = array<i32>} : memref<448x128xbf16, #tpu.memory_space<vmem>>, vector<32x128xbf16>,
    %6 = tpu.iota {dimensions = array<i32: 1>} : vector<16x24x128xi32>
    %c16_i32 = arith.constant 16 : i32
    %7 = vector.broadcast %c16_i32 : i32 to vector<16x24x128xi32>
    %8 = arith.cmpi slt, %6, %7 : vector<16x24x128xi32>
    %cst_7 = arith.constant 0.000000e+00 : bf16
    %9 = vector.broadcast %cst_7 : bf16 to vector<16x8x128xbf16>
    %c0_8 = arith.constant 0 : index
    %c0_9 = arith.constant 0 : index
    %c0_10 = arith.constant 0 : index
    %c0_11 = arith.constant 0 : index
    %10 = vector.load %arg1[%c0_8, %c0_9, %c0_10, %c0_11] : memref<1x16x16x128xbf16, #tpu.memory_space<vmem>>, vector<1x16x16x128xbf16>
    %11 = vector.shape_cast %10 : vector<1x16x16x128xbf16> to vector<16x16x128xbf16>
    %12 = tpu.concatenate %11, %9 in 1 : vector<16x16x128xbf16>, vector<16x8x128xbf16> -> vector<16x24x128xbf16>
    %13 = vector.shape_cast %12 : vector<16x24x128xbf16> to vector<384x128xbf16>
    %c32 = arith.constant 32 : index
    %c0_12 = arith.constant 0 : index
    %14 = vector.load %arg9[%c32, %c0_12] : memref<448x128xbf16, #tpu.memory_space<vmem>>, vector<384x128xbf16>
    tpu.vector_store %arg9[%c32, %c0_12], %13 {strides = array<i32>} : memref<448x128xbf16, #tpu.memory_space<vmem>>, vector<384x128xbf16>,
    %c7 = arith.constant 7 : index
    %c0_13 = arith.constant 0 : index
    %15 = vector.load %arg9[%c7, %c0_13] : memref<448x128xbf16, #tpu.memory_space<vmem>>, vector<384x128xbf16>
    %c0_14 = arith.constant 0 : index
    %c0_15 = arith.constant 0 : index
    %16 = vector.load %arg11[%c0_14, %c0_15] : memref<384x1152xbf16, #tpu.memory_space<vmem>>, vector<384x128xbf16>
    tpu.vector_store %arg11[%c0_14, %c0_15], %15 {strides = array<i32>} : memref<384x1152xbf16, #tpu.memory_space<vmem>>, vector<384x128xbf16>,
    %c8 = arith.constant 8 : index
    %c0_16 = arith.constant 0 : index
    %17 = vector.load %arg9[%c8, %c0_16] : memref<448x128xbf16, #tpu.memory_space<vmem>>, vector<384x128xbf16>
    %c0_17 = arith.constant 0 : index
    %c128 = arith.constant 128 : index
    %18 = vector.load %arg11[%c0_17, %c128] : memref<384x1152xbf16, #tpu.memory_space<vmem>>, vector<384x128xbf16>
    tpu.vector_store %arg11[%c0_17, %c128], %17 {strides = array<i32>} : memref<384x1152xbf16, #tpu.memory_space<vmem>>, vector<384x128xbf16>,
    %c9 = arith.constant 9 : index
    %c0_18 = arith.constant 0 : index
    %19 = vector.load %arg9[%c9, %c0_18] : memref<448x128xbf16, #tpu.memory_space<vmem>>, vector<384x128xbf16>
    %c0_19 = arith.constant 0 : index
    %c256 = arith.constant 256 : index
    %20 = vector.load %arg11[%c0_19, %c256] : memref<384x1152xbf16, #tpu.memory_space<vmem>>, vector<384x128xbf16>
    tpu.vector_store %arg11[%c0_19, %c256], %19 {strides = array<i32>} : memref<384x1152xbf16, #tpu.memory_space<vmem>>, vector<384x128xbf16>,
    %c31 = arith.constant 31 : index
    %c0_20 = arith.constant 0 : index
    %21 = vector.load %arg9[%c31, %c0_20] : memref<448x128xbf16, #tpu.memory_space<vmem>>, vector<384x128xbf16>
    %c0_21 = arith.constant 0 : index
    %c384 = arith.constant 384 : index
    %22 = vector.load %arg11[%c0_21, %c384] : memref<384x1152xbf16, #tpu.memory_space<vmem>>, vector<384x128xbf16>
    tpu.vector_store %arg11[%c0_21, %c384], %21 {strides = array<i32>} : memref<384x1152xbf16, #tpu.memory_space<vmem>>, vector<384x128xbf16>,
    %c32_22 = arith.constant 32 : index
    %c0_23 = arith.constant 0 : index
    %23 = vector.load %arg9[%c32_22, %c0_23] : memref<448x128xbf16, #tpu.memory_space<vmem>>, vector<384x128xbf16>
    %c0_24 = arith.constant 0 : index
    %c512 = arith.constant 512 : index
    %24 = vector.load %arg11[%c0_24, %c512] : memref<384x1152xbf16, #tpu.memory_space<vmem>>, vector<384x128xbf16>
    tpu.vector_store %arg11[%c0_24, %c512], %23 {strides = array<i32>} : memref<384x1152xbf16, #tpu.memory_space<vmem>>, vector<384x128xbf16>,
    %c33 = arith.constant 33 : index
    %c0_25 = arith.constant 0 : index
    %25 = vector.load %arg9[%c33, %c0_25] : memref<448x128xbf16, #tpu.memory_space<vmem>>, vector<384x128xbf16>
    %c0_26 = arith.constant 0 : index
    %c640 = arith.constant 640 : index
    %26 = vector.load %arg11[%c0_26, %c640] : memref<384x1152xbf16, #tpu.memory_space<vmem>>, vector<384x128xbf16>
    tpu.vector_store %arg11[%c0_26, %c640], %25 {strides = array<i32>} : memref<384x1152xbf16, #tpu.memory_space<vmem>>, vector<384x128xbf16>,
    %c55 = arith.constant 55 : index
    %c0_27 = arith.constant 0 : index
    %27 = vector.load %arg9[%c55, %c0_27] : memref<448x128xbf16, #tpu.memory_space<vmem>>, vector<384x128xbf16>
    %c0_28 = arith.constant 0 : index
    %c768 = arith.constant 768 : index
    %28 = vector.load %arg11[%c0_28, %c768] : memref<384x1152xbf16, #tpu.memory_space<vmem>>, vector<384x128xbf16>
    tpu.vector_store %arg11[%c0_28, %c768], %27 {strides = array<i32>} : memref<384x1152xbf16, #tpu.memory_space<vmem>>, vector<384x128xbf16>,
    %c56 = arith.constant 56 : index
    %c0_29 = arith.constant 0 : index
    %29 = vector.load %arg9[%c56, %c0_29] : memref<448x128xbf16, #tpu.memory_space<vmem>>, vector<384x128xbf16>
    %c0_30 = arith.constant 0 : index
    %c896 = arith.constant 896 : index
    %30 = vector.load %arg11[%c0_30, %c896] : memref<384x1152xbf16, #tpu.memory_space<vmem>>, vector<384x128xbf16>
    tpu.vector_store %arg11[%c0_30, %c896], %29 {strides = array<i32>} : memref<384x1152xbf16, #tpu.memory_space<vmem>>, vector<384x128xbf16>,
    %c57 = arith.constant 57 : index
    %c0_31 = arith.constant 0 : index
    %31 = vector.load %arg9[%c57, %c0_31] : memref<448x128xbf16, #tpu.memory_space<vmem>>, vector<384x128xbf16>
    %c0_32 = arith.constant 0 : index
    %c1024 = arith.constant 1024 : index
    %32 = vector.load %arg11[%c0_32, %c1024] : memref<384x1152xbf16, #tpu.memory_space<vmem>>, vector<384x128xbf16>
    tpu.vector_store %arg11[%c0_32, %c1024], %31 {strides = array<i32>} : memref<384x1152xbf16, #tpu.memory_space<vmem>>, vector<384x128xbf16>,
    %c0_33 = arith.constant 0 : index
    %c0_34 = arith.constant 0 : index
    %33 = vector.load %arg11[%c0_33, %c0_34] : memref<384x1152xbf16, #tpu.memory_space<vmem>>, vector<384x1152xbf16>
    %c0_35 = arith.constant 0 : index
    %c0_36 = arith.constant 0 : index
    %34 = vector.load %arg2[%c0_35, %c0_36] : memref<1152x128xbf16, #tpu.memory_space<vmem>>, vector<1152x128xbf16>
    %cst_37 = arith.constant dense<0.000000e+00> : vector<384x128xf32>
    %35 = tpu.matmul %33, %34, %cst_37 {dimension_numbers = #tpu.dot_dimension_numbers<[1], [0], [0], [1], [0, 0, 1, 1], [], []>} : vector<384x1152xbf16>, vector<1152x128xbf16>, vector<384x128xf32> -> vector<384x128xf32>
    %c0_38 = arith.constant 0 : index
    %c0_39 = arith.constant 0 : index
    %36 = vector.load %arg3[%c0_38, %c0_39] : memref<1x128xf32, #tpu.memory_space<vmem>>, vector<1x128xf32>
    %37 = vector.broadcast %36 : vector<1x128xf32> to vector<384x128xf32>
    %38 = arith.mulf %35, %37 : vector<384x128xf32>
    %c0_40 = arith.constant 0 : index
    %c0_41 = arith.constant 0 : index
    %39 = vector.load %arg4[%c0_40, %c0_41] : memref<1x128xf32, #tpu.memory_space<vmem>>, vector<1x128xf32>
    %40 = vector.broadcast %39 : vector<1x128xf32> to vector<384x128xf32>
    %41 = arith.addf %38, %40 : vector<384x128xf32>
    %cst_42 = arith.constant 0.000000e+00 : f32
    %42 = vector.broadcast %cst_42 : f32 to vector<384x128xf32>
    %43 = arith.maximumf %41, %42 : vector<384x128xf32>
    %44 = vector.shape_cast %43 : vector<384x128xf32> to vector<16x24x128xf32>
    %cst_43 = arith.constant 0.000000e+00 : f32
    %45 = vector.broadcast %cst_43 : f32 to vector<16x24x128xf32>
    %46 = arith.select %8, %44, %45 : vector<16x24x128xi1>, vector<16x24x128xf32>
    %47 = arith.truncf %46 : vector<16x24x128xf32> to vector<16x24x128xbf16>
    %48 = vector.shape_cast %47 : vector<16x24x128xbf16> to vector<384x128xbf16>
    %c32_44 = arith.constant 32 : index
    %c0_45 = arith.constant 0 : index
    %49 = vector.load %arg10[%c32_44, %c0_45] : memref<448x128xbf16, #tpu.memory_space<vmem>>, vector<384x128xbf16>
    tpu.vector_store %arg10[%c32_44, %c0_45], %48 {strides = array<i32>} : memref<448x128xbf16, #tpu.memory_space<vmem>>, vector<384x128xbf16>,
    %c7_46 = arith.constant 7 : index
    %c0_47 = arith.constant 0 : index
    %50 = vector.load %arg10[%c7_46, %c0_47] : memref<448x128xbf16, #tpu.memory_space<vmem>>, vector<384x128xbf16>
    %c0_48 = arith.constant 0 : index
    %c0_49 = arith.constant 0 : index
    %51 = vector.load %arg11[%c0_48, %c0_49] : memref<384x1152xbf16, #tpu.memory_space<vmem>>, vector<384x128xbf16>
    tpu.vector_store %arg11[%c0_48, %c0_49], %50 {strides = array<i32>} : memref<384x1152xbf16, #tpu.memory_space<vmem>>, vector<384x128xbf16>,
    %c8_50 = arith.constant 8 : index
    %c0_51 = arith.constant 0 : index
    %52 = vector.load %arg10[%c8_50, %c0_51] : memref<448x128xbf16, #tpu.memory_space<vmem>>, vector<384x128xbf16>
    %c0_52 = arith.constant 0 : index
    %c128_53 = arith.constant 128 : index
    %53 = vector.load %arg11[%c0_52, %c128_53] : memref<384x1152xbf16, #tpu.memory_space<vmem>>, vector<384x128xbf16>
    tpu.vector_store %arg11[%c0_52, %c128_53], %52 {strides = array<i32>} : memref<384x1152xbf16, #tpu.memory_space<vmem>>, vector<384x128xbf16>,
    %c9_54 = arith.constant 9 : index
    %c0_55 = arith.constant 0 : index
    %54 = vector.load %arg10[%c9_54, %c0_55] : memref<448x128xbf16, #tpu.memory_space<vmem>>, vector<384x128xbf16>
    %c0_56 = arith.constant 0 : index
    %c256_57 = arith.constant 256 : index
    %55 = vector.load %arg11[%c0_56, %c256_57] : memref<384x1152xbf16, #tpu.memory_space<vmem>>, vector<384x128xbf16>
    tpu.vector_store %arg11[%c0_56, %c256_57], %54 {strides = array<i32>} : memref<384x1152xbf16, #tpu.memory_space<vmem>>, vector<384x128xbf16>,
    %c31_58 = arith.constant 31 : index
    %c0_59 = arith.constant 0 : index
    %56 = vector.load %arg10[%c31_58, %c0_59] : memref<448x128xbf16, #tpu.memory_space<vmem>>, vector<384x128xbf16>
    %c0_60 = arith.constant 0 : index
    %c384_61 = arith.constant 384 : index
    %57 = vector.load %arg11[%c0_60, %c384_61] : memref<384x1152xbf16, #tpu.memory_space<vmem>>, vector<384x128xbf16>
    tpu.vector_store %arg11[%c0_60, %c384_61], %56 {strides = array<i32>} : memref<384x1152xbf16, #tpu.memory_space<vmem>>, vector<384x128xbf16>,
    %c32_62 = arith.constant 32 : index
    %c0_63 = arith.constant 0 : index
    %58 = vector.load %arg10[%c32_62, %c0_63] : memref<448x128xbf16, #tpu.memory_space<vmem>>, vector<384x128xbf16>
    %c0_64 = arith.constant 0 : index
    %c512_65 = arith.constant 512 : index
    %59 = vector.load %arg11[%c0_64, %c512_65] : memref<384x1152xbf16, #tpu.memory_space<vmem>>, vector<384x128xbf16>
    tpu.vector_store %arg11[%c0_64, %c512_65], %58 {strides = array<i32>} : memref<384x1152xbf16, #tpu.memory_space<vmem>>, vector<384x128xbf16>,
    %c33_66 = arith.constant 33 : index
    %c0_67 = arith.constant 0 : index
    %60 = vector.load %arg10[%c33_66, %c0_67] : memref<448x128xbf16, #tpu.memory_space<vmem>>, vector<384x128xbf16>
    %c0_68 = arith.constant 0 : index
    %c640_69 = arith.constant 640 : index
    %61 = vector.load %arg11[%c0_68, %c640_69] : memref<384x1152xbf16, #tpu.memory_space<vmem>>, vector<384x128xbf16>
    tpu.vector_store %arg11[%c0_68, %c640_69], %60 {strides = array<i32>} : memref<384x1152xbf16, #tpu.memory_space<vmem>>, vector<384x128xbf16>,
    %c55_70 = arith.constant 55 : index
    %c0_71 = arith.constant 0 : index
    %62 = vector.load %arg10[%c55_70, %c0_71] : memref<448x128xbf16, #tpu.memory_space<vmem>>, vector<384x128xbf16>
    %c0_72 = arith.constant 0 : index
    %c768_73 = arith.constant 768 : index
    %63 = vector.load %arg11[%c0_72, %c768_73] : memref<384x1152xbf16, #tpu.memory_space<vmem>>, vector<384x128xbf16>
    tpu.vector_store %arg11[%c0_72, %c768_73], %62 {strides = array<i32>} : memref<384x1152xbf16, #tpu.memory_space<vmem>>, vector<384x128xbf16>,
    %c56_74 = arith.constant 56 : index
    %c0_75 = arith.constant 0 : index
    %64 = vector.load %arg10[%c56_74, %c0_75] : memref<448x128xbf16, #tpu.memory_space<vmem>>, vector<384x128xbf16>
    %c0_76 = arith.constant 0 : index
    %c896_77 = arith.constant 896 : index
    %65 = vector.load %arg11[%c0_76, %c896_77] : memref<384x1152xbf16, #tpu.memory_space<vmem>>, vector<384x128xbf16>
    tpu.vector_store %arg11[%c0_76, %c896_77], %64 {strides = array<i32>} : memref<384x1152xbf16, #tpu.memory_space<vmem>>, vector<384x128xbf16>,
    %c57_78 = arith.constant 57 : index
    %c0_79 = arith.constant 0 : index
    %66 = vector.load %arg10[%c57_78, %c0_79] : memref<448x128xbf16, #tpu.memory_space<vmem>>, vector<384x128xbf16>
    %c0_80 = arith.constant 0 : index
    %c1024_81 = arith.constant 1024 : index
    %67 = vector.load %arg11[%c0_80, %c1024_81] : memref<384x1152xbf16, #tpu.memory_space<vmem>>, vector<384x128xbf16>
    tpu.vector_store %arg11[%c0_80, %c1024_81], %66 {strides = array<i32>} : memref<384x1152xbf16, #tpu.memory_space<vmem>>, vector<384x128xbf16>,
    %c0_82 = arith.constant 0 : index
    %c0_83 = arith.constant 0 : index
    %68 = vector.load %arg11[%c0_82, %c0_83] : memref<384x1152xbf16, #tpu.memory_space<vmem>>, vector<384x1152xbf16>
    %c0_84 = arith.constant 0 : index
    %c0_85 = arith.constant 0 : index
    %69 = vector.load %arg5[%c0_84, %c0_85] : memref<1152x128xbf16, #tpu.memory_space<vmem>>, vector<1152x128xbf16>
    %cst_86 = arith.constant dense<0.000000e+00> : vector<384x128xf32>
    %70 = tpu.matmul %68, %69, %cst_86 {dimension_numbers = #tpu.dot_dimension_numbers<[1], [0], [0], [1], [0, 0, 1, 1], [], []>} : vector<384x1152xbf16>, vector<1152x128xbf16>, vector<384x128xf32> -> vector<384x128xf32>
    %c0_87 = arith.constant 0 : index
    %c0_88 = arith.constant 0 : index
    %71 = vector.load %arg6[%c0_87, %c0_88] : memref<1x128xf32, #tpu.memory_space<vmem>>, vector<1x128xf32>
    %72 = vector.broadcast %71 : vector<1x128xf32> to vector<384x128xf32>
    %73 = arith.mulf %70, %72 : vector<384x128xf32>
    %c0_89 = arith.constant 0 : index
    %c0_90 = arith.constant 0 : index
    %74 = vector.load %arg7[%c0_89, %c0_90] : memref<1x128xf32, #tpu.memory_space<vmem>>, vector<1x128xf32>
    %75 = vector.broadcast %74 : vector<1x128xf32> to vector<384x128xf32>
    %76 = arith.addf %73, %75 : vector<384x128xf32>
    %77 = vector.shape_cast %76 : vector<384x128xf32> to vector<16x24x128xf32>
    %78 = vector.extract_strided_slice %77 {offsets = [0, 0, 0], sizes = [16, 16, 128], strides = [1, 1, 1]} : vector<16x24x128xf32> to vector<16x16x128xf32>
    %79 = arith.extf %11 : vector<16x16x128xbf16> to vector<16x16x128xf32>
    %80 = arith.addf %78, %79 : vector<16x16x128xf32>
    %81 = arith.truncf %80 : vector<16x16x128xf32> to vector<16x16x128xbf16>
    %c0_91 = arith.constant 0 : index
    %c0_92 = arith.constant 0 : index
    %c0_93 = arith.constant 0 : index
    %c0_94 = arith.constant 0 : index
    %82 = vector.load %arg8[%c0_91, %c0_92, %c0_93, %c0_94] : memref<1x16x16x128xbf16, #tpu.memory_space<vmem>>, vector<1x16x16x128xbf16>
    %83 = vector.shape_cast %82 : vector<1x16x16x128xbf16> to vector<16x16x128xbf16>
    %84 = vector.shape_cast %81 : vector<16x16x128xbf16> to vector<1x16x16x128xbf16>
    tpu.vector_store %arg8[%c0_91, %c0_92, %c0_93, %c0_94], %84 {strides = array<i32>} : memref<1x16x16x128xbf16, #tpu.memory_space<vmem>>, vector<1x16x16x128xbf16>,
    return
  }
  func.func @transform_0(%arg0: i32) -> (i32, i32, i32, i32) {
    %c0_i32 = arith.constant 0 : i32
    %c0_i32_0 = arith.constant 0 : i32
    %c0_i32_1 = arith.constant 0 : i32
    %c0_i32_2 = arith.constant 0 : i32
    return %arg0, %c0_i32, %c0_i32_0, %c0_i32_1 : i32, i32, i32, i32
  }
  func.func @transform_1(%arg0: i32) -> (i32, i32) {
    %c0_i32 = arith.constant 0 : i32
    %c0_i32_0 = arith.constant 0 : i32
    %c0_i32_1 = arith.constant 0 : i32
    return %c0_i32, %c0_i32_0 : i32, i32
  }
  func.func @transform_2(%arg0: i32) -> (i32, i32) {
    %c0_i32 = arith.constant 0 : i32
    %c0_i32_0 = arith.constant 0 : i32
    %c0_i32_1 = arith.constant 0 : i32
    return %c0_i32, %c0_i32_0 : i32, i32
  }
  func.func @transform_3(%arg0: i32) -> (i32, i32) {
    %c0_i32 = arith.constant 0 : i32
    %c0_i32_0 = arith.constant 0 : i32
    %c0_i32_1 = arith.constant 0 : i32
    return %c0_i32, %c0_i32_0 : i32, i32
  }
  func.func @transform_4(%arg0: i32) -> (i32, i32) {
    %c0_i32 = arith.constant 0 : i32
    %c0_i32_0 = arith.constant 0 : i32
    %c0_i32_1 = arith.constant 0 : i32
    return %c0_i32, %c0_i32_0 : i32, i32
  }
  func.func @transform_5(%arg0: i32) -> (i32, i32) {
    %c0_i32 = arith.constant 0 : i32
    %c0_i32_0 = arith.constant 0 : i32
    %c0_i32_1 = arith.constant 0 : i32
    return %c0_i32, %c0_i32_0 : i32, i32
  }
  func.func @transform_6(%arg0: i32) -> (i32, i32) {
    %c0_i32 = arith.constant 0 : i32
    %c0_i32_0 = arith.constant 0 : i32
    %c0_i32_1 = arith.constant 0 : i32
    return %c0_i32, %c0_i32_0 : i32, i32
  }
  func.func @transform_7(%arg0: i32) -> (i32, i32, i32, i32) {
    %c0_i32 = arith.constant 0 : i32
    %c0_i32_0 = arith.constant 0 : i32
    %c0_i32_1 = arith.constant 0 : i32
    %c0_i32_2 = arith.constant 0 : i32
    return %arg0, %c0_i32, %c0_i32_0, %c0_i32_1 : i32, i32, i32, i32
  }
}

</mosaic_0001>

<llo_original>
// kernel: tpu_custom_call.1
$region0: #{tpu_custom_call.1}
  #allocation0 [shape = 'u32[]', space=smem, size = 0x4, offset = 0x4, fixed_abs, tag = 'smem constant byte address 0x4 - core index']
  #allocation1 [shape = 'u32[144,128]{1,0:T(1,128)}', space=vmem, size = 0x12000, scoped, tag = 'internal scratch']
  #allocation2 [shape = 'bf16[448,128]{1,0:T(16,128)(2,1)}', space=vmem, size = 0x1c000, scoped, tag = 'scratch operand']
  #allocation3 [shape = 'bf16[448,128]{1,0:T(16,128)(2,1)}', space=vmem, size = 0x1c000, scoped, tag = 'scratch operand']
  #allocation4 [shape = 'bf16[384,1152]{1,0:T(16,128)(2,1)}', space=vmem, size = 0xd8000, scoped, tag = 'scratch operand']
  %s0 = inlined_call_operand.hbm [shape: bf16[2,16,16,128], index: 0, kind: input, shape index: {}]
  %s1 = inlined_call_operand.hbm [shape: bf16[1152,128], index: 1, kind: input, shape index: {}]
  %s2 = inlined_call_operand.vmem [shape: f32[1,128], index: 2, kind: input, shape index: {}]
  %s3 = inlined_call_operand.vmem [shape: f32[1,128], index: 3, kind: input, shape index: {}]
  %s4 = inlined_call_operand.hbm [shape: bf16[1152,128], index: 4, kind: input, shape index: {}]
  %s5 = inlined_call_operand.vmem [shape: f32[1,128], index: 5, kind: input, shape index: {}]
  %s6 = inlined_call_operand.vmem [shape: f32[1,128], index: 6, kind: input, shape index: {}]
  %s7 = inlined_call_operand.hbm [shape: bf16[2,16,16,128], index: 7, kind: output, shape index: {}]
  %s8 = sld [smem:[#allocation0]]
  $region73: #{tpu_custom_call.1} parent=0
    _
  %s10 = ssub.s32 1, %s8
  %s11 = scalar_select 0, %s10, %s8
  $region1: #{tpu_custom_call.1} parent=0
    #allocation5 [shape = 'u8[131072]{0}', space=vmem, size = 0x20000, scoped, tag = 'input window, operand 0']
    #allocation6 [shape = 's32[2]{0}', space=sflag, size = 0x8, scoped, tag = 'scoped memory for tpu_custom_call.1']
    #allocation7 [shape = 's32[2]{0}', space=sflag, size = 0x8, scoped, tag = 'scoped memory for tpu_custom_call.1']
    #allocation8 [shape = 'u8[294912]{0}', space=vmem, size = 0x48000, scoped, tag = 'input window, operand 1, single buffered']
    #allocation9 [shape = 's32[1]{0}', space=sflag, size = 0x4, scoped, tag = 'scoped memory for tpu_custom_call.1']
    #allocation10 [shape = 'u8[294912]{0}', space=vmem, size = 0x48000, scoped, tag = 'input window, operand 4, single buffered']
    #allocation11 [shape = 'u8[131072]{0}', space=vmem, size = 0x20000, scoped, tag = 'output window, operand 0']
    %12 = vsyncpa [#allocation6], 0
    %s13 = scalar_lea.sflag [#allocation6], 1
    %14 = vsyncpa %s13, 0
    %15 = vsyncpa [#allocation9], 0
    %16 = vsyncpa [#allocation7], 0
    %s17 = scalar_lea.sflag [#allocation7], 1
    %18 = vsyncpa %s17, 0
    loop: start=0, step=1, limit=4
    $region2: #{tpu_custom_call.1} parent=1 // loop_pre_header
      _
    $region3: #{tpu_custom_call.1} parent=1 // loop_header
      %s20 = sphi 0, %s24
      %p21 = scmp.ge.s32.totalorder %s20, 4
      %s30 = sphi 0, %s32
      %s33 = sphi 0, %s30
      %s34 = sphi 0, %s33
      %s50 = sphi 0, %s34
      %s54 = sphi 0, %s54
      %s56 = sphi 0, %s54
      %s57 = sphi 0, %s56
      %s71 = sphi 0, %s57
      %s75 = sphi 0, %s75
      %s77 = sphi 0, %s75
      %s78 = sphi 0, %s77
      %s92 = sphi 0, %s78
      %s96 = sphi 0, %s96
      %s98 = sphi 0, %s96
      %s99 = sphi 0, %s98
      %s113 = sphi 0, %s99
      %s117 = sphi 0, %s117
      %s119 = sphi 0, %s117
      %s120 = sphi 0, %s119
      %s134 = sphi 0, %s120
      %s138 = sphi 0, %s138
      %s140 = sphi 0, %s138
      %s141 = sphi 0, %s140
      %s155 = sphi 0, %s141
      %s159 = sphi 0, %s159
      %s161 = sphi 0, %s159
      %s162 = sphi 0, %s161
      %s176 = sphi 0, %s162
      %s182 = sphi 0, %s184
      %s185 = sphi 0, %s182
      %s186 = sphi 0, %s185
      %s202 = sphi 0, %s186
    $region4: #{tpu_custom_call.1} parent=1 // loop_header_branch
      %23 = sbr.rel (%p21) target = $region8
    $region5: #{tpu_custom_call.1} parent=1 // loop_body
      %s25 = ssub.s32 %s20, 1
      %s26 = ssub.s32 %s20, 2
      %s27 = sadd.s32 %s20, 1
      %s28 = ssub.s32 %s20, %s27
      %p29 = scmp.eq.s32.totalorder %s28, 0
      %s31 = sadd.s32 %s30, 1
      %s32 = scalar_select %p29, %s30, %s31
      %p35 = pneg %p29
      %p36 = scmp.eq.s32.totalorder %s20, 1
      %p37 = por %p35, %p36
      %p38 = scmp.ne.s32.totalorder %s30, %s33
      %p39 = scmp.eq.s32.totalorder %s20, 0
      %p40 = por %p38, %p39
      %p41 = scmp.ne.s32.totalorder %s30, %s33
      %p42 = scmp.eq.s32.totalorder %s25, 1
      %p43 = por %p41, %p42
      %p44 = scmp.ne.s32.totalorder %s33, %s34
      %p45 = scmp.eq.s32.totalorder %s25, 0
      %p46 = por %p44, %p45
      %p47 = scmp.ne.s32.totalorder %s33, %s34
      %p48 = scmp.eq.s32.totalorder %s26, 1
      %p49 = por %p47, %p48
      %p51 = scmp.ne.s32.totalorder %s34, %s50
      %p52 = scmp.eq.s32.totalorder %s26, 0
      %p53 = por %p51, %p52
      %s55 = sadd.s32 %s54, 1
      %p58 = scmp.eq.s32.totalorder %s20, 1
      %p59 = scmp.ne.s32.totalorder %s54, %s56
      %p60 = scmp.eq.s32.totalorder %s20, 0
      %p61 = por %p59, %p60
      %p62 = scmp.ne.s32.totalorder %s54, %s56
      %p63 = scmp.eq.s32.totalorder %s25, 1
      %p64 = por %p62, %p63
      %p65 = scmp.ne.s32.totalorder %s56, %s57
      %p66 = scmp.eq.s32.totalorder %s25, 0
      %p67 = por %p65, %p66
      %p68 = scmp.ne.s32.totalorder %s56, %s57
      %p69 = scmp.eq.s32.totalorder %s26, 1
      %p70 = por %p68, %p69
      %p72 = scmp.ne.s32.totalorder %s57, %s71
      %p73 = scmp.eq.s32.totalorder %s26, 0
      %p74 = por %p72, %p73
      %s76 = sadd.s32 %s75, 1
      %p79 = scmp.eq.s32.totalorder %s20, 1
      %p80 = scmp.ne.s32.totalorder %s75, %s77
      %p81 = scmp.eq.s32.totalorder %s20, 0
      %p82 = por %p80, %p81
      %p83 = scmp.ne.s32.totalorder %s75, %s77
      %p84 = scmp.eq.s32.totalorder %s25, 1
      %p85 = por %p83, %p84
      %p86 = scmp.ne.s32.totalorder %s77, %s78
      %p87 = scmp.eq.s32.totalorder %s25, 0
      %p88 = por %p86, %p87
      %p89 = scmp.ne.s32.totalorder %s77, %s78
      %p90 = scmp.eq.s32.totalorder %s26, 1
      %p91 = por %p89, %p90
      %p93 = scmp.ne.s32.totalorder %s78, %s92
      %p94 = scmp.eq.s32.totalorder %s26, 0
      %p95 = por %p93, %p94
      %s97 = sadd.s32 %s96, 1
      %p100 = scmp.eq.s32.totalorder %s20, 1
      %p101 = scmp.ne.s32.totalorder %s96, %s98
      %p102 = scmp.eq.s32.totalorder %s20, 0
      %p103 = por %p101, %p102
      %p104 = scmp.ne.s32.totalorder %s96, %s98
      %p105 = scmp.eq.s32.totalorder %s25, 1
      %p106 = por %p104, %p105
      %p107 = scmp.ne.s32.totalorder %s98, %s99
      %p108 = scmp.eq.s32.totalorder %s25, 0
      %p109 = por %p107, %p108
      %p110 = scmp.ne.s32.totalorder %s98, %s99
      %p111 = scmp.eq.s32.totalorder %s26, 1
      %p112 = por %p110, %p111
      %p114 = scmp.ne.s32.totalorder %s99, %s113
      %p115 = scmp.eq.s32.totalorder %s26, 0
      %p116 = por %p114, %p115
      %s118 = sadd.s32 %s117, 1
      %p121 = scmp.eq.s32.totalorder %s20, 1
      %p122 = scmp.ne.s32.totalorder %s117, %s119
      %p123 = scmp.eq.s32.totalorder %s20, 0
      %p124 = por %p122, %p123
      %p125 = scmp.ne.s32.totalorder %s117, %s119
      %p126 = scmp.eq.s32.totalorder %s25, 1
      %p127 = por %p125, %p126
      %p128 = scmp.ne.s32.totalorder %s119, %s120
      %p129 = scmp.eq.s32.totalorder %s25, 0
      %p130 = por %p128, %p129
      %p131 = scmp.ne.s32.totalorder %s119, %s120
      %p132 = scmp.eq.s32.totalorder %s26, 1
      %p133 = por %p131, %p132
      %p135 = scmp.ne.s32.totalorder %s120, %s134
      %p136 = scmp.eq.s32.totalorder %s26, 0
      %p137 = por %p135, %p136
      %s139 = sadd.s32 %s138, 1
      %p142 = scmp.eq.s32.totalorder %s20, 1
      %p143 = scmp.ne.s32.totalorder %s138, %s140
      %p144 = scmp.eq.s32.totalorder %s20, 0
      %p145 = por %p143, %p144
      %p146 = scmp.ne.s32.totalorder %s138, %s140
      %p147 = scmp.eq.s32.totalorder %s25, 1
      %p148 = por %p146, %p147
      %p149 = scmp.ne.s32.totalorder %s140, %s141
      %p150 = scmp.eq.s32.totalorder %s25, 0
      %p151 = por %p149, %p150
      %p152 = scmp.ne.s32.totalorder %s140, %s141
      %p153 = scmp.eq.s32.totalorder %s26, 1
      %p154 = por %p152, %p153
      %p156 = scmp.ne.s32.totalorder %s141, %s155
      %p157 = scmp.eq.s32.totalorder %s26, 0
      %p158 = por %p156, %p157
      %s160 = sadd.s32 %s159, 1
      %p163 = scmp.eq.s32.totalorder %s20, 1
      %p164 = scmp.ne.s32.totalorder %s159, %s161
      %p165 = scmp.eq.s32.totalorder %s20, 0
      %p166 = por %p164, %p165
      %p167 = scmp.ne.s32.totalorder %s159, %s161
      %p168 = scmp.eq.s32.totalorder %s25, 1
      %p169 = por %p167, %p168
      %p170 = scmp.ne.s32.totalorder %s161, %s162
      %p171 = scmp.eq.s32.totalorder %s25, 0
      %p172 = por %p170, %p171
      %p173 = scmp.ne.s32.totalorder %s161, %s162
      %p174 = scmp.eq.s32.totalorder %s26, 1
      %p175 = por %p173, %p174
      %p177 = scmp.ne.s32.totalorder %s162, %s176
      %p178 = scmp.eq.s32.totalorder %s26, 0
      %p179 = por %p177, %p178
      %s180 = ssub.s32 %s20, %s27
      %p181 = scmp.eq.s32.totalorder %s180, 0
      %s183 = sadd.s32 %s182, 1
      %s184 = scalar_select %p181, %s182, %s183
      %p187 = pneg %p181
      %p188 = scmp.eq.s32.totalorder %s20, 1
      %p189 = por %p187, %p188
      %p190 = scmp.ne.s32.totalorder %s182, %s185
      %p191 = scmp.eq.s32.totalorder %s20, 0
      %p192 = por %p190, %p191
      %p193 = scmp.ne.s32.totalorder %s182, %s185
      %p194 = scmp.eq.s32.totalorder %s25, 1
      %p195 = por %p193, %p194
      %p196 = scmp.ne.s32.totalorder %s185, %s186
      %p197 = scmp.eq.s32.totalorder %s25, 0
      %p198 = por %p196, %p197
      %p199 = scmp.ne.s32.totalorder %s185, %s186
      %p200 = scmp.eq.s32.totalorder %s26, 1
      %p201 = por %p199, %p200
      %p203 = scmp.ne.s32.totalorder %s186, %s202
      %p204 = scmp.eq.s32.totalorder %s26, 0
      %p205 = por %p203, %p204
      %p206 = scmp.le.s32.totalorder 1, %s20
      %p207 = scmp.lt.s32.totalorder %s20, 3
      %p208 = pnand %p206, %p207
      %p209 = pneg %p208
      // Predicated region
      $region9: #{tpu_custom_call.1} parent=5 // pred_check
        _
      $region10: #{tpu_custom_call.1} parent=5 // pred_check_branch
        %211 = sbr.rel (%p208) target = $region12
      $region11: #{tpu_custom_call.1} parent=5 // pred_region
        %s212 = ssub.s32 %s20, 1
        // Predicated region
        $region13: #{tpu_custom_call.1} parent=11 // pred_check
          %p213 = pneg %p67
        $region14: #{tpu_custom_call.1} parent=11 // pred_check_branch
          %215 = sbr.rel (%p213) target = $region16
        $region15: #{tpu_custom_call.1} parent=11 // pred_region
          %s217 = ssub.s32 9216, 9216
          %218 = vsyncadd [#allocation9], %s217
          %s219 = sshll.u32 [#allocation8], 4
          %s220 = int_to_ptr.vmem [resolvable:$true] %s219
          %225 = dma.hbm_to_vmem [thread:$0]  %s1, 9216, %s220, [#allocation9], 64, 64, 4
        $region16: #{tpu_custom_call.1} parent=11 // pred_fallthru
          _
        // Predicated region
        $region17: #{tpu_custom_call.1} parent=11 // pred_check
          %p226 = pneg %p88
        $region18: #{tpu_custom_call.1} parent=11 // pred_check_branch
          %228 = sbr.rel (%p226) target = $region20
        $region19: #{tpu_custom_call.1} parent=11 // pred_region
          _
        $region20: #{tpu_custom_call.1} parent=11 // pred_fallthru
          _
        // Predicated region
        $region21: #{tpu_custom_call.1} parent=11 // pred_check
          %p229 = pneg %p109
        $region22: #{tpu_custom_call.1} parent=11 // pred_check_branch
          %231 = sbr.rel (%p229) target = $region24
        $region23: #{tpu_custom_call.1} parent=11 // pred_region
          _
        $region24: #{tpu_custom_call.1} parent=11 // pred_fallthru
          _
        // Predicated region
        $region25: #{tpu_custom_call.1} parent=11 // pred_check
          %p232 = pneg %p130
        $region26: #{tpu_custom_call.1} parent=11 // pred_check_branch
          %234 = sbr.rel (%p232) target = $region28
        $region27: #{tpu_custom_call.1} parent=11 // pred_region
          %s236 = ssub.s32 9216, 9216
          %237 = vsyncadd [#allocation9], %s236
          %s238 = sshll.u32 [#allocation10], 4
          %s239 = int_to_ptr.vmem [resolvable:$true] %s238
          %244 = dma.hbm_to_vmem [thread:$0]  %s4, 9216, %s239, [#allocation9], 64, 64, 4
        $region28: #{tpu_custom_call.1} parent=11 // pred_fallthru
          _
        // Predicated region
        $region29: #{tpu_custom_call.1} parent=11 // pred_check
          %p245 = pneg %p151
        $region30: #{tpu_custom_call.1} parent=11 // pred_check_branch
          %247 = sbr.rel (%p245) target = $region32
        $region31: #{tpu_custom_call.1} parent=11 // pred_region
          _
        $region32: #{tpu_custom_call.1} parent=11 // pred_fallthru
          _
        // Predicated region
        $region33: #{tpu_custom_call.1} parent=11 // pred_check
          %p248 = pneg %p172
        $region34: #{tpu_custom_call.1} parent=11 // pred_check_branch
          %250 = sbr.rel (%p248) target = $region36
        $region35: #{tpu_custom_call.1} parent=11 // pred_region
          _
        $region36: #{tpu_custom_call.1} parent=11 // pred_fallthru
          _
      $region12: #{tpu_custom_call.1} parent=5 // pred_fallthru
        _
      %p251 = scmp.lt.s32.totalorder %s20, 2
      // Predicated region
      $region37: #{tpu_custom_call.1} parent=5 // pred_check
        %p252 = pneg %p251
      $region38: #{tpu_custom_call.1} parent=5 // pred_check_branch
        %254 = sbr.rel (%p252) target = $region40
      $region39: #{tpu_custom_call.1} parent=5 // pred_region
        // Predicated region
        $region41: #{tpu_custom_call.1} parent=39 // pred_check
          %p255 = pneg %p40
        $region42: #{tpu_custom_call.1} parent=39 // pred_check_branch
          %257 = sbr.rel (%p255) target = $region44
        $region43: #{tpu_custom_call.1} parent=39 // pred_region
          %s258 = sand.u32 %s30, 1
          %s259 = scalar_lea.sflag [#allocation6], %s258
          %s260 = sand.u32 %s30, 1
          %s261 = smul.addr %s260, 128
          %s262 = scalar_lea.vmem [#allocation5], %s261
          %s264 = ssub.s32 2048, 2048
          %265 = vsyncadd %s259, %s264
          %s266 = smul.addr %s20, 32
          %s267 = smul.addr %s266, 64
          %s268 = scalar_lea.hbm %s0, %s267
          %s269 = sshll.u32 %s262, 4
          %s270 = int_to_ptr.vmem [resolvable:$true] %s269
          %275 = dma.hbm_to_vmem [thread:$0]  %s268, 2048, %s270, %s259, 64, 64, 4
        $region44: #{tpu_custom_call.1} parent=39 // pred_fallthru
          _
      $region40: #{tpu_custom_call.1} parent=5 // pred_fallthru
        _
      %p276 = scmp.le.s32.totalorder 1, %s20
      %p277 = scmp.lt.s32.totalorder %s20, 3
      %p278 = pnand %p276, %p277
      %p279 = pneg %p278
      // Predicated region
      $region45: #{tpu_custom_call.1} parent=5 // pred_check
        _
      $region46: #{tpu_custom_call.1} parent=5 // pred_check_branch
        %281 = sbr.rel (%p278) target = $region48
      $region47: #{tpu_custom_call.1} parent=5 // pred_region
        %s282 = ssub.s32 %s20, 1
        %s283 = sand.u32 %s33, 1
        %s284 = scalar_lea.sflag [#allocation6], %s283
        %s285 = sand.u32 %s33, 1
        %s286 = smul.addr %s285, 128
        %s287 = scalar_lea.vmem [#allocation5], %s286
        // Predicated region
        $region49: #{tpu_custom_call.1} parent=47 // pred_check
          %p288 = pneg %p46
        $region50: #{tpu_custom_call.1} parent=47 // pred_check_branch
          %290 = sbr.rel (%p288) target = $region52
        $region51: #{tpu_custom_call.1} parent=47 // pred_region
          %291 = dma.done %s284, 2048
        $region52: #{tpu_custom_call.1} parent=47 // pred_fallthru
          _
        // Predicated region
        $region53: #{tpu_custom_call.1} parent=47 // pred_check
          %p292 = pneg %p67
        $region54: #{tpu_custom_call.1} parent=47 // pred_check_branch
          %294 = sbr.rel (%p292) target = $region56
        $region55: #{tpu_custom_call.1} parent=47 // pred_region
          %295 = dma.done [#allocation9], 9216
        $region56: #{tpu_custom_call.1} parent=47 // pred_fallthru
          _
        // Predicated region
        $region57: #{tpu_custom_call.1} parent=47 // pred_check
          %p296 = pneg %p130
        $region58: #{tpu_custom_call.1} parent=47 // pred_check_branch
          %298 = sbr.rel (%p296) target = $region60
        $region59: #{tpu_custom_call.1} parent=47 // pred_region
          %299 = dma.done [#allocation9], 9216
        $region60: #{tpu_custom_call.1} parent=47 // pred_fallthru
          _
        %s300 = sand.u32 %s33, 1
        %s301 = scalar_lea.sflag [#allocation6], %s300
        %s302 = sand.u32 %s33, 1
        %s303 = smul.addr %s302, 128
        %s304 = scalar_lea.vmem [#allocation5], %s303
        %p305 = pneg %p46
        %p306 = pneg %p43
        %p307 = pneg %p67
        %p308 = pneg %p64
        %p309 = pneg %p88
        %p310 = pneg %p85
        %p311 = pneg %p109
        %p312 = pneg %p106
        %p313 = pneg %p130
        %p314 = pneg %p127
        %p315 = pneg %p151
        %p316 = pneg %p148
        %p317 = pneg %p172
        %p318 = pneg %p169
        %p319 = pneg %p198
        %p320 = pneg %p195
        %s321 = sand.u32 %s185, 1
        %s322 = scalar_lea.sflag [#allocation7], %s321
        %s323 = sand.u32 %s185, 1
        %s324 = smul.addr %s323, 128
        %s325 = scalar_lea.vmem [#allocation11], %s324
        %327 = vst [vmem:[#allocation2] sm:$0xff] 0
        %328 = vst [vmem:[#allocation2 + $0x8] sm:$0xff] 0
        %329 = vst [vmem:[#allocation2 + $0xd0] sm:$0xff] 0
        %330 = vst [vmem:[#allocation2 + $0xd8] sm:$0xff] 0
        %331 = vst [vmem:[#allocation3] sm:$0xff] 0
        %332 = vst [vmem:[#allocation3 + $0x8] sm:$0xff] 0
        %333 = vst [vmem:[#allocation3 + $0xd0] sm:$0xff] 0
        %334 = vst [vmem:[#allocation3 + $0xd8] sm:$0xff] 0
        %v335 = vlaneseq
        %v336 = vshrl.u32 %v335, 7
        %v337 = vadd.s32 %v336, 8
        %v338 = vadd.s32 %v336, 16
        %vm339 = vcmp.lt.s32.totalorder %v336, 16
        %vm340 = vcmp.lt.s32.totalorder %v337, 16
        %vm341 = vcmp.lt.s32.totalorder %v338, 16
        %v342 = vld [vmem:[%s287] sm:$0xf]
        %v343 = vld [vmem:[%s287 + $0x4] sm:$0xf]
        %v344 = vld [vmem:[%s287 + $0x8] sm:$0xf]
        %v345 = vld [vmem:[%s287 + $0xc] sm:$0xf]
        %v346 = vld [vmem:[%s287 + $0x10] sm:$0xf]
        %v347 = vld [vmem:[%s287 + $0x14] sm:$0xf]
        %v348 = vld [vmem:[%s287 + $0x18] sm:$0xf]
        %v349 = vld [vmem:[%s287 + $0x1c] sm:$0xf]
        %v350 = vld [vmem:[%s287 + $0x20] sm:$0xf]
        %v351 = vld [vmem:[%s287 + $0x24] sm:$0xf]
        %v352 = vld [vmem:[%s287 + $0x28] sm:$0xf]
        %v353 = vld [vmem:[%s287 + $0x2c] sm:$0xf]
        %v354 = vld [vmem:[%s287 + $0x30] sm:$0xf]
        %v355 = vld [vmem:[%s287 + $0x34] sm:$0xf]
        %v356 = vld [vmem:[%s287 + $0x38] sm:$0xf]
        %v357 = vld [vmem:[%s287 + $0x3c] sm:$0xf]
        %v358 = vld [vmem:[%s287 + $0x40] sm:$0xf]
        %v359 = vld [vmem:[%s287 + $0x44] sm:$0xf]
        %v360 = vld [vmem:[%s287 + $0x48] sm:$0xf]
        %v361 = vld [vmem:[%s287 + $0x4c] sm:$0xf]
        %v362 = vld [vmem:[%s287 + $0x50] sm:$0xf]
        %v363 = vld [vmem:[%s287 + $0x54] sm:$0xf]
        %v364 = vld [vmem:[%s287 + $0x58] sm:$0xf]
        %v365 = vld [vmem:[%s287 + $0x5c] sm:$0xf]
        %v366 = vld [vmem:[%s287 + $0x60] sm:$0xf]
        %v367 = vld [vmem:[%s287 + $0x64] sm:$0xf]
        %v368 = vld [vmem:[%s287 + $0x68] sm:$0xf]
        %v369 = vld [vmem:[%s287 + $0x6c] sm:$0xf]
        %v370 = vld [vmem:[%s287 + $0x70] sm:$0xf]
        %v371 = vld [vmem:[%s287 + $0x74] sm:$0xf]
        %v372 = vld [vmem:[%s287 + $0x78] sm:$0xf]
        %v373 = vld [vmem:[%s287 + $0x7c] sm:$0xf]
        %v406 = vunpack.c.l.b16 %v342
        %v407 = vunpack.c.l.b16 %v343
        %v408 = vunpack.c.l.b16 %v344
        %v409 = vunpack.c.l.b16 %v345
        %v410 = vunpack.c.l.b16 %v346
        %v411 = vunpack.c.l.b16 %v347
        %v412 = vunpack.c.l.b16 %v348
        %v413 = vunpack.c.l.b16 %v349
        %v414 = vunpack.c.l.b16 %v350
        %v415 = vunpack.c.l.b16 %v351
        %v416 = vunpack.c.l.b16 %v352
        %v417 = vunpack.c.l.b16 %v353
        %v418 = vunpack.c.l.b16 %v354
        %v419 = vunpack.c.l.b16 %v355
        %v420 = vunpack.c.l.b16 %v356
        %v421 = vunpack.c.l.b16 %v357
        %v422 = vunpack.c.l.b16 %v358
        %v423 = vunpack.c.l.b16 %v359
        %v424 = vunpack.c.l.b16 %v360
        %v425 = vunpack.c.l.b16 %v361
        %v426 = vunpack.c.l.b16 %v362
        %v427 = vunpack.c.l.b16 %v363
        %v428 = vunpack.c.l.b16 %v364
        %v429 = vunpack.c.l.b16 %v365
        %v430 = vunpack.c.l.b16 %v366
        %v431 = vunpack.c.l.b16 %v367
        %v432 = vunpack.c.l.b16 %v368
        %v433 = vunpack.c.l.b16 %v369
        %v434 = vunpack.c.l.b16 %v370
        %v435 = vunpack.c.l.b16 %v371
        %v436 = vunpack.c.l.b16 %v372
        %v437 = vunpack.c.l.b16 %v373
        %v439 = vunpack.c.l.b16 0
        %v440 = vpack.c.b16 %v407, %v406
        %v441 = vpack.c.b16 %v408, %v439
        %v442 = vpack.c.b16 %v439, %v409
        %v443 = vpack.c.b16 %v411, %v410
        %v444 = vpack.c.b16 %v412, %v439
        %v445 = vpack.c.b16 %v439, %v413
        %v446 = vpack.c.b16 %v415, %v414
        %v447 = vpack.c.b16 %v416, %v439
        %v448 = vpack.c.b16 %v439, %v417
        %v449 = vpack.c.b16 %v419, %v418
        %v450 = vpack.c.b16 %v420, %v439
        %v451 = vpack.c.b16 %v439, %v421
        %v452 = vpack.c.b16 %v423, %v422
        %v453 = vpack.c.b16 %v424, %v439
        %v454 = vpack.c.b16 %v439, %v425
        %v455 = vpack.c.b16 %v427, %v426
        %v456 = vpack.c.b16 %v428, %v439
        %v457 = vpack.c.b16 %v439, %v429
        %v458 = vpack.c.b16 %v431, %v430
        %v459 = vpack.c.b16 %v432, %v439
        %v460 = vpack.c.b16 %v439, %v433
        %v461 = vpack.c.b16 %v435, %v434
        %v462 = vpack.c.b16 %v436, %v439
        %v463 = vpack.c.b16 %v439, %v437
        %488 = vst [vmem:[#allocation2 + $0x10] sm:$0xff] %v440
        %489 = vst [vmem:[#allocation2 + $0x18] sm:$0xff] %v441
        %490 = vst [vmem:[#allocation2 + $0x20] sm:$0xff] %v442
        %491 = vst [vmem:[#allocation2 + $0x28] sm:$0xff] %v443
        %492 = vst [vmem:[#allocation2 + $0x30] sm:$0xff] %v444
        %493 = vst [vmem:[#allocation2 + $0x38] sm:$0xff] %v445
        %494 = vst [vmem:[#allocation2 + $0x40] sm:$0xff] %v446
        %495 = vst [vmem:[#allocation2 + $0x48] sm:$0xff] %v447
        %496 = vst [vmem:[#allocation2 + $0x50] sm:$0xff] %v448
        %497 = vst [vmem:[#allocation2 + $0x58] sm:$0xff] %v449
        %498 = vst [vmem:[#allocation2 + $0x60] sm:$0xff] %v450
        %499 = vst [vmem:[#allocation2 + $0x68] sm:$0xff] %v451
        %500 = vst [vmem:[#allocation2 + $0x70] sm:$0xff] %v452
        %501 = vst [vmem:[#allocation2 + $0x78] sm:$0xff] %v453
        %502 = vst [vmem:[#allocation2 + $0x80] sm:$0xff] %v454
        %503 = vst [vmem:[#allocation2 + $0x88] sm:$0xff] %v455
        %504 = vst [vmem:[#allocation2 + $0x90] sm:$0xff] %v456
        %505 = vst [vmem:[#allocation2 + $0x98] sm:$0xff] %v457
        %506 = vst [vmem:[#allocation2 + $0xa0] sm:$0xff] %v458
        %507 = vst [vmem:[#allocation2 + $0xa8] sm:$0xff] %v459
        %508 = vst [vmem:[#allocation2 + $0xb0] sm:$0xff] %v460
        %509 = vst [vmem:[#allocation2 + $0xb8] sm:$0xff] %v461
        %510 = vst [vmem:[#allocation2 + $0xc0] sm:$0xff] %v462
        %511 = vst [vmem:[#allocation2 + $0xc8] sm:$0xff] %v463
        %v512 = vld [vmem:[#allocation2] sm:$0xf8]
        %v513 = vld [vmem:[#allocation2 + $0x8] sm:$0xff]
        %v514 = vld [vmem:[#allocation2 + $0x10] sm:$0xff]
        %v515 = vld [vmem:[#allocation2 + $0x18] sm:$0xff]
        %v516 = vld [vmem:[#allocation2 + $0x20] sm:$0xff]
        %v517 = vld [vmem:[#allocation2 + $0x28] sm:$0xff]
        %v518 = vld [vmem:[#allocation2 + $0x30] sm:$0xff]
        %v519 = vld [vmem:[#allocation2 + $0x38] sm:$0xff]
        %v520 = vld [vmem:[#allocation2 + $0x40] sm:$0xff]
        %v521 = vld [vmem:[#allocation2 + $0x48] sm:$0xff]
        %v522 = vld [vmem:[#allocation2 + $0x50] sm:$0xff]
        %v523 = vld [vmem:[#allocation2 + $0x58] sm:$0xff]
        %v524 = vld [vmem:[#allocation2 + $0x60] sm:$0xff]
        %v525 = vld [vmem:[#allocation2 + $0x68] sm:$0xff]
        %v526 = vld [vmem:[#allocation2 + $0x70] sm:$0xff]
        %v527 = vld [vmem:[#allocation2 + $0x78] sm:$0xff]
        %v528 = vld [vmem:[#allocation2 + $0x80] sm:$0xff]
        %v529 = vld [vmem:[#allocation2 + $0x88] sm:$0xff]
        %v530 = vld [vmem:[#allocation2 + $0x90] sm:$0xff]
        %v531 = vld [vmem:[#allocation2 + $0x98] sm:$0xff]
        %v532 = vld [vmem:[#allocation2 + $0xa0] sm:$0xff]
        %v533 = vld [vmem:[#allocation2 + $0xa8] sm:$0xff]
        %v534 = vld [vmem:[#allocation2 + $0xb0] sm:$0xff]
        %v535 = vld [vmem:[#allocation2 + $0xb8] sm:$0xff]
        %v536 = vld [vmem:[#allocation2 + $0xc0] sm:$0xf]
        %vm537 = vsmask.f32 4352
        %v539 = vshrl.u32 %v512, 16
        %v541 = vrot.slane %v539, 3
        %v542 = vshll.u32 %v512, 16
        %v544 = vrot.slane %v542, 4
        %v545 = vor.u32 %v541, %v544
        %v547 = vshrl.u32 %v513, 16
        %v549 = vrot.slane %v547, 3
        %v550 = vshll.u32 %v513, 16
        %v552 = vrot.slane %v550, 4
        %v553 = vor.u32 %v549, %v552
        %v554 = vsel %vm537, %v545, %v553
        %v556 = vshrl.u32 %v514, 16
        %v558 = vrot.slane %v556, 3
        %v559 = vshll.u32 %v514, 16
        %v561 = vrot.slane %v559, 4
        %v562 = vor.u32 %v558, %v561
        %v563 = vsel %vm537, %v553, %v562
        %v565 = vshrl.u32 %v515, 16
        %v567 = vrot.slane %v565, 3
        %v568 = vshll.u32 %v515, 16
        %v570 = vrot.slane %v568, 4
        %v571 = vor.u32 %v567, %v570
        %v572 = vsel %vm537, %v562, %v571
        %v574 = vshrl.u32 %v516, 16
        %v576 = vrot.slane %v574, 3
        %v577 = vshll.u32 %v516, 16
        %v579 = vrot.slane %v577, 4
        %v580 = vor.u32 %v576, %v579
        %v581 = vsel %vm537, %v571, %v580
        %v583 = vshrl.u32 %v517, 16
        %v585 = vrot.slane %v583, 3
        %v586 = vshll.u32 %v517, 16
        %v588 = vrot.slane %v586, 4
        %v589 = vor.u32 %v585, %v588
        %v590 = vsel %vm537, %v580, %v589
        %v592 = vshrl.u32 %v518, 16
        %v594 = vrot.slane %v592, 3
        %v595 = vshll.u32 %v518, 16
        %v597 = vrot.slane %v595, 4
        %v598 = vor.u32 %v594, %v597
        %v599 = vsel %vm537, %v589, %v598
        %v601 = vshrl.u32 %v519, 16
        %v603 = vrot.slane %v601, 3
        %v604 = vshll.u32 %v519, 16
        %v606 = vrot.slane %v604, 4
        %v607 = vor.u32 %v603, %v606
        %v608 = vsel %vm537, %v598, %v607
        %v610 = vshrl.u32 %v520, 16
        %v612 = vrot.slane %v610, 3
        %v613 = vshll.u32 %v520, 16
        %v615 = vrot.slane %v613, 4
        %v616 = vor.u32 %v612, %v615
        %v617 = vsel %vm537, %v607, %v616
        %v619 = vshrl.u32 %v521, 16
        %v621 = vrot.slane %v619, 3
        %v622 = vshll.u32 %v521, 16
        %v624 = vrot.slane %v622, 4
        %v625 = vor.u32 %v621, %v624
        %v626 = vsel %vm537, %v616, %v625
        %v628 = vshrl.u32 %v522, 16
        %v630 = vrot.slane %v628, 3
        %v631 = vshll.u32 %v522, 16
        %v633 = vrot.slane %v631, 4
        %v634 = vor.u32 %v630, %v633
        %v635 = vsel %vm537, %v625, %v634
        %v637 = vshrl.u32 %v523, 16
        %v639 = vrot.slane %v637, 3
        %v640 = vshll.u32 %v523, 16
        %v642 = vrot.slane %v640, 4
        %v643 = vor.u32 %v639, %v642
        %v644 = vsel %vm537, %v634, %v643
        %v646 = vshrl.u32 %v524, 16
        %v648 = vrot.slane %v646, 3
        %v649 = vshll.u32 %v524, 16
        %v651 = vrot.slane %v649, 4
        %v652 = vor.u32 %v648, %v651
        %v653 = vsel %vm537, %v643, %v652
        %v655 = vshrl.u32 %v525, 16
        %v657 = vrot.slane %v655, 3
        %v658 = vshll.u32 %v525, 16
        %v660 = vrot.slane %v658, 4
        %v661 = vor.u32 %v657, %v660
        %v662 = vsel %vm537, %v652, %v661
        %v664 = vshrl.u32 %v526, 16
        %v666 = vrot.slane %v664, 3
        %v667 = vshll.u32 %v526, 16
        %v669 = vrot.slane %v667, 4
        %v670 = vor.u32 %v666, %v669
        %v671 = vsel %vm537, %v661, %v670
        %v673 = vshrl.u32 %v527, 16
        %v675 = vrot.slane %v673, 3
        %v676 = vshll.u32 %v527, 16
        %v678 = vrot.slane %v676, 4
        %v679 = vor.u32 %v675, %v678
        %v680 = vsel %vm537, %v670, %v679
        %v682 = vshrl.u32 %v528, 16
        %v684 = vrot.slane %v682, 3
        %v685 = vshll.u32 %v528, 16
        %v687 = vrot.slane %v685, 4
        %v688 = vor.u32 %v684, %v687
        %v689 = vsel %vm537, %v679, %v688
        %v691 = vshrl.u32 %v529, 16
        %v693 = vrot.slane %v691, 3
        %v694 = vshll.u32 %v529, 16
        %v696 = vrot.slane %v694, 4
        %v697 = vor.u32 %v693, %v696
        %v698 = vsel %vm537, %v688, %v697
        %v700 = vshrl.u32 %v530, 16
        %v702 = vrot.slane %v700, 3
        %v703 = vshll.u32 %v530, 16
        %v705 = vrot.slane %v703, 4
        %v706 = vor.u32 %v702, %v705
        %v707 = vsel %vm537, %v697, %v706
        %v709 = vshrl.u32 %v531, 16
        %v711 = vrot.slane %v709, 3
        %v712 = vshll.u32 %v531, 16
        %v714 = vrot.slane %v712, 4
        %v715 = vor.u32 %v711, %v714
        %v716 = vsel %vm537, %v706, %v715
        %v718 = vshrl.u32 %v532, 16
        %v720 = vrot.slane %v718, 3
        %v721 = vshll.u32 %v532, 16
        %v723 = vrot.slane %v721, 4
        %v724 = vor.u32 %v720, %v723
        %v725 = vsel %vm537, %v715, %v724
        %v727 = vshrl.u32 %v533, 16
        %v729 = vrot.slane %v727, 3
        %v730 = vshll.u32 %v533, 16
        %v732 = vrot.slane %v730, 4
        %v733 = vor.u32 %v729, %v732
        %v734 = vsel %vm537, %v724, %v733
        %v736 = vshrl.u32 %v534, 16
        %v738 = vrot.slane %v736, 3
        %v739 = vshll.u32 %v534, 16
        %v741 = vrot.slane %v739, 4
        %v742 = vor.u32 %v738, %v741
        %v743 = vsel %vm537, %v733, %v742
        %v745 = vshrl.u32 %v535, 16
        %v747 = vrot.slane %v745, 3
        %v748 = vshll.u32 %v535, 16
        %v750 = vrot.slane %v748, 4
        %v751 = vor.u32 %v747, %v750
        %v752 = vsel %vm537, %v742, %v751
        %v754 = vshrl.u32 %v536, 16
        %v756 = vrot.slane %v754, 3
        %v757 = vshll.u32 %v536, 16
        %v759 = vrot.slane %v757, 4
        %v760 = vor.u32 %v756, %v759
        %v761 = vsel %vm537, %v751, %v760
        %786 = vst [vmem:[#allocation4] sm:$0xff] %v554
        %787 = vst [vmem:[#allocation4 + $0x48] sm:$0xff] %v563
        %788 = vst [vmem:[#allocation4 + $0x90] sm:$0xff] %v572
        %789 = vst [vmem:[#allocation4 + $0xd8] sm:$0xff] %v581
        %790 = vst [vmem:[#allocation4 + $0x120] sm:$0xff] %v590
        %791 = vst [vmem:[#allocation4 + $0x168] sm:$0xff] %v599
        %792 = vst [vmem:[#allocation4 + $0x1b0] sm:$0xff] %v608
        %793 = vst [vmem:[#allocation4 + $0x1f8] sm:$0xff] %v617
        %794 = vst [vmem:[#allocation4 + $0x240] sm:$0xff] %v626
        %795 = vst [vmem:[#allocation4 + $0x288] sm:$0xff] %v635
        %796 = vst [vmem:[#allocation4 + $0x2d0] sm:$0xff] %v644
        %797 = vst [vmem:[#allocation4 + $0x318] sm:$0xff] %v653
        %798 = vst [vmem:[#allocation4 + $0x360] sm:$0xff] %v662
        %799 = vst [vmem:[#allocation4 + $0x3a8] sm:$0xff] %v671
        %800 = vst [vmem:[#allocation4 + $0x3f0] sm:$0xff] %v680
        %801 = vst [vmem:[#allocation4 + $0x438] sm:$0xff] %v689
        %802 = vst [vmem:[#allocation4 + $0x480] sm:$0xff] %v698
        %803 = vst [vmem:[#allocation4 + $0x4c8] sm:$0xff] %v707
        %804 = vst [vmem:[#allocation4 + $0x510] sm:$0xff] %v716
        %805 = vst [vmem:[#allocation4 + $0x558] sm:$0xff] %v725
        %806 = vst [vmem:[#allocation4 + $0x5a0] sm:$0xff] %v734
        %807 = vst [vmem:[#allocation4 + $0x5e8] sm:$0xff] %v743
        %808 = vst [vmem:[#allocation4 + $0x630] sm:$0xff] %v752
        %809 = vst [vmem:[#allocation4 + $0x678] sm:$0xff] %v761
        %v810 = vld [vmem:[#allocation2] sm:$0xf0]
        %v811 = vld [vmem:[#allocation2 + $0x8] sm:$0xff]
        %v812 = vld [vmem:[#allocation2 + $0x10] sm:$0xff]
        %v813 = vld [vmem:[#allocation2 + $0x18] sm:$0xff]
        %v814 = vld [vmem:[#allocation2 + $0x20] sm:$0xff]
        %v815 = vld [vmem:[#allocation2 + $0x28] sm:$0xff]
        %v816 = vld [vmem:[#allocation2 + $0x30] sm:$0xff]
        %v817 = vld [vmem:[#allocation2 + $0x38] sm:$0xff]
        %v818 = vld [vmem:[#allocation2 + $0x40] sm:$0xff]
        %v819 = vld [vmem:[#allocation2 + $0x48] sm:$0xff]
        %v820 = vld [vmem:[#allocation2 + $0x50] sm:$0xff]
        %v821 = vld [vmem:[#allocation2 + $0x58] sm:$0xff]
        %v822 = vld [vmem:[#allocation2 + $0x60] sm:$0xff]
        %v823 = vld [vmem:[#allocation2 + $0x68] sm:$0xff]
        %v824 = vld [vmem:[#allocation2 + $0x70] sm:$0xff]
        %v825 = vld [vmem:[#allocation2 + $0x78] sm:$0xff]
        %v826 = vld [vmem:[#allocation2 + $0x80] sm:$0xff]
        %v827 = vld [vmem:[#allocation2 + $0x88] sm:$0xff]
        %v828 = vld [vmem:[#allocation2 + $0x90] sm:$0xff]
        %v829 = vld [vmem:[#allocation2 + $0x98] sm:$0xff]
        %v830 = vld [vmem:[#allocation2 + $0xa0] sm:$0xff]
        %v831 = vld [vmem:[#allocation2 + $0xa8] sm:$0xff]
        %v832 = vld [vmem:[#allocation2 + $0xb0] sm:$0xff]
        %v833 = vld [vmem:[#allocation2 + $0xb8] sm:$0xff]
        %v834 = vld [vmem:[#allocation2 + $0xc0] sm:$0xf]
        %vm860 = vcmask 1043456
        %v861 = vrot.slane %v810, 4
        %v862 = vrot.slane %v811, 4
        %v863 = vsel %vm860, %v861, %v862
        %v864 = vrot.slane %v812, 4
        %v865 = vsel %vm860, %v862, %v864
        %v866 = vrot.slane %v813, 4
        %v867 = vsel %vm860, %v864, %v866
        %v868 = vrot.slane %v814, 4
        %v869 = vsel %vm860, %v866, %v868
        %v870 = vrot.slane %v815, 4
        %v871 = vsel %vm860, %v868, %v870
        %v872 = vrot.slane %v816, 4
        %v873 = vsel %vm860, %v870, %v872
        %v874 = vrot.slane %v817, 4
        %v875 = vsel %vm860, %v872, %v874
        %v876 = vrot.slane %v818, 4
        %v877 = vsel %vm860, %v874, %v876
        %v878 = vrot.slane %v819, 4
        %v879 = vsel %vm860, %v876, %v878
        %v880 = vrot.slane %v820, 4
        %v881 = vsel %vm860, %v878, %v880
        %v882 = vrot.slane %v821, 4
        %v883 = vsel %vm860, %v880, %v882
        %v884 = vrot.slane %v822, 4
        %v885 = vsel %vm860, %v882, %v884
        %v886 = vrot.slane %v823, 4
        %v887 = vsel %vm860, %v884, %v886
        %v888 = vrot.slane %v824, 4
        %v889 = vsel %vm860, %v886, %v888
        %v890 = vrot.slane %v825, 4
        %v891 = vsel %vm860, %v888, %v890
        %v892 = vrot.slane %v826, 4
        %v893 = vsel %vm860, %v890, %v892
        %v894 = vrot.slane %v827, 4
        %v895 = vsel %vm860, %v892, %v894
        %v896 = vrot.slane %v828, 4
        %v897 = vsel %vm860, %v894, %v896
        %v898 = vrot.slane %v829, 4
        %v899 = vsel %vm860, %v896, %v898
        %v900 = vrot.slane %v830, 4
        %v901 = vsel %vm860, %v898, %v900
        %v902 = vrot.slane %v831, 4
        %v903 = vsel %vm860, %v900, %v902
        %v904 = vrot.slane %v832, 4
        %v905 = vsel %vm860, %v902, %v904
        %v906 = vrot.slane %v833, 4
        %v907 = vsel %vm860, %v904, %v906
        %v908 = vrot.slane %v834, 4
        %v909 = vsel %vm860, %v906, %v908
        %934 = vst [vmem:[#allocation4 + $0x8] sm:$0xff] %v863
        %935 = vst [vmem:[#allocation4 + $0x50] sm:$0xff] %v865
        %936 = vst [vmem:[#allocation4 + $0x98] sm:$0xff] %v867
        %937 = vst [vmem:[#allocation4 + $0xe0] sm:$0xff] %v869
        %938 = vst [vmem:[#allocation4 + $0x128] sm:$0xff] %v871
        %939 = vst [vmem:[#allocation4 + $0x170] sm:$0xff] %v873
        %940 = vst [vmem:[#allocation4 + $0x1b8] sm:$0xff] %v875
        %941 = vst [vmem:[#allocation4 + $0x200] sm:$0xff] %v877
        %942 = vst [vmem:[#allocation4 + $0x248] sm:$0xff] %v879
        %943 = vst [vmem:[#allocation4 + $0x290] sm:$0xff] %v881
        %944 = vst [vmem:[#allocation4 + $0x2d8] sm:$0xff] %v883
        %945 = vst [vmem:[#allocation4 + $0x320] sm:$0xff] %v885
        %946 = vst [vmem:[#allocation4 + $0x368] sm:$0xff] %v887
        %947 = vst [vmem:[#allocation4 + $0x3b0] sm:$0xff] %v889
        %948 = vst [vmem:[#allocation4 + $0x3f8] sm:$0xff] %v891
        %949 = vst [vmem:[#allocation4 + $0x440] sm:$0xff] %v893
        %950 = vst [vmem:[#allocation4 + $0x488] sm:$0xff] %v895
        %951 = vst [vmem:[#allocation4 + $0x4d0] sm:$0xff] %v897
        %952 = vst [vmem:[#allocation4 + $0x518] sm:$0xff] %v899
        %953 = vst [vmem:[#allocation4 + $0x560] sm:$0xff] %v901
        %954 = vst [vmem:[#allocation4 + $0x5a8] sm:$0xff] %v903
        %955 = vst [vmem:[#allocation4 + $0x5f0] sm:$0xff] %v905
        %956 = vst [vmem:[#allocation4 + $0x638] sm:$0xff] %v907
        %957 = vst [vmem:[#allocation4 + $0x680] sm:$0xff] %v909
        %v958 = vld [vmem:[#allocation2] sm:$0xf0]
        %v959 = vld [vmem:[#allocation2 + $0x8] sm:$0xff]
        %v960 = vld [vmem:[#allocation2 + $0x10] sm:$0xff]
        %v961 = vld [vmem:[#allocation2 + $0x18] sm:$0xff]
        %v962 = vld [vmem:[#allocation2 + $0x20] sm:$0xff]
        %v963 = vld [vmem:[#allocation2 + $0x28] sm:$0xff]
        %v964 = vld [vmem:[#allocation2 + $0x30] sm:$0xff]
        %v965 = vld [vmem:[#allocation2 + $0x38] sm:$0xff]
        %v966 = vld [vmem:[#allocation2 + $0x40] sm:$0xff]
        %v967 = vld [vmem:[#allocation2 + $0x48] sm:$0xff]
        %v968 = vld [vmem:[#allocation2 + $0x50] sm:$0xff]
        %v969 = vld [vmem:[#allocation2 + $0x58] sm:$0xff]
        %v970 = vld [vmem:[#allocation2 + $0x60] sm:$0xff]
        %v971 = vld [vmem:[#allocation2 + $0x68] sm:$0xff]
        %v972 = vld [vmem:[#allocation2 + $0x70] sm:$0xff]
        %v973 = vld [vmem:[#allocation2 + $0x78] sm:$0xff]
        %v974 = vld [vmem:[#allocation2 + $0x80] sm:$0xff]
        %v975 = vld [vmem:[#allocation2 + $0x88] sm:$0xff]
        %v976 = vld [vmem:[#allocation2 + $0x90] sm:$0xff]
        %v977 = vld [vmem:[#allocation2 + $0x98] sm:$0xff]
        %v978 = vld [vmem:[#allocation2 + $0xa0] sm:$0xff]
        %v979 = vld [vmem:[#allocation2 + $0xa8] sm:$0xff]
        %v980 = vld [vmem:[#allocation2 + $0xb0] sm:$0xff]
        %v981 = vld [vmem:[#allocation2 + $0xb8] sm:$0xff]
        %v982 = vld [vmem:[#allocation2 + $0xc0] sm:$0x1f]
        %vm983 = vsmask.f32 3328
        %v985 = vshrl.u32 %v958, 16
        %v987 = vrot.slane %v985, 4
        %v988 = vshll.u32 %v958, 16
        %v990 = vrot.slane %v988, 5
        %v991 = vor.u32 %v987, %v990
        %v993 = vshrl.u32 %v959, 16
        %v995 = vrot.slane %v993, 4
        %v996 = vshll.u32 %v959, 16
        %v998 = vrot.slane %v996, 5
        %v999 = vor.u32 %v995, %v998
        %v1000 = vsel %vm983, %v991, %v999
        %v1002 = vshrl.u32 %v960, 16
        %v1004 = vrot.slane %v1002, 4
        %v1005 = vshll.u32 %v960, 16
        %v1007 = vrot.slane %v1005, 5
        %v1008 = vor.u32 %v1004, %v1007
        %v1009 = vsel %vm983, %v999, %v1008
        %v1011 = vshrl.u32 %v961, 16
        %v1013 = vrot.slane %v1011, 4
        %v1014 = vshll.u32 %v961, 16
        %v1016 = vrot.slane %v1014, 5
        %v1017 = vor.u32 %v1013, %v1016
        %v1018 = vsel %vm983, %v1008, %v1017
        %v1020 = vshrl.u32 %v962, 16
        %v1022 = vrot.slane %v1020, 4
        %v1023 = vshll.u32 %v962, 16
        %v1025 = vrot.slane %v1023, 5
        %v1026 = vor.u32 %v1022, %v1025
        %v1027 = vsel %vm983, %v1017, %v1026
        %v1029 = vshrl.u32 %v963, 16
        %v1031 = vrot.slane %v1029, 4
        %v1032 = vshll.u32 %v963, 16
        %v1034 = vrot.slane %v1032, 5
        %v1035 = vor.u32 %v1031, %v1034
        %v1036 = vsel %vm983, %v1026, %v1035
        %v1038 = vshrl.u32 %v964, 16
        %v1040 = vrot.slane %v1038, 4
        %v1041 = vshll.u32 %v964, 16
        %v1043 = vrot.slane %v1041, 5
        %v1044 = vor.u32 %v1040, %v1043
        %v1045 = vsel %vm983, %v1035, %v1044
        %v1047 = vshrl.u32 %v965, 16
        %v1049 = vrot.slane %v1047, 4
        %v1050 = vshll.u32 %v965, 16
        %v1052 = vrot.slane %v1050, 5
        %v1053 = vor.u32 %v1049, %v1052
        %v1054 = vsel %vm983, %v1044, %v1053
        %v1056 = vshrl.u32 %v966, 16
        %v1058 = vrot.slane %v1056, 4
        %v1059 = vshll.u32 %v966, 16
        %v1061 = vrot.slane %v1059, 5
        %v1062 = vor.u32 %v1058, %v1061
        %v1063 = vsel %vm983, %v1053, %v1062
        %v1065 = vshrl.u32 %v967, 16
        %v1067 = vrot.slane %v1065, 4
        %v1068 = vshll.u32 %v967, 16
        %v1070 = vrot.slane %v1068, 5
        %v1071 = vor.u32 %v1067, %v1070
        %v1072 = vsel %vm983, %v1062, %v1071
        %v1074 = vshrl.u32 %v968, 16
        %v1076 = vrot.slane %v1074, 4
        %v1077 = vshll.u32 %v968, 16
        %v1079 = vrot.slane %v1077, 5
        %v1080 = vor.u32 %v1076, %v1079
        %v1081 = vsel %vm983, %v1071, %v1080
        %v1083 = vshrl.u32 %v969, 16
        %v1085 = vrot.slane %v1083, 4
        %v1086 = vshll.u32 %v969, 16
        %v1088 = vrot.slane %v1086, 5
        %v1089 = vor.u32 %v1085, %v1088
        %v1090 = vsel %vm983, %v1080, %v1089
        %v1092 = vshrl.u32 %v970, 16
        %v1094 = vrot.slane %v1092, 4
        %v1095 = vshll.u32 %v970, 16
        %v1097 = vrot.slane %v1095, 5
        %v1098 = vor.u32 %v1094, %v1097
        %v1099 = vsel %vm983, %v1089, %v1098
        %v1101 = vshrl.u32 %v971, 16
        %v1103 = vrot.slane %v1101, 4
        %v1104 = vshll.u32 %v971, 16
        %v1106 = vrot.slane %v1104, 5
        %v1107 = vor.u32 %v1103, %v1106
        %v1108 = vsel %vm983, %v1098, %v1107
        %v1110 = vshrl.u32 %v972, 16
        %v1112 = vrot.slane %v1110, 4
        %v1113 = vshll.u32 %v972, 16
        %v1115 = vrot.slane %v1113, 5
        %v1116 = vor.u32 %v1112, %v1115
        %v1117 = vsel %vm983, %v1107, %v1116
        %v1119 = vshrl.u32 %v973, 16
        %v1121 = vrot.slane %v1119, 4
        %v1122 = vshll.u32 %v973, 16
        %v1124 = vrot.slane %v1122, 5
        %v1125 = vor.u32 %v1121, %v1124
        %v1126 = vsel %vm983, %v1116, %v1125
        %v1128 = vshrl.u32 %v974, 16
        %v1130 = vrot.slane %v1128, 4
        %v1131 = vshll.u32 %v974, 16
        %v1133 = vrot.slane %v1131, 5
        %v1134 = vor.u32 %v1130, %v1133
        %v1135 = vsel %vm983, %v1125, %v1134
        %v1137 = vshrl.u32 %v975, 16
        %v1139 = vrot.slane %v1137, 4
        %v1140 = vshll.u32 %v975, 16
        %v1142 = vrot.slane %v1140, 5
        %v1143 = vor.u32 %v1139, %v1142
        %v1144 = vsel %vm983, %v1134, %v1143
        %v1146 = vshrl.u32 %v976, 16
        %v1148 = vrot.slane %v1146, 4
        %v1149 = vshll.u32 %v976, 16
        %v1151 = vrot.slane %v1149, 5
        %v1152 = vor.u32 %v1148, %v1151
        %v1153 = vsel %vm983, %v1143, %v1152
        %v1155 = vshrl.u32 %v977, 16
        %v1157 = vrot.slane %v1155, 4
        %v1158 = vshll.u32 %v977, 16
        %v1160 = vrot.slane %v1158, 5
        %v1161 = vor.u32 %v1157, %v1160
        %v1162 = vsel %vm983, %v1152, %v1161
        %v1164 = vshrl.u32 %v978, 16
        %v1166 = vrot.slane %v1164, 4
        %v1167 = vshll.u32 %v978, 16
        %v1169 = vrot.slane %v1167, 5
        %v1170 = vor.u32 %v1166, %v1169
        %v1171 = vsel %vm983, %v1161, %v1170
        %v1173 = vshrl.u32 %v979, 16
        %v1175 = vrot.slane %v1173, 4
        %v1176 = vshll.u32 %v979, 16
        %v1178 = vrot.slane %v1176, 5
        %v1179 = vor.u32 %v1175, %v1178
        %v1180 = vsel %vm983, %v1170, %v1179
        %v1182 = vshrl.u32 %v980, 16
        %v1184 = vrot.slane %v1182, 4
        %v1185 = vshll.u32 %v980, 16
        %v1187 = vrot.slane %v1185, 5
        %v1188 = vor.u32 %v1184, %v1187
        %v1189 = vsel %vm983, %v1179, %v1188
        %v1191 = vshrl.u32 %v981, 16
        %v1193 = vrot.slane %v1191, 4
        %v1194 = vshll.u32 %v981, 16
        %v1196 = vrot.slane %v1194, 5
        %v1197 = vor.u32 %v1193, %v1196
        %v1198 = vsel %vm983, %v1188, %v1197
        %v1200 = vshrl.u32 %v982, 16
        %v1202 = vrot.slane %v1200, 4
        %v1203 = vshll.u32 %v982, 16
        %v1205 = vrot.slane %v1203, 5
        %v1206 = vor.u32 %v1202, %v1205
        %v1207 = vsel %vm983, %v1197, %v1206
        %1232 = vst [vmem:[#allocation4 + $0x10] sm:$0xff] %v1000
        %1233 = vst [vmem:[#allocation4 + $0x58] sm:$0xff] %v1009
        %1234 = vst [vmem:[#allocation4 + $0xa0] sm:$0xff] %v1018
        %1235 = vst [vmem:[#allocation4 + $0xe8] sm:$0xff] %v1027
        %1236 = vst [vmem:[#allocation4 + $0x130] sm:$0xff] %v1036
        %1237 = vst [vmem:[#allocation4 + $0x178] sm:$0xff] %v1045
        %1238 = vst [vmem:[#allocation4 + $0x1c0] sm:$0xff] %v1054
        %1239 = vst [vmem:[#allocation4 + $0x208] sm:$0xff] %v1063
        %1240 = vst [vmem:[#allocation4 + $0x250] sm:$0xff] %v1072
        %1241 = vst [vmem:[#allocation4 + $0x298] sm:$0xff] %v1081
        %1242 = vst [vmem:[#allocation4 + $0x2e0] sm:$0xff] %v1090
        %1243 = vst [vmem:[#allocation4 + $0x328] sm:$0xff] %v1099
        %1244 = vst [vmem:[#allocation4 + $0x370] sm:$0xff] %v1108
        %1245 = vst [vmem:[#allocation4 + $0x3b8] sm:$0xff] %v1117
        %1246 = vst [vmem:[#allocation4 + $0x400] sm:$0xff] %v1126
        %1247 = vst [vmem:[#allocation4 + $0x448] sm:$0xff] %v1135
        %1248 = vst [vmem:[#allocation4 + $0x490] sm:$0xff] %v1144
        %1249 = vst [vmem:[#allocation4 + $0x4d8] sm:$0xff] %v1153
        %1250 = vst [vmem:[#allocation4 + $0x520] sm:$0xff] %v1162
        %1251 = vst [vmem:[#allocation4 + $0x568] sm:$0xff] %v1171
        %1252 = vst [vmem:[#allocation4 + $0x5b0] sm:$0xff] %v1180
        %1253 = vst [vmem:[#allocation4 + $0x5f8] sm:$0xff] %v1189
        %1254 = vst [vmem:[#allocation4 + $0x640] sm:$0xff] %v1198
        %1255 = vst [vmem:[#allocation4 + $0x688] sm:$0xff] %v1207
        %v1256 = vld [vmem:[#allocation2 + $0x8] sm:$0x80]
        %v1257 = vld [vmem:[#allocation2 + $0x10] sm:$0xff]
        %v1258 = vld [vmem:[#allocation2 + $0x18] sm:$0xff]
        %v1259 = vld [vmem:[#allocation2 + $0x20] sm:$0xff]
        %v1260 = vld [vmem:[#allocation2 + $0x28] sm:$0xff]
        %v1261 = vld [vmem:[#allocation2 + $0x30] sm:$0xff]
        %v1262 = vld [vmem:[#allocation2 + $0x38] sm:$0xff]
        %v1263 = vld [vmem:[#allocation2 + $0x40] sm:$0xff]
        %v1264 = vld [vmem:[#allocation2 + $0x48] sm:$0xff]
        %v1265 = vld [vmem:[#allocation2 + $0x50] sm:$0xff]
        %v1266 = vld [vmem:[#allocation2 + $0x58] sm:$0xff]
        %v1267 = vld [vmem:[#allocation2 + $0x60] sm:$0xff]
        %v1268 = vld [vmem:[#allocation2 + $0x68] sm:$0xff]
        %v1269 = vld [vmem:[#allocation2 + $0x70] sm:$0xff]
        %v1270 = vld [vmem:[#allocation2 + $0x78] sm:$0xff]
        %v1271 = vld [vmem:[#allocation2 + $0x80] sm:$0xff]
        %v1272 = vld [vmem:[#allocation2 + $0x88] sm:$0xff]
        %v1273 = vld [vmem:[#allocation2 + $0x90] sm:$0xff]
        %v1274 = vld [vmem:[#allocation2 + $0x98] sm:$0xff]
        %v1275 = vld [vmem:[#allocation2 + $0xa0] sm:$0xff]
        %v1276 = vld [vmem:[#allocation2 + $0xa8] sm:$0xff]
        %v1277 = vld [vmem:[#allocation2 + $0xb0] sm:$0xff]
        %v1278 = vld [vmem:[#allocation2 + $0xb8] sm:$0xff]
        %v1279 = vld [vmem:[#allocation2 + $0xc0] sm:$0xff]
        %v1280 = vld [vmem:[#allocation2 + $0xc8] sm:$0xff]
        %vm1281 = vsmask.f32 256
        %v1283 = vshrl.u32 %v1256, 16
        %v1285 = vrot.slane %v1283, 7
        %v1287 = vshrl.u32 %v1257, 16
        %v1289 = vrot.slane %v1287, 7
        %v1290 = vshll.u32 %v1257, 16
        %v1292 = vor.u32 %v1289, %v1290
        %v1293 = vsel %vm1281, %v1285, %v1292
        %v1295 = vshrl.u32 %v1258, 16
        %v1297 = vrot.slane %v1295, 7
        %v1298 = vshll.u32 %v1258, 16
        %v1300 = vor.u32 %v1297, %v1298
        %v1301 = vsel %vm1281, %v1289, %v1300
        %v1303 = vshrl.u32 %v1259, 16
        %v1305 = vrot.slane %v1303, 7
        %v1306 = vshll.u32 %v1259, 16
        %v1308 = vor.u32 %v1305, %v1306
        %v1309 = vsel %vm1281, %v1297, %v1308
        %v1311 = vshrl.u32 %v1260, 16
        %v1313 = vrot.slane %v1311, 7
        %v1314 = vshll.u32 %v1260, 16
        %v1316 = vor.u32 %v1313, %v1314
        %v1317 = vsel %vm1281, %v1305, %v1316
        %v1319 = vshrl.u32 %v1261, 16
        %v1321 = vrot.slane %v1319, 7
        %v1322 = vshll.u32 %v1261, 16
        %v1324 = vor.u32 %v1321, %v1322
        %v1325 = vsel %vm1281, %v1313, %v1324
        %v1327 = vshrl.u32 %v1262, 16
        %v1329 = vrot.slane %v1327, 7
        %v1330 = vshll.u32 %v1262, 16
        %v1332 = vor.u32 %v1329, %v1330
        %v1333 = vsel %vm1281, %v1321, %v1332
        %v1335 = vshrl.u32 %v1263, 16
        %v1337 = vrot.slane %v1335, 7
        %v1338 = vshll.u32 %v1263, 16
        %v1340 = vor.u32 %v1337, %v1338
        %v1341 = vsel %vm1281, %v1329, %v1340
        %v1343 = vshrl.u32 %v1264, 16
        %v1345 = vrot.slane %v1343, 7
        %v1346 = vshll.u32 %v1264, 16
        %v1348 = vor.u32 %v1345, %v1346
        %v1349 = vsel %vm1281, %v1337, %v1348
        %v1351 = vshrl.u32 %v1265, 16
        %v1353 = vrot.slane %v1351, 7
        %v1354 = vshll.u32 %v1265, 16
        %v1356 = vor.u32 %v1353, %v1354
        %v1357 = vsel %vm1281, %v1345, %v1356
        %v1359 = vshrl.u32 %v1266, 16
        %v1361 = vrot.slane %v1359, 7
        %v1362 = vshll.u32 %v1266, 16
        %v1364 = vor.u32 %v1361, %v1362
        %v1365 = vsel %vm1281, %v1353, %v1364
        %v1367 = vshrl.u32 %v1267, 16
        %v1369 = vrot.slane %v1367, 7
        %v1370 = vshll.u32 %v1267, 16
        %v1372 = vor.u32 %v1369, %v1370
        %v1373 = vsel %vm1281, %v1361, %v1372
        %v1375 = vshrl.u32 %v1268, 16
        %v1377 = vrot.slane %v1375, 7
        %v1378 = vshll.u32 %v1268, 16
        %v1380 = vor.u32 %v1377, %v1378
        %v1381 = vsel %vm1281, %v1369, %v1380
        %v1383 = vshrl.u32 %v1269, 16
        %v1385 = vrot.slane %v1383, 7
        %v1386 = vshll.u32 %v1269, 16
        %v1388 = vor.u32 %v1385, %v1386
        %v1389 = vsel %vm1281, %v1377, %v1388
        %v1391 = vshrl.u32 %v1270, 16
        %v1393 = vrot.slane %v1391, 7
        %v1394 = vshll.u32 %v1270, 16
        %v1396 = vor.u32 %v1393, %v1394
        %v1397 = vsel %vm1281, %v1385, %v1396
        %v1399 = vshrl.u32 %v1271, 16
        %v1401 = vrot.slane %v1399, 7
        %v1402 = vshll.u32 %v1271, 16
        %v1404 = vor.u32 %v1401, %v1402
        %v1405 = vsel %vm1281, %v1393, %v1404
        %v1407 = vshrl.u32 %v1272, 16
        %v1409 = vrot.slane %v1407, 7
        %v1410 = vshll.u32 %v1272, 16
        %v1412 = vor.u32 %v1409, %v1410
        %v1413 = vsel %vm1281, %v1401, %v1412
        %v1415 = vshrl.u32 %v1273, 16
        %v1417 = vrot.slane %v1415, 7
        %v1418 = vshll.u32 %v1273, 16
        %v1420 = vor.u32 %v1417, %v1418
        %v1421 = vsel %vm1281, %v1409, %v1420
        %v1423 = vshrl.u32 %v1274, 16
        %v1425 = vrot.slane %v1423, 7
        %v1426 = vshll.u32 %v1274, 16
        %v1428 = vor.u32 %v1425, %v1426
        %v1429 = vsel %vm1281, %v1417, %v1428
        %v1431 = vshrl.u32 %v1275, 16
        %v1433 = vrot.slane %v1431, 7
        %v1434 = vshll.u32 %v1275, 16
        %v1436 = vor.u32 %v1433, %v1434
        %v1437 = vsel %vm1281, %v1425, %v1436
        %v1439 = vshrl.u32 %v1276, 16
        %v1441 = vrot.slane %v1439, 7
        %v1442 = vshll.u32 %v1276, 16
        %v1444 = vor.u32 %v1441, %v1442
        %v1445 = vsel %vm1281, %v1433, %v1444
        %v1447 = vshrl.u32 %v1277, 16
        %v1449 = vrot.slane %v1447, 7
        %v1450 = vshll.u32 %v1277, 16
        %v1452 = vor.u32 %v1449, %v1450
        %v1453 = vsel %vm1281, %v1441, %v1452
        %v1455 = vshrl.u32 %v1278, 16
        %v1457 = vrot.slane %v1455, 7
        %v1458 = vshll.u32 %v1278, 16
        %v1460 = vor.u32 %v1457, %v1458
        %v1461 = vsel %vm1281, %v1449, %v1460
        %v1463 = vshrl.u32 %v1279, 16
        %v1465 = vrot.slane %v1463, 7
        %v1466 = vshll.u32 %v1279, 16
        %v1468 = vor.u32 %v1465, %v1466
        %v1469 = vsel %vm1281, %v1457, %v1468
        %v1471 = vshrl.u32 %v1280, 16
        %v1473 = vrot.slane %v1471, 7
        %v1474 = vshll.u32 %v1280, 16
        %v1476 = vor.u32 %v1473, %v1474
        %v1477 = vsel %vm1281, %v1465, %v1476
        %1502 = vst [vmem:[#allocation4 + $0x18] sm:$0xff] %v1293
        %1503 = vst [vmem:[#allocation4 + $0x60] sm:$0xff] %v1301
        %1504 = vst [vmem:[#allocation4 + $0xa8] sm:$0xff] %v1309
        %1505 = vst [vmem:[#allocation4 + $0xf0] sm:$0xff] %v1317
        %1506 = vst [vmem:[#allocation4 + $0x138] sm:$0xff] %v1325
        %1507 = vst [vmem:[#allocation4 + $0x180] sm:$0xff] %v1333
        %1508 = vst [vmem:[#allocation4 + $0x1c8] sm:$0xff] %v1341
        %1509 = vst [vmem:[#allocation4 + $0x210] sm:$0xff] %v1349
        %1510 = vst [vmem:[#allocation4 + $0x258] sm:$0xff] %v1357
        %1511 = vst [vmem:[#allocation4 + $0x2a0] sm:$0xff] %v1365
        %1512 = vst [vmem:[#allocation4 + $0x2e8] sm:$0xff] %v1373
        %1513 = vst [vmem:[#allocation4 + $0x330] sm:$0xff] %v1381
        %1514 = vst [vmem:[#allocation4 + $0x378] sm:$0xff] %v1389
        %1515 = vst [vmem:[#allocation4 + $0x3c0] sm:$0xff] %v1397
        %1516 = vst [vmem:[#allocation4 + $0x408] sm:$0xff] %v1405
        %1517 = vst [vmem:[#allocation4 + $0x450] sm:$0xff] %v1413
        %1518 = vst [vmem:[#allocation4 + $0x498] sm:$0xff] %v1421
        %1519 = vst [vmem:[#allocation4 + $0x4e0] sm:$0xff] %v1429
        %1520 = vst [vmem:[#allocation4 + $0x528] sm:$0xff] %v1437
        %1521 = vst [vmem:[#allocation4 + $0x570] sm:$0xff] %v1445
        %1522 = vst [vmem:[#allocation4 + $0x5b8] sm:$0xff] %v1453
        %1523 = vst [vmem:[#allocation4 + $0x600] sm:$0xff] %v1461
        %1524 = vst [vmem:[#allocation4 + $0x648] sm:$0xff] %v1469
        %1525 = vst [vmem:[#allocation4 + $0x690] sm:$0xff] %v1477
        %v1526 = vld [vmem:[#allocation2 + $0x10] sm:$0xff]
        %v1527 = vld [vmem:[#allocation2 + $0x18] sm:$0xff]
        %v1528 = vld [vmem:[#allocation2 + $0x20] sm:$0xff]
        %v1529 = vld [vmem:[#allocation2 + $0x28] sm:$0xff]
        %v1530 = vld [vmem:[#allocation2 + $0x30] sm:$0xff]
        %v1531 = vld [vmem:[#allocation2 + $0x38] sm:$0xff]
        %v1532 = vld [vmem:[#allocation2 + $0x40] sm:$0xff]
        %v1533 = vld [vmem:[#allocation2 + $0x48] sm:$0xff]
        %v1534 = vld [vmem:[#allocation2 + $0x50] sm:$0xff]
        %v1535 = vld [vmem:[#allocation2 + $0x58] sm:$0xff]
        %v1536 = vld [vmem:[#allocation2 + $0x60] sm:$0xff]
        %v1537 = vld [vmem:[#allocation2 + $0x68] sm:$0xff]
        %v1538 = vld [vmem:[#allocation2 + $0x70] sm:$0xff]
        %v1539 = vld [vmem:[#allocation2 + $0x78] sm:$0xff]
        %v1540 = vld [vmem:[#allocation2 + $0x80] sm:$0xff]
        %v1541 = vld [vmem:[#allocation2 + $0x88] sm:$0xff]
        %v1542 = vld [vmem:[#allocation2 + $0x90] sm:$0xff]
        %v1543 = vld [vmem:[#allocation2 + $0x98] sm:$0xff]
        %v1544 = vld [vmem:[#allocation2 + $0xa0] sm:$0xff]
        %v1545 = vld [vmem:[#allocation2 + $0xa8] sm:$0xff]
        %v1546 = vld [vmem:[#allocation2 + $0xb0] sm:$0xff]
        %v1547 = vld [vmem:[#allocation2 + $0xb8] sm:$0xff]
        %v1548 = vld [vmem:[#allocation2 + $0xc0] sm:$0xff]
        %v1549 = vld [vmem:[#allocation2 + $0xc8] sm:$0xff]
        %1550 = vst [vmem:[#allocation4 + $0x20] sm:$0xff] %v1526
        %1551 = vst [vmem:[#allocation4 + $0x68] sm:$0xff] %v1527
        %1552 = vst [vmem:[#allocation4 + $0xb0] sm:$0xff] %v1528
        %1553 = vst [vmem:[#allocation4 + $0xf8] sm:$0xff] %v1529
        %1554 = vst [vmem:[#allocation4 + $0x140] sm:$0xff] %v1530
        %1555 = vst [vmem:[#allocation4 + $0x188] sm:$0xff] %v1531
        %1556 = vst [vmem:[#allocation4 + $0x1d0] sm:$0xff] %v1532
        %1557 = vst [vmem:[#allocation4 + $0x218] sm:$0xff] %v1533
        %1558 = vst [vmem:[#allocation4 + $0x260] sm:$0xff] %v1534
        %1559 = vst [vmem:[#allocation4 + $0x2a8] sm:$0xff] %v1535
        %1560 = vst [vmem:[#allocation4 + $0x2f0] sm:$0xff] %v1536
        %1561 = vst [vmem:[#allocation4 + $0x338] sm:$0xff] %v1537
        %1562 = vst [vmem:[#allocation4 + $0x380] sm:$0xff] %v1538
        %1563 = vst [vmem:[#allocation4 + $0x3c8] sm:$0xff] %v1539
        %1564 = vst [vmem:[#allocation4 + $0x410] sm:$0xff] %v1540
        %1565 = vst [vmem:[#allocation4 + $0x458] sm:$0xff] %v1541
        %1566 = vst [vmem:[#allocation4 + $0x4a0] sm:$0xff] %v1542
        %1567 = vst [vmem:[#allocation4 + $0x4e8] sm:$0xff] %v1543
        %1568 = vst [vmem:[#allocation4 + $0x530] sm:$0xff] %v1544
        %1569 = vst [vmem:[#allocation4 + $0x578] sm:$0xff] %v1545
        %1570 = vst [vmem:[#allocation4 + $0x5c0] sm:$0xff] %v1546
        %1571 = vst [vmem:[#allocation4 + $0x608] sm:$0xff] %v1547
        %1572 = vst [vmem:[#allocation4 + $0x650] sm:$0xff] %v1548
        %1573 = vst [vmem:[#allocation4 + $0x698] sm:$0xff] %v1549
        %v1574 = vld [vmem:[#allocation2 + $0x10] sm:$0xff]
        %v1575 = vld [vmem:[#allocation2 + $0x18] sm:$0xff]
        %v1576 = vld [vmem:[#allocation2 + $0x20] sm:$0xff]
        %v1577 = vld [vmem:[#allocation2 + $0x28] sm:$0xff]
        %v1578 = vld [vmem:[#allocation2 + $0x30] sm:$0xff]
        %v1579 = vld [vmem:[#allocation2 + $0x38] sm:$0xff]
        %v1580 = vld [vmem:[#allocation2 + $0x40] sm:$0xff]
        %v1581 = vld [vmem:[#allocation2 + $0x48] sm:$0xff]
        %v1582 = vld [vmem:[#allocation2 + $0x50] sm:$0xff]
        %v1583 = vld [vmem:[#allocation2 + $0x58] sm:$0xff]
        %v1584 = vld [vmem:[#allocation2 + $0x60] sm:$0xff]
        %v1585 = vld [vmem:[#allocation2 + $0x68] sm:$0xff]
        %v1586 = vld [vmem:[#allocation2 + $0x70] sm:$0xff]
        %v1587 = vld [vmem:[#allocation2 + $0x78] sm:$0xff]
        %v1588 = vld [vmem:[#allocation2 + $0x80] sm:$0xff]
        %v1589 = vld [vmem:[#allocation2 + $0x88] sm:$0xff]
        %v1590 = vld [vmem:[#allocation2 + $0x90] sm:$0xff]
        %v1591 = vld [vmem:[#allocation2 + $0x98] sm:$0xff]
        %v1592 = vld [vmem:[#allocation2 + $0xa0] sm:$0xff]
        %v1593 = vld [vmem:[#allocation2 + $0xa8] sm:$0xff]
        %v1594 = vld [vmem:[#allocation2 + $0xb0] sm:$0xff]
        %v1595 = vld [vmem:[#allocation2 + $0xb8] sm:$0xff]
        %v1596 = vld [vmem:[#allocation2 + $0xc0] sm:$0xff]
        %v1597 = vld [vmem:[#allocation2 + $0xc8] sm:$0xff]
        %v1598 = vld [vmem:[#allocation2 + $0xd0] sm:$0x1]
        %vm1599 = vsmask.f32 7424
        %v1601 = vshrl.u32 %v1574, 16
        %v1603 = vshll.u32 %v1574, 16
        %v1605 = vrot.slane %v1603, 1
        %v1606 = vor.u32 %v1601, %v1605
        %v1608 = vshll.u32 %v1575, 16
        %v1610 = vrot.slane %v1608, 1
        %v1611 = vsel %vm1599, %v1606, %v1610
        %v1612 = vshrl.u32 %v1575, 16
        %v1614 = vor.u32 %v1612, %v1610
        %v1616 = vshll.u32 %v1576, 16
        %v1618 = vrot.slane %v1616, 1
        %v1619 = vsel %vm1599, %v1614, %v1618
        %v1620 = vshrl.u32 %v1576, 16
        %v1622 = vor.u32 %v1620, %v1618
        %v1624 = vshll.u32 %v1577, 16
        %v1626 = vrot.slane %v1624, 1
        %v1627 = vsel %vm1599, %v1622, %v1626
        %v1628 = vshrl.u32 %v1577, 16
        %v1630 = vor.u32 %v1628, %v1626
        %v1632 = vshll.u32 %v1578, 16
        %v1634 = vrot.slane %v1632, 1
        %v1635 = vsel %vm1599, %v1630, %v1634
        %v1636 = vshrl.u32 %v1578, 16
        %v1638 = vor.u32 %v1636, %v1634
        %v1640 = vshll.u32 %v1579, 16
        %v1642 = vrot.slane %v1640, 1
        %v1643 = vsel %vm1599, %v1638, %v1642
        %v1644 = vshrl.u32 %v1579, 16
        %v1646 = vor.u32 %v1644, %v1642
        %v1648 = vshll.u32 %v1580, 16
        %v1650 = vrot.slane %v1648, 1
        %v1651 = vsel %vm1599, %v1646, %v1650
        %v1652 = vshrl.u32 %v1580, 16
        %v1654 = vor.u32 %v1652, %v1650
        %v1656 = vshll.u32 %v1581, 16
        %v1658 = vrot.slane %v1656, 1
        %v1659 = vsel %vm1599, %v1654, %v1658
        %v1660 = vshrl.u32 %v1581, 16
        %v1662 = vor.u32 %v1660, %v1658
        %v1664 = vshll.u32 %v1582, 16
        %v1666 = vrot.slane %v1664, 1
        %v1667 = vsel %vm1599, %v1662, %v1666
        %v1668 = vshrl.u32 %v1582, 16
        %v1670 = vor.u32 %v1668, %v1666
        %v1672 = vshll.u32 %v1583, 16
        %v1674 = vrot.slane %v1672, 1
        %v1675 = vsel %vm1599, %v1670, %v1674
        %v1676 = vshrl.u32 %v1583, 16
        %v1678 = vor.u32 %v1676, %v1674
        %v1680 = vshll.u32 %v1584, 16
        %v1682 = vrot.slane %v1680, 1
        %v1683 = vsel %vm1599, %v1678, %v1682
        %v1684 = vshrl.u32 %v1584, 16
        %v1686 = vor.u32 %v1684, %v1682
        %v1688 = vshll.u32 %v1585, 16
        %v1690 = vrot.slane %v1688, 1
        %v1691 = vsel %vm1599, %v1686, %v1690
        %v1692 = vshrl.u32 %v1585, 16
        %v1694 = vor.u32 %v1692, %v1690
        %v1696 = vshll.u32 %v1586, 16
        %v1698 = vrot.slane %v1696, 1
        %v1699 = vsel %vm1599, %v1694, %v1698
        %v1700 = vshrl.u32 %v1586, 16
        %v1702 = vor.u32 %v1700, %v1698
        %v1704 = vshll.u32 %v1587, 16
        %v1706 = vrot.slane %v1704, 1
        %v1707 = vsel %vm1599, %v1702, %v1706
        %v1708 = vshrl.u32 %v1587, 16
        %v1710 = vor.u32 %v1708, %v1706
        %v1712 = vshll.u32 %v1588, 16
        %v1714 = vrot.slane %v1712, 1
        %v1715 = vsel %vm1599, %v1710, %v1714
        %v1716 = vshrl.u32 %v1588, 16
        %v1718 = vor.u32 %v1716, %v1714
        %v1720 = vshll.u32 %v1589, 16
        %v1722 = vrot.slane %v1720, 1
        %v1723 = vsel %vm1599, %v1718, %v1722
        %v1724 = vshrl.u32 %v1589, 16
        %v1726 = vor.u32 %v1724, %v1722
        %v1728 = vshll.u32 %v1590, 16
        %v1730 = vrot.slane %v1728, 1
        %v1731 = vsel %vm1599, %v1726, %v1730
        %v1732 = vshrl.u32 %v1590, 16
        %v1734 = vor.u32 %v1732, %v1730
        %v1736 = vshll.u32 %v1591, 16
        %v1738 = vrot.slane %v1736, 1
        %v1739 = vsel %vm1599, %v1734, %v1738
        %v1740 = vshrl.u32 %v1591, 16
        %v1742 = vor.u32 %v1740, %v1738
        %v1744 = vshll.u32 %v1592, 16
        %v1746 = vrot.slane %v1744, 1
        %v1747 = vsel %vm1599, %v1742, %v1746
        %v1748 = vshrl.u32 %v1592, 16
        %v1750 = vor.u32 %v1748, %v1746
        %v1752 = vshll.u32 %v1593, 16
        %v1754 = vrot.slane %v1752, 1
        %v1755 = vsel %vm1599, %v1750, %v1754
        %v1756 = vshrl.u32 %v1593, 16
        %v1758 = vor.u32 %v1756, %v1754
        %v1760 = vshll.u32 %v1594, 16
        %v1762 = vrot.slane %v1760, 1
        %v1763 = vsel %vm1599, %v1758, %v1762
        %v1764 = vshrl.u32 %v1594, 16
        %v1766 = vor.u32 %v1764, %v1762
        %v1768 = vshll.u32 %v1595, 16
        %v1770 = vrot.slane %v1768, 1
        %v1771 = vsel %vm1599, %v1766, %v1770
        %v1772 = vshrl.u32 %v1595, 16
        %v1774 = vor.u32 %v1772, %v1770
        %v1776 = vshll.u32 %v1596, 16
        %v1778 = vrot.slane %v1776, 1
        %v1779 = vsel %vm1599, %v1774, %v1778
        %v1780 = vshrl.u32 %v1596, 16
        %v1782 = vor.u32 %v1780, %v1778
        %v1784 = vshll.u32 %v1597, 16
        %v1786 = vrot.slane %v1784, 1
        %v1787 = vsel %vm1599, %v1782, %v1786
        %v1788 = vshrl.u32 %v1597, 16
        %v1790 = vor.u32 %v1788, %v1786
        %v1792 = vshll.u32 %v1598, 16
        %v1794 = vrot.slane %v1792, 1
        %v1795 = vsel %vm1599, %v1790, %v1794
        %1820 = vst [vmem:[#allocation4 + $0x28] sm:$0xff] %v1611
        %1821 = vst [vmem:[#allocation4 + $0x70] sm:$0xff] %v1619
        %1822 = vst [vmem:[#allocation4 + $0xb8] sm:$0xff] %v1627
        %1823 = vst [vmem:[#allocation4 + $0x100] sm:$0xff] %v1635
        %1824 = vst [vmem:[#allocation4 + $0x148] sm:$0xff] %v1643
        %1825 = vst [vmem:[#allocation4 + $0x190] sm:$0xff] %v1651
        %1826 = vst [vmem:[#allocation4 + $0x1d8] sm:$0xff] %v1659
        %1827 = vst [vmem:[#allocation4 + $0x220] sm:$0xff] %v1667
        %1828 = vst [vmem:[#allocation4 + $0x268] sm:$0xff] %v1675
        %1829 = vst [vmem:[#allocation4 + $0x2b0] sm:$0xff] %v1683
        %1830 = vst [vmem:[#allocation4 + $0x2f8] sm:$0xff] %v1691
        %1831 = vst [vmem:[#allocation4 + $0x340] sm:$0xff] %v1699
        %1832 = vst [vmem:[#allocation4 + $0x388] sm:$0xff] %v1707
        %1833 = vst [vmem:[#allocation4 + $0x3d0] sm:$0xff] %v1715
        %1834 = vst [vmem:[#allocation4 + $0x418] sm:$0xff] %v1723
        %1835 = vst [vmem:[#allocation4 + $0x460] sm:$0xff] %v1731
        %1836 = vst [vmem:[#allocation4 + $0x4a8] sm:$0xff] %v1739
        %1837 = vst [vmem:[#allocation4 + $0x4f0] sm:$0xff] %v1747
        %1838 = vst [vmem:[#allocation4 + $0x538] sm:$0xff] %v1755
        %1839 = vst [vmem:[#allocation4 + $0x580] sm:$0xff] %v1763
        %1840 = vst [vmem:[#allocation4 + $0x5c8] sm:$0xff] %v1771
        %1841 = vst [vmem:[#allocation4 + $0x610] sm:$0xff] %v1779
        %1842 = vst [vmem:[#allocation4 + $0x658] sm:$0xff] %v1787
        %1843 = vst [vmem:[#allocation4 + $0x6a0] sm:$0xff] %v1795
        %v1844 = vld [vmem:[#allocation2 + $0x18] sm:$0xf8]
        %v1845 = vld [vmem:[#allocation2 + $0x20] sm:$0xff]
        %v1846 = vld [vmem:[#allocation2 + $0x28] sm:$0xff]
        %v1847 = vld [vmem:[#allocation2 + $0x30] sm:$0xff]
        %v1848 = vld [vmem:[#allocation2 + $0x38] sm:$0xff]
        %v1849 = vld [vmem:[#allocation2 + $0x40] sm:$0xff]
        %v1850 = vld [vmem:[#allocation2 + $0x48] sm:$0xff]
        %v1851 = vld [vmem:[#allocation2 + $0x50] sm:$0xff]
        %v1852 = vld [vmem:[#allocation2 + $0x58] sm:$0xff]
        %v1853 = vld [vmem:[#allocation2 + $0x60] sm:$0xff]
        %v1854 = vld [vmem:[#allocation2 + $0x68] sm:$0xff]
        %v1855 = vld [vmem:[#allocation2 + $0x70] sm:$0xff]
        %v1856 = vld [vmem:[#allocation2 + $0x78] sm:$0xff]
        %v1857 = vld [vmem:[#allocation2 + $0x80] sm:$0xff]
        %v1858 = vld [vmem:[#allocation2 + $0x88] sm:$0xff]
        %v1859 = vld [vmem:[#allocation2 + $0x90] sm:$0xff]
        %v1860 = vld [vmem:[#allocation2 + $0x98] sm:$0xff]
        %v1861 = vld [vmem:[#allocation2 + $0xa0] sm:$0xff]
        %v1862 = vld [vmem:[#allocation2 + $0xa8] sm:$0xff]
        %v1863 = vld [vmem:[#allocation2 + $0xb0] sm:$0xff]
        %v1864 = vld [vmem:[#allocation2 + $0xb8] sm:$0xff]
        %v1865 = vld [vmem:[#allocation2 + $0xc0] sm:$0xff]
        %v1866 = vld [vmem:[#allocation2 + $0xc8] sm:$0xff]
        %v1867 = vld [vmem:[#allocation2 + $0xd0] sm:$0xff]
        %v1868 = vld [vmem:[#allocation2 + $0xd8] sm:$0xf]
        %v1870 = vshrl.u32 %v1844, 16
        %v1872 = vrot.slane %v1870, 3
        %v1873 = vshll.u32 %v1844, 16
        %v1875 = vrot.slane %v1873, 4
        %v1876 = vor.u32 %v1872, %v1875
        %v1878 = vshrl.u32 %v1845, 16
        %v1880 = vrot.slane %v1878, 3
        %v1881 = vshll.u32 %v1845, 16
        %v1883 = vrot.slane %v1881, 4
        %v1884 = vor.u32 %v1880, %v1883
        %v1885 = vsel %vm537, %v1876, %v1884
        %v1887 = vshrl.u32 %v1846, 16
        %v1889 = vrot.slane %v1887, 3
        %v1890 = vshll.u32 %v1846, 16
        %v1892 = vrot.slane %v1890, 4
        %v1893 = vor.u32 %v1889, %v1892
        %v1894 = vsel %vm537, %v1884, %v1893
        %v1896 = vshrl.u32 %v1847, 16
        %v1898 = vrot.slane %v1896, 3
        %v1899 = vshll.u32 %v1847, 16
        %v1901 = vrot.slane %v1899, 4
        %v1902 = vor.u32 %v1898, %v1901
        %v1903 = vsel %vm537, %v1893, %v1902
        %v1905 = vshrl.u32 %v1848, 16
        %v1907 = vrot.slane %v1905, 3
        %v1908 = vshll.u32 %v1848, 16
        %v1910 = vrot.slane %v1908, 4
        %v1911 = vor.u32 %v1907, %v1910
        %v1912 = vsel %vm537, %v1902, %v1911
        %v1914 = vshrl.u32 %v1849, 16
        %v1916 = vrot.slane %v1914, 3
        %v1917 = vshll.u32 %v1849, 16
        %v1919 = vrot.slane %v1917, 4
        %v1920 = vor.u32 %v1916, %v1919
        %v1921 = vsel %vm537, %v1911, %v1920
        %v1923 = vshrl.u32 %v1850, 16
        %v1925 = vrot.slane %v1923, 3
        %v1926 = vshll.u32 %v1850, 16
        %v1928 = vrot.slane %v1926, 4
        %v1929 = vor.u32 %v1925, %v1928
        %v1930 = vsel %vm537, %v1920, %v1929
        %v1932 = vshrl.u32 %v1851, 16
        %v1934 = vrot.slane %v1932, 3
        %v1935 = vshll.u32 %v1851, 16
        %v1937 = vrot.slane %v1935, 4
        %v1938 = vor.u32 %v1934, %v1937
        %v1939 = vsel %vm537, %v1929, %v1938
        %v1941 = vshrl.u32 %v1852, 16
        %v1943 = vrot.slane %v1941, 3
        %v1944 = vshll.u32 %v1852, 16
        %v1946 = vrot.slane %v1944, 4
        %v1947 = vor.u32 %v1943, %v1946
        %v1948 = vsel %vm537, %v1938, %v1947
        %v1950 = vshrl.u32 %v1853, 16
        %v1952 = vrot.slane %v1950, 3
        %v1953 = vshll.u32 %v1853, 16
        %v1955 = vrot.slane %v1953, 4
        %v1956 = vor.u32 %v1952, %v1955
        %v1957 = vsel %vm537, %v1947, %v1956
        %v1959 = vshrl.u32 %v1854, 16
        %v1961 = vrot.slane %v1959, 3
        %v1962 = vshll.u32 %v1854, 16
        %v1964 = vrot.slane %v1962, 4
        %v1965 = vor.u32 %v1961, %v1964
        %v1966 = vsel %vm537, %v1956, %v1965
        %v1968 = vshrl.u32 %v1855, 16
        %v1970 = vrot.slane %v1968, 3
        %v1971 = vshll.u32 %v1855, 16
        %v1973 = vrot.slane %v1971, 4
        %v1974 = vor.u32 %v1970, %v1973
        %v1975 = vsel %vm537, %v1965, %v1974
        %v1977 = vshrl.u32 %v1856, 16
        %v1979 = vrot.slane %v1977, 3
        %v1980 = vshll.u32 %v1856, 16
        %v1982 = vrot.slane %v1980, 4
        %v1983 = vor.u32 %v1979, %v1982
        %v1984 = vsel %vm537, %v1974, %v1983
        %v1986 = vshrl.u32 %v1857, 16
        %v1988 = vrot.slane %v1986, 3
        %v1989 = vshll.u32 %v1857, 16
        %v1991 = vrot.slane %v1989, 4
        %v1992 = vor.u32 %v1988, %v1991
        %v1993 = vsel %vm537, %v1983, %v1992
        %v1995 = vshrl.u32 %v1858, 16
        %v1997 = vrot.slane %v1995, 3
        %v1998 = vshll.u32 %v1858, 16
        %v2000 = vrot.slane %v1998, 4
        %v2001 = vor.u32 %v1997, %v2000
        %v2002 = vsel %vm537, %v1992, %v2001
        %v2004 = vshrl.u32 %v1859, 16
        %v2006 = vrot.slane %v2004, 3
        %v2007 = vshll.u32 %v1859, 16
        %v2009 = vrot.slane %v2007, 4
        %v2010 = vor.u32 %v2006, %v2009
        %v2011 = vsel %vm537, %v2001, %v2010
        %v2013 = vshrl.u32 %v1860, 16
        %v2015 = vrot.slane %v2013, 3
        %v2016 = vshll.u32 %v1860, 16
        %v2018 = vrot.slane %v2016, 4
        %v2019 = vor.u32 %v2015, %v2018
        %v2020 = vsel %vm537, %v2010, %v2019
        %v2022 = vshrl.u32 %v1861, 16
        %v2024 = vrot.slane %v2022, 3
        %v2025 = vshll.u32 %v1861, 16
        %v2027 = vrot.slane %v2025, 4
        %v2028 = vor.u32 %v2024, %v2027
        %v2029 = vsel %vm537, %v2019, %v2028
        %v2031 = vshrl.u32 %v1862, 16
        %v2033 = vrot.slane %v2031, 3
        %v2034 = vshll.u32 %v1862, 16
        %v2036 = vrot.slane %v2034, 4
        %v2037 = vor.u32 %v2033, %v2036
        %v2038 = vsel %vm537, %v2028, %v2037
        %v2040 = vshrl.u32 %v1863, 16
        %v2042 = vrot.slane %v2040, 3
        %v2043 = vshll.u32 %v1863, 16
        %v2045 = vrot.slane %v2043, 4
        %v2046 = vor.u32 %v2042, %v2045
        %v2047 = vsel %vm537, %v2037, %v2046
        %v2049 = vshrl.u32 %v1864, 16
        %v2051 = vrot.slane %v2049, 3
        %v2052 = vshll.u32 %v1864, 16
        %v2054 = vrot.slane %v2052, 4
        %v2055 = vor.u32 %v2051, %v2054
        %v2056 = vsel %vm537, %v2046, %v2055
        %v2058 = vshrl.u32 %v1865, 16
        %v2060 = vrot.slane %v2058, 3
        %v2061 = vshll.u32 %v1865, 16
        %v2063 = vrot.slane %v2061, 4
        %v2064 = vor.u32 %v2060, %v2063
        %v2065 = vsel %vm537, %v2055, %v2064
        %v2067 = vshrl.u32 %v1866, 16
        %v2069 = vrot.slane %v2067, 3
        %v2070 = vshll.u32 %v1866, 16
        %v2072 = vrot.slane %v2070, 4
        %v2073 = vor.u32 %v2069, %v2072
        %v2074 = vsel %vm537, %v2064, %v2073
        %v2076 = vshrl.u32 %v1867, 16
        %v2078 = vrot.slane %v2076, 3
        %v2079 = vshll.u32 %v1867, 16
        %v2081 = vrot.slane %v2079, 4
        %v2082 = vor.u32 %v2078, %v2081
        %v2083 = vsel %vm537, %v2073, %v2082
        %v2085 = vshrl.u32 %v1868, 16
        %v2087 = vrot.slane %v2085, 3
        %v2088 = vshll.u32 %v1868, 16
        %v2090 = vrot.slane %v2088, 4
        %v2091 = vor.u32 %v2087, %v2090
        %v2092 = vsel %vm537, %v2082, %v2091
        %2117 = vst [vmem:[#allocation4 + $0x30] sm:$0xff] %v1885
        %2118 = vst [vmem:[#allocation4 + $0x78] sm:$0xff] %v1894
        %2119 = vst [vmem:[#allocation4 + $0xc0] sm:$0xff] %v1903
        %2120 = vst [vmem:[#allocation4 + $0x108] sm:$0xff] %v1912
        %2121 = vst [vmem:[#allocation4 + $0x150] sm:$0xff] %v1921
        %2122 = vst [vmem:[#allocation4 + $0x198] sm:$0xff] %v1930
        %2123 = vst [vmem:[#allocation4 + $0x1e0] sm:$0xff] %v1939
        %2124 = vst [vmem:[#allocation4 + $0x228] sm:$0xff] %v1948
        %2125 = vst [vmem:[#allocation4 + $0x270] sm:$0xff] %v1957
        %2126 = vst [vmem:[#allocation4 + $0x2b8] sm:$0xff] %v1966
        %2127 = vst [vmem:[#allocation4 + $0x300] sm:$0xff] %v1975
        %2128 = vst [vmem:[#allocation4 + $0x348] sm:$0xff] %v1984
        %2129 = vst [vmem:[#allocation4 + $0x390] sm:$0xff] %v1993
        %2130 = vst [vmem:[#allocation4 + $0x3d8] sm:$0xff] %v2002
        %2131 = vst [vmem:[#allocation4 + $0x420] sm:$0xff] %v2011
        %2132 = vst [vmem:[#allocation4 + $0x468] sm:$0xff] %v2020
        %2133 = vst [vmem:[#allocation4 + $0x4b0] sm:$0xff] %v2029
        %2134 = vst [vmem:[#allocation4 + $0x4f8] sm:$0xff] %v2038
        %2135 = vst [vmem:[#allocation4 + $0x540] sm:$0xff] %v2047
        %2136 = vst [vmem:[#allocation4 + $0x588] sm:$0xff] %v2056
        %2137 = vst [vmem:[#allocation4 + $0x5d0] sm:$0xff] %v2065
        %2138 = vst [vmem:[#allocation4 + $0x618] sm:$0xff] %v2074
        %2139 = vst [vmem:[#allocation4 + $0x660] sm:$0xff] %v2083
        %2140 = vst [vmem:[#allocation4 + $0x6a8] sm:$0xff] %v2092
        %v2141 = vld [vmem:[#allocation2 + $0x18] sm:$0xf0]
        %v2142 = vld [vmem:[#allocation2 + $0x20] sm:$0xff]
        %v2143 = vld [vmem:[#allocation2 + $0x28] sm:$0xff]
        %v2144 = vld [vmem:[#allocation2 + $0x30] sm:$0xff]
        %v2145 = vld [vmem:[#allocation2 + $0x38] sm:$0xff]
        %v2146 = vld [vmem:[#allocation2 + $0x40] sm:$0xff]
        %v2147 = vld [vmem:[#allocation2 + $0x48] sm:$0xff]
        %v2148 = vld [vmem:[#allocation2 + $0x50] sm:$0xff]
        %v2149 = vld [vmem:[#allocation2 + $0x58] sm:$0xff]
        %v2150 = vld [vmem:[#allocation2 + $0x60] sm:$0xff]
        %v2151 = vld [vmem:[#allocation2 + $0x68] sm:$0xff]
        %v2152 = vld [vmem:[#allocation2 + $0x70] sm:$0xff]
        %v2153 = vld [vmem:[#allocation2 + $0x78] sm:$0xff]
        %v2154 = vld [vmem:[#allocation2 + $0x80] sm:$0xff]
        %v2155 = vld [vmem:[#allocation2 + $0x88] sm:$0xff]
        %v2156 = vld [vmem:[#allocation2 + $0x90] sm:$0xff]
        %v2157 = vld [vmem:[#allocation2 + $0x98] sm:$0xff]
        %v2158 = vld [vmem:[#allocation2 + $0xa0] sm:$0xff]
        %v2159 = vld [vmem:[#allocation2 + $0xa8] sm:$0xff]
        %v2160 = vld [vmem:[#allocation2 + $0xb0] sm:$0xff]
        %v2161 = vld [vmem:[#allocation2 + $0xb8] sm:$0xff]
        %v2162 = vld [vmem:[#allocation2 + $0xc0] sm:$0xff]
        %v2163 = vld [vmem:[#allocation2 + $0xc8] sm:$0xff]
        %v2164 = vld [vmem:[#allocation2 + $0xd0] sm:$0xff]
        %v2165 = vld [vmem:[#allocation2 + $0xd8] sm:$0xf]
        %v2191 = vrot.slane %v2141, 4
        %v2192 = vrot.slane %v2142, 4
        %v2193 = vsel %vm860, %v2191, %v2192
        %v2194 = vrot.slane %v2143, 4
        %v2195 = vsel %vm860, %v2192, %v2194
        %v2196 = vrot.slane %v2144, 4
        %v2197 = vsel %vm860, %v2194, %v2196
        %v2198 = vrot.slane %v2145, 4
        %v2199 = vsel %vm860, %v2196, %v2198
        %v2200 = vrot.slane %v2146, 4
        %v2201 = vsel %vm860, %v2198, %v2200
        %v2202 = vrot.slane %v2147, 4
        %v2203 = vsel %vm860, %v2200, %v2202
        %v2204 = vrot.slane %v2148, 4
        %v2205 = vsel %vm860, %v2202, %v2204
        %v2206 = vrot.slane %v2149, 4
        %v2207 = vsel %vm860, %v2204, %v2206
        %v2208 = vrot.slane %v2150, 4
        %v2209 = vsel %vm860, %v2206, %v2208
        %v2210 = vrot.slane %v2151, 4
        %v2211 = vsel %vm860, %v2208, %v2210
        %v2212 = vrot.slane %v2152, 4
        %v2213 = vsel %vm860, %v2210, %v2212
        %v2214 = vrot.slane %v2153, 4
        %v2215 = vsel %vm860, %v2212, %v2214
        %v2216 = vrot.slane %v2154, 4
        %v2217 = vsel %vm860, %v2214, %v2216
        %v2218 = vrot.slane %v2155, 4
        %v2219 = vsel %vm860, %v2216, %v2218
        %v2220 = vrot.slane %v2156, 4
        %v2221 = vsel %vm860, %v2218, %v2220
        %v2222 = vrot.slane %v2157, 4
        %v2223 = vsel %vm860, %v2220, %v2222
        %v2224 = vrot.slane %v2158, 4
        %v2225 = vsel %vm860, %v2222, %v2224
        %v2226 = vrot.slane %v2159, 4
        %v2227 = vsel %vm860, %v2224, %v2226
        %v2228 = vrot.slane %v2160, 4
        %v2229 = vsel %vm860, %v2226, %v2228
        %v2230 = vrot.slane %v2161, 4
        %v2231 = vsel %vm860, %v2228, %v2230
        %v2232 = vrot.slane %v2162, 4
        %v2233 = vsel %vm860, %v2230, %v2232
        %v2234 = vrot.slane %v2163, 4
        %v2235 = vsel %vm860, %v2232, %v2234
        %v2236 = vrot.slane %v2164, 4
        %v2237 = vsel %vm860, %v2234, %v2236
        %v2238 = vrot.slane %v2165, 4
        %v2239 = vsel %vm860, %v2236, %v2238
        %2264 = vst [vmem:[#allocation4 + $0x38] sm:$0xff] %v2193
        %2265 = vst [vmem:[#allocation4 + $0x80] sm:$0xff] %v2195
        %2266 = vst [vmem:[#allocation4 + $0xc8] sm:$0xff] %v2197
        %2267 = vst [vmem:[#allocation4 + $0x110] sm:$0xff] %v2199
        %2268 = vst [vmem:[#allocation4 + $0x158] sm:$0xff] %v2201
        %2269 = vst [vmem:[#allocation4 + $0x1a0] sm:$0xff] %v2203
        %2270 = vst [vmem:[#allocation4 + $0x1e8] sm:$0xff] %v2205
        %2271 = vst [vmem:[#allocation4 + $0x230] sm:$0xff] %v2207
        %2272 = vst [vmem:[#allocation4 + $0x278] sm:$0xff] %v2209
        %2273 = vst [vmem:[#allocation4 + $0x2c0] sm:$0xff] %v2211
        %2274 = vst [vmem:[#allocation4 + $0x308] sm:$0xff] %v2213
        %2275 = vst [vmem:[#allocation4 + $0x350] sm:$0xff] %v2215
        %2276 = vst [vmem:[#allocation4 + $0x398] sm:$0xff] %v2217
        %2277 = vst [vmem:[#allocation4 + $0x3e0] sm:$0xff] %v2219
        %2278 = vst [vmem:[#allocation4 + $0x428] sm:$0xff] %v2221
        %2279 = vst [vmem:[#allocation4 + $0x470] sm:$0xff] %v2223
        %2280 = vst [vmem:[#allocation4 + $0x4b8] sm:$0xff] %v2225
        %2281 = vst [vmem:[#allocation4 + $0x500] sm:$0xff] %v2227
        %2282 = vst [vmem:[#allocation4 + $0x548] sm:$0xff] %v2229
        %2283 = vst [vmem:[#allocation4 + $0x590] sm:$0xff] %v2231
        %2284 = vst [vmem:[#allocation4 + $0x5d8] sm:$0xff] %v2233
        %2285 = vst [vmem:[#allocation4 + $0x620] sm:$0xff] %v2235
        %2286 = vst [vmem:[#allocation4 + $0x668] sm:$0xff] %v2237
        %2287 = vst [vmem:[#allocation4 + $0x6b0] sm:$0xff] %v2239
        %v2288 = vld [vmem:[#allocation2 + $0x18] sm:$0xf0]
        %v2289 = vld [vmem:[#allocation2 + $0x20] sm:$0xff]
        %v2290 = vld [vmem:[#allocation2 + $0x28] sm:$0xff]
        %v2291 = vld [vmem:[#allocation2 + $0x30] sm:$0xff]
        %v2292 = vld [vmem:[#allocation2 + $0x38] sm:$0xff]
        %v2293 = vld [vmem:[#allocation2 + $0x40] sm:$0xff]
        %v2294 = vld [vmem:[#allocation2 + $0x48] sm:$0xff]
        %v2295 = vld [vmem:[#allocation2 + $0x50] sm:$0xff]
        %v2296 = vld [vmem:[#allocation2 + $0x58] sm:$0xff]
        %v2297 = vld [vmem:[#allocation2 + $0x60] sm:$0xff]
        %v2298 = vld [vmem:[#allocation2 + $0x68] sm:$0xff]
        %v2299 = vld [vmem:[#allocation2 + $0x70] sm:$0xff]
        %v2300 = vld [vmem:[#allocation2 + $0x78] sm:$0xff]
        %v2301 = vld [vmem:[#allocation2 + $0x80] sm:$0xff]
        %v2302 = vld [vmem:[#allocation2 + $0x88] sm:$0xff]
        %v2303 = vld [vmem:[#allocation2 + $0x90] sm:$0xff]
        %v2304 = vld [vmem:[#allocation2 + $0x98] sm:$0xff]
        %v2305 = vld [vmem:[#allocation2 + $0xa0] sm:$0xff]
        %v2306 = vld [vmem:[#allocation2 + $0xa8] sm:$0xff]
        %v2307 = vld [vmem:[#allocation2 + $0xb0] sm:$0xff]
        %v2308 = vld [vmem:[#allocation2 + $0xb8] sm:$0xff]
        %v2309 = vld [vmem:[#allocation2 + $0xc0] sm:$0xff]
        %v2310 = vld [vmem:[#allocation2 + $0xc8] sm:$0xff]
        %v2311 = vld [vmem:[#allocation2 + $0xd0] sm:$0xff]
        %v2312 = vld [vmem:[#allocation2 + $0xd8] sm:$0x1f]
        %v2314 = vshrl.u32 %v2288, 16
        %v2316 = vrot.slane %v2314, 4
        %v2317 = vshll.u32 %v2288, 16
        %v2319 = vrot.slane %v2317, 5
        %v2320 = vor.u32 %v2316, %v2319
        %v2322 = vshrl.u32 %v2289, 16
        %v2324 = vrot.slane %v2322, 4
        %v2325 = vshll.u32 %v2289, 16
        %v2327 = vrot.slane %v2325, 5
        %v2328 = vor.u32 %v2324, %v2327
        %v2329 = vsel %vm983, %v2320, %v2328
        %v2331 = vshrl.u32 %v2290, 16
        %v2333 = vrot.slane %v2331, 4
        %v2334 = vshll.u32 %v2290, 16
        %v2336 = vrot.slane %v2334, 5
        %v2337 = vor.u32 %v2333, %v2336
        %v2338 = vsel %vm983, %v2328, %v2337
        %v2340 = vshrl.u32 %v2291, 16
        %v2342 = vrot.slane %v2340, 4
        %v2343 = vshll.u32 %v2291, 16
        %v2345 = vrot.slane %v2343, 5
        %v2346 = vor.u32 %v2342, %v2345
        %v2347 = vsel %vm983, %v2337, %v2346
        %v2349 = vshrl.u32 %v2292, 16
        %v2351 = vrot.slane %v2349, 4
        %v2352 = vshll.u32 %v2292, 16
        %v2354 = vrot.slane %v2352, 5
        %v2355 = vor.u32 %v2351, %v2354
        %v2356 = vsel %vm983, %v2346, %v2355
        %v2358 = vshrl.u32 %v2293, 16
        %v2360 = vrot.slane %v2358, 4
        %v2361 = vshll.u32 %v2293, 16
        %v2363 = vrot.slane %v2361, 5
        %v2364 = vor.u32 %v2360, %v2363
        %v2365 = vsel %vm983, %v2355, %v2364
        %v2367 = vshrl.u32 %v2294, 16
        %v2369 = vrot.slane %v2367, 4
        %v2370 = vshll.u32 %v2294, 16
        %v2372 = vrot.slane %v2370, 5
        %v2373 = vor.u32 %v2369, %v2372
        %v2374 = vsel %vm983, %v2364, %v2373
        %v2376 = vshrl.u32 %v2295, 16
        %v2378 = vrot.slane %v2376, 4
        %v2379 = vshll.u32 %v2295, 16
        %v2381 = vrot.slane %v2379, 5
        %v2382 = vor.u32 %v2378, %v2381
        %v2383 = vsel %vm983, %v2373, %v2382
        %v2385 = vshrl.u32 %v2296, 16
        %v2387 = vrot.slane %v2385, 4
        %v2388 = vshll.u32 %v2296, 16
        %v2390 = vrot.slane %v2388, 5
        %v2391 = vor.u32 %v2387, %v2390
        %v2392 = vsel %vm983, %v2382, %v2391
        %v2394 = vshrl.u32 %v2297, 16
        %v2396 = vrot.slane %v2394, 4
        %v2397 = vshll.u32 %v2297, 16
        %v2399 = vrot.slane %v2397, 5
        %v2400 = vor.u32 %v2396, %v2399
        %v2401 = vsel %vm983, %v2391, %v2400
        %v2403 = vshrl.u32 %v2298, 16
        %v2405 = vrot.slane %v2403, 4
        %v2406 = vshll.u32 %v2298, 16
        %v2408 = vrot.slane %v2406, 5
        %v2409 = vor.u32 %v2405, %v2408
        %v2410 = vsel %vm983, %v2400, %v2409
        %v2412 = vshrl.u32 %v2299, 16
        %v2414 = vrot.slane %v2412, 4
        %v2415 = vshll.u32 %v2299, 16
        %v2417 = vrot.slane %v2415, 5
        %v2418 = vor.u32 %v2414, %v2417
        %v2419 = vsel %vm983, %v2409, %v2418
        %v2421 = vshrl.u32 %v2300, 16
        %v2423 = vrot.slane %v2421, 4
        %v2424 = vshll.u32 %v2300, 16
        %v2426 = vrot.slane %v2424, 5
        %v2427 = vor.u32 %v2423, %v2426
        %v2428 = vsel %vm983, %v2418, %v2427
        %v2430 = vshrl.u32 %v2301, 16
        %v2432 = vrot.slane %v2430, 4
        %v2433 = vshll.u32 %v2301, 16
        %v2435 = vrot.slane %v2433, 5
        %v2436 = vor.u32 %v2432, %v2435
        %v2437 = vsel %vm983, %v2427, %v2436
        %v2439 = vshrl.u32 %v2302, 16
        %v2441 = vrot.slane %v2439, 4
        %v2442 = vshll.u32 %v2302, 16
        %v2444 = vrot.slane %v2442, 5
        %v2445 = vor.u32 %v2441, %v2444
        %v2446 = vsel %vm983, %v2436, %v2445
        %v2448 = vshrl.u32 %v2303, 16
        %v2450 = vrot.slane %v2448, 4
        %v2451 = vshll.u32 %v2303, 16
        %v2453 = vrot.slane %v2451, 5
        %v2454 = vor.u32 %v2450, %v2453
        %v2455 = vsel %vm983, %v2445, %v2454
        %v2457 = vshrl.u32 %v2304, 16
        %v2459 = vrot.slane %v2457, 4
        %v2460 = vshll.u32 %v2304, 16
        %v2462 = vrot.slane %v2460, 5
        %v2463 = vor.u32 %v2459, %v2462
        %v2464 = vsel %vm983, %v2454, %v2463
        %v2466 = vshrl.u32 %v2305, 16
        %v2468 = vrot.slane %v2466, 4
        %v2469 = vshll.u32 %v2305, 16
        %v2471 = vrot.slane %v2469, 5
        %v2472 = vor.u32 %v2468, %v2471
        %v2473 = vsel %vm983, %v2463, %v2472
        %v2475 = vshrl.u32 %v2306, 16
        %v2477 = vrot.slane %v2475, 4
        %v2478 = vshll.u32 %v2306, 16
        %v2480 = vrot.slane %v2478, 5
        %v2481 = vor.u32 %v2477, %v2480
        %v2482 = vsel %vm983, %v2472, %v2481
        %v2484 = vshrl.u32 %v2307, 16
        %v2486 = vrot.slane %v2484, 4
        %v2487 = vshll.u32 %v2307, 16
        %v2489 = vrot.slane %v2487, 5
        %v2490 = vor.u32 %v2486, %v2489
        %v2491 = vsel %vm983, %v2481, %v2490
        %v2493 = vshrl.u32 %v2308, 16
        %v2495 = vrot.slane %v2493, 4
        %v2496 = vshll.u32 %v2308, 16
        %v2498 = vrot.slane %v2496, 5
        %v2499 = vor.u32 %v2495, %v2498
        %v2500 = vsel %vm983, %v2490, %v2499
        %v2502 = vshrl.u32 %v2309, 16
        %v2504 = vrot.slane %v2502, 4
        %v2505 = vshll.u32 %v2309, 16
        %v2507 = vrot.slane %v2505, 5
        %v2508 = vor.u32 %v2504, %v2507
        %v2509 = vsel %vm983, %v2499, %v2508
        %v2511 = vshrl.u32 %v2310, 16
        %v2513 = vrot.slane %v2511, 4
        %v2514 = vshll.u32 %v2310, 16
        %v2516 = vrot.slane %v2514, 5
        %v2517 = vor.u32 %v2513, %v2516
        %v2518 = vsel %vm983, %v2508, %v2517
        %v2520 = vshrl.u32 %v2311, 16
        %v2522 = vrot.slane %v2520, 4
        %v2523 = vshll.u32 %v2311, 16
        %v2525 = vrot.slane %v2523, 5
        %v2526 = vor.u32 %v2522, %v2525
        %v2527 = vsel %vm983, %v2517, %v2526
        %v2529 = vshrl.u32 %v2312, 16
        %v2531 = vrot.slane %v2529, 4
        %v2532 = vshll.u32 %v2312, 16
        %v2534 = vrot.slane %v2532, 5
        %v2535 = vor.u32 %v2531, %v2534
        %v2536 = vsel %vm983, %v2526, %v2535
        %2561 = vst [vmem:[#allocation4 + $0x40] sm:$0xff] %v2329
        %2562 = vst [vmem:[#allocation4 + $0x88] sm:$0xff] %v2338
        %2563 = vst [vmem:[#allocation4 + $0xd0] sm:$0xff] %v2347
        %2564 = vst [vmem:[#allocation4 + $0x118] sm:$0xff] %v2356
        %2565 = vst [vmem:[#allocation4 + $0x160] sm:$0xff] %v2365
        %2566 = vst [vmem:[#allocation4 + $0x1a8] sm:$0xff] %v2374
        %2567 = vst [vmem:[#allocation4 + $0x1f0] sm:$0xff] %v2383
        %2568 = vst [vmem:[#allocation4 + $0x238] sm:$0xff] %v2392
        %2569 = vst [vmem:[#allocation4 + $0x280] sm:$0xff] %v2401
        %2570 = vst [vmem:[#allocation4 + $0x2c8] sm:$0xff] %v2410
        %2571 = vst [vmem:[#allocation4 + $0x310] sm:$0xff] %v2419
        %2572 = vst [vmem:[#allocation4 + $0x358] sm:$0xff] %v2428
        %2573 = vst [vmem:[#allocation4 + $0x3a0] sm:$0xff] %v2437
        %2574 = vst [vmem:[#allocation4 + $0x3e8] sm:$0xff] %v2446
        %2575 = vst [vmem:[#allocation4 + $0x430] sm:$0xff] %v2455
        %2576 = vst [vmem:[#allocation4 + $0x478] sm:$0xff] %v2464
        %2577 = vst [vmem:[#allocation4 + $0x4c0] sm:$0xff] %v2473
        %2578 = vst [vmem:[#allocation4 + $0x508] sm:$0xff] %v2482
        %2579 = vst [vmem:[#allocation4 + $0x550] sm:$0xff] %v2491
        %2580 = vst [vmem:[#allocation4 + $0x598] sm:$0xff] %v2500
        %2581 = vst [vmem:[#allocation4 + $0x5e0] sm:$0xff] %v2509
        %2582 = vst [vmem:[#allocation4 + $0x628] sm:$0xff] %v2518
        %2583 = vst [vmem:[#allocation4 + $0x670] sm:$0xff] %v2527
        %2584 = vst [vmem:[#allocation4 + $0x6b8] sm:$0xff] %v2536
        %v2585 = vld [vmem:[#allocation4] sm:$0xff]
        %v2586 = vld [vmem:[#allocation4 + $0x8] sm:$0xff]
        %v2587 = vld [vmem:[#allocation4 + $0x10] sm:$0xff]
        %v2588 = vld [vmem:[#allocation4 + $0x18] sm:$0xff]
        %v2589 = vld [vmem:[#allocation4 + $0x20] sm:$0xff]
        %v2590 = vld [vmem:[#allocation4 + $0x28] sm:$0xff]
        %v2591 = vld [vmem:[#allocation4 + $0x30] sm:$0xff]
        %v2592 = vld [vmem:[#allocation4 + $0x38] sm:$0xff]
        %v2593 = vld [vmem:[#allocation4 + $0x40] sm:$0xff]
        %v2594 = vld [vmem:[#allocation4 + $0x48] sm:$0xff]
        %v2595 = vld [vmem:[#allocation4 + $0x50] sm:$0xff]
        %v2596 = vld [vmem:[#allocation4 + $0x58] sm:$0xff]
        %v2597 = vld [vmem:[#allocation4 + $0x60] sm:$0xff]
        %v2598 = vld [vmem:[#allocation4 + $0x68] sm:$0xff]
        %v2599 = vld [vmem:[#allocation4 + $0x70] sm:$0xff]
        %v2600 = vld [vmem:[#allocation4 + $0x78] sm:$0xff]
        %v2601 = vld [vmem:[#allocation4 + $0x80] sm:$0xff]
        %v2602 = vld [vmem:[#allocation4 + $0x88] sm:$0xff]
        %v2603 = vld [vmem:[#allocation4 + $0x90] sm:$0xff]
        %v2604 = vld [vmem:[#allocation4 + $0x98] sm:$0xff]
        %v2605 = vld [vmem:[#allocation4 + $0xa0] sm:$0xff]
        %v2606 = vld [vmem:[#allocation4 + $0xa8] sm:$0xff]
        %v2607 = vld [vmem:[#allocation4 + $0xb0] sm:$0xff]
        %v2608 = vld [vmem:[#allocation4 + $0xb8] sm:$0xff]
        %v2609 = vld [vmem:[#allocation4 + $0xc0] sm:$0xff]
        %v2610 = vld [vmem:[#allocation4 + $0xc8] sm:$0xff]
        %v2611 = vld [vmem:[#allocation4 + $0xd0] sm:$0xff]
        %v2612 = vld [vmem:[#allocation4 + $0xd8] sm:$0xff]
        %v2613 = vld [vmem:[#allocation4 + $0xe0] sm:$0xff]
        %v2614 = vld [vmem:[#allocation4 + $0xe8] sm:$0xff]
        %v2615 = vld [vmem:[#allocation4 + $0xf0] sm:$0xff]
        %v2616 = vld [vmem:[#allocation4 + $0xf8] sm:$0xff]
        %v2617 = vld [vmem:[#allocation4 + $0x100] sm:$0xff]
        %v2618 = vld [vmem:[#allocation4 + $0x108] sm:$0xff]
        %v2619 = vld [vmem:[#allocation4 + $0x110] sm:$0xff]
        %v2620 = vld [vmem:[#allocation4 + $0x118] sm:$0xff]
        %v2621 = vld [vmem:[#allocation4 + $0x120] sm:$0xff]
        %v2622 = vld [vmem:[#allocation4 + $0x128] sm:$0xff]
        %v2623 = vld [vmem:[#allocation4 + $0x130] sm:$0xff]
        %v2624 = vld [vmem:[#allocation4 + $0x138] sm:$0xff]
        %v2625 = vld [vmem:[#allocation4 + $0x140] sm:$0xff]
        %v2626 = vld [vmem:[#allocation4 + $0x148] sm:$0xff]
        %v2627 = vld [vmem:[#allocation4 + $0x150] sm:$0xff]
        %v2628 = vld [vmem:[#allocation4 + $0x158] sm:$0xff]
        %v2629 = vld [vmem:[#allocation4 + $0x160] sm:$0xff]
        %v2630 = vld [vmem:[#allocation4 + $0x168] sm:$0xff]
        %v2631 = vld [vmem:[#allocation4 + $0x170] sm:$0xff]
        %v2632 = vld [vmem:[#allocation4 + $0x178] sm:$0xff]
        %v2633 = vld [vmem:[#allocation4 + $0x180] sm:$0xff]
        %v2634 = vld [vmem:[#allocation4 + $0x188] sm:$0xff]
        %v2635 = vld [vmem:[#allocation4 + $0x190] sm:$0xff]
        %v2636 = vld [vmem:[#allocation4 + $0x198] sm:$0xff]
        %v2637 = vld [vmem:[#allocation4 + $0x1a0] sm:$0xff]
        %v2638 = vld [vmem:[#allocation4 + $0x1a8] sm:$0xff]
        %v2639 = vld [vmem:[#allocation4 + $0x1b0] sm:$0xff]
        %v2640 = vld [vmem:[#allocation4 + $0x1b8] sm:$0xff]
        %v2641 = vld [vmem:[#allocation4 + $0x1c0] sm:$0xff]
        %v2642 = vld [vmem:[#allocation4 + $0x1c8] sm:$0xff]
        %v2643 = vld [vmem:[#allocation4 + $0x1d0] sm:$0xff]
        %v2644 = vld [vmem:[#allocation4 + $0x1d8] sm:$0xff]
        %v2645 = vld [vmem:[#allocation4 + $0x1e0] sm:$0xff]
        %v2646 = vld [vmem:[#allocation4 + $0x1e8] sm:$0xff]
        %v2647 = vld [vmem:[#allocation4 + $0x1f0] sm:$0xff]
        %v2648 = vld [vmem:[#allocation4 + $0x1f8] sm:$0xff]
        %v2649 = vld [vmem:[#allocation4 + $0x200] sm:$0xff]
        %v2650 = vld [vmem:[#allocation4 + $0x208] sm:$0xff]
        %v2651 = vld [vmem:[#allocation4 + $0x210] sm:$0xff]
        %v2652 = vld [vmem:[#allocation4 + $0x218] sm:$0xff]
        %v2653 = vld [vmem:[#allocation4 + $0x220] sm:$0xff]
        %v2654 = vld [vmem:[#allocation4 + $0x228] sm:$0xff]
        %v2655 = vld [vmem:[#allocation4 + $0x230] sm:$0xff]
        %v2656 = vld [vmem:[#allocation4 + $0x238] sm:$0xff]
        %v2657 = vld [vmem:[#allocation4 + $0x240] sm:$0xff]
        %v2658 = vld [vmem:[#allocation4 + $0x248] sm:$0xff]
        %v2659 = vld [vmem:[#allocation4 + $0x250] sm:$0xff]
        %v2660 = vld [vmem:[#allocation4 + $0x258] sm:$0xff]
        %v2661 = vld [vmem:[#allocation4 + $0x260] sm:$0xff]
        %v2662 = vld [vmem:[#allocation4 + $0x268] sm:$0xff]
        %v2663 = vld [vmem:[#allocation4 + $0x270] sm:$0xff]
        %v2664 = vld [vmem:[#allocation4 + $0x278] sm:$0xff]
        %v2665 = vld [vmem:[#allocation4 + $0x280] sm:$0xff]
        %v2666 = vld [vmem:[#allocation4 + $0x288] sm:$0xff]
        %v2667 = vld [vmem:[#allocation4 + $0x290] sm:$0xff]
        %v2668 = vld [vmem:[#allocation4 + $0x298] sm:$0xff]
        %v2669 = vld [vmem:[#allocation4 + $0x2a0] sm:$0xff]
        %v2670 = vld [vmem:[#allocation4 + $0x2a8] sm:$0xff]
        %v2671 = vld [vmem:[#allocation4 + $0x2b0] sm:$0xff]
        %v2672 = vld [vmem:[#allocation4 + $0x2b8] sm:$0xff]
        %v2673 = vld [vmem:[#allocation4 + $0x2c0] sm:$0xff]
        %v2674 = vld [vmem:[#allocation4 + $0x2c8] sm:$0xff]
        %v2675 = vld [vmem:[#allocation4 + $0x2d0] sm:$0xff]
        %v2676 = vld [vmem:[#allocation4 + $0x2d8] sm:$0xff]
        %v2677 = vld [vmem:[#allocation4 + $0x2e0] sm:$0xff]
        %v2678 = vld [vmem:[#allocation4 + $0x2e8] sm:$0xff]
        %v2679 = vld [vmem:[#allocation4 + $0x2f0] sm:$0xff]
        %v2680 = vld [vmem:[#allocation4 + $0x2f8] sm:$0xff]
        %v2681 = vld [vmem:[#allocation4 + $0x300] sm:$0xff]
        %v2682 = vld [vmem:[#allocation4 + $0x308] sm:$0xff]
        %v2683 = vld [vmem:[#allocation4 + $0x310] sm:$0xff]
        %v2684 = vld [vmem:[#allocation4 + $0x318] sm:$0xff]
        %v2685 = vld [vmem:[#allocation4 + $0x320] sm:$0xff]
        %v2686 = vld [vmem:[#allocation4 + $0x328] sm:$0xff]
        %v2687 = vld [vmem:[#allocation4 + $0x330] sm:$0xff]
        %v2688 = vld [vmem:[#allocation4 + $0x338] sm:$0xff]
        %v2689 = vld [vmem:[#allocation4 + $0x340] sm:$0xff]
        %v2690 = vld [vmem:[#allocation4 + $0x348] sm:$0xff]
        %v2691 = vld [vmem:[#allocation4 + $0x350] sm:$0xff]
        %v2692 = vld [vmem:[#allocation4 + $0x358] sm:$0xff]
        %v2693 = vld [vmem:[#allocation4 + $0x360] sm:$0xff]
        %v2694 = vld [vmem:[#allocation4 + $0x368] sm:$0xff]
        %v2695 = vld [vmem:[#allocation4 + $0x370] sm:$0xff]
        %v2696 = vld [vmem:[#allocation4 + $0x378] sm:$0xff]
        %v2697 = vld [vmem:[#allocation4 + $0x380] sm:$0xff]
        %v2698 = vld [vmem:[#allocation4 + $0x388] sm:$0xff]
        %v2699 = vld [vmem:[#allocation4 + $0x390] sm:$0xff]
        %v2700 = vld [vmem:[#allocation4 + $0x398] sm:$0xff]
        %v2701 = vld [vmem:[#allocation4 + $0x3a0] sm:$0xff]
        %v2702 = vld [vmem:[#allocation4 + $0x3a8] sm:$0xff]
        %v2703 = vld [vmem:[#allocation4 + $0x3b0] sm:$0xff]
        %v2704 = vld [vmem:[#allocation4 + $0x3b8] sm:$0xff]
        %v2705 = vld [vmem:[#allocation4 + $0x3c0] sm:$0xff]
        %v2706 = vld [vmem:[#allocation4 + $0x3c8] sm:$0xff]
        %v2707 = vld [vmem:[#allocation4 + $0x3d0] sm:$0xff]
        %v2708 = vld [vmem:[#allocation4 + $0x3d8] sm:$0xff]
        %v2709 = vld [vmem:[#allocation4 + $0x3e0] sm:$0xff]
        %v2710 = vld [vmem:[#allocation4 + $0x3e8] sm:$0xff]
        %v2711 = vld [vmem:[#allocation4 + $0x3f0] sm:$0xff]
        %v2712 = vld [vmem:[#allocation4 + $0x3f8] sm:$0xff]
        %v2713 = vld [vmem:[#allocation4 + $0x400] sm:$0xff]
        %v2714 = vld [vmem:[#allocation4 + $0x408] sm:$0xff]
        %v2715 = vld [vmem:[#allocation4 + $0x410] sm:$0xff]
        %v2716 = vld [vmem:[#allocation4 + $0x418] sm:$0xff]
        %v2717 = vld [vmem:[#allocation4 + $0x420] sm:$0xff]
        %v2718 = vld [vmem:[#allocation4 + $0x428] sm:$0xff]
        %v2719 = vld [vmem:[#allocation4 + $0x430] sm:$0xff]
        %v2720 = vld [vmem:[#allocation4 + $0x438] sm:$0xff]
        %v2721 = vld [vmem:[#allocation4 + $0x440] sm:$0xff]
        %v2722 = vld [vmem:[#allocation4 + $0x448] sm:$0xff]
        %v2723 = vld [vmem:[#allocation4 + $0x450] sm:$0xff]
        %v2724 = vld [vmem:[#allocation4 + $0x458] sm:$0xff]
        %v2725 = vld [vmem:[#allocation4 + $0x460] sm:$0xff]
        %v2726 = vld [vmem:[#allocation4 + $0x468] sm:$0xff]
        %v2727 = vld [vmem:[#allocation4 + $0x470] sm:$0xff]
        %v2728 = vld [vmem:[#allocation4 + $0x478] sm:$0xff]
        %v2729 = vld [vmem:[#allocation4 + $0x480] sm:$0xff]
        %v2730 = vld [vmem:[#allocation4 + $0x488] sm:$0xff]
        %v2731 = vld [vmem:[#allocation4 + $0x490] sm:$0xff]
        %v2732 = vld [vmem:[#allocation4 + $0x498] sm:$0xff]
        %v2733 = vld [vmem:[#allocation4 + $0x4a0] sm:$0xff]
        %v2734 = vld [vmem:[#allocation4 + $0x4a8] sm:$0xff]
        %v2735 = vld [vmem:[#allocation4 + $0x4b0] sm:$0xff]
        %v2736 = vld [vmem:[#allocation4 + $0x4b8] sm:$0xff]
        %v2737 = vld [vmem:[#allocation4 + $0x4c0] sm:$0xff]
        %v2738 = vld [vmem:[#allocation4 + $0x4c8] sm:$0xff]
        %v2739 = vld [vmem:[#allocation4 + $0x4d0] sm:$0xff]
        %v2740 = vld [vmem:[#allocation4 + $0x4d8] sm:$0xff]
        %v2741 = vld [vmem:[#allocation4 + $0x4e0] sm:$0xff]
        %v2742 = vld [vmem:[#allocation4 + $0x4e8] sm:$0xff]
        %v2743 = vld [vmem:[#allocation4 + $0x4f0] sm:$0xff]
        %v2744 = vld [vmem:[#allocation4 + $0x4f8] sm:$0xff]
        %v2745 = vld [vmem:[#allocation4 + $0x500] sm:$0xff]
        %v2746 = vld [vmem:[#allocation4 + $0x508] sm:$0xff]
        %v2747 = vld [vmem:[#allocation4 + $0x510] sm:$0xff]
        %v2748 = vld [vmem:[#allocation4 + $0x518] sm:$0xff]
        %v2749 = vld [vmem:[#allocation4 + $0x520] sm:$0xff]
        %v2750 = vld [vmem:[#allocation4 + $0x528] sm:$0xff]
        %v2751 = vld [vmem:[#allocation4 + $0x530] sm:$0xff]
        %v2752 = vld [vmem:[#allocation4 + $0x538] sm:$0xff]
        %v2753 = vld [vmem:[#allocation4 + $0x540] sm:$0xff]
        %v2754 = vld [vmem:[#allocation4 + $0x548] sm:$0xff]
        %v2755 = vld [vmem:[#allocation4 + $0x550] sm:$0xff]
        %v2756 = vld [vmem:[#allocation4 + $0x558] sm:$0xff]
        %v2757 = vld [vmem:[#allocation4 + $0x560] sm:$0xff]
        %v2758 = vld [vmem:[#allocation4 + $0x568] sm:$0xff]
        %v2759 = vld [vmem:[#allocation4 + $0x570] sm:$0xff]
        %v2760 = vld [vmem:[#allocation4 + $0x578] sm:$0xff]
        %v2761 = vld [vmem:[#allocation4 + $0x580] sm:$0xff]
        %v2762 = vld [vmem:[#allocation4 + $0x588] sm:$0xff]
        %v2763 = vld [vmem:[#allocation4 + $0x590] sm:$0xff]
        %v2764 = vld [vmem:[#allocation4 + $0x598] sm:$0xff]
        %v2765 = vld [vmem:[#allocation4 + $0x5a0] sm:$0xff]
        %v2766 = vld [vmem:[#allocation4 + $0x5a8] sm:$0xff]
        %v2767 = vld [vmem:[#allocation4 + $0x5b0] sm:$0xff]
        %v2768 = vld [vmem:[#allocation4 + $0x5b8] sm:$0xff]
        %v2769 = vld [vmem:[#allocation4 + $0x5c0] sm:$0xff]
        %v2770 = vld [vmem:[#allocation4 + $0x5c8] sm:$0xff]
        %v2771 = vld [vmem:[#allocation4 + $0x5d0] sm:$0xff]
        %v2772 = vld [vmem:[#allocation4 + $0x5d8] sm:$0xff]
        %v2773 = vld [vmem:[#allocation4 + $0x5e0] sm:$0xff]
        %v2774 = vld [vmem:[#allocation4 + $0x5e8] sm:$0xff]
        %v2775 = vld [vmem:[#allocation4 + $0x5f0] sm:$0xff]
        %v2776 = vld [vmem:[#allocation4 + $0x5f8] sm:$0xff]
        %v2777 = vld [vmem:[#allocation4 + $0x600] sm:$0xff]
        %v2778 = vld [vmem:[#allocation4 + $0x608] sm:$0xff]
        %v2779 = vld [vmem:[#allocation4 + $0x610] sm:$0xff]
        %v2780 = vld [vmem:[#allocation4 + $0x618] sm:$0xff]
        %v2781 = vld [vmem:[#allocation4 + $0x620] sm:$0xff]
        %v2782 = vld [vmem:[#allocation4 + $0x628] sm:$0xff]
        %v2783 = vld [vmem:[#allocation4 + $0x630] sm:$0xff]
        %v2784 = vld [vmem:[#allocation4 + $0x638] sm:$0xff]
        %v2785 = vld [vmem:[#allocation4 + $0x640] sm:$0xff]
        %v2786 = vld [vmem:[#allocation4 + $0x648] sm:$0xff]
        %v2787 = vld [vmem:[#allocation4 + $0x650] sm:$0xff]
        %v2788 = vld [vmem:[#allocation4 + $0x658] sm:$0xff]
        %v2789 = vld [vmem:[#allocation4 + $0x660] sm:$0xff]
        %v2790 = vld [vmem:[#allocation4 + $0x668] sm:$0xff]
        %v2791 = vld [vmem:[#allocation4 + $0x670] sm:$0xff]
        %v2792 = vld [vmem:[#allocation4 + $0x678] sm:$0xff]
        %v2793 = vld [vmem:[#allocation4 + $0x680] sm:$0xff]
        %v2794 = vld [vmem:[#allocation4 + $0x688] sm:$0xff]
        %v2795 = vld [vmem:[#allocation4 + $0x690] sm:$0xff]
        %v2796 = vld [vmem:[#allocation4 + $0x698] sm:$0xff]
        %v2797 = vld [vmem:[#allocation4 + $0x6a0] sm:$0xff]
        %v2798 = vld [vmem:[#allocation4 + $0x6a8] sm:$0xff]
        %v2799 = vld [vmem:[#allocation4 + $0x6b0] sm:$0xff]
        %v2800 = vld [vmem:[#allocation4 + $0x6b8] sm:$0xff]
        %v2801 = vld [vmem:[#allocation8] sm:$0xf]
        %v2802 = vld [vmem:[#allocation8 + $0x4] sm:$0xf]
        %v2803 = vld [vmem:[#allocation8 + $0x8] sm:$0xf]
        %v2804 = vld [vmem:[#allocation8 + $0xc] sm:$0xf]
        %v2805 = vld [vmem:[#allocation8 + $0x10] sm:$0xf]
        %v2806 = vld [vmem:[#allocation8 + $0x14] sm:$0xf]
        %v2807 = vld [vmem:[#allocation8 + $0x18] sm:$0xf]
        %v2808 = vld [vmem:[#allocation8 + $0x1c] sm:$0xf]
        %v2809 = vld [vmem:[#allocation8 + $0x20] sm:$0xf]
        %v2810 = vld [vmem:[#allocation8 + $0x24] sm:$0xf]
        %v2811 = vld [vmem:[#allocation8 + $0x28] sm:$0xf]
        %v2812 = vld [vmem:[#allocation8 + $0x2c] sm:$0xf]
        %v2813 = vld [vmem:[#allocation8 + $0x30] sm:$0xf]
        %v2814 = vld [vmem:[#allocation8 + $0x34] sm:$0xf]
        %v2815 = vld [vmem:[#allocation8 + $0x38] sm:$0xf]
        %v2816 = vld [vmem:[#allocation8 + $0x3c] sm:$0xf]
        %v2817 = vld [vmem:[#allocation8 + $0x40] sm:$0xf]
        %v2818 = vld [vmem:[#allocation8 + $0x44] sm:$0xf]
        %v2819 = vld [vmem:[#allocation8 + $0x48] sm:$0xf]
        %v2820 = vld [vmem:[#allocation8 + $0x4c] sm:$0xf]
        %v2821 = vld [vmem:[#allocation8 + $0x50] sm:$0xf]
        %v2822 = vld [vmem:[#allocation8 + $0x54] sm:$0xf]
        %v2823 = vld [vmem:[#allocation8 + $0x58] sm:$0xf]
        %v2824 = vld [vmem:[#allocation8 + $0x5c] sm:$0xf]
        %v2825 = vld [vmem:[#allocation8 + $0x60] sm:$0xf]
        %v2826 = vld [vmem:[#allocation8 + $0x64] sm:$0xf]
        %v2827 = vld [vmem:[#allocation8 + $0x68] sm:$0xf]
        %v2828 = vld [vmem:[#allocation8 + $0x6c] sm:$0xf]
        %v2829 = vld [vmem:[#allocation8 + $0x70] sm:$0xf]
        %v2830 = vld [vmem:[#allocation8 + $0x74] sm:$0xf]
        %v2831 = vld [vmem:[#allocation8 + $0x78] sm:$0xf]
        %v2832 = vld [vmem:[#allocation8 + $0x7c] sm:$0xf]
        %v2833 = vld [vmem:[#allocation8 + $0x80] sm:$0xf]
        %v2834 = vld [vmem:[#allocation8 + $0x84] sm:$0xf]
        %v2835 = vld [vmem:[#allocation8 + $0x88] sm:$0xf]
        %v2836 = vld [vmem:[#allocation8 + $0x8c] sm:$0xf]
        %v2837 = vld [vmem:[#allocation8 + $0x90] sm:$0xf]
        %v2838 = vld [vmem:[#allocation8 + $0x94] sm:$0xf]
        %v2839 = vld [vmem:[#allocation8 + $0x98] sm:$0xf]
        %v2840 = vld [vmem:[#allocation8 + $0x9c] sm:$0xf]
        %v2841 = vld [vmem:[#allocation8 + $0xa0] sm:$0xf]
        %v2842 = vld [vmem:[#allocation8 + $0xa4] sm:$0xf]
        %v2843 = vld [vmem:[#allocation8 + $0xa8] sm:$0xf]
        %v2844 = vld [vmem:[#allocation8 + $0xac] sm:$0xf]
        %v2845 = vld [vmem:[#allocation8 + $0xb0] sm:$0xf]
        %v2846 = vld [vmem:[#allocation8 + $0xb4] sm:$0xf]
        %v2847 = vld [vmem:[#allocation8 + $0xb8] sm:$0xf]
        %v2848 = vld [vmem:[#allocation8 + $0xbc] sm:$0xf]
        %v2849 = vld [vmem:[#allocation8 + $0xc0] sm:$0xf]
        %v2850 = vld [vmem:[#allocation8 + $0xc4] sm:$0xf]
        %v2851 = vld [vmem:[#allocation8 + $0xc8] sm:$0xf]
        %v2852 = vld [vmem:[#allocation8 + $0xcc] sm:$0xf]
        %v2853 = vld [vmem:[#allocation8 + $0xd0] sm:$0xf]
        %v2854 = vld [vmem:[#allocation8 + $0xd4] sm:$0xf]
        %v2855 = vld [vmem:[#allocation8 + $0xd8] sm:$0xf]
        %v2856 = vld [vmem:[#allocation8 + $0xdc] sm:$0xf]
        %v2857 = vld [vmem:[#allocation8 + $0xe0] sm:$0xf]
        %v2858 = vld [vmem:[#allocation8 + $0xe4] sm:$0xf]
        %v2859 = vld [vmem:[#allocation8 + $0xe8] sm:$0xf]
        %v2860 = vld [vmem:[#allocation8 + $0xec] sm:$0xf]
        %v2861 = vld [vmem:[#allocation8 + $0xf0] sm:$0xf]
        %v2862 = vld [vmem:[#allocation8 + $0xf4] sm:$0xf]
        %v2863 = vld [vmem:[#allocation8 + $0xf8] sm:$0xf]
        %v2864 = vld [vmem:[#allocation8 + $0xfc] sm:$0xf]
        %v2865 = vld [vmem:[#allocation8 + $0x100] sm:$0xf]
        %v2866 = vld [vmem:[#allocation8 + $0x104] sm:$0xf]
        %v2867 = vld [vmem:[#allocation8 + $0x108] sm:$0xf]
        %v2868 = vld [vmem:[#allocation8 + $0x10c] sm:$0xf]
        %v2869 = vld [vmem:[#allocation8 + $0x110] sm:$0xf]
        %v2870 = vld [vmem:[#allocation8 + $0x114] sm:$0xf]
        %v2871 = vld [vmem:[#allocation8 + $0x118] sm:$0xf]
        %v2872 = vld [vmem:[#allocation8 + $0x11c] sm:$0xf]
        %v2873 = vld [vmem:[#allocation8 + $0x120] sm:$0xf]
        %v2874 = vld [vmem:[#allocation8 + $0x124] sm:$0xf]
        %v2875 = vld [vmem:[#allocation8 + $0x128] sm:$0xf]
        %v2876 = vld [vmem:[#allocation8 + $0x12c] sm:$0xf]
        %v2877 = vld [vmem:[#allocation8 + $0x130] sm:$0xf]
        %v2878 = vld [vmem:[#allocation8 + $0x134] sm:$0xf]
        %v2879 = vld [vmem:[#allocation8 + $0x138] sm:$0xf]
        %v2880 = vld [vmem:[#allocation8 + $0x13c] sm:$0xf]
        %v2881 = vld [vmem:[#allocation8 + $0x140] sm:$0xf]
        %v2882 = vld [vmem:[#allocation8 + $0x144] sm:$0xf]
        %v2883 = vld [vmem:[#allocation8 + $0x148] sm:$0xf]
        %v2884 = vld [vmem:[#allocation8 + $0x14c] sm:$0xf]
        %v2885 = vld [vmem:[#allocation8 + $0x150] sm:$0xf]
        %v2886 = vld [vmem:[#allocation8 + $0x154] sm:$0xf]
        %v2887 = vld [vmem:[#allocation8 + $0x158] sm:$0xf]
        %v2888 = vld [vmem:[#allocation8 + $0x15c] sm:$0xf]
        %v2889 = vld [vmem:[#allocation8 + $0x160] sm:$0xf]
        %v2890 = vld [vmem:[#allocation8 + $0x164] sm:$0xf]
        %v2891 = vld [vmem:[#allocation8 + $0x168] sm:$0xf]
        %v2892 = vld [vmem:[#allocation8 + $0x16c] sm:$0xf]
        %v2893 = vld [vmem:[#allocation8 + $0x170] sm:$0xf]
        %v2894 = vld [vmem:[#allocation8 + $0x174] sm:$0xf]
        %v2895 = vld [vmem:[#allocation8 + $0x178] sm:$0xf]
        %v2896 = vld [vmem:[#allocation8 + $0x17c] sm:$0xf]
        %v2897 = vld [vmem:[#allocation8 + $0x180] sm:$0xf]
        %v2898 = vld [vmem:[#allocation8 + $0x184] sm:$0xf]
        %v2899 = vld [vmem:[#allocation8 + $0x188] sm:$0xf]
        %v2900 = vld [vmem:[#allocation8 + $0x18c] sm:$0xf]
        %v2901 = vld [vmem:[#allocation8 + $0x190] sm:$0xf]
        %v2902 = vld [vmem:[#allocation8 + $0x194] sm:$0xf]
        %v2903 = vld [vmem:[#allocation8 + $0x198] sm:$0xf]
        %v2904 = vld [vmem:[#allocation8 + $0x19c] sm:$0xf]
        %v2905 = vld [vmem:[#allocation8 + $0x1a0] sm:$0xf]
        %v2906 = vld [vmem:[#allocation8 + $0x1a4] sm:$0xf]
        %v2907 = vld [vmem:[#allocation8 + $0x1a8] sm:$0xf]
        %v2908 = vld [vmem:[#allocation8 + $0x1ac] sm:$0xf]
        %v2909 = vld [vmem:[#allocation8 + $0x1b0] sm:$0xf]
        %v2910 = vld [vmem:[#allocation8 + $0x1b4] sm:$0xf]
        %v2911 = vld [vmem:[#allocation8 + $0x1b8] sm:$0xf]
        %v2912 = vld [vmem:[#allocation8 + $0x1bc] sm:$0xf]
        %v2913 = vld [vmem:[#allocation8 + $0x1c0] sm:$0xf]
        %v2914 = vld [vmem:[#allocation8 + $0x1c4] sm:$0xf]
        %v2915 = vld [vmem:[#allocation8 + $0x1c8] sm:$0xf]
        %v2916 = vld [vmem:[#allocation8 + $0x1cc] sm:$0xf]
        %v2917 = vld [vmem:[#allocation8 + $0x1d0] sm:$0xf]
        %v2918 = vld [vmem:[#allocation8 + $0x1d4] sm:$0xf]
        %v2919 = vld [vmem:[#allocation8 + $0x1d8] sm:$0xf]
        %v2920 = vld [vmem:[#allocation8 + $0x1dc] sm:$0xf]
        %v2921 = vld [vmem:[#allocation8 + $0x1e0] sm:$0xf]
        %v2922 = vld [vmem:[#allocation8 + $0x1e4] sm:$0xf]
        %v2923 = vld [vmem:[#allocation8 + $0x1e8] sm:$0xf]
        %v2924 = vld [vmem:[#allocation8 + $0x1ec] sm:$0xf]
        %v2925 = vld [vmem:[#allocation8 + $0x1f0] sm:$0xf]
        %v2926 = vld [vmem:[#allocation8 + $0x1f4] sm:$0xf]
        %v2927 = vld [vmem:[#allocation8 + $0x1f8] sm:$0xf]
        %v2928 = vld [vmem:[#allocation8 + $0x1fc] sm:$0xf]
        %v2929 = vld [vmem:[#allocation8 + $0x200] sm:$0xf]
        %v2930 = vld [vmem:[#allocation8 + $0x204] sm:$0xf]
        %v2931 = vld [vmem:[#allocation8 + $0x208] sm:$0xf]
        %v2932 = vld [vmem:[#allocation8 + $0x20c] sm:$0xf]
        %v2933 = vld [vmem:[#allocation8 + $0x210] sm:$0xf]
        %v2934 = vld [vmem:[#allocation8 + $0x214] sm:$0xf]
        %v2935 = vld [vmem:[#allocation8 + $0x218] sm:$0xf]
        %v2936 = vld [vmem:[#allocation8 + $0x21c] sm:$0xf]
        %v2937 = vld [vmem:[#allocation8 + $0x220] sm:$0xf]
        %v2938 = vld [vmem:[#allocation8 + $0x224] sm:$0xf]
        %v2939 = vld [vmem:[#allocation8 + $0x228] sm:$0xf]
        %v2940 = vld [vmem:[#allocation8 + $0x22c] sm:$0xf]
        %v2941 = vld [vmem:[#allocation8 + $0x230] sm:$0xf]
        %v2942 = vld [vmem:[#allocation8 + $0x234] sm:$0xf]
        %v2943 = vld [vmem:[#allocation8 + $0x238] sm:$0xf]
        %v2944 = vld [vmem:[#allocation8 + $0x23c] sm:$0xf]
        %v3089 = vunpack.c.l.b16 %v2801
        %v3090 = vunpack.c.l.b16 %v2802
        %v3091 = vunpack.c.l.b16 %v2803
        %v3092 = vunpack.c.l.b16 %v2804
        %v3093 = vunpack.c.l.b16 %v2805
        %v3094 = vunpack.c.l.b16 %v2806
        %v3095 = vunpack.c.l.b16 %v2807
        %v3096 = vunpack.c.l.b16 %v2808
        %v3097 = vunpack.c.l.b16 %v2809
        %v3098 = vunpack.c.l.b16 %v2810
        %v3099 = vunpack.c.l.b16 %v2811
        %v3100 = vunpack.c.l.b16 %v2812
        %v3101 = vunpack.c.l.b16 %v2813
        %v3102 = vunpack.c.l.b16 %v2814
        %v3103 = vunpack.c.l.b16 %v2815
        %v3104 = vunpack.c.l.b16 %v2816
        %v3105 = vunpack.c.l.b16 %v2817
        %v3106 = vunpack.c.l.b16 %v2818
        %v3107 = vunpack.c.l.b16 %v2819
        %v3108 = vunpack.c.l.b16 %v2820
        %v3109 = vunpack.c.l.b16 %v2821
        %v3110 = vunpack.c.l.b16 %v2822
        %v3111 = vunpack.c.l.b16 %v2823
        %v3112 = vunpack.c.l.b16 %v2824
        %v3113 = vunpack.c.l.b16 %v2825
        %v3114 = vunpack.c.l.b16 %v2826
        %v3115 = vunpack.c.l.b16 %v2827
        %v3116 = vunpack.c.l.b16 %v2828
        %v3117 = vunpack.c.l.b16 %v2829
        %v3118 = vunpack.c.l.b16 %v2830
        %v3119 = vunpack.c.l.b16 %v2831
        %v3120 = vunpack.c.l.b16 %v2832
        %v3121 = vunpack.c.l.b16 %v2833
        %v3122 = vunpack.c.l.b16 %v2834
        %v3123 = vunpack.c.l.b16 %v2835
        %v3124 = vunpack.c.l.b16 %v2836
        %v3125 = vunpack.c.l.b16 %v2837
        %v3126 = vunpack.c.l.b16 %v2838
        %v3127 = vunpack.c.l.b16 %v2839
        %v3128 = vunpack.c.l.b16 %v2840
        %v3129 = vunpack.c.l.b16 %v2841
        %v3130 = vunpack.c.l.b16 %v2842
        %v3131 = vunpack.c.l.b16 %v2843
        %v3132 = vunpack.c.l.b16 %v2844
        %v3133 = vunpack.c.l.b16 %v2845
        %v3134 = vunpack.c.l.b16 %v2846
        %v3135 = vunpack.c.l.b16 %v2847
        %v3136 = vunpack.c.l.b16 %v2848
        %v3137 = vunpack.c.l.b16 %v2849
        %v3138 = vunpack.c.l.b16 %v2850
        %v3139 = vunpack.c.l.b16 %v2851
        %v3140 = vunpack.c.l.b16 %v2852
        %v3141 = vunpack.c.l.b16 %v2853
        %v3142 = vunpack.c.l.b16 %v2854
        %v3143 = vunpack.c.l.b16 %v2855
        %v3144 = vunpack.c.l.b16 %v2856
        %v3145 = vunpack.c.l.b16 %v2857
        %v3146 = vunpack.c.l.b16 %v2858
        %v3147 = vunpack.c.l.b16 %v2859
        %v3148 = vunpack.c.l.b16 %v2860
        %v3149 = vunpack.c.l.b16 %v2861
        %v3150 = vunpack.c.l.b16 %v2862
        %v3151 = vunpack.c.l.b16 %v2863
        %v3152 = vunpack.c.l.b16 %v2864
        %v3153 = vunpack.c.l.b16 %v2865
        %v3154 = vunpack.c.l.b16 %v2866
        %v3155 = vunpack.c.l.b16 %v2867
        %v3156 = vunpack.c.l.b16 %v2868
        %v3157 = vunpack.c.l.b16 %v2869
        %v3158 = vunpack.c.l.b16 %v2870
        %v3159 = vunpack.c.l.b16 %v2871
        %v3160 = vunpack.c.l.b16 %v2872
        %v3161 = vunpack.c.l.b16 %v2873
        %v3162 = vunpack.c.l.b16 %v2874
        %v3163 = vunpack.c.l.b16 %v2875
        %v3164 = vunpack.c.l.b16 %v2876
        %v3165 = vunpack.c.l.b16 %v2877
        %v3166 = vunpack.c.l.b16 %v2878
        %v3167 = vunpack.c.l.b16 %v2879
        %v3168 = vunpack.c.l.b16 %v2880
        %v3169 = vunpack.c.l.b16 %v2881
        %v3170 = vunpack.c.l.b16 %v2882
        %v3171 = vunpack.c.l.b16 %v2883
        %v3172 = vunpack.c.l.b16 %v2884
        %v3173 = vunpack.c.l.b16 %v2885
        %v3174 = vunpack.c.l.b16 %v2886
        %v3175 = vunpack.c.l.b16 %v2887
        %v3176 = vunpack.c.l.b16 %v2888
        %v3177 = vunpack.c.l.b16 %v2889
        %v3178 = vunpack.c.l.b16 %v2890
        %v3179 = vunpack.c.l.b16 %v2891
        %v3180 = vunpack.c.l.b16 %v2892
        %v3181 = vunpack.c.l.b16 %v2893
        %v3182 = vunpack.c.l.b16 %v2894
        %v3183 = vunpack.c.l.b16 %v2895
        %v3184 = vunpack.c.l.b16 %v2896
        %v3185 = vunpack.c.l.b16 %v2897
        %v3186 = vunpack.c.l.b16 %v2898
        %v3187 = vunpack.c.l.b16 %v2899
        %v3188 = vunpack.c.l.b16 %v2900
        %v3189 = vunpack.c.l.b16 %v2901
        %v3190 = vunpack.c.l.b16 %v2902
        %v3191 = vunpack.c.l.b16 %v2903
        %v3192 = vunpack.c.l.b16 %v2904
        %v3193 = vunpack.c.l.b16 %v2905
        %v3194 = vunpack.c.l.b16 %v2906
        %v3195 = vunpack.c.l.b16 %v2907
        %v3196 = vunpack.c.l.b16 %v2908
        %v3197 = vunpack.c.l.b16 %v2909
        %v3198 = vunpack.c.l.b16 %v2910
        %v3199 = vunpack.c.l.b16 %v2911
        %v3200 = vunpack.c.l.b16 %v2912
        %v3201 = vunpack.c.l.b16 %v2913
        %v3202 = vunpack.c.l.b16 %v2914
        %v3203 = vunpack.c.l.b16 %v2915
        %v3204 = vunpack.c.l.b16 %v2916
        %v3205 = vunpack.c.l.b16 %v2917
        %v3206 = vunpack.c.l.b16 %v2918
        %v3207 = vunpack.c.l.b16 %v2919
        %v3208 = vunpack.c.l.b16 %v2920
        %v3209 = vunpack.c.l.b16 %v2921
        %v3210 = vunpack.c.l.b16 %v2922
        %v3211 = vunpack.c.l.b16 %v2923
        %v3212 = vunpack.c.l.b16 %v2924
        %v3213 = vunpack.c.l.b16 %v2925
        %v3214 = vunpack.c.l.b16 %v2926
        %v3215 = vunpack.c.l.b16 %v2927
        %v3216 = vunpack.c.l.b16 %v2928
        %v3217 = vunpack.c.l.b16 %v2929
        %v3218 = vunpack.c.l.b16 %v2930
        %v3219 = vunpack.c.l.b16 %v2931
        %v3220 = vunpack.c.l.b16 %v2932
        %v3221 = vunpack.c.l.b16 %v2933
        %v3222 = vunpack.c.l.b16 %v2934
        %v3223 = vunpack.c.l.b16 %v2935
        %v3224 = vunpack.c.l.b16 %v2936
        %v3225 = vunpack.c.l.b16 %v2937
        %v3226 = vunpack.c.l.b16 %v2938
        %v3227 = vunpack.c.l.b16 %v2939
        %v3228 = vunpack.c.l.b16 %v2940
        %v3229 = vunpack.c.l.b16 %v2941
        %v3230 = vunpack.c.l.b16 %v2942
        %v3231 = vunpack.c.l.b16 %v2943
        %v3232 = vunpack.c.l.b16 %v2944
        %v3233 = vpack.c.b16 %v3090, %v3089
        %v3234 = vpack.c.b16 %v3092, %v3091
        %v3235 = vpack.c.b16 %v3094, %v3093
        %v3236 = vpack.c.b16 %v3096, %v3095
        %v3237 = vpack.c.b16 %v3098, %v3097
        %v3238 = vpack.c.b16 %v3100, %v3099
        %v3239 = vpack.c.b16 %v3102, %v3101
        %v3240 = vpack.c.b16 %v3104, %v3103
        %v3241 = vpack.c.b16 %v3106, %v3105
        %v3242 = vpack.c.b16 %v3108, %v3107
        %v3243 = vpack.c.b16 %v3110, %v3109
        %v3244 = vpack.c.b16 %v3112, %v3111
        %v3245 = vpack.c.b16 %v3114, %v3113
        %v3246 = vpack.c.b16 %v3116, %v3115
        %v3247 = vpack.c.b16 %v3118, %v3117
        %v3248 = vpack.c.b16 %v3120, %v3119
        %v3249 = vpack.c.b16 %v3122, %v3121
        %v3250 = vpack.c.b16 %v3124, %v3123
        %v3251 = vpack.c.b16 %v3126, %v3125
        %v3252 = vpack.c.b16 %v3128, %v3127
        %v3253 = vpack.c.b16 %v3130, %v3129
        %v3254 = vpack.c.b16 %v3132, %v3131
        %v3255 = vpack.c.b16 %v3134, %v3133
        %v3256 = vpack.c.b16 %v3136, %v3135
        %v3257 = vpack.c.b16 %v3138, %v3137
        %v3258 = vpack.c.b16 %v3140, %v3139
        %v3259 = vpack.c.b16 %v3142, %v3141
        %v3260 = vpack.c.b16 %v3144, %v3143
        %v3261 = vpack.c.b16 %v3146, %v3145
        %v3262 = vpack.c.b16 %v3148, %v3147
        %v3263 = vpack.c.b16 %v3150, %v3149
        %v3264 = vpack.c.b16 %v3152, %v3151
        %v3265 = vpack.c.b16 %v3154, %v3153
        %v3266 = vpack.c.b16 %v3156, %v3155
        %v3267 = vpack.c.b16 %v3158, %v3157
        %v3268 = vpack.c.b16 %v3160, %v3159
        %v3269 = vpack.c.b16 %v3162, %v3161
        %v3270 = vpack.c.b16 %v3164, %v3163
        %v3271 = vpack.c.b16 %v3166, %v3165
        %v3272 = vpack.c.b16 %v3168, %v3167
        %v3273 = vpack.c.b16 %v3170, %v3169
        %v3274 = vpack.c.b16 %v3172, %v3171
        %v3275 = vpack.c.b16 %v3174, %v3173
        %v3276 = vpack.c.b16 %v3176, %v3175
        %v3277 = vpack.c.b16 %v3178, %v3177
        %v3278 = vpack.c.b16 %v3180, %v3179
        %v3279 = vpack.c.b16 %v3182, %v3181
        %v3280 = vpack.c.b16 %v3184, %v3183
        %v3281 = vpack.c.b16 %v3186, %v3185
        %v3282 = vpack.c.b16 %v3188, %v3187
        %v3283 = vpack.c.b16 %v3190, %v3189
        %v3284 = vpack.c.b16 %v3192, %v3191
        %v3285 = vpack.c.b16 %v3194, %v3193
        %v3286 = vpack.c.b16 %v3196, %v3195
        %v3287 = vpack.c.b16 %v3198, %v3197
        %v3288 = vpack.c.b16 %v3200, %v3199
        %v3289 = vpack.c.b16 %v3202, %v3201
        %v3290 = vpack.c.b16 %v3204, %v3203
        %v3291 = vpack.c.b16 %v3206, %v3205
        %v3292 = vpack.c.b16 %v3208, %v3207
        %v3293 = vpack.c.b16 %v3210, %v3209
        %v3294 = vpack.c.b16 %v3212, %v3211
        %v3295 = vpack.c.b16 %v3214, %v3213
        %v3296 = vpack.c.b16 %v3216, %v3215
        %v3297 = vpack.c.b16 %v3218, %v3217
        %v3298 = vpack.c.b16 %v3220, %v3219
        %v3299 = vpack.c.b16 %v3222, %v3221
        %v3300 = vpack.c.b16 %v3224, %v3223
        %v3301 = vpack.c.b16 %v3226, %v3225
        %v3302 = vpack.c.b16 %v3228, %v3227
        %v3303 = vpack.c.b16 %v3230, %v3229
        %v3304 = vpack.c.b16 %v3232, %v3231
        %3377 = vmatprep.subr.bf16.mxu0 0
        %3378 = vmatpush1.bf16.msra.mxu0 %v3233
        %3379 = vmatprep.subr.bf16.mxu0 0
        %3380 = vmatpush1.bf16.msra.mxu0 %v3234
        %3381 = vmatprep.subr.bf16.mxu0 0
        %3382 = vmatpush1.bf16.msra.mxu0 %v3235
        %3383 = vmatprep.subr.bf16.mxu0 0
        %3384 = vmatpush1.bf16.msra.mxu0 %v3236
        %3385 = vmatprep.subr.bf16.mxu0 0
        %3386 = vmatpush1.bf16.msra.mxu0 %v3237
        %3387 = vmatprep.subr.bf16.mxu0 0
        %3388 = vmatpush1.bf16.msra.mxu0 %v3238
        %3389 = vmatprep.subr.bf16.mxu0 0
        %3390 = vmatpush1.bf16.msra.mxu0 %v3239
        %3391 = vmatprep.subr.bf16.mxu0 0
        %3392 = vmatpush1.bf16.msra.mxu0 %v3240
        %3393 = vmatprep.subr.bf16.mxu0 0
        %3394 = vmatpush1.bf16.msra.mxu0 %v3241
        %3395 = vmatprep.subr.bf16.mxu0 0
        %3396 = vmatpush1.bf16.msra.mxu0 %v3242
        %3397 = vmatprep.subr.bf16.mxu0 0
        %3398 = vmatpush1.bf16.msra.mxu0 %v3243
        %3399 = vmatprep.subr.bf16.mxu0 0
        %3400 = vmatpush1.bf16.msra.mxu0 %v3244
        %3401 = vmatprep.subr.bf16.mxu0 0
        %3402 = vmatpush1.bf16.msra.mxu0 %v3245
        %3403 = vmatprep.subr.bf16.mxu0 0
        %3404 = vmatpush1.bf16.msra.mxu0 %v3246
        %3405 = vmatprep.subr.bf16.mxu0 0
        %3406 = vmatpush1.bf16.msra.mxu0 %v3247
        %3407 = vmatprep.subr.bf16.mxu0 0
        %3408 = vmatpush1.bf16.msra.mxu0 %v3248
        %3409 = vmatprep.mubr.bf16.mxu0 %v2586
        %3410 = vmatmul.mubr.bf16.gmra.mrb[0].mxu0 %v2585
        %v3411 = vpop.f32.mrb[0].mxu0
        %v3412 = vadd.f32 0.0, %v3411
        %v3413 = vpop.f32.mrb[0].mxu0
        %v3414 = vpop.f32.mrb[0].mxu0
        %v3415 = vadd.f32 0.0, %v3414
        %v3416 = vpop.f32.mrb[0].mxu0
        %3417 = vmatprep.mubr.bf16.mxu0 %v2595
        %3418 = vmatmul.mubr.bf16.gmra.mrb[0].mxu0 %v2594
        %v3419 = vpop.f32.mrb[0].mxu0
        %v3420 = vadd.f32 0.0, %v3419
        %v3421 = vpop.f32.mrb[0].mxu0
        %v3422 = vpop.f32.mrb[0].mxu0
        %v3423 = vadd.f32 0.0, %v3422
        %v3424 = vpop.f32.mrb[0].mxu0
        %3425 = vmatprep.mubr.bf16.mxu0 %v2604
        %3426 = vmatmul.mubr.bf16.gmra.mrb[0].mxu0 %v2603
        %v3427 = vpop.f32.mrb[0].mxu0
        %v3428 = vadd.f32 0.0, %v3427
        %v3429 = vpop.f32.mrb[0].mxu0
        %v3430 = vpop.f32.mrb[0].mxu0
        %v3431 = vadd.f32 0.0, %v3430
        %v3432 = vpop.f32.mrb[0].mxu0
        %3433 = vmatprep.mubr.bf16.mxu0 %v2613
        %3434 = vmatmul.mubr.bf16.gmra.mrb[0].mxu0 %v2612
        %v3435 = vpop.f32.mrb[0].mxu0
        %v3436 = vadd.f32 0.0, %v3435
        %v3437 = vpop.f32.mrb[0].mxu0
        %v3438 = vpop.f32.mrb[0].mxu0
        %v3439 = vadd.f32 0.0, %v3438
        %v3440 = vpop.f32.mrb[0].mxu0
        %3441 = vmatprep.mubr.bf16.mxu0 %v2622
        %3442 = vmatmul.mubr.bf16.gmra.mrb[0].mxu0 %v2621
        %v3443 = vpop.f32.mrb[0].mxu0
        %v3444 = vadd.f32 0.0, %v3443
        %v3445 = vpop.f32.mrb[0].mxu0
        %v3446 = vpop.f32.mrb[0].mxu0
        %v3447 = vadd.f32 0.0, %v3446
        %v3448 = vpop.f32.mrb[0].mxu0
        %3449 = vmatprep.mubr.bf16.mxu0 %v2631
        %3450 = vmatmul.mubr.bf16.gmra.mrb[0].mxu0 %v2630
        %v3451 = vpop.f32.mrb[0].mxu0
        %v3452 = vadd.f32 0.0, %v3451
        %v3453 = vpop.f32.mrb[0].mxu0
        %v3454 = vpop.f32.mrb[0].mxu0
        %v3455 = vadd.f32 0.0, %v3454
        %v3456 = vpop.f32.mrb[0].mxu0
        %3457 = vmatprep.mubr.bf16.mxu0 %v2640
        %3458 = vmatmul.mubr.bf16.gmra.mrb[0].mxu0 %v2639
        %v3459 = vpop.f32.mrb[0].mxu0
        %v3460 = vadd.f32 0.0, %v3459
        %v3461 = vpop.f32.mrb[0].mxu0
        %v3462 = vpop.f32.mrb[0].mxu0
        %v3463 = vadd.f32 0.0, %v3462
        %v3464 = vpop.f32.mrb[0].mxu0
        %3465 = vmatprep.mubr.bf16.mxu0 %v2649
        %3466 = vmatmul.mubr.bf16.gmra.mrb[0].mxu0 %v2648
        %v3467 = vpop.f32.mrb[0].mxu0
        %v3468 = vadd.f32 0.0, %v3467
        %v3469 = vpop.f32.mrb[0].mxu0
        %v3470 = vpop.f32.mrb[0].mxu0
        %v3471 = vadd.f32 0.0, %v3470
        %v3472 = vpop.f32.mrb[0].mxu0
        %3473 = vmatprep.mubr.bf16.mxu0 %v2658
        %3474 = vmatmul.mubr.bf16.gmra.mrb[0].mxu0 %v2657
        %v3475 = vpop.f32.mrb[0].mxu0
        %v3476 = vadd.f32 0.0, %v3475
        %v3477 = vpop.f32.mrb[0].mxu0
        %v3478 = vpop.f32.mrb[0].mxu0
        %v3479 = vadd.f32 0.0, %v3478
        %v3480 = vpop.f32.mrb[0].mxu0
        %3481 = vmatprep.mubr.bf16.mxu0 %v2667
        %3482 = vmatmul.mubr.bf16.gmra.mrb[0].mxu0 %v2666
        %v3483 = vpop.f32.mrb[0].mxu0
        %v3484 = vadd.f32 0.0, %v3483
        %v3485 = vpop.f32.mrb[0].mxu0
        %v3486 = vpop.f32.mrb[0].mxu0
        %v3487 = vadd.f32 0.0, %v3486
        %v3488 = vpop.f32.mrb[0].mxu0
        %3489 = vmatprep.mubr.bf16.mxu0 %v2676
        %3490 = vmatmul.mubr.bf16.gmra.mrb[0].mxu0 %v2675
        %v3491 = vpop.f32.mrb[0].mxu0
        %v3492 = vadd.f32 0.0, %v3491
        %v3493 = vpop.f32.mrb[0].mxu0
        %v3494 = vpop.f32.mrb[0].mxu0
        %v3495 = vadd.f32 0.0, %v3494
        %v3496 = vpop.f32.mrb[0].mxu0
        %3497 = vmatprep.mubr.bf16.mxu0 %v2685
        %3498 = vmatmul.mubr.bf16.gmra.mrb[0].mxu0 %v2684
        %v3499 = vpop.f32.mrb[0].mxu0
        %v3500 = vadd.f32 0.0, %v3499
        %v3501 = vpop.f32.mrb[0].mxu0
        %v3502 = vpop.f32.mrb[0].mxu0
        %v3503 = vadd.f32 0.0, %v3502
        %v3504 = vpop.f32.mrb[0].mxu0
        %3505 = vmatprep.mubr.bf16.mxu0 %v2694
        %3506 = vmatmul.mubr.bf16.gmra.mrb[0].mxu0 %v2693
        %v3507 = vpop.f32.mrb[0].mxu0
        %v3508 = vadd.f32 0.0, %v3507
        %v3509 = vpop.f32.mrb[0].mxu0
        %v3510 = vpop.f32.mrb[0].mxu0
        %v3511 = vadd.f32 0.0, %v3510
        %v3512 = vpop.f32.mrb[0].mxu0
        %3513 = vmatprep.mubr.bf16.mxu0 %v2703
        %3514 = vmatmul.mubr.bf16.gmra.mrb[0].mxu0 %v2702
        %v3515 = vpop.f32.mrb[0].mxu0
        %v3516 = vadd.f32 0.0, %v3515
        %v3517 = vpop.f32.mrb[0].mxu0
        %v3518 = vpop.f32.mrb[0].mxu0
        %v3519 = vadd.f32 0.0, %v3518
        %v3520 = vpop.f32.mrb[0].mxu0
        %3521 = vmatprep.mubr.bf16.mxu0 %v2712
        %3522 = vmatmul.mubr.bf16.gmra.mrb[0].mxu0 %v2711
        %v3523 = vpop.f32.mrb[0].mxu0
        %v3524 = vadd.f32 0.0, %v3523
        %v3525 = vpop.f32.mrb[0].mxu0
        %v3526 = vpop.f32.mrb[0].mxu0
        %v3527 = vadd.f32 0.0, %v3526
        %v3528 = vpop.f32.mrb[0].mxu0
        %3529 = vmatprep.mubr.bf16.mxu0 %v2721
        %3530 = vmatmul.mubr.bf16.gmra.mrb[0].mxu0 %v2720
        %v3531 = vpop.f32.mrb[0].mxu0
        %v3532 = vadd.f32 0.0, %v3531
        %v3533 = vpop.f32.mrb[0].mxu0
        %v3534 = vpop.f32.mrb[0].mxu0
        %v3535 = vadd.f32 0.0, %v3534
        %v3536 = vpop.f32.mrb[0].mxu0
        %3537 = vmatprep.mubr.bf16.mxu0 %v2730
        %3538 = vmatmul.mubr.bf16.gmra.mrb[0].mxu0 %v2729
        %v3539 = vpop.f32.mrb[0].mxu0
        %v3540 = vadd.f32 0.0, %v3539
        %v3541 = vpop.f32.mrb[0].mxu0
        %v3542 = vpop.f32.mrb[0].mxu0
        %v3543 = vadd.f32 0.0, %v3542
        %v3544 = vpop.f32.mrb[0].mxu0
        %3545 = vmatprep.mubr.bf16.mxu0 %v2739
        %3546 = vmatmul.mubr.bf16.gmra.mrb[0].mxu0 %v2738
        %v3547 = vpop.f32.mrb[0].mxu0
        %v3548 = vadd.f32 0.0, %v3547
        %v3549 = vpop.f32.mrb[0].mxu0
        %v3550 = vpop.f32.mrb[0].mxu0
        %v3551 = vadd.f32 0.0, %v3550
        %v3552 = vpop.f32.mrb[0].mxu0
        %3553 = vmatprep.mubr.bf16.mxu0 %v2748
        %3554 = vmatmul.mubr.bf16.gmra.mrb[0].mxu0 %v2747
        %v3555 = vpop.f32.mrb[0].mxu0
        %v3556 = vadd.f32 0.0, %v3555
        %v3557 = vpop.f32.mrb[0].mxu0
        %v3558 = vpop.f32.mrb[0].mxu0
        %v3559 = vadd.f32 0.0, %v3558
        %v3560 = vpop.f32.mrb[0].mxu0
        %3561 = vmatprep.mubr.bf16.mxu0 %v2757
        %3562 = vmatmul.mubr.bf16.gmra.mrb[0].mxu0 %v2756
        %v3563 = vpop.f32.mrb[0].mxu0
        %v3564 = vadd.f32 0.0, %v3563
        %v3565 = vpop.f32.mrb[0].mxu0
        %v3566 = vpop.f32.mrb[0].mxu0
        %v3567 = vadd.f32 0.0, %v3566
        %v3568 = vpop.f32.mrb[0].mxu0
        %3569 = vmatprep.mubr.bf16.mxu0 %v2766
        %3570 = vmatmul.mubr.bf16.gmra.mrb[0].mxu0 %v2765
        %v3571 = vpop.f32.mrb[0].mxu0
        %v3572 = vadd.f32 0.0, %v3571
        %v3573 = vpop.f32.mrb[0].mxu0
        %v3574 = vpop.f32.mrb[0].mxu0
        %v3575 = vadd.f32 0.0, %v3574
        %v3576 = vpop.f32.mrb[0].mxu0
        %3577 = vmatprep.mubr.bf16.mxu0 %v2775
        %3578 = vmatmul.mubr.bf16.gmra.mrb[0].mxu0 %v2774
        %v3579 = vpop.f32.mrb[0].mxu0
        %v3580 = vadd.f32 0.0, %v3579
        %v3581 = vpop.f32.mrb[0].mxu0
        %v3582 = vpop.f32.mrb[0].mxu0
        %v3583 = vadd.f32 0.0, %v3582
        %v3584 = vpop.f32.mrb[0].mxu0
        %3585 = vmatprep.mubr.bf16.mxu0 %v2784
        %3586 = vmatmul.mubr.bf16.gmra.mrb[0].mxu0 %v2783
        %v3587 = vpop.f32.mrb[0].mxu0
        %v3588 = vadd.f32 0.0, %v3587
        %v3589 = vpop.f32.mrb[0].mxu0
        %v3590 = vpop.f32.mrb[0].mxu0
        %v3591 = vadd.f32 0.0, %v3590
        %v3592 = vpop.f32.mrb[0].mxu0
        %3593 = vmatprep.mubr.bf16.mxu0 %v2793
        %3594 = vmatmul.mubr.bf16.gmra.mrb[0].mxu0 %v2792
        %v3595 = vpop.f32.mrb[0].mxu0
        %v3596 = vadd.f32 0.0, %v3595
        %v3597 = vpop.f32.mrb[0].mxu0
        %v3598 = vpop.f32.mrb[0].mxu0
        %v3599 = vadd.f32 0.0, %v3598
        %v3600 = vpop.f32.mrb[0].mxu0
        %3601 = vdwg.mxu0
        %3602 = vmatprep.subr.bf16.mxu0 0
        %3603 = vmatpush1.bf16.msra.mxu0 %v3249
        %3604 = vmatprep.subr.bf16.mxu0 0
        %3605 = vmatpush1.bf16.msra.mxu0 %v3250
        %3606 = vmatprep.subr.bf16.mxu0 0
        %3607 = vmatpush1.bf16.msra.mxu0 %v3251
        %3608 = vmatprep.subr.bf16.mxu0 0
        %3609 = vmatpush1.bf16.msra.mxu0 %v3252
        %3610 = vmatprep.subr.bf16.mxu0 0
        %3611 = vmatpush1.bf16.msra.mxu0 %v3253
        %3612 = vmatprep.subr.bf16.mxu0 0
        %3613 = vmatpush1.bf16.msra.mxu0 %v3254
        %3614 = vmatprep.subr.bf16.mxu0 0
        %3615 = vmatpush1.bf16.msra.mxu0 %v3255
        %3616 = vmatprep.subr.bf16.mxu0 0
        %3617 = vmatpush1.bf16.msra.mxu0 %v3256
        %3618 = vmatprep.subr.bf16.mxu0 0
        %3619 = vmatpush1.bf16.msra.mxu0 %v3257
        %3620 = vmatprep.subr.bf16.mxu0 0
        %3621 = vmatpush1.bf16.msra.mxu0 %v3258
        %3622 = vmatprep.subr.bf16.mxu0 0
        %3623 = vmatpush1.bf16.msra.mxu0 %v3259
        %3624 = vmatprep.subr.bf16.mxu0 0
        %3625 = vmatpush1.bf16.msra.mxu0 %v3260
        %3626 = vmatprep.subr.bf16.mxu0 0
        %3627 = vmatpush1.bf16.msra.mxu0 %v3261
        %3628 = vmatprep.subr.bf16.mxu0 0
        %3629 = vmatpush1.bf16.msra.mxu0 %v3262
        %3630 = vmatprep.subr.bf16.mxu0 0
        %3631 = vmatpush1.bf16.msra.mxu0 %v3263
        %3632 = vmatprep.subr.bf16.mxu0 0
        %3633 = vmatpush1.bf16.msra.mxu0 %v3264
        %3634 = vmatprep.mubr.bf16.mxu0 %v2588
        %3635 = vmatmul.mubr.bf16.gmra.mrb[0].mxu0 %v2587
        %v3636 = vpop.f32.mrb[0].mxu0
        %v3637 = vadd.f32 %v3412, %v3636
        %v3638 = vpop.f32.mrb[0].mxu0
        %v3639 = vpop.f32.mrb[0].mxu0
        %v3640 = vadd.f32 %v3415, %v3639
        %v3641 = vpop.f32.mrb[0].mxu0
        %3642 = vmatprep.mubr.bf16.mxu0 %v2597
        %3643 = vmatmul.mubr.bf16.gmra.mrb[0].mxu0 %v2596
        %v3644 = vpop.f32.mrb[0].mxu0
        %v3645 = vadd.f32 %v3420, %v3644
        %v3646 = vpop.f32.mrb[0].mxu0
        %v3647 = vpop.f32.mrb[0].mxu0
        %v3648 = vadd.f32 %v3423, %v3647
        %v3649 = vpop.f32.mrb[0].mxu0
        %3650 = vmatprep.mubr.bf16.mxu0 %v2606
        %3651 = vmatmul.mubr.bf16.gmra.mrb[0].mxu0 %v2605
        %v3652 = vpop.f32.mrb[0].mxu0
        %v3653 = vadd.f32 %v3428, %v3652
        %v3654 = vpop.f32.mrb[0].mxu0
        %v3655 = vpop.f32.mrb[0].mxu0
        %v3656 = vadd.f32 %v3431, %v3655
        %v3657 = vpop.f32.mrb[0].mxu0
        %3658 = vmatprep.mubr.bf16.mxu0 %v2615
        %3659 = vmatmul.mubr.bf16.gmra.mrb[0].mxu0 %v2614
        %v3660 = vpop.f32.mrb[0].mxu0
        %v3661 = vadd.f32 %v3436, %v3660
        %v3662 = vpop.f32.mrb[0].mxu0
        %v3663 = vpop.f32.mrb[0].mxu0
        %v3664 = vadd.f32 %v3439, %v3663
        %v3665 = vpop.f32.mrb[0].mxu0
        %3666 = vmatprep.mubr.bf16.mxu0 %v2624
        %3667 = vmatmul.mubr.bf16.gmra.mrb[0].mxu0 %v2623
        %v3668 = vpop.f32.mrb[0].mxu0
        %v3669 = vadd.f32 %v3444, %v3668
        %v3670 = vpop.f32.mrb[0].mxu0
        %v3671 = vpop.f32.mrb[0].mxu0
        %v3672 = vadd.f32 %v3447, %v3671
        %v3673 = vpop.f32.mrb[0].mxu0
        %3674 = vmatprep.mubr.bf16.mxu0 %v2633
        %3675 = vmatmul.mubr.bf16.gmra.mrb[0].mxu0 %v2632
        %v3676 = vpop.f32.mrb[0].mxu0
        %v3677 = vadd.f32 %v3452, %v3676
        %v3678 = vpop.f32.mrb[0].mxu0
        %v3679 = vpop.f32.mrb[0].mxu0
        %v3680 = vadd.f32 %v3455, %v3679
        %v3681 = vpop.f32.mrb[0].mxu0
        %3682 = vmatprep.mubr.bf16.mxu0 %v2642
        %3683 = vmatmul.mubr.bf16.gmra.mrb[0].mxu0 %v2641
        %v3684 = vpop.f32.mrb[0].mxu0
        %v3685 = vadd.f32 %v3460, %v3684
        %v3686 = vpop.f32.mrb[0].mxu0
        %v3687 = vpop.f32.mrb[0].mxu0
        %v3688 = vadd.f32 %v3463, %v3687
        %v3689 = vpop.f32.mrb[0].mxu0
        %3690 = vmatprep.mubr.bf16.mxu0 %v2651
        %3691 = vmatmul.mubr.bf16.gmra.mrb[0].mxu0 %v2650
        %v3692 = vpop.f32.mrb[0].mxu0
        %v3693 = vadd.f32 %v3468, %v3692
        %v3694 = vpop.f32.mrb[0].mxu0
        %v3695 = vpop.f32.mrb[0].mxu0
        %v3696 = vadd.f32 %v3471, %v3695
        %v3697 = vpop.f32.mrb[0].mxu0
        %3698 = vmatprep.mubr.bf16.mxu0 %v2660
        %3699 = vmatmul.mubr.bf16.gmra.mrb[0].mxu0 %v2659
        %v3700 = vpop.f32.mrb[0].mxu0
        %v3701 = vadd.f32 %v3476, %v3700
        %v3702 = vpop.f32.mrb[0].mxu0
        %v3703 = vpop.f32.mrb[0].mxu0
        %v3704 = vadd.f32 %v3479, %v3703
        %v3705 = vpop.f32.mrb[0].mxu0
        %3706 = vmatprep.mubr.bf16.mxu0 %v2669
        %3707 = vmatmul.mubr.bf16.gmra.mrb[0].mxu0 %v2668
        %v3708 = vpop.f32.mrb[0].mxu0
        %v3709 = vadd.f32 %v3484, %v3708
        %v3710 = vpop.f32.mrb[0].mxu0
        %v3711 = vpop.f32.mrb[0].mxu0
        %v3712 = vadd.f32 %v3487, %v3711
        %v3713 = vpop.f32.mrb[0].mxu0
        %3714 = vmatprep.mubr.bf16.mxu0 %v2678
        %3715 = vmatmul.mubr.bf16.gmra.mrb[0].mxu0 %v2677
        %v3716 = vpop.f32.mrb[0].mxu0
        %v3717 = vadd.f32 %v3492, %v3716
        %v3718 = vpop.f32.mrb[0].mxu0
        %v3719 = vpop.f32.mrb[0].mxu0
        %v3720 = vadd.f32 %v3495, %v3719
        %v3721 = vpop.f32.mrb[0].mxu0
        %3722 = vmatprep.mubr.bf16.mxu0 %v2687
        %3723 = vmatmul.mubr.bf16.gmra.mrb[0].mxu0 %v2686
        %v3724 = vpop.f32.mrb[0].mxu0
        %v3725 = vadd.f32 %v3500, %v3724
        %v3726 = vpop.f32.mrb[0].mxu0
        %v3727 = vpop.f32.mrb[0].mxu0
        %v3728 = vadd.f32 %v3503, %v3727
        %v3729 = vpop.f32.mrb[0].mxu0
        %3730 = vmatprep.mubr.bf16.mxu0 %v2696
        %3731 = vmatmul.mubr.bf16.gmra.mrb[0].mxu0 %v2695
        %v3732 = vpop.f32.mrb[0].mxu0
        %v3733 = vadd.f32 %v3508, %v3732
        %v3734 = vpop.f32.mrb[0].mxu0
        %v3735 = vpop.f32.mrb[0].mxu0
        %v3736 = vadd.f32 %v3511, %v3735
        %v3737 = vpop.f32.mrb[0].mxu0
        %3738 = vmatprep.mubr.bf16.mxu0 %v2705
        %3739 = vmatmul.mubr.bf16.gmra.mrb[0].mxu0 %v2704
        %v3740 = vpop.f32.mrb[0].mxu0
        %v3741 = vadd.f32 %v3516, %v3740
        %v3742 = vpop.f32.mrb[0].mxu0
        %v3743 = vpop.f32.mrb[0].mxu0
        %v3744 = vadd.f32 %v3519, %v3743
        %v3745 = vpop.f32.mrb[0].mxu0
        %3746 = vmatprep.mubr.bf16.mxu0 %v2714
        %3747 = vmatmul.mubr.bf16.gmra.mrb[0].mxu0 %v2713
        %v3748 = vpop.f32.mrb[0].mxu0
        %v3749 = vadd.f32 %v3524, %v3748
        %v3750 = vpop.f32.mrb[0].mxu0
        %v3751 = vpop.f32.mrb[0].mxu0
        %v3752 = vadd.f32 %v3527, %v3751
        %v3753 = vpop.f32.mrb[0].mxu0
        %3754 = vmatprep.mubr.bf16.mxu0 %v2723
        %3755 = vmatmul.mubr.bf16.gmra.mrb[0].mxu0 %v2722
        %v3756 = vpop.f32.mrb[0].mxu0
        %v3757 = vadd.f32 %v3532, %v3756
        %v3758 = vpop.f32.mrb[0].mxu0
        %v3759 = vpop.f32.mrb[0].mxu0
        %v3760 = vadd.f32 %v3535, %v3759
        %v3761 = vpop.f32.mrb[0].mxu0
        %3762 = vmatprep.mubr.bf16.mxu0 %v2732
        %3763 = vmatmul.mubr.bf16.gmra.mrb[0].mxu0 %v2731
        %v3764 = vpop.f32.mrb[0].mxu0
        %v3765 = vadd.f32 %v3540, %v3764
        %v3766 = vpop.f32.mrb[0].mxu0
        %v3767 = vpop.f32.mrb[0].mxu0
        %v3768 = vadd.f32 %v3543, %v3767
        %v3769 = vpop.f32.mrb[0].mxu0
        %3770 = vmatprep.mubr.bf16.mxu0 %v2741
        %3771 = vmatmul.mubr.bf16.gmra.mrb[0].mxu0 %v2740
        %v3772 = vpop.f32.mrb[0].mxu0
        %v3773 = vadd.f32 %v3548, %v3772
        %v3774 = vpop.f32.mrb[0].mxu0
        %v3775 = vpop.f32.mrb[0].mxu0
        %v3776 = vadd.f32 %v3551, %v3775
        %v3777 = vpop.f32.mrb[0].mxu0
        %3778 = vmatprep.mubr.bf16.mxu0 %v2750
        %3779 = vmatmul.mubr.bf16.gmra.mrb[0].mxu0 %v2749
        %v3780 = vpop.f32.mrb[0].mxu0
        %v3781 = vadd.f32 %v3556, %v3780
        %v3782 = vpop.f32.mrb[0].mxu0
        %v3783 = vpop.f32.mrb[0].mxu0
        %v3784 = vadd.f32 %v3559, %v3783
        %v3785 = vpop.f32.mrb[0].mxu0
        %3786 = vmatprep.mubr.bf16.mxu0 %v2759
        %3787 = vmatmul.mubr.bf16.gmra.mrb[0].mxu0 %v2758
        %v3788 = vpop.f32.mrb[0].mxu0
        %v3789 = vadd.f32 %v3564, %v3788
        %v3790 = vpop.f32.mrb[0].mxu0
        %v3791 = vpop.f32.mrb[0].mxu0
        %v3792 = vadd.f32 %v3567, %v3791
        %v3793 = vpop.f32.mrb[0].mxu0
        %3794 = vmatprep.mubr.bf16.mxu0 %v2768
        %3795 = vmatmul.mubr.bf16.gmra.mrb[0].mxu0 %v2767
        %v3796 = vpop.f32.mrb[0].mxu0
        %v3797 = vadd.f32 %v3572, %v3796
        %v3798 = vpop.f32.mrb[0].mxu0
        %v3799 = vpop.f32.mrb[0].mxu0
        %v3800 = vadd.f32 %v3575, %v3799
        %v3801 = vpop.f32.mrb[0].mxu0
        %3802 = vmatprep.mubr.bf16.mxu0 %v2777
        %3803 = vmatmul.mubr.bf16.gmra.mrb[0].mxu0 %v2776
        %v3804 = vpop.f32.mrb[0].mxu0
        %v3805 = vadd.f32 %v3580, %v3804
        %v3806 = vpop.f32.mrb[0].mxu0
        %v3807 = vpop.f32.mrb[0].mxu0
        %v3808 = vadd.f32 %v3583, %v3807
        %v3809 = vpop.f32.mrb[0].mxu0
        %3810 = vmatprep.mubr.bf16.mxu0 %v2786
        %3811 = vmatmul.mubr.bf16.gmra.mrb[0].mxu0 %v2785
        %v3812 = vpop.f32.mrb[0].mxu0
        %v3813 = vadd.f32 %v3588, %v3812
        %v3814 = vpop.f32.mrb[0].mxu0
        %v3815 = vpop.f32.mrb[0].mxu0
        %v3816 = vadd.f32 %v3591, %v3815
        %v3817 = vpop.f32.mrb[0].mxu0
        %3818 = vmatprep.mubr.bf16.mxu0 %v2795
        %3819 = vmatmul.mubr.bf16.gmra.mrb[0].mxu0 %v2794
        %v3820 = vpop.f32.mrb[0].mxu0
        %v3821 = vadd.f32 %v3596, %v3820
        %v3822 = vpop.f32.mrb[0].mxu0
        %v3823 = vpop.f32.mrb[0].mxu0
        %v3824 = vadd.f32 %v3599, %v3823
        %v3825 = vpop.f32.mrb[0].mxu0
        %3826 = vdwg.mxu0
        %3827 = vmatprep.subr.bf16.mxu0 0
        %3828 = vmatpush1.bf16.msra.mxu0 %v3265
        %3829 = vmatprep.subr.bf16.mxu0 0
        %3830 = vmatpush1.bf16.msra.mxu0 %v3266
        %3831 = vmatprep.subr.bf16.mxu0 0
        %3832 = vmatpush1.bf16.msra.mxu0 %v3267
        %3833 = vmatprep.subr.bf16.mxu0 0
        %3834 = vmatpush1.bf16.msra.mxu0 %v3268
        %3835 = vmatprep.subr.bf16.mxu0 0
        %3836 = vmatpush1.bf16.msra.mxu0 %v3269
        %3837 = vmatprep.subr.bf16.mxu0 0
        %3838 = vmatpush1.bf16.msra.mxu0 %v3270
        %3839 = vmatprep.subr.bf16.mxu0 0
        %3840 = vmatpush1.bf16.msra.mxu0 %v3271
        %3841 = vmatprep.subr.bf16.mxu0 0
        %3842 = vmatpush1.bf16.msra.mxu0 %v3272
        %3843 = vmatprep.subr.bf16.mxu0 0
        %3844 = vmatpush1.bf16.msra.mxu0 %v3273
        %3845 = vmatprep.subr.bf16.mxu0 0
        %3846 = vmatpush1.bf16.msra.mxu0 %v3274
        %3847 = vmatprep.subr.bf16.mxu0 0
        %3848 = vmatpush1.bf16.msra.mxu0 %v3275
        %3849 = vmatprep.subr.bf16.mxu0 0
        %3850 = vmatpush1.bf16.msra.mxu0 %v3276
        %3851 = vmatprep.subr.bf16.mxu0 0
        %3852 = vmatpush1.bf16.msra.mxu0 %v3277
        %3853 = vmatprep.subr.bf16.mxu0 0
        %3854 = vmatpush1.bf16.msra.mxu0 %v3278
        %3855 = vmatprep.subr.bf16.mxu0 0
        %3856 = vmatpush1.bf16.msra.mxu0 %v3279
        %3857 = vmatprep.subr.bf16.mxu0 0
        %3858 = vmatpush1.bf16.msra.mxu0 %v3280
        %3859 = vmatprep.mubr.bf16.mxu0 %v2590
        %3860 = vmatmul.mubr.bf16.gmra.mrb[0].mxu0 %v2589
        %v3861 = vpop.f32.mrb[0].mxu0
        %v3862 = vadd.f32 %v3637, %v3861
        %v3863 = vpop.f32.mrb[0].mxu0
        %v3864 = vpop.f32.mrb[0].mxu0
        %v3865 = vadd.f32 %v3640, %v3864
        %v3866 = vpop.f32.mrb[0].mxu0
        %3867 = vmatprep.mubr.bf16.mxu0 %v2599
        %3868 = vmatmul.mubr.bf16.gmra.mrb[0].mxu0 %v2598
        %v3869 = vpop.f32.mrb[0].mxu0
        %v3870 = vadd.f32 %v3645, %v3869
        %v3871 = vpop.f32.mrb[0].mxu0
        %v3872 = vpop.f32.mrb[0].mxu0
        %v3873 = vadd.f32 %v3648, %v3872
        %v3874 = vpop.f32.mrb[0].mxu0
        %3875 = vmatprep.mubr.bf16.mxu0 %v2608
        %3876 = vmatmul.mubr.bf16.gmra.mrb[0].mxu0 %v2607
        %v3877 = vpop.f32.mrb[0].mxu0
        %v3878 = vadd.f32 %v3653, %v3877
        %v3879 = vpop.f32.mrb[0].mxu0
        %v3880 = vpop.f32.mrb[0].mxu0
        %v3881 = vadd.f32 %v3656, %v3880
        %v3882 = vpop.f32.mrb[0].mxu0
        %3883 = vmatprep.mubr.bf16.mxu0 %v2617
        %3884 = vmatmul.mubr.bf16.gmra.mrb[0].mxu0 %v2616
        %v3885 = vpop.f32.mrb[0].mxu0
        %v3886 = vadd.f32 %v3661, %v3885
        %v3887 = vpop.f32.mrb[0].mxu0
        %v3888 = vpop.f32.mrb[0].mxu0
        %v3889 = vadd.f32 %v3664, %v3888
        %v3890 = vpop.f32.mrb[0].mxu0
        %3891 = vmatprep.mubr.bf16.mxu0 %v2626
        %3892 = vmatmul.mubr.bf16.gmra.mrb[0].mxu0 %v2625
        %v3893 = vpop.f32.mrb[0].mxu0
        %v3894 = vadd.f32 %v3669, %v3893
        %v3895 = vpop.f32.mrb[0].mxu0
        %v3896 = vpop.f32.mrb[0].mxu0
        %v3897 = vadd.f32 %v3672, %v3896
        %v3898 = vpop.f32.mrb[0].mxu0
        %3899 = vmatprep.mubr.bf16.mxu0 %v2635
        %3900 = vmatmul.mubr.bf16.gmra.mrb[0].mxu0 %v2634
        %v3901 = vpop.f32.mrb[0].mxu0
        %v3902 = vadd.f32 %v3677, %v3901
        %v3903 = vpop.f32.mrb[0].mxu0
        %v3904 = vpop.f32.mrb[0].mxu0
        %v3905 = vadd.f32 %v3680, %v3904
        %v3906 = vpop.f32.mrb[0].mxu0
        %3907 = vmatprep.mubr.bf16.mxu0 %v2644
        %3908 = vmatmul.mubr.bf16.gmra.mrb[0].mxu0 %v2643
        %v3909 = vpop.f32.mrb[0].mxu0
        %v3910 = vadd.f32 %v3685, %v3909
        %v3911 = vpop.f32.mrb[0].mxu0
        %v3912 = vpop.f32.mrb[0].mxu0
        %v3913 = vadd.f32 %v3688, %v3912
        %v3914 = vpop.f32.mrb[0].mxu0
        %3915 = vmatprep.mubr.bf16.mxu0 %v2653
        %3916 = vmatmul.mubr.bf16.gmra.mrb[0].mxu0 %v2652
        %v3917 = vpop.f32.mrb[0].mxu0
        %v3918 = vadd.f32 %v3693, %v3917
        %v3919 = vpop.f32.mrb[0].mxu0
        %v3920 = vpop.f32.mrb[0].mxu0
        %v3921 = vadd.f32 %v3696, %v3920
        %v3922 = vpop.f32.mrb[0].mxu0
        %3923 = vmatprep.mubr.bf16.mxu0 %v2662
        %3924 = vmatmul.mubr.bf16.gmra.mrb[0].mxu0 %v2661
        %v3925 = vpop.f32.mrb[0].mxu0
        %v3926 = vadd.f32 %v3701, %v3925
        %v3927 = vpop.f32.mrb[0].mxu0
        %v3928 = vpop.f32.mrb[0].mxu0
        %v3929 = vadd.f32 %v3704, %v3928
        %v3930 = vpop.f32.mrb[0].mxu0
        %3931 = vmatprep.mubr.bf16.mxu0 %v2671
        %3932 = vmatmul.mubr.bf16.gmra.mrb[0].mxu0 %v2670
        %v3933 = vpop.f32.mrb[0].mxu0
        %v3934 = vadd.f32 %v3709, %v3933
        %v3935 = vpop.f32.mrb[0].mxu0
        %v3936 = vpop.f32.mrb[0].mxu0
        %v3937 = vadd.f32 %v3712, %v3936
        %v3938 = vpop.f32.mrb[0].mxu0
        %3939 = vmatprep.mubr.bf16.mxu0 %v2680
        %3940 = vmatmul.mubr.bf16.gmra.mrb[0].mxu0 %v2679
        %v3941 = vpop.f32.mrb[0].mxu0
        %v3942 = vadd.f32 %v3717, %v3941
        %v3943 = vpop.f32.mrb[0].mxu0
        %v3944 = vpop.f32.mrb[0].mxu0
        %v3945 = vadd.f32 %v3720, %v3944
        %v3946 = vpop.f32.mrb[0].mxu0
        %3947 = vmatprep.mubr.bf16.mxu0 %v2689
        %3948 = vmatmul.mubr.bf16.gmra.mrb[0].mxu0 %v2688
        %v3949 = vpop.f32.mrb[0].mxu0
        %v3950 = vadd.f32 %v3725, %v3949
        %v3951 = vpop.f32.mrb[0].mxu0
        %v3952 = vpop.f32.mrb[0].mxu0
        %v3953 = vadd.f32 %v3728, %v3952
        %v3954 = vpop.f32.mrb[0].mxu0
        %3955 = vmatprep.mubr.bf16.mxu0 %v2698
        %3956 = vmatmul.mubr.bf16.gmra.mrb[0].mxu0 %v2697
        %v3957 = vpop.f32.mrb[0].mxu0
        %v3958 = vadd.f32 %v3733, %v3957
        %v3959 = vpop.f32.mrb[0].mxu0
        %v3960 = vpop.f32.mrb[0].mxu0
        %v3961 = vadd.f32 %v3736, %v3960
        %v3962 = vpop.f32.mrb[0].mxu0
        %3963 = vmatprep.mubr.bf16.mxu0 %v2707
        %3964 = vmatmul.mubr.bf16.gmra.mrb[0].mxu0 %v2706
        %v3965 = vpop.f32.mrb[0].mxu0
        %v3966 = vadd.f32 %v3741, %v3965
        %v3967 = vpop.f32.mrb[0].mxu0
        %v3968 = vpop.f32.mrb[0].mxu0
        %v3969 = vadd.f32 %v3744, %v3968
        %v3970 = vpop.f32.mrb[0].mxu0
        %3971 = vmatprep.mubr.bf16.mxu0 %v2716
        %3972 = vmatmul.mubr.bf16.gmra.mrb[0].mxu0 %v2715
        %v3973 = vpop.f32.mrb[0].mxu0
        %v3974 = vadd.f32 %v3749, %v3973
        %v3975 = vpop.f32.mrb[0].mxu0
        %v3976 = vpop.f32.mrb[0].mxu0
        %v3977 = vadd.f32 %v3752, %v3976
        %v3978 = vpop.f32.mrb[0].mxu0
        %3979 = vmatprep.mubr.bf16.mxu0 %v2725
        %3980 = vmatmul.mubr.bf16.gmra.mrb[0].mxu0 %v2724
        %v3981 = vpop.f32.mrb[0].mxu0
        %v3982 = vadd.f32 %v3757, %v3981
        %v3983 = vpop.f32.mrb[0].mxu0
        %v3984 = vpop.f32.mrb[0].mxu0
        %v3985 = vadd.f32 %v3760, %v3984
        %v3986 = vpop.f32.mrb[0].mxu0
        %3987 = vmatprep.mubr.bf16.mxu0 %v2734
        %3988 = vmatmul.mubr.bf16.gmra.mrb[0].mxu0 %v2733
        %v3989 = vpop.f32.mrb[0].mxu0
        %v3990 = vadd.f32 %v3765, %v3989
        %v3991 = vpop.f32.mrb[0].mxu0
        %v3992 = vpop.f32.mrb[0].mxu0
        %v3993 = vadd.f32 %v3768, %v3992
        %v3994 = vpop.f32.mrb[0].mxu0
        %3995 = vmatprep.mubr.bf16.mxu0 %v2743
        %3996 = vmatmul.mubr.bf16.gmra.mrb[0].mxu0 %v2742
        %v3997 = vpop.f32.mrb[0].mxu0
        %v3998 = vadd.f32 %v3773, %v3997
        %v3999 = vpop.f32.mrb[0].mxu0
        %v4000 = vpop.f32.mrb[0].mxu0
        %v4001 = vadd.f32 %v3776, %v4000
        %v4002 = vpop.f32.mrb[0].mxu0
        %4003 = vmatprep.mubr.bf16.mxu0 %v2752
        %4004 = vmatmul.mubr.bf16.gmra.mrb[0].mxu0 %v2751
        %v4005 = vpop.f32.mrb[0].mxu0
        %v4006 = vadd.f32 %v3781, %v4005
        %v4007 = vpop.f32.mrb[0].mxu0
        %v4008 = vpop.f32.mrb[0].mxu0
        %v4009 = vadd.f32 %v3784, %v4008
        %v4010 = vpop.f32.mrb[0].mxu0
        %4011 = vmatprep.mubr.bf16.mxu0 %v2761
        %4012 = vmatmul.mubr.bf16.gmra.mrb[0].mxu0 %v2760
        %v4013 = vpop.f32.mrb[0].mxu0
        %v4014 = vadd.f32 %v3789, %v4013
        %v4015 = vpop.f32.mrb[0].mxu0
        %v4016 = vpop.f32.mrb[0].mxu0
        %v4017 = vadd.f32 %v3792, %v4016
        %v4018 = vpop.f32.mrb[0].mxu0
        %4019 = vmatprep.mubr.bf16.mxu0 %v2770
        %4020 = vmatmul.mubr.bf16.gmra.mrb[0].mxu0 %v2769
        %v4021 = vpop.f32.mrb[0].mxu0
        %v4022 = vadd.f32 %v3797, %v4021
        %v4023 = vpop.f32.mrb[0].mxu0
        %v4024 = vpop.f32.mrb[0].mxu0
        %v4025 = vadd.f32 %v3800, %v4024
        %v4026 = vpop.f32.mrb[0].mxu0
        %4027 = vmatprep.mubr.bf16.mxu0 %v2779
        %4028 = vmatmul.mubr.bf16.gmra.mrb[0].mxu0 %v2778
        %v4029 = vpop.f32.mrb[0].mxu0
        %v4030 = vadd.f32 %v3805, %v4029
        %v4031 = vpop.f32.mrb[0].mxu0
        %v4032 = vpop.f32.mrb[0].mxu0
        %v4033 = vadd.f32 %v3808, %v4032
        %v4034 = vpop.f32.mrb[0].mxu0
        %4035 = vmatprep.mubr.bf16.mxu0 %v2788
        %4036 = vmatmul.mubr.bf16.gmra.mrb[0].mxu0 %v2787
        %v4037 = vpop.f32.mrb[0].mxu0
        %v4038 = vadd.f32 %v3813, %v4037
        %v4039 = vpop.f32.mrb[0].mxu0
        %v4040 = vpop.f32.mrb[0].mxu0
        %v4041 = vadd.f32 %v3816, %v4040
        %v4042 = vpop.f32.mrb[0].mxu0
        %4043 = vmatprep.mubr.bf16.mxu0 %v2797
        %4044 = vmatmul.mubr.bf16.gmra.mrb[0].mxu0 %v2796
        %v4045 = vpop.f32.mrb[0].mxu0
        %v4046 = vadd.f32 %v3821, %v4045
        %v4047 = vpop.f32.mrb[0].mxu0
        %v4048 = vpop.f32.mrb[0].mxu0
        %v4049 = vadd.f32 %v3824, %v4048
        %v4050 = vpop.f32.mrb[0].mxu0
        %4051 = vdwg.mxu0
        %4052 = vmatprep.subr.bf16.mxu0 0
        %4053 = vmatpush1.bf16.msra.mxu0 %v3281
        %4054 = vmatprep.subr.bf16.mxu0 0
        %4055 = vmatpush1.bf16.msra.mxu0 %v3282
        %4056 = vmatprep.subr.bf16.mxu0 0
        %4057 = vmatpush1.bf16.msra.mxu0 %v3283
        %4058 = vmatprep.subr.bf16.mxu0 0
        %4059 = vmatpush1.bf16.msra.mxu0 %v3284
        %4060 = vmatprep.subr.bf16.mxu0 0
        %4061 = vmatpush1.bf16.msra.mxu0 %v3285
        %4062 = vmatprep.subr.bf16.mxu0 0
        %4063 = vmatpush1.bf16.msra.mxu0 %v3286
        %4064 = vmatprep.subr.bf16.mxu0 0
        %4065 = vmatpush1.bf16.msra.mxu0 %v3287
        %4066 = vmatprep.subr.bf16.mxu0 0
        %4067 = vmatpush1.bf16.msra.mxu0 %v3288
        %4068 = vmatprep.subr.bf16.mxu0 0
        %4069 = vmatpush1.bf16.msra.mxu0 %v3289
        %4070 = vmatprep.subr.bf16.mxu0 0
        %4071 = vmatpush1.bf16.msra.mxu0 %v3290
        %4072 = vmatprep.subr.bf16.mxu0 0
        %4073 = vmatpush1.bf16.msra.mxu0 %v3291
        %4074 = vmatprep.subr.bf16.mxu0 0
        %4075 = vmatpush1.bf16.msra.mxu0 %v3292
        %4076 = vmatprep.subr.bf16.mxu0 0
        %4077 = vmatpush1.bf16.msra.mxu0 %v3293
        %4078 = vmatprep.subr.bf16.mxu0 0
        %4079 = vmatpush1.bf16.msra.mxu0 %v3294
        %4080 = vmatprep.subr.bf16.mxu0 0
        %4081 = vmatpush1.bf16.msra.mxu0 %v3295
        %4082 = vmatprep.subr.bf16.mxu0 0
        %4083 = vmatpush1.bf16.msra.mxu0 %v3296
        %4084 = vmatprep.mubr.bf16.mxu0 %v2592
        %4085 = vmatmul.mubr.bf16.gmra.mrb[0].mxu0 %v2591
        %v4086 = vpop.f32.mrb[0].mxu0
        %v4087 = vadd.f32 %v3862, %v4086
        %v4088 = vpop.f32.mrb[0].mxu0
        %v4089 = vpop.f32.mrb[0].mxu0
        %v4090 = vadd.f32 %v3865, %v4089
        %v4091 = vpop.f32.mrb[0].mxu0
        %4092 = vmatprep.mubr.bf16.mxu0 %v2601
        %4093 = vmatmul.mubr.bf16.gmra.mrb[0].mxu0 %v2600
        %v4094 = vpop.f32.mrb[0].mxu0
        %v4095 = vadd.f32 %v3870, %v4094
        %v4096 = vpop.f32.mrb[0].mxu0
        %v4097 = vpop.f32.mrb[0].mxu0
        %v4098 = vadd.f32 %v3873, %v4097
        %v4099 = vpop.f32.mrb[0].mxu0
        %4100 = vmatprep.mubr.bf16.mxu0 %v2610
        %4101 = vmatmul.mubr.bf16.gmra.mrb[0].mxu0 %v2609
        %v4102 = vpop.f32.mrb[0].mxu0
        %v4103 = vadd.f32 %v3878, %v4102
        %v4104 = vpop.f32.mrb[0].mxu0
        %v4105 = vpop.f32.mrb[0].mxu0
        %v4106 = vadd.f32 %v3881, %v4105
        %v4107 = vpop.f32.mrb[0].mxu0
        %4108 = vmatprep.mubr.bf16.mxu0 %v2619
        %4109 = vmatmul.mubr.bf16.gmra.mrb[0].mxu0 %v2618
        %v4110 = vpop.f32.mrb[0].mxu0
        %v4111 = vadd.f32 %v3886, %v4110
        %v4112 = vpop.f32.mrb[0].mxu0
        %v4113 = vpop.f32.mrb[0].mxu0
        %v4114 = vadd.f32 %v3889, %v4113
        %v4115 = vpop.f32.mrb[0].mxu0
        %4116 = vmatprep.mubr.bf16.mxu0 %v2628
        %4117 = vmatmul.mubr.bf16.gmra.mrb[0].mxu0 %v2627
        %v4118 = vpop.f32.mrb[0].mxu0
        %v4119 = vadd.f32 %v3894, %v4118
        %v4120 = vpop.f32.mrb[0].mxu0
        %v4121 = vpop.f32.mrb[0].mxu0
        %v4122 = vadd.f32 %v3897, %v4121
        %v4123 = vpop.f32.mrb[0].mxu0
        %4124 = vmatprep.mubr.bf16.mxu0 %v2637
        %4125 = vmatmul.mubr.bf16.gmra.mrb[0].mxu0 %v2636
        %v4126 = vpop.f32.mrb[0].mxu0
        %v4127 = vadd.f32 %v3902, %v4126
        %v4128 = vpop.f32.mrb[0].mxu0
        %v4129 = vpop.f32.mrb[0].mxu0
        %v4130 = vadd.f32 %v3905, %v4129
        %v4131 = vpop.f32.mrb[0].mxu0
        %4132 = vmatprep.mubr.bf16.mxu0 %v2646
        %4133 = vmatmul.mubr.bf16.gmra.mrb[0].mxu0 %v2645
        %v4134 = vpop.f32.mrb[0].mxu0
        %v4135 = vadd.f32 %v3910, %v4134
        %v4136 = vpop.f32.mrb[0].mxu0
        %v4137 = vpop.f32.mrb[0].mxu0
        %v4138 = vadd.f32 %v3913, %v4137
        %v4139 = vpop.f32.mrb[0].mxu0
        %4140 = vmatprep.mubr.bf16.mxu0 %v2655
        %4141 = vmatmul.mubr.bf16.gmra.mrb[0].mxu0 %v2654
        %v4142 = vpop.f32.mrb[0].mxu0
        %v4143 = vadd.f32 %v3918, %v4142
        %v4144 = vpop.f32.mrb[0].mxu0
        %v4145 = vpop.f32.mrb[0].mxu0
        %v4146 = vadd.f32 %v3921, %v4145
        %v4147 = vpop.f32.mrb[0].mxu0
        %4148 = vmatprep.mubr.bf16.mxu0 %v2664
        %4149 = vmatmul.mubr.bf16.gmra.mrb[0].mxu0 %v2663
        %v4150 = vpop.f32.mrb[0].mxu0
        %v4151 = vadd.f32 %v3926, %v4150
        %v4152 = vpop.f32.mrb[0].mxu0
        %v4153 = vpop.f32.mrb[0].mxu0
        %v4154 = vadd.f32 %v3929, %v4153
        %v4155 = vpop.f32.mrb[0].mxu0
        %4156 = vmatprep.mubr.bf16.mxu0 %v2673
        %4157 = vmatmul.mubr.bf16.gmra.mrb[0].mxu0 %v2672
        %v4158 = vpop.f32.mrb[0].mxu0
        %v4159 = vadd.f32 %v3934, %v4158
        %v4160 = vpop.f32.mrb[0].mxu0
        %v4161 = vpop.f32.mrb[0].mxu0
        %v4162 = vadd.f32 %v3937, %v4161
        %v4163 = vpop.f32.mrb[0].mxu0
        %4164 = vmatprep.mubr.bf16.mxu0 %v2682
        %4165 = vmatmul.mubr.bf16.gmra.mrb[0].mxu0 %v2681
        %v4166 = vpop.f32.mrb[0].mxu0
        %v4167 = vadd.f32 %v3942, %v4166
        %v4168 = vpop.f32.mrb[0].mxu0
        %v4169 = vpop.f32.mrb[0].mxu0
        %v4170 = vadd.f32 %v3945, %v4169
        %v4171 = vpop.f32.mrb[0].mxu0
        %4172 = vmatprep.mubr.bf16.mxu0 %v2691
        %4173 = vmatmul.mubr.bf16.gmra.mrb[0].mxu0 %v2690
        %v4174 = vpop.f32.mrb[0].mxu0
        %v4175 = vadd.f32 %v3950, %v4174
        %v4176 = vpop.f32.mrb[0].mxu0
        %v4177 = vpop.f32.mrb[0].mxu0
        %v4178 = vadd.f32 %v3953, %v4177
        %v4179 = vpop.f32.mrb[0].mxu0
        %4180 = vmatprep.mubr.bf16.mxu0 %v2700
        %4181 = vmatmul.mubr.bf16.gmra.mrb[0].mxu0 %v2699
        %v4182 = vpop.f32.mrb[0].mxu0
        %v4183 = vadd.f32 %v3958, %v4182
        %v4184 = vpop.f32.mrb[0].mxu0
        %v4185 = vpop.f32.mrb[0].mxu0
        %v4186 = vadd.f32 %v3961, %v4185
        %v4187 = vpop.f32.mrb[0].mxu0
        %4188 = vmatprep.mubr.bf16.mxu0 %v2709
        %4189 = vmatmul.mubr.bf16.gmra.mrb[0].mxu0 %v2708
        %v4190 = vpop.f32.mrb[0].mxu0
        %v4191 = vadd.f32 %v3966, %v4190
        %v4192 = vpop.f32.mrb[0].mxu0
        %v4193 = vpop.f32.mrb[0].mxu0
        %v4194 = vadd.f32 %v3969, %v4193
        %v4195 = vpop.f32.mrb[0].mxu0
        %4196 = vmatprep.mubr.bf16.mxu0 %v2718
        %4197 = vmatmul.mubr.bf16.gmra.mrb[0].mxu0 %v2717
        %v4198 = vpop.f32.mrb[0].mxu0
        %v4199 = vadd.f32 %v3974, %v4198
        %v4200 = vpop.f32.mrb[0].mxu0
        %v4201 = vpop.f32.mrb[0].mxu0
        %v4202 = vadd.f32 %v3977, %v4201
        %v4203 = vpop.f32.mrb[0].mxu0
        %4204 = vmatprep.mubr.bf16.mxu0 %v2727
        %4205 = vmatmul.mubr.bf16.gmra.mrb[0].mxu0 %v2726
        %v4206 = vpop.f32.mrb[0].mxu0
        %v4207 = vadd.f32 %v3982, %v4206
        %v4208 = vpop.f32.mrb[0].mxu0
        %v4209 = vpop.f32.mrb[0].mxu0
        %v4210 = vadd.f32 %v3985, %v4209
        %v4211 = vpop.f32.mrb[0].mxu0
        %4212 = vmatprep.mubr.bf16.mxu0 %v2736
        %4213 = vmatmul.mubr.bf16.gmra.mrb[0].mxu0 %v2735
        %v4214 = vpop.f32.mrb[0].mxu0
        %v4215 = vadd.f32 %v3990, %v4214
        %v4216 = vpop.f32.mrb[0].mxu0
        %v4217 = vpop.f32.mrb[0].mxu0
        %v4218 = vadd.f32 %v3993, %v4217
        %v4219 = vpop.f32.mrb[0].mxu0
        %4220 = vmatprep.mubr.bf16.mxu0 %v2745
        %4221 = vmatmul.mubr.bf16.gmra.mrb[0].mxu0 %v2744
        %v4222 = vpop.f32.mrb[0].mxu0
        %v4223 = vadd.f32 %v3998, %v4222
        %v4224 = vpop.f32.mrb[0].mxu0
        %v4225 = vpop.f32.mrb[0].mxu0
        %v4226 = vadd.f32 %v4001, %v4225
        %v4227 = vpop.f32.mrb[0].mxu0
        %4228 = vmatprep.mubr.bf16.mxu0 %v2754
        %4229 = vmatmul.mubr.bf16.gmra.mrb[0].mxu0 %v2753
        %v4230 = vpop.f32.mrb[0].mxu0
        %v4231 = vadd.f32 %v4006, %v4230
        %v4232 = vpop.f32.mrb[0].mxu0
        %v4233 = vpop.f32.mrb[0].mxu0
        %v4234 = vadd.f32 %v4009, %v4233
        %v4235 = vpop.f32.mrb[0].mxu0
        %4236 = vmatprep.mubr.bf16.mxu0 %v2763
        %4237 = vmatmul.mubr.bf16.gmra.mrb[0].mxu0 %v2762
        %v4238 = vpop.f32.mrb[0].mxu0
        %v4239 = vadd.f32 %v4014, %v4238
        %v4240 = vpop.f32.mrb[0].mxu0
        %v4241 = vpop.f32.mrb[0].mxu0
        %v4242 = vadd.f32 %v4017, %v4241
        %v4243 = vpop.f32.mrb[0].mxu0
        %4244 = vmatprep.mubr.bf16.mxu0 %v2772
        %4245 = vmatmul.mubr.bf16.gmra.mrb[0].mxu0 %v2771
        %v4246 = vpop.f32.mrb[0].mxu0
        %v4247 = vadd.f32 %v4022, %v4246
        %v4248 = vpop.f32.mrb[0].mxu0
        %v4249 = vpop.f32.mrb[0].mxu0
        %v4250 = vadd.f32 %v4025, %v4249
        %v4251 = vpop.f32.mrb[0].mxu0
        %4252 = vmatprep.mubr.bf16.mxu0 %v2781
        %4253 = vmatmul.mubr.bf16.gmra.mrb[0].mxu0 %v2780
        %v4254 = vpop.f32.mrb[0].mxu0
        %v4255 = vadd.f32 %v4030, %v4254
        %v4256 = vpop.f32.mrb[0].mxu0
        %v4257 = vpop.f32.mrb[0].mxu0
        %v4258 = vadd.f32 %v4033, %v4257
        %v4259 = vpop.f32.mrb[0].mxu0
        %4260 = vmatprep.mubr.bf16.mxu0 %v2790
        %4261 = vmatmul.mubr.bf16.gmra.mrb[0].mxu0 %v2789
        %v4262 = vpop.f32.mrb[0].mxu0
        %v4263 = vadd.f32 %v4038, %v4262
        %v4264 = vpop.f32.mrb[0].mxu0
        %v4265 = vpop.f32.mrb[0].mxu0
        %v4266 = vadd.f32 %v4041, %v4265
        %v4267 = vpop.f32.mrb[0].mxu0
        %4268 = vmatprep.mubr.bf16.mxu0 %v2799
        %4269 = vmatmul.mubr.bf16.gmra.mrb[0].mxu0 %v2798
        %v4270 = vpop.f32.mrb[0].mxu0
        %v4271 = vadd.f32 %v4046, %v4270
        %v4272 = vpop.f32.mrb[0].mxu0
        %v4273 = vpop.f32.mrb[0].mxu0
        %v4274 = vadd.f32 %v4049, %v4273
        %v4275 = vpop.f32.mrb[0].mxu0
        %4276 = vdwg.mxu0
        %4277 = vmatprep.subr.bf16.mxu0 0
        %4278 = vmatpush1.bf16.msra.mxu0 %v3297
        %4279 = vmatprep.subr.bf16.mxu0 0
        %4280 = vmatpush1.bf16.msra.mxu0 %v3298
        %4281 = vmatprep.subr.bf16.mxu0 0
        %4282 = vmatpush1.bf16.msra.mxu0 %v3299
        %4283 = vmatprep.subr.bf16.mxu0 0
        %4284 = vmatpush1.bf16.msra.mxu0 %v3300
        %4285 = vmatprep.subr.bf16.mxu0 0
        %4286 = vmatpush1.bf16.msra.mxu0 %v3301
        %4287 = vmatprep.subr.bf16.mxu0 0
        %4288 = vmatpush1.bf16.msra.mxu0 %v3302
        %4289 = vmatprep.subr.bf16.mxu0 0
        %4290 = vmatpush1.bf16.msra.mxu0 %v3303
        %4291 = vmatprep.subr.bf16.mxu0 0
        %4292 = vmatpush1.bf16.msra.mxu0 %v3304
        %4293 = vmatprep.subr.bf16.mxu0 0
        %4294 = vmatpush1.bf16.msra.mxu0 0
        %4295 = vmatprep.subr.bf16.mxu0 0
        %4296 = vmatpush1.bf16.msra.mxu0 0
        %4297 = vmatprep.subr.bf16.mxu0 0
        %4298 = vmatpush1.bf16.msra.mxu0 0
        %4299 = vmatprep.subr.bf16.mxu0 0
        %4300 = vmatpush1.bf16.msra.mxu0 0
        %4301 = vmatprep.subr.bf16.mxu0 0
        %4302 = vmatpush1.bf16.msra.mxu0 0
        %4303 = vmatprep.subr.bf16.mxu0 0
        %4304 = vmatpush1.bf16.msra.mxu0 0
        %4305 = vmatprep.subr.bf16.mxu0 0
        %4306 = vmatpush1.bf16.msra.mxu0 0
        %4307 = vmatprep.subr.bf16.mxu0 0
        %4308 = vmatpush1.bf16.msra.mxu0 0
        %4309 = vmatprep.mubr.bf16.mxu0 0
        %4310 = vmatmul.mubr.bf16.gmra.mrb[0].mxu0 %v2593
        %v4311 = vpop.f32.mrb[0].mxu0
        %v4312 = vadd.f32 %v4087, %v4311
        %v4313 = vpop.f32.mrb[0].mxu0
        %v4314 = vpop.f32.mrb[0].mxu0
        %v4315 = vadd.f32 %v4090, %v4314
        %v4316 = vpop.f32.mrb[0].mxu0
        %4317 = vmatprep.mubr.bf16.mxu0 0
        %4318 = vmatmul.mubr.bf16.gmra.mrb[0].mxu0 %v2602
        %v4319 = vpop.f32.mrb[0].mxu0
        %v4320 = vadd.f32 %v4095, %v4319
        %v4321 = vpop.f32.mrb[0].mxu0
        %v4322 = vpop.f32.mrb[0].mxu0
        %v4323 = vadd.f32 %v4098, %v4322
        %v4324 = vpop.f32.mrb[0].mxu0
        %4325 = vmatprep.mubr.bf16.mxu0 0
        %4326 = vmatmul.mubr.bf16.gmra.mrb[0].mxu0 %v2611
        %v4327 = vpop.f32.mrb[0].mxu0
        %v4328 = vadd.f32 %v4103, %v4327
        %v4329 = vpop.f32.mrb[0].mxu0
        %v4330 = vpop.f32.mrb[0].mxu0
        %v4331 = vadd.f32 %v4106, %v4330
        %v4332 = vpop.f32.mrb[0].mxu0
        %4333 = vmatprep.mubr.bf16.mxu0 0
        %4334 = vmatmul.mubr.bf16.gmra.mrb[0].mxu0 %v2620
        %v4335 = vpop.f32.mrb[0].mxu0
        %v4336 = vadd.f32 %v4111, %v4335
        %v4337 = vpop.f32.mrb[0].mxu0
        %v4338 = vpop.f32.mrb[0].mxu0
        %v4339 = vadd.f32 %v4114, %v4338
        %v4340 = vpop.f32.mrb[0].mxu0
        %4341 = vmatprep.mubr.bf16.mxu0 0
        %4342 = vmatmul.mubr.bf16.gmra.mrb[0].mxu0 %v2629
        %v4343 = vpop.f32.mrb[0].mxu0
        %v4344 = vadd.f32 %v4119, %v4343
        %v4345 = vpop.f32.mrb[0].mxu0
        %v4346 = vpop.f32.mrb[0].mxu0
        %v4347 = vadd.f32 %v4122, %v4346
        %v4348 = vpop.f32.mrb[0].mxu0
        %4349 = vmatprep.mubr.bf16.mxu0 0
        %4350 = vmatmul.mubr.bf16.gmra.mrb[0].mxu0 %v2638
        %v4351 = vpop.f32.mrb[0].mxu0
        %v4352 = vadd.f32 %v4127, %v4351
        %v4353 = vpop.f32.mrb[0].mxu0
        %v4354 = vpop.f32.mrb[0].mxu0
        %v4355 = vadd.f32 %v4130, %v4354
        %v4356 = vpop.f32.mrb[0].mxu0
        %4357 = vmatprep.mubr.bf16.mxu0 0
        %4358 = vmatmul.mubr.bf16.gmra.mrb[0].mxu0 %v2647
        %v4359 = vpop.f32.mrb[0].mxu0
        %v4360 = vadd.f32 %v4135, %v4359
        %v4361 = vpop.f32.mrb[0].mxu0
        %v4362 = vpop.f32.mrb[0].mxu0
        %v4363 = vadd.f32 %v4138, %v4362
        %v4364 = vpop.f32.mrb[0].mxu0
        %4365 = vmatprep.mubr.bf16.mxu0 0
        %4366 = vmatmul.mubr.bf16.gmra.mrb[0].mxu0 %v2656
        %v4367 = vpop.f32.mrb[0].mxu0
        %v4368 = vadd.f32 %v4143, %v4367
        %v4369 = vpop.f32.mrb[0].mxu0
        %v4370 = vpop.f32.mrb[0].mxu0
        %v4371 = vadd.f32 %v4146, %v4370
        %v4372 = vpop.f32.mrb[0].mxu0
        %4373 = vmatprep.mubr.bf16.mxu0 0
        %4374 = vmatmul.mubr.bf16.gmra.mrb[0].mxu0 %v2665
        %v4375 = vpop.f32.mrb[0].mxu0
        %v4376 = vadd.f32 %v4151, %v4375
        %v4377 = vpop.f32.mrb[0].mxu0
        %v4378 = vpop.f32.mrb[0].mxu0
        %v4379 = vadd.f32 %v4154, %v4378
        %v4380 = vpop.f32.mrb[0].mxu0
        %4381 = vmatprep.mubr.bf16.mxu0 0
        %4382 = vmatmul.mubr.bf16.gmra.mrb[0].mxu0 %v2674
        %v4383 = vpop.f32.mrb[0].mxu0
        %v4384 = vadd.f32 %v4159, %v4383
        %v4385 = vpop.f32.mrb[0].mxu0
        %v4386 = vpop.f32.mrb[0].mxu0
        %v4387 = vadd.f32 %v4162, %v4386
        %v4388 = vpop.f32.mrb[0].mxu0
        %4389 = vmatprep.mubr.bf16.mxu0 0
        %4390 = vmatmul.mubr.bf16.gmra.mrb[0].mxu0 %v2683
        %v4391 = vpop.f32.mrb[0].mxu0
        %v4392 = vadd.f32 %v4167, %v4391
        %v4393 = vpop.f32.mrb[0].mxu0
        %v4394 = vpop.f32.mrb[0].mxu0
        %v4395 = vadd.f32 %v4170, %v4394
        %v4396 = vpop.f32.mrb[0].mxu0
        %4397 = vmatprep.mubr.bf16.mxu0 0
        %4398 = vmatmul.mubr.bf16.gmra.mrb[0].mxu0 %v2692
        %v4399 = vpop.f32.mrb[0].mxu0
        %v4400 = vadd.f32 %v4175, %v4399
        %v4401 = vpop.f32.mrb[0].mxu0
        %v4402 = vpop.f32.mrb[0].mxu0
        %v4403 = vadd.f32 %v4178, %v4402
        %v4404 = vpop.f32.mrb[0].mxu0
        %4405 = vmatprep.mubr.bf16.mxu0 0
        %4406 = vmatmul.mubr.bf16.gmra.mrb[0].mxu0 %v2701
        %v4407 = vpop.f32.mrb[0].mxu0
        %v4408 = vadd.f32 %v4183, %v4407
        %v4409 = vpop.f32.mrb[0].mxu0
        %v4410 = vpop.f32.mrb[0].mxu0
        %v4411 = vadd.f32 %v4186, %v4410
        %v4412 = vpop.f32.mrb[0].mxu0
        %4413 = vmatprep.mubr.bf16.mxu0 0
        %4414 = vmatmul.mubr.bf16.gmra.mrb[0].mxu0 %v2710
        %v4415 = vpop.f32.mrb[0].mxu0
        %v4416 = vadd.f32 %v4191, %v4415
        %v4417 = vpop.f32.mrb[0].mxu0
        %v4418 = vpop.f32.mrb[0].mxu0
        %v4419 = vadd.f32 %v4194, %v4418
        %v4420 = vpop.f32.mrb[0].mxu0
        %4421 = vmatprep.mubr.bf16.mxu0 0
        %4422 = vmatmul.mubr.bf16.gmra.mrb[0].mxu0 %v2719
        %v4423 = vpop.f32.mrb[0].mxu0
        %v4424 = vadd.f32 %v4199, %v4423
        %v4425 = vpop.f32.mrb[0].mxu0
        %v4426 = vpop.f32.mrb[0].mxu0
        %v4427 = vadd.f32 %v4202, %v4426
        %v4428 = vpop.f32.mrb[0].mxu0
        %4429 = vmatprep.mubr.bf16.mxu0 0
        %4430 = vmatmul.mubr.bf16.gmra.mrb[0].mxu0 %v2728
        %v4431 = vpop.f32.mrb[0].mxu0
        %v4432 = vadd.f32 %v4207, %v4431
        %v4433 = vpop.f32.mrb[0].mxu0
        %v4434 = vpop.f32.mrb[0].mxu0
        %v4435 = vadd.f32 %v4210, %v4434
        %v4436 = vpop.f32.mrb[0].mxu0
        %4437 = vmatprep.mubr.bf16.mxu0 0
        %4438 = vmatmul.mubr.bf16.gmra.mrb[0].mxu0 %v2737
        %v4439 = vpop.f32.mrb[0].mxu0
        %v4440 = vadd.f32 %v4215, %v4439
        %v4441 = vpop.f32.mrb[0].mxu0
        %v4442 = vpop.f32.mrb[0].mxu0
        %v4443 = vadd.f32 %v4218, %v4442
        %v4444 = vpop.f32.mrb[0].mxu0
        %4445 = vmatprep.mubr.bf16.mxu0 0
        %4446 = vmatmul.mubr.bf16.gmra.mrb[0].mxu0 %v2746
        %v4447 = vpop.f32.mrb[0].mxu0
        %v4448 = vadd.f32 %v4223, %v4447
        %v4449 = vpop.f32.mrb[0].mxu0
        %v4450 = vpop.f32.mrb[0].mxu0
        %v4451 = vadd.f32 %v4226, %v4450
        %v4452 = vpop.f32.mrb[0].mxu0
        %4453 = vmatprep.mubr.bf16.mxu0 0
        %4454 = vmatmul.mubr.bf16.gmra.mrb[0].mxu0 %v2755
        %v4455 = vpop.f32.mrb[0].mxu0
        %v4456 = vadd.f32 %v4231, %v4455
        %v4457 = vpop.f32.mrb[0].mxu0
        %v4458 = vpop.f32.mrb[0].mxu0
        %v4459 = vadd.f32 %v4234, %v4458
        %v4460 = vpop.f32.mrb[0].mxu0
        %4461 = vmatprep.mubr.bf16.mxu0 0
        %4462 = vmatmul.mubr.bf16.gmra.mrb[0].mxu0 %v2764
        %v4463 = vpop.f32.mrb[0].mxu0
        %v4464 = vadd.f32 %v4239, %v4463
        %v4465 = vpop.f32.mrb[0].mxu0
        %v4466 = vpop.f32.mrb[0].mxu0
        %v4467 = vadd.f32 %v4242, %v4466
        %v4468 = vpop.f32.mrb[0].mxu0
        %4469 = vmatprep.mubr.bf16.mxu0 0
        %4470 = vmatmul.mubr.bf16.gmra.mrb[0].mxu0 %v2773
        %v4471 = vpop.f32.mrb[0].mxu0
        %v4472 = vadd.f32 %v4247, %v4471
        %v4473 = vpop.f32.mrb[0].mxu0
        %v4474 = vpop.f32.mrb[0].mxu0
        %v4475 = vadd.f32 %v4250, %v4474
        %v4476 = vpop.f32.mrb[0].mxu0
        %4477 = vmatprep.mubr.bf16.mxu0 0
        %4478 = vmatmul.mubr.bf16.gmra.mrb[0].mxu0 %v2782
        %v4479 = vpop.f32.mrb[0].mxu0
        %v4480 = vadd.f32 %v4255, %v4479
        %v4481 = vpop.f32.mrb[0].mxu0
        %v4482 = vpop.f32.mrb[0].mxu0
        %v4483 = vadd.f32 %v4258, %v4482
        %v4484 = vpop.f32.mrb[0].mxu0
        %4485 = vmatprep.mubr.bf16.mxu0 0
        %4486 = vmatmul.mubr.bf16.gmra.mrb[0].mxu0 %v2791
        %v4487 = vpop.f32.mrb[0].mxu0
        %v4488 = vadd.f32 %v4263, %v4487
        %v4489 = vpop.f32.mrb[0].mxu0
        %v4490 = vpop.f32.mrb[0].mxu0
        %v4491 = vadd.f32 %v4266, %v4490
        %v4492 = vpop.f32.mrb[0].mxu0
        %4493 = vmatprep.mubr.bf16.mxu0 0
        %4494 = vmatmul.mubr.bf16.gmra.mrb[0].mxu0 %v2800
        %v4495 = vpop.f32.mrb[0].mxu0
        %v4496 = vadd.f32 %v4271, %v4495
        %v4497 = vpop.f32.mrb[0].mxu0
        %v4498 = vpop.f32.mrb[0].mxu0
        %v4499 = vadd.f32 %v4274, %v4498
        %v4500 = vpop.f32.mrb[0].mxu0
        %4501 = vdwg.mxu0
        %v4502 = vld [vmem:[%s2] sm:$0x1]
        %v4504 = vlaneseq
        %v4505 = vshrl.u32 %v4504, 7
        %v4506 = vsub.s32 0, %v4505
        %v4507 = vrot.slane %v4502, %v4506
        %v4509 = vmul.f32 %v4312, %v4507
        %v4510 = vmul.f32 %v4315, %v4507
        %v4511 = vmul.f32 %v4320, %v4507
        %v4512 = vmul.f32 %v4323, %v4507
        %v4513 = vmul.f32 %v4328, %v4507
        %v4514 = vmul.f32 %v4331, %v4507
        %v4515 = vmul.f32 %v4336, %v4507
        %v4516 = vmul.f32 %v4339, %v4507
        %v4517 = vmul.f32 %v4344, %v4507
        %v4518 = vmul.f32 %v4347, %v4507
        %v4519 = vmul.f32 %v4352, %v4507
        %v4520 = vmul.f32 %v4355, %v4507
        %v4521 = vmul.f32 %v4360, %v4507
        %v4522 = vmul.f32 %v4363, %v4507
        %v4523 = vmul.f32 %v4368, %v4507
        %v4524 = vmul.f32 %v4371, %v4507
        %v4525 = vmul.f32 %v4376, %v4507
        %v4526 = vmul.f32 %v4379, %v4507
        %v4527 = vmul.f32 %v4384, %v4507
        %v4528 = vmul.f32 %v4387, %v4507
        %v4529 = vmul.f32 %v4392, %v4507
        %v4530 = vmul.f32 %v4395, %v4507
        %v4531 = vmul.f32 %v4400, %v4507
        %v4532 = vmul.f32 %v4403, %v4507
        %v4533 = vmul.f32 %v4408, %v4507
        %v4534 = vmul.f32 %v4411, %v4507
        %v4535 = vmul.f32 %v4416, %v4507
        %v4536 = vmul.f32 %v4419, %v4507
        %v4537 = vmul.f32 %v4424, %v4507
        %v4538 = vmul.f32 %v4427, %v4507
        %v4539 = vmul.f32 %v4432, %v4507
        %v4540 = vmul.f32 %v4435, %v4507
        %v4541 = vmul.f32 %v4440, %v4507
        %v4542 = vmul.f32 %v4443, %v4507
        %v4543 = vmul.f32 %v4448, %v4507
        %v4544 = vmul.f32 %v4451, %v4507
        %v4545 = vmul.f32 %v4456, %v4507
        %v4546 = vmul.f32 %v4459, %v4507
        %v4547 = vmul.f32 %v4464, %v4507
        %v4548 = vmul.f32 %v4467, %v4507
        %v4549 = vmul.f32 %v4472, %v4507
        %v4550 = vmul.f32 %v4475, %v4507
        %v4551 = vmul.f32 %v4480, %v4507
        %v4552 = vmul.f32 %v4483, %v4507
        %v4553 = vmul.f32 %v4488, %v4507
        %v4554 = vmul.f32 %v4491, %v4507
        %v4555 = vmul.f32 %v4496, %v4507
        %v4556 = vmul.f32 %v4499, %v4507
        %v4557 = vld [vmem:[%s3] sm:$0x1]
        %v4559 = vlaneseq
        %v4560 = vshrl.u32 %v4559, 7
        %v4561 = vsub.s32 0, %v4560
        %v4562 = vrot.slane %v4557, %v4561
        %v4564 = vadd.f32 %v4509, %v4562
        %v4565 = vadd.f32 %v4510, %v4562
        %v4566 = vadd.f32 %v4511, %v4562
        %v4567 = vadd.f32 %v4512, %v4562
        %v4568 = vadd.f32 %v4513, %v4562
        %v4569 = vadd.f32 %v4514, %v4562
        %v4570 = vadd.f32 %v4515, %v4562
        %v4571 = vadd.f32 %v4516, %v4562
        %v4572 = vadd.f32 %v4517, %v4562
        %v4573 = vadd.f32 %v4518, %v4562
        %v4574 = vadd.f32 %v4519, %v4562
        %v4575 = vadd.f32 %v4520, %v4562
        %v4576 = vadd.f32 %v4521, %v4562
        %v4577 = vadd.f32 %v4522, %v4562
        %v4578 = vadd.f32 %v4523, %v4562
        %v4579 = vadd.f32 %v4524, %v4562
        %v4580 = vadd.f32 %v4525, %v4562
        %v4581 = vadd.f32 %v4526, %v4562
        %v4582 = vadd.f32 %v4527, %v4562
        %v4583 = vadd.f32 %v4528, %v4562
        %v4584 = vadd.f32 %v4529, %v4562
        %v4585 = vadd.f32 %v4530, %v4562
        %v4586 = vadd.f32 %v4531, %v4562
        %v4587 = vadd.f32 %v4532, %v4562
        %v4588 = vadd.f32 %v4533, %v4562
        %v4589 = vadd.f32 %v4534, %v4562
        %v4590 = vadd.f32 %v4535, %v4562
        %v4591 = vadd.f32 %v4536, %v4562
        %v4592 = vadd.f32 %v4537, %v4562
        %v4593 = vadd.f32 %v4538, %v4562
        %v4594 = vadd.f32 %v4539, %v4562
        %v4595 = vadd.f32 %v4540, %v4562
        %v4596 = vadd.f32 %v4541, %v4562
        %v4597 = vadd.f32 %v4542, %v4562
        %v4598 = vadd.f32 %v4543, %v4562
        %v4599 = vadd.f32 %v4544, %v4562
        %v4600 = vadd.f32 %v4545, %v4562
        %v4601 = vadd.f32 %v4546, %v4562
        %v4602 = vadd.f32 %v4547, %v4562
        %v4603 = vadd.f32 %v4548, %v4562
        %v4604 = vadd.f32 %v4549, %v4562
        %v4605 = vadd.f32 %v4550, %v4562
        %v4606 = vadd.f32 %v4551, %v4562
        %v4607 = vadd.f32 %v4552, %v4562
        %v4608 = vadd.f32 %v4553, %v4562
        %v4609 = vadd.f32 %v4554, %v4562
        %v4610 = vadd.f32 %v4555, %v4562
        %v4611 = vadd.f32 %v4556, %v4562
        %v4612 = vmax.f32 %v4564, 0.0
        %v4613 = vmax.f32 %v4565, 0.0
        %v4614 = vmax.f32 %v4566, 0.0
        %v4615 = vmax.f32 %v4567, 0.0
        %v4616 = vmax.f32 %v4568, 0.0
        %v4617 = vmax.f32 %v4569, 0.0
        %v4618 = vmax.f32 %v4570, 0.0
        %v4619 = vmax.f32 %v4571, 0.0
        %v4620 = vmax.f32 %v4572, 0.0
        %v4621 = vmax.f32 %v4573, 0.0
        %v4622 = vmax.f32 %v4574, 0.0
        %v4623 = vmax.f32 %v4575, 0.0
        %v4624 = vmax.f32 %v4576, 0.0
        %v4625 = vmax.f32 %v4577, 0.0
        %v4626 = vmax.f32 %v4578, 0.0
        %v4627 = vmax.f32 %v4579, 0.0
        %v4628 = vmax.f32 %v4580, 0.0
        %v4629 = vmax.f32 %v4581, 0.0
        %v4630 = vmax.f32 %v4582, 0.0
        %v4631 = vmax.f32 %v4583, 0.0
        %v4632 = vmax.f32 %v4584, 0.0
        %v4633 = vmax.f32 %v4585, 0.0
        %v4634 = vmax.f32 %v4586, 0.0
        %v4635 = vmax.f32 %v4587, 0.0
        %v4636 = vmax.f32 %v4588, 0.0
        %v4637 = vmax.f32 %v4589, 0.0
        %v4638 = vmax.f32 %v4590, 0.0
        %v4639 = vmax.f32 %v4591, 0.0
        %v4640 = vmax.f32 %v4592, 0.0
        %v4641 = vmax.f32 %v4593, 0.0
        %v4642 = vmax.f32 %v4594, 0.0
        %v4643 = vmax.f32 %v4595, 0.0
        %v4644 = vmax.f32 %v4596, 0.0
        %v4645 = vmax.f32 %v4597, 0.0
        %v4646 = vmax.f32 %v4598, 0.0
        %v4647 = vmax.f32 %v4599, 0.0
        %v4648 = vmax.f32 %v4600, 0.0
        %v4649 = vmax.f32 %v4601, 0.0
        %v4650 = vmax.f32 %v4602, 0.0
        %v4651 = vmax.f32 %v4603, 0.0
        %v4652 = vmax.f32 %v4604, 0.0
        %v4653 = vmax.f32 %v4605, 0.0
        %v4654 = vmax.f32 %v4606, 0.0
        %v4655 = vmax.f32 %v4607, 0.0
        %v4656 = vmax.f32 %v4608, 0.0
        %v4657 = vmax.f32 %v4609, 0.0
        %v4658 = vmax.f32 %v4610, 0.0
        %v4659 = vmax.f32 %v4611, 0.0
        %v4660 = vsel %vm339, %v4612, 0.0
        %v4661 = vsel %vm340, %v4613, 0.0
        %v4662 = vsel %vm341, %v4614, 0.0
        %v4663 = vsel %vm339, %v4615, 0.0
        %v4664 = vsel %vm340, %v4616, 0.0
        %v4665 = vsel %vm341, %v4617, 0.0
        %v4666 = vsel %vm339, %v4618, 0.0
        %v4667 = vsel %vm340, %v4619, 0.0
        %v4668 = vsel %vm341, %v4620, 0.0
        %v4669 = vsel %vm339, %v4621, 0.0
        %v4670 = vsel %vm340, %v4622, 0.0
        %v4671 = vsel %vm341, %v4623, 0.0
        %v4672 = vsel %vm339, %v4624, 0.0
        %v4673 = vsel %vm340, %v4625, 0.0
        %v4674 = vsel %vm341, %v4626, 0.0
        %v4675 = vsel %vm339, %v4627, 0.0
        %v4676 = vsel %vm340, %v4628, 0.0
        %v4677 = vsel %vm341, %v4629, 0.0
        %v4678 = vsel %vm339, %v4630, 0.0
        %v4679 = vsel %vm340, %v4631, 0.0
        %v4680 = vsel %vm341, %v4632, 0.0
        %v4681 = vsel %vm339, %v4633, 0.0
        %v4682 = vsel %vm340, %v4634, 0.0
        %v4683 = vsel %vm341, %v4635, 0.0
        %v4684 = vsel %vm339, %v4636, 0.0
        %v4685 = vsel %vm340, %v4637, 0.0
        %v4686 = vsel %vm341, %v4638, 0.0
        %v4687 = vsel %vm339, %v4639, 0.0
        %v4688 = vsel %vm340, %v4640, 0.0
        %v4689 = vsel %vm341, %v4641, 0.0
        %v4690 = vsel %vm339, %v4642, 0.0
        %v4691 = vsel %vm340, %v4643, 0.0
        %v4692 = vsel %vm341, %v4644, 0.0
        %v4693 = vsel %vm339, %v4645, 0.0
        %v4694 = vsel %vm340, %v4646, 0.0
        %v4695 = vsel %vm341, %v4647, 0.0
        %v4696 = vsel %vm339, %v4648, 0.0
        %v4697 = vsel %vm340, %v4649, 0.0
        %v4698 = vsel %vm341, %v4650, 0.0
        %v4699 = vsel %vm339, %v4651, 0.0
        %v4700 = vsel %vm340, %v4652, 0.0
        %v4701 = vsel %vm341, %v4653, 0.0
        %v4702 = vsel %vm339, %v4654, 0.0
        %v4703 = vsel %vm340, %v4655, 0.0
        %v4704 = vsel %vm341, %v4656, 0.0
        %v4705 = vsel %vm339, %v4657, 0.0
        %v4706 = vsel %vm340, %v4658, 0.0
        %v4707 = vsel %vm341, %v4659, 0.0
        %v4708 = vpack.c.bf16 %v4661, %v4660
        %v4709 = vpack.c.bf16 %v4662, %v4662
        %v4710 = vpack.c.bf16 %v4664, %v4663
        %v4711 = vpack.c.bf16 %v4665, %v4665
        %v4712 = vpack.c.bf16 %v4667, %v4666
        %v4713 = vpack.c.bf16 %v4668, %v4668
        %v4714 = vpack.c.bf16 %v4670, %v4669
        %v4715 = vpack.c.bf16 %v4671, %v4671
        %v4716 = vpack.c.bf16 %v4673, %v4672
        %v4717 = vpack.c.bf16 %v4674, %v4674
        %v4718 = vpack.c.bf16 %v4676, %v4675
        %v4719 = vpack.c.bf16 %v4677, %v4677
        %v4720 = vpack.c.bf16 %v4679, %v4678
        %v4721 = vpack.c.bf16 %v4680, %v4680
        %v4722 = vpack.c.bf16 %v4682, %v4681
        %v4723 = vpack.c.bf16 %v4683, %v4683
        %v4724 = vpack.c.bf16 %v4685, %v4684
        %v4725 = vpack.c.bf16 %v4686, %v4686
        %v4726 = vpack.c.bf16 %v4688, %v4687
        %v4727 = vpack.c.bf16 %v4689, %v4689
        %v4728 = vpack.c.bf16 %v4691, %v4690
        %v4729 = vpack.c.bf16 %v4692, %v4692
        %v4730 = vpack.c.bf16 %v4694, %v4693
        %v4731 = vpack.c.bf16 %v4695, %v4695
        %v4732 = vpack.c.bf16 %v4697, %v4696
        %v4733 = vpack.c.bf16 %v4698, %v4698
        %v4734 = vpack.c.bf16 %v4700, %v4699
        %v4735 = vpack.c.bf16 %v4701, %v4701
        %v4736 = vpack.c.bf16 %v4703, %v4702
        %v4737 = vpack.c.bf16 %v4704, %v4704
        %v4738 = vpack.c.bf16 %v4706, %v4705
        %v4739 = vpack.c.bf16 %v4707, %v4707
        %v4772 = vunpack.c.l.b16 %v4708
        %v4773 = vunpack.c.h.b16 %v4708
        %v4774 = vunpack.c.l.b16 %v4709
        %v4775 = vunpack.c.l.b16 %v4710
        %v4776 = vunpack.c.h.b16 %v4710
        %v4777 = vunpack.c.l.b16 %v4711
        %v4778 = vunpack.c.l.b16 %v4712
        %v4779 = vunpack.c.h.b16 %v4712
        %v4780 = vunpack.c.l.b16 %v4713
        %v4781 = vunpack.c.l.b16 %v4714
        %v4782 = vunpack.c.h.b16 %v4714
        %v4783 = vunpack.c.l.b16 %v4715
        %v4784 = vunpack.c.l.b16 %v4716
        %v4785 = vunpack.c.h.b16 %v4716
        %v4786 = vunpack.c.l.b16 %v4717
        %v4787 = vunpack.c.l.b16 %v4718
        %v4788 = vunpack.c.h.b16 %v4718
        %v4789 = vunpack.c.l.b16 %v4719
        %v4790 = vunpack.c.l.b16 %v4720
        %v4791 = vunpack.c.h.b16 %v4720
        %v4792 = vunpack.c.l.b16 %v4721
        %v4793 = vunpack.c.l.b16 %v4722
        %v4794 = vunpack.c.h.b16 %v4722
        %v4795 = vunpack.c.l.b16 %v4723
        %v4796 = vunpack.c.l.b16 %v4724
        %v4797 = vunpack.c.h.b16 %v4724
        %v4798 = vunpack.c.l.b16 %v4725
        %v4799 = vunpack.c.l.b16 %v4726
        %v4800 = vunpack.c.h.b16 %v4726
        %v4801 = vunpack.c.l.b16 %v4727
        %v4802 = vunpack.c.l.b16 %v4728
        %v4803 = vunpack.c.h.b16 %v4728
        %v4804 = vunpack.c.l.b16 %v4729
        %v4805 = vunpack.c.l.b16 %v4730
        %v4806 = vunpack.c.h.b16 %v4730
        %v4807 = vunpack.c.l.b16 %v4731
        %v4808 = vunpack.c.l.b16 %v4732
        %v4809 = vunpack.c.h.b16 %v4732
        %v4810 = vunpack.c.l.b16 %v4733
        %v4811 = vunpack.c.l.b16 %v4734
        %v4812 = vunpack.c.h.b16 %v4734
        %v4813 = vunpack.c.l.b16 %v4735
        %v4814 = vunpack.c.l.b16 %v4736
        %v4815 = vunpack.c.h.b16 %v4736
        %v4816 = vunpack.c.l.b16 %v4737
        %v4817 = vunpack.c.l.b16 %v4738
        %v4818 = vunpack.c.h.b16 %v4738
        %v4819 = vunpack.c.l.b16 %v4739
        %v4820 = vpack.c.b16 %v4773, %v4772
        %v4821 = vpack.c.b16 %v4775, %v4774
        %v4822 = vpack.c.b16 %v4777, %v4776
        %v4823 = vpack.c.b16 %v4779, %v4778
        %v4824 = vpack.c.b16 %v4781, %v4780
        %v4825 = vpack.c.b16 %v4783, %v4782
        %v4826 = vpack.c.b16 %v4785, %v4784
        %v4827 = vpack.c.b16 %v4787, %v4786
        %v4828 = vpack.c.b16 %v4789, %v4788
        %v4829 = vpack.c.b16 %v4791, %v4790
        %v4830 = vpack.c.b16 %v4793, %v4792
        %v4831 = vpack.c.b16 %v4795, %v4794
        %v4832 = vpack.c.b16 %v4797, %v4796
        %v4833 = vpack.c.b16 %v4799, %v4798
        %v4834 = vpack.c.b16 %v4801, %v4800
        %v4835 = vpack.c.b16 %v4803, %v4802
        %v4836 = vpack.c.b16 %v4805, %v4804
        %v4837 = vpack.c.b16 %v4807, %v4806
        %v4838 = vpack.c.b16 %v4809, %v4808
        %v4839 = vpack.c.b16 %v4811, %v4810
        %v4840 = vpack.c.b16 %v4813, %v4812
        %v4841 = vpack.c.b16 %v4815, %v4814
        %v4842 = vpack.c.b16 %v4817, %v4816
        %v4843 = vpack.c.b16 %v4819, %v4818
        %4868 = vst [vmem:[#allocation3 + $0x10] sm:$0xff] %v4820
        %4869 = vst [vmem:[#allocation3 + $0x18] sm:$0xff] %v4821
        %4870 = vst [vmem:[#allocation3 + $0x20] sm:$0xff] %v4822
        %4871 = vst [vmem:[#allocation3 + $0x28] sm:$0xff] %v4823
        %4872 = vst [vmem:[#allocation3 + $0x30] sm:$0xff] %v4824
        %4873 = vst [vmem:[#allocation3 + $0x38] sm:$0xff] %v4825
        %4874 = vst [vmem:[#allocation3 + $0x40] sm:$0xff] %v4826
        %4875 = vst [vmem:[#allocation3 + $0x48] sm:$0xff] %v4827
        %4876 = vst [vmem:[#allocation3 + $0x50] sm:$0xff] %v4828
        %4877 = vst [vmem:[#allocation3 + $0x58] sm:$0xff] %v4829
        %4878 = vst [vmem:[#allocation3 + $0x60] sm:$0xff] %v4830
        %4879 = vst [vmem:[#allocation3 + $0x68] sm:$0xff] %v4831
        %4880 = vst [vmem:[#allocation3 + $0x70] sm:$0xff] %v4832
        %4881 = vst [vmem:[#allocation3 + $0x78] sm:$0xff] %v4833
        %4882 = vst [vmem:[#allocation3 + $0x80] sm:$0xff] %v4834
        %4883 = vst [vmem:[#allocation3 + $0x88] sm:$0xff] %v4835
        %4884 = vst [vmem:[#allocation3 + $0x90] sm:$0xff] %v4836
        %4885 = vst [vmem:[#allocation3 + $0x98] sm:$0xff] %v4837
        %4886 = vst [vmem:[#allocation3 + $0xa0] sm:$0xff] %v4838
        %4887 = vst [vmem:[#allocation3 + $0xa8] sm:$0xff] %v4839
        %4888 = vst [vmem:[#allocation3 + $0xb0] sm:$0xff] %v4840
        %4889 = vst [vmem:[#allocation3 + $0xb8] sm:$0xff] %v4841
        %4890 = vst [vmem:[#allocation3 + $0xc0] sm:$0xff] %v4842
        %4891 = vst [vmem:[#allocation3 + $0xc8] sm:$0xff] %v4843
        %v4892 = vld [vmem:[#allocation3] sm:$0xf8]
        %v4893 = vld [vmem:[#allocation3 + $0x8] sm:$0xff]
        %v4894 = vld [vmem:[#allocation3 + $0x10] sm:$0xff]
        %v4895 = vld [vmem:[#allocation3 + $0x18] sm:$0xff]
        %v4896 = vld [vmem:[#allocation3 + $0x20] sm:$0xff]
        %v4897 = vld [vmem:[#allocation3 + $0x28] sm:$0xff]
        %v4898 = vld [vmem:[#allocation3 + $0x30] sm:$0xff]
        %v4899 = vld [vmem:[#allocation3 + $0x38] sm:$0xff]
        %v4900 = vld [vmem:[#allocation3 + $0x40] sm:$0xff]
        %v4901 = vld [vmem:[#allocation3 + $0x48] sm:$0xff]
        %v4902 = vld [vmem:[#allocation3 + $0x50] sm:$0xff]
        %v4903 = vld [vmem:[#allocation3 + $0x58] sm:$0xff]
        %v4904 = vld [vmem:[#allocation3 + $0x60] sm:$0xff]
        %v4905 = vld [vmem:[#allocation3 + $0x68] sm:$0xff]
        %v4906 = vld [vmem:[#allocation3 + $0x70] sm:$0xff]
        %v4907 = vld [vmem:[#allocation3 + $0x78] sm:$0xff]
        %v4908 = vld [vmem:[#allocation3 + $0x80] sm:$0xff]
        %v4909 = vld [vmem:[#allocation3 + $0x88] sm:$0xff]
        %v4910 = vld [vmem:[#allocation3 + $0x90] sm:$0xff]
        %v4911 = vld [vmem:[#allocation3 + $0x98] sm:$0xff]
        %v4912 = vld [vmem:[#allocation3 + $0xa0] sm:$0xff]
        %v4913 = vld [vmem:[#allocation3 + $0xa8] sm:$0xff]
        %v4914 = vld [vmem:[#allocation3 + $0xb0] sm:$0xff]
        %v4915 = vld [vmem:[#allocation3 + $0xb8] sm:$0xff]
        %v4916 = vld [vmem:[#allocation3 + $0xc0] sm:$0xf]
        %v4918 = vshrl.u32 %v4892, 16
        %v4920 = vrot.slane %v4918, 3
        %v4921 = vshll.u32 %v4892, 16
        %v4923 = vrot.slane %v4921, 4
        %v4924 = vor.u32 %v4920, %v4923
        %v4926 = vshrl.u32 %v4893, 16
        %v4928 = vrot.slane %v4926, 3
        %v4929 = vshll.u32 %v4893, 16
        %v4931 = vrot.slane %v4929, 4
        %v4932 = vor.u32 %v4928, %v4931
        %v4933 = vsel %vm537, %v4924, %v4932
        %v4935 = vshrl.u32 %v4894, 16
        %v4937 = vrot.slane %v4935, 3
        %v4938 = vshll.u32 %v4894, 16
        %v4940 = vrot.slane %v4938, 4
        %v4941 = vor.u32 %v4937, %v4940
        %v4942 = vsel %vm537, %v4932, %v4941
        %v4944 = vshrl.u32 %v4895, 16
        %v4946 = vrot.slane %v4944, 3
        %v4947 = vshll.u32 %v4895, 16
        %v4949 = vrot.slane %v4947, 4
        %v4950 = vor.u32 %v4946, %v4949
        %v4951 = vsel %vm537, %v4941, %v4950
        %v4953 = vshrl.u32 %v4896, 16
        %v4955 = vrot.slane %v4953, 3
        %v4956 = vshll.u32 %v4896, 16
        %v4958 = vrot.slane %v4956, 4
        %v4959 = vor.u32 %v4955, %v4958
        %v4960 = vsel %vm537, %v4950, %v4959
        %v4962 = vshrl.u32 %v4897, 16
        %v4964 = vrot.slane %v4962, 3
        %v4965 = vshll.u32 %v4897, 16
        %v4967 = vrot.slane %v4965, 4
        %v4968 = vor.u32 %v4964, %v4967
        %v4969 = vsel %vm537, %v4959, %v4968
        %v4971 = vshrl.u32 %v4898, 16
        %v4973 = vrot.slane %v4971, 3
        %v4974 = vshll.u32 %v4898, 16
        %v4976 = vrot.slane %v4974, 4
        %v4977 = vor.u32 %v4973, %v4976
        %v4978 = vsel %vm537, %v4968, %v4977
        %v4980 = vshrl.u32 %v4899, 16
        %v4982 = vrot.slane %v4980, 3
        %v4983 = vshll.u32 %v4899, 16
        %v4985 = vrot.slane %v4983, 4
        %v4986 = vor.u32 %v4982, %v4985
        %v4987 = vsel %vm537, %v4977, %v4986
        %v4989 = vshrl.u32 %v4900, 16
        %v4991 = vrot.slane %v4989, 3
        %v4992 = vshll.u32 %v4900, 16
        %v4994 = vrot.slane %v4992, 4
        %v4995 = vor.u32 %v4991, %v4994
        %v4996 = vsel %vm537, %v4986, %v4995
        %v4998 = vshrl.u32 %v4901, 16
        %v5000 = vrot.slane %v4998, 3
        %v5001 = vshll.u32 %v4901, 16
        %v5003 = vrot.slane %v5001, 4
        %v5004 = vor.u32 %v5000, %v5003
        %v5005 = vsel %vm537, %v4995, %v5004
        %v5007 = vshrl.u32 %v4902, 16
        %v5009 = vrot.slane %v5007, 3
        %v5010 = vshll.u32 %v4902, 16
        %v5012 = vrot.slane %v5010, 4
        %v5013 = vor.u32 %v5009, %v5012
        %v5014 = vsel %vm537, %v5004, %v5013
        %v5016 = vshrl.u32 %v4903, 16
        %v5018 = vrot.slane %v5016, 3
        %v5019 = vshll.u32 %v4903, 16
        %v5021 = vrot.slane %v5019, 4
        %v5022 = vor.u32 %v5018, %v5021
        %v5023 = vsel %vm537, %v5013, %v5022
        %v5025 = vshrl.u32 %v4904, 16
        %v5027 = vrot.slane %v5025, 3
        %v5028 = vshll.u32 %v4904, 16
        %v5030 = vrot.slane %v5028, 4
        %v5031 = vor.u32 %v5027, %v5030
        %v5032 = vsel %vm537, %v5022, %v5031
        %v5034 = vshrl.u32 %v4905, 16
        %v5036 = vrot.slane %v5034, 3
        %v5037 = vshll.u32 %v4905, 16
        %v5039 = vrot.slane %v5037, 4
        %v5040 = vor.u32 %v5036, %v5039
        %v5041 = vsel %vm537, %v5031, %v5040
        %v5043 = vshrl.u32 %v4906, 16
        %v5045 = vrot.slane %v5043, 3
        %v5046 = vshll.u32 %v4906, 16
        %v5048 = vrot.slane %v5046, 4
        %v5049 = vor.u32 %v5045, %v5048
        %v5050 = vsel %vm537, %v5040, %v5049
        %v5052 = vshrl.u32 %v4907, 16
        %v5054 = vrot.slane %v5052, 3
        %v5055 = vshll.u32 %v4907, 16
        %v5057 = vrot.slane %v5055, 4
        %v5058 = vor.u32 %v5054, %v5057
        %v5059 = vsel %vm537, %v5049, %v5058
        %v5061 = vshrl.u32 %v4908, 16
        %v5063 = vrot.slane %v5061, 3
        %v5064 = vshll.u32 %v4908, 16
        %v5066 = vrot.slane %v5064, 4
        %v5067 = vor.u32 %v5063, %v5066
        %v5068 = vsel %vm537, %v5058, %v5067
        %v5070 = vshrl.u32 %v4909, 16
        %v5072 = vrot.slane %v5070, 3
        %v5073 = vshll.u32 %v4909, 16
        %v5075 = vrot.slane %v5073, 4
        %v5076 = vor.u32 %v5072, %v5075
        %v5077 = vsel %vm537, %v5067, %v5076
        %v5079 = vshrl.u32 %v4910, 16
        %v5081 = vrot.slane %v5079, 3
        %v5082 = vshll.u32 %v4910, 16
        %v5084 = vrot.slane %v5082, 4
        %v5085 = vor.u32 %v5081, %v5084
        %v5086 = vsel %vm537, %v5076, %v5085
        %v5088 = vshrl.u32 %v4911, 16
        %v5090 = vrot.slane %v5088, 3
        %v5091 = vshll.u32 %v4911, 16
        %v5093 = vrot.slane %v5091, 4
        %v5094 = vor.u32 %v5090, %v5093
        %v5095 = vsel %vm537, %v5085, %v5094
        %v5097 = vshrl.u32 %v4912, 16
        %v5099 = vrot.slane %v5097, 3
        %v5100 = vshll.u32 %v4912, 16
        %v5102 = vrot.slane %v5100, 4
        %v5103 = vor.u32 %v5099, %v5102
        %v5104 = vsel %vm537, %v5094, %v5103
        %v5106 = vshrl.u32 %v4913, 16
        %v5108 = vrot.slane %v5106, 3
        %v5109 = vshll.u32 %v4913, 16
        %v5111 = vrot.slane %v5109, 4
        %v5112 = vor.u32 %v5108, %v5111
        %v5113 = vsel %vm537, %v5103, %v5112
        %v5115 = vshrl.u32 %v4914, 16
        %v5117 = vrot.slane %v5115, 3
        %v5118 = vshll.u32 %v4914, 16
        %v5120 = vrot.slane %v5118, 4
        %v5121 = vor.u32 %v5117, %v5120
        %v5122 = vsel %vm537, %v5112, %v5121
        %v5124 = vshrl.u32 %v4915, 16
        %v5126 = vrot.slane %v5124, 3
        %v5127 = vshll.u32 %v4915, 16
        %v5129 = vrot.slane %v5127, 4
        %v5130 = vor.u32 %v5126, %v5129
        %v5131 = vsel %vm537, %v5121, %v5130
        %v5133 = vshrl.u32 %v4916, 16
        %v5135 = vrot.slane %v5133, 3
        %v5136 = vshll.u32 %v4916, 16
        %v5138 = vrot.slane %v5136, 4
        %v5139 = vor.u32 %v5135, %v5138
        %v5140 = vsel %vm537, %v5130, %v5139
        %5165 = vst [vmem:[#allocation4] sm:$0xff] %v4933
        %5166 = vst [vmem:[#allocation4 + $0x48] sm:$0xff] %v4942
        %5167 = vst [vmem:[#allocation4 + $0x90] sm:$0xff] %v4951
        %5168 = vst [vmem:[#allocation4 + $0xd8] sm:$0xff] %v4960
        %5169 = vst [vmem:[#allocation4 + $0x120] sm:$0xff] %v4969
        %5170 = vst [vmem:[#allocation4 + $0x168] sm:$0xff] %v4978
        %5171 = vst [vmem:[#allocation4 + $0x1b0] sm:$0xff] %v4987
        %5172 = vst [vmem:[#allocation4 + $0x1f8] sm:$0xff] %v4996
        %5173 = vst [vmem:[#allocation4 + $0x240] sm:$0xff] %v5005
        %5174 = vst [vmem:[#allocation4 + $0x288] sm:$0xff] %v5014
        %5175 = vst [vmem:[#allocation4 + $0x2d0] sm:$0xff] %v5023
        %5176 = vst [vmem:[#allocation4 + $0x318] sm:$0xff] %v5032
        %5177 = vst [vmem:[#allocation4 + $0x360] sm:$0xff] %v5041
        %5178 = vst [vmem:[#allocation4 + $0x3a8] sm:$0xff] %v5050
        %5179 = vst [vmem:[#allocation4 + $0x3f0] sm:$0xff] %v5059
        %5180 = vst [vmem:[#allocation4 + $0x438] sm:$0xff] %v5068
        %5181 = vst [vmem:[#allocation4 + $0x480] sm:$0xff] %v5077
        %5182 = vst [vmem:[#allocation4 + $0x4c8] sm:$0xff] %v5086
        %5183 = vst [vmem:[#allocation4 + $0x510] sm:$0xff] %v5095
        %5184 = vst [vmem:[#allocation4 + $0x558] sm:$0xff] %v5104
        %5185 = vst [vmem:[#allocation4 + $0x5a0] sm:$0xff] %v5113
        %5186 = vst [vmem:[#allocation4 + $0x5e8] sm:$0xff] %v5122
        %5187 = vst [vmem:[#allocation4 + $0x630] sm:$0xff] %v5131
        %5188 = vst [vmem:[#allocation4 + $0x678] sm:$0xff] %v5140
        %v5189 = vld [vmem:[#allocation3] sm:$0xf0]
        %v5190 = vld [vmem:[#allocation3 + $0x8] sm:$0xff]
        %v5191 = vld [vmem:[#allocation3 + $0x10] sm:$0xff]
        %v5192 = vld [vmem:[#allocation3 + $0x18] sm:$0xff]
        %v5193 = vld [vmem:[#allocation3 + $0x20] sm:$0xff]
        %v5194 = vld [vmem:[#allocation3 + $0x28] sm:$0xff]
        %v5195 = vld [vmem:[#allocation3 + $0x30] sm:$0xff]
        %v5196 = vld [vmem:[#allocation3 + $0x38] sm:$0xff]
        %v5197 = vld [vmem:[#allocation3 + $0x40] sm:$0xff]
        %v5198 = vld [vmem:[#allocation3 + $0x48] sm:$0xff]
        %v5199 = vld [vmem:[#allocation3 + $0x50] sm:$0xff]
        %v5200 = vld [vmem:[#allocation3 + $0x58] sm:$0xff]
        %v5201 = vld [vmem:[#allocation3 + $0x60] sm:$0xff]
        %v5202 = vld [vmem:[#allocation3 + $0x68] sm:$0xff]
        %v5203 = vld [vmem:[#allocation3 + $0x70] sm:$0xff]
        %v5204 = vld [vmem:[#allocation3 + $0x78] sm:$0xff]
        %v5205 = vld [vmem:[#allocation3 + $0x80] sm:$0xff]
        %v5206 = vld [vmem:[#allocation3 + $0x88] sm:$0xff]
        %v5207 = vld [vmem:[#allocation3 + $0x90] sm:$0xff]
        %v5208 = vld [vmem:[#allocation3 + $0x98] sm:$0xff]
        %v5209 = vld [vmem:[#allocation3 + $0xa0] sm:$0xff]
        %v5210 = vld [vmem:[#allocation3 + $0xa8] sm:$0xff]
        %v5211 = vld [vmem:[#allocation3 + $0xb0] sm:$0xff]
        %v5212 = vld [vmem:[#allocation3 + $0xb8] sm:$0xff]
        %v5213 = vld [vmem:[#allocation3 + $0xc0] sm:$0xf]
        %v5239 = vrot.slane %v5189, 4
        %v5240 = vrot.slane %v5190, 4
        %v5241 = vsel %vm860, %v5239, %v5240
        %v5242 = vrot.slane %v5191, 4
        %v5243 = vsel %vm860, %v5240, %v5242
        %v5244 = vrot.slane %v5192, 4
        %v5245 = vsel %vm860, %v5242, %v5244
        %v5246 = vrot.slane %v5193, 4
        %v5247 = vsel %vm860, %v5244, %v5246
        %v5248 = vrot.slane %v5194, 4
        %v5249 = vsel %vm860, %v5246, %v5248
        %v5250 = vrot.slane %v5195, 4
        %v5251 = vsel %vm860, %v5248, %v5250
        %v5252 = vrot.slane %v5196, 4
        %v5253 = vsel %vm860, %v5250, %v5252
        %v5254 = vrot.slane %v5197, 4
        %v5255 = vsel %vm860, %v5252, %v5254
        %v5256 = vrot.slane %v5198, 4
        %v5257 = vsel %vm860, %v5254, %v5256
        %v5258 = vrot.slane %v5199, 4
        %v5259 = vsel %vm860, %v5256, %v5258
        %v5260 = vrot.slane %v5200, 4
        %v5261 = vsel %vm860, %v5258, %v5260
        %v5262 = vrot.slane %v5201, 4
        %v5263 = vsel %vm860, %v5260, %v5262
        %v5264 = vrot.slane %v5202, 4
        %v5265 = vsel %vm860, %v5262, %v5264
        %v5266 = vrot.slane %v5203, 4
        %v5267 = vsel %vm860, %v5264, %v5266
        %v5268 = vrot.slane %v5204, 4
        %v5269 = vsel %vm860, %v5266, %v5268
        %v5270 = vrot.slane %v5205, 4
        %v5271 = vsel %vm860, %v5268, %v5270
        %v5272 = vrot.slane %v5206, 4
        %v5273 = vsel %vm860, %v5270, %v5272
        %v5274 = vrot.slane %v5207, 4
        %v5275 = vsel %vm860, %v5272, %v5274
        %v5276 = vrot.slane %v5208, 4
        %v5277 = vsel %vm860, %v5274, %v5276
        %v5278 = vrot.slane %v5209, 4
        %v5279 = vsel %vm860, %v5276, %v5278
        %v5280 = vrot.slane %v5210, 4
        %v5281 = vsel %vm860, %v5278, %v5280
        %v5282 = vrot.slane %v5211, 4
        %v5283 = vsel %vm860, %v5280, %v5282
        %v5284 = vrot.slane %v5212, 4
        %v5285 = vsel %vm860, %v5282, %v5284
        %v5286 = vrot.slane %v5213, 4
        %v5287 = vsel %vm860, %v5284, %v5286
        %5312 = vst [vmem:[#allocation4 + $0x8] sm:$0xff] %v5241
        %5313 = vst [vmem:[#allocation4 + $0x50] sm:$0xff] %v5243
        %5314 = vst [vmem:[#allocation4 + $0x98] sm:$0xff] %v5245
        %5315 = vst [vmem:[#allocation4 + $0xe0] sm:$0xff] %v5247
        %5316 = vst [vmem:[#allocation4 + $0x128] sm:$0xff] %v5249
        %5317 = vst [vmem:[#allocation4 + $0x170] sm:$0xff] %v5251
        %5318 = vst [vmem:[#allocation4 + $0x1b8] sm:$0xff] %v5253
        %5319 = vst [vmem:[#allocation4 + $0x200] sm:$0xff] %v5255
        %5320 = vst [vmem:[#allocation4 + $0x248] sm:$0xff] %v5257
        %5321 = vst [vmem:[#allocation4 + $0x290] sm:$0xff] %v5259
        %5322 = vst [vmem:[#allocation4 + $0x2d8] sm:$0xff] %v5261
        %5323 = vst [vmem:[#allocation4 + $0x320] sm:$0xff] %v5263
        %5324 = vst [vmem:[#allocation4 + $0x368] sm:$0xff] %v5265
        %5325 = vst [vmem:[#allocation4 + $0x3b0] sm:$0xff] %v5267
        %5326 = vst [vmem:[#allocation4 + $0x3f8] sm:$0xff] %v5269
        %5327 = vst [vmem:[#allocation4 + $0x440] sm:$0xff] %v5271
        %5328 = vst [vmem:[#allocation4 + $0x488] sm:$0xff] %v5273
        %5329 = vst [vmem:[#allocation4 + $0x4d0] sm:$0xff] %v5275
        %5330 = vst [vmem:[#allocation4 + $0x518] sm:$0xff] %v5277
        %5331 = vst [vmem:[#allocation4 + $0x560] sm:$0xff] %v5279
        %5332 = vst [vmem:[#allocation4 + $0x5a8] sm:$0xff] %v5281
        %5333 = vst [vmem:[#allocation4 + $0x5f0] sm:$0xff] %v5283
        %5334 = vst [vmem:[#allocation4 + $0x638] sm:$0xff] %v5285
        %5335 = vst [vmem:[#allocation4 + $0x680] sm:$0xff] %v5287
        %v5336 = vld [vmem:[#allocation3] sm:$0xf0]
        %v5337 = vld [vmem:[#allocation3 + $0x8] sm:$0xff]
        %v5338 = vld [vmem:[#allocation3 + $0x10] sm:$0xff]
        %v5339 = vld [vmem:[#allocation3 + $0x18] sm:$0xff]
        %v5340 = vld [vmem:[#allocation3 + $0x20] sm:$0xff]
        %v5341 = vld [vmem:[#allocation3 + $0x28] sm:$0xff]
        %v5342 = vld [vmem:[#allocation3 + $0x30] sm:$0xff]
        %v5343 = vld [vmem:[#allocation3 + $0x38] sm:$0xff]
        %v5344 = vld [vmem:[#allocation3 + $0x40] sm:$0xff]
        %v5345 = vld [vmem:[#allocation3 + $0x48] sm:$0xff]
        %v5346 = vld [vmem:[#allocation3 + $0x50] sm:$0xff]
        %v5347 = vld [vmem:[#allocation3 + $0x58] sm:$0xff]
        %v5348 = vld [vmem:[#allocation3 + $0x60] sm:$0xff]
        %v5349 = vld [vmem:[#allocation3 + $0x68] sm:$0xff]
        %v5350 = vld [vmem:[#allocation3 + $0x70] sm:$0xff]
        %v5351 = vld [vmem:[#allocation3 + $0x78] sm:$0xff]
        %v5352 = vld [vmem:[#allocation3 + $0x80] sm:$0xff]
        %v5353 = vld [vmem:[#allocation3 + $0x88] sm:$0xff]
        %v5354 = vld [vmem:[#allocation3 + $0x90] sm:$0xff]
        %v5355 = vld [vmem:[#allocation3 + $0x98] sm:$0xff]
        %v5356 = vld [vmem:[#allocation3 + $0xa0] sm:$0xff]
        %v5357 = vld [vmem:[#allocation3 + $0xa8] sm:$0xff]
        %v5358 = vld [vmem:[#allocation3 + $0xb0] sm:$0xff]
        %v5359 = vld [vmem:[#allocation3 + $0xb8] sm:$0xff]
        %v5360 = vld [vmem:[#allocation3 + $0xc0] sm:$0x1f]
        %v5362 = vshrl.u32 %v5336, 16
        %v5364 = vrot.slane %v5362, 4
        %v5365 = vshll.u32 %v5336, 16
        %v5367 = vrot.slane %v5365, 5
        %v5368 = vor.u32 %v5364, %v5367
        %v5370 = vshrl.u32 %v5337, 16
        %v5372 = vrot.slane %v5370, 4
        %v5373 = vshll.u32 %v5337, 16
        %v5375 = vrot.slane %v5373, 5
        %v5376 = vor.u32 %v5372, %v5375
        %v5377 = vsel %vm983, %v5368, %v5376
        %v5379 = vshrl.u32 %v5338, 16
        %v5381 = vrot.slane %v5379, 4
        %v5382 = vshll.u32 %v5338, 16
        %v5384 = vrot.slane %v5382, 5
        %v5385 = vor.u32 %v5381, %v5384
        %v5386 = vsel %vm983, %v5376, %v5385
        %v5388 = vshrl.u32 %v5339, 16
        %v5390 = vrot.slane %v5388, 4
        %v5391 = vshll.u32 %v5339, 16
        %v5393 = vrot.slane %v5391, 5
        %v5394 = vor.u32 %v5390, %v5393
        %v5395 = vsel %vm983, %v5385, %v5394
        %v5397 = vshrl.u32 %v5340, 16
        %v5399 = vrot.slane %v5397, 4
        %v5400 = vshll.u32 %v5340, 16
        %v5402 = vrot.slane %v5400, 5
        %v5403 = vor.u32 %v5399, %v5402
        %v5404 = vsel %vm983, %v5394, %v5403
        %v5406 = vshrl.u32 %v5341, 16
        %v5408 = vrot.slane %v5406, 4
        %v5409 = vshll.u32 %v5341, 16
        %v5411 = vrot.slane %v5409, 5
        %v5412 = vor.u32 %v5408, %v5411
        %v5413 = vsel %vm983, %v5403, %v5412
        %v5415 = vshrl.u32 %v5342, 16
        %v5417 = vrot.slane %v5415, 4
        %v5418 = vshll.u32 %v5342, 16
        %v5420 = vrot.slane %v5418, 5
        %v5421 = vor.u32 %v5417, %v5420
        %v5422 = vsel %vm983, %v5412, %v5421
        %v5424 = vshrl.u32 %v5343, 16
        %v5426 = vrot.slane %v5424, 4
        %v5427 = vshll.u32 %v5343, 16
        %v5429 = vrot.slane %v5427, 5
        %v5430 = vor.u32 %v5426, %v5429
        %v5431 = vsel %vm983, %v5421, %v5430
        %v5433 = vshrl.u32 %v5344, 16
        %v5435 = vrot.slane %v5433, 4
        %v5436 = vshll.u32 %v5344, 16
        %v5438 = vrot.slane %v5436, 5
        %v5439 = vor.u32 %v5435, %v5438
        %v5440 = vsel %vm983, %v5430, %v5439
        %v5442 = vshrl.u32 %v5345, 16
        %v5444 = vrot.slane %v5442, 4
        %v5445 = vshll.u32 %v5345, 16
        %v5447 = vrot.slane %v5445, 5
        %v5448 = vor.u32 %v5444, %v5447
        %v5449 = vsel %vm983, %v5439, %v5448
        %v5451 = vshrl.u32 %v5346, 16
        %v5453 = vrot.slane %v5451, 4
        %v5454 = vshll.u32 %v5346, 16
        %v5456 = vrot.slane %v5454, 5
        %v5457 = vor.u32 %v5453, %v5456
        %v5458 = vsel %vm983, %v5448, %v5457
        %v5460 = vshrl.u32 %v5347, 16
        %v5462 = vrot.slane %v5460, 4
        %v5463 = vshll.u32 %v5347, 16
        %v5465 = vrot.slane %v5463, 5
        %v5466 = vor.u32 %v5462, %v5465
        %v5467 = vsel %vm983, %v5457, %v5466
        %v5469 = vshrl.u32 %v5348, 16
        %v5471 = vrot.slane %v5469, 4
        %v5472 = vshll.u32 %v5348, 16
        %v5474 = vrot.slane %v5472, 5
        %v5475 = vor.u32 %v5471, %v5474
        %v5476 = vsel %vm983, %v5466, %v5475
        %v5478 = vshrl.u32 %v5349, 16
        %v5480 = vrot.slane %v5478, 4
        %v5481 = vshll.u32 %v5349, 16
        %v5483 = vrot.slane %v5481, 5
        %v5484 = vor.u32 %v5480, %v5483
        %v5485 = vsel %vm983, %v5475, %v5484
        %v5487 = vshrl.u32 %v5350, 16
        %v5489 = vrot.slane %v5487, 4
        %v5490 = vshll.u32 %v5350, 16
        %v5492 = vrot.slane %v5490, 5
        %v5493 = vor.u32 %v5489, %v5492
        %v5494 = vsel %vm983, %v5484, %v5493
        %v5496 = vshrl.u32 %v5351, 16
        %v5498 = vrot.slane %v5496, 4
        %v5499 = vshll.u32 %v5351, 16
        %v5501 = vrot.slane %v5499, 5
        %v5502 = vor.u32 %v5498, %v5501
        %v5503 = vsel %vm983, %v5493, %v5502
        %v5505 = vshrl.u32 %v5352, 16
        %v5507 = vrot.slane %v5505, 4
        %v5508 = vshll.u32 %v5352, 16
        %v5510 = vrot.slane %v5508, 5
        %v5511 = vor.u32 %v5507, %v5510
        %v5512 = vsel %vm983, %v5502, %v5511
        %v5514 = vshrl.u32 %v5353, 16
        %v5516 = vrot.slane %v5514, 4
        %v5517 = vshll.u32 %v5353, 16
        %v5519 = vrot.slane %v5517, 5
        %v5520 = vor.u32 %v5516, %v5519
        %v5521 = vsel %vm983, %v5511, %v5520
        %v5523 = vshrl.u32 %v5354, 16
        %v5525 = vrot.slane %v5523, 4
        %v5526 = vshll.u32 %v5354, 16
        %v5528 = vrot.slane %v5526, 5
        %v5529 = vor.u32 %v5525, %v5528
        %v5530 = vsel %vm983, %v5520, %v5529
        %v5532 = vshrl.u32 %v5355, 16
        %v5534 = vrot.slane %v5532, 4
        %v5535 = vshll.u32 %v5355, 16
        %v5537 = vrot.slane %v5535, 5
        %v5538 = vor.u32 %v5534, %v5537
        %v5539 = vsel %vm983, %v5529, %v5538
        %v5541 = vshrl.u32 %v5356, 16
        %v5543 = vrot.slane %v5541, 4
        %v5544 = vshll.u32 %v5356, 16
        %v5546 = vrot.slane %v5544, 5
        %v5547 = vor.u32 %v5543, %v5546
        %v5548 = vsel %vm983, %v5538, %v5547
        %v5550 = vshrl.u32 %v5357, 16
        %v5552 = vrot.slane %v5550, 4
        %v5553 = vshll.u32 %v5357, 16
        %v5555 = vrot.slane %v5553, 5
        %v5556 = vor.u32 %v5552, %v5555
        %v5557 = vsel %vm983, %v5547, %v5556
        %v5559 = vshrl.u32 %v5358, 16
        %v5561 = vrot.slane %v5559, 4
        %v5562 = vshll.u32 %v5358, 16
        %v5564 = vrot.slane %v5562, 5
        %v5565 = vor.u32 %v5561, %v5564
        %v5566 = vsel %vm983, %v5556, %v5565
        %v5568 = vshrl.u32 %v5359, 16
        %v5570 = vrot.slane %v5568, 4
        %v5571 = vshll.u32 %v5359, 16
        %v5573 = vrot.slane %v5571, 5
        %v5574 = vor.u32 %v5570, %v5573
        %v5575 = vsel %vm983, %v5565, %v5574
        %v5577 = vshrl.u32 %v5360, 16
        %v5579 = vrot.slane %v5577, 4
        %v5580 = vshll.u32 %v5360, 16
        %v5582 = vrot.slane %v5580, 5
        %v5583 = vor.u32 %v5579, %v5582
        %v5584 = vsel %vm983, %v5574, %v5583
        %5609 = vst [vmem:[#allocation4 + $0x10] sm:$0xff] %v5377
        %5610 = vst [vmem:[#allocation4 + $0x58] sm:$0xff] %v5386
        %5611 = vst [vmem:[#allocation4 + $0xa0] sm:$0xff] %v5395
        %5612 = vst [vmem:[#allocation4 + $0xe8] sm:$0xff] %v5404
        %5613 = vst [vmem:[#allocation4 + $0x130] sm:$0xff] %v5413
        %5614 = vst [vmem:[#allocation4 + $0x178] sm:$0xff] %v5422
        %5615 = vst [vmem:[#allocation4 + $0x1c0] sm:$0xff] %v5431
        %5616 = vst [vmem:[#allocation4 + $0x208] sm:$0xff] %v5440
        %5617 = vst [vmem:[#allocation4 + $0x250] sm:$0xff] %v5449
        %5618 = vst [vmem:[#allocation4 + $0x298] sm:$0xff] %v5458
        %5619 = vst [vmem:[#allocation4 + $0x2e0] sm:$0xff] %v5467
        %5620 = vst [vmem:[#allocation4 + $0x328] sm:$0xff] %v5476
        %5621 = vst [vmem:[#allocation4 + $0x370] sm:$0xff] %v5485
        %5622 = vst [vmem:[#allocation4 + $0x3b8] sm:$0xff] %v5494
        %5623 = vst [vmem:[#allocation4 + $0x400] sm:$0xff] %v5503
        %5624 = vst [vmem:[#allocation4 + $0x448] sm:$0xff] %v5512
        %5625 = vst [vmem:[#allocation4 + $0x490] sm:$0xff] %v5521
        %5626 = vst [vmem:[#allocation4 + $0x4d8] sm:$0xff] %v5530
        %5627 = vst [vmem:[#allocation4 + $0x520] sm:$0xff] %v5539
        %5628 = vst [vmem:[#allocation4 + $0x568] sm:$0xff] %v5548
        %5629 = vst [vmem:[#allocation4 + $0x5b0] sm:$0xff] %v5557
        %5630 = vst [vmem:[#allocation4 + $0x5f8] sm:$0xff] %v5566
        %5631 = vst [vmem:[#allocation4 + $0x640] sm:$0xff] %v5575
        %5632 = vst [vmem:[#allocation4 + $0x688] sm:$0xff] %v5584
        %v5633 = vld [vmem:[#allocation3 + $0x8] sm:$0x80]
        %v5634 = vld [vmem:[#allocation3 + $0x10] sm:$0xff]
        %v5635 = vld [vmem:[#allocation3 + $0x18] sm:$0xff]
        %v5636 = vld [vmem:[#allocation3 + $0x20] sm:$0xff]
        %v5637 = vld [vmem:[#allocation3 + $0x28] sm:$0xff]
        %v5638 = vld [vmem:[#allocation3 + $0x30] sm:$0xff]
        %v5639 = vld [vmem:[#allocation3 + $0x38] sm:$0xff]
        %v5640 = vld [vmem:[#allocation3 + $0x40] sm:$0xff]
        %v5641 = vld [vmem:[#allocation3 + $0x48] sm:$0xff]
        %v5642 = vld [vmem:[#allocation3 + $0x50] sm:$0xff]
        %v5643 = vld [vmem:[#allocation3 + $0x58] sm:$0xff]
        %v5644 = vld [vmem:[#allocation3 + $0x60] sm:$0xff]
        %v5645 = vld [vmem:[#allocation3 + $0x68] sm:$0xff]
        %v5646 = vld [vmem:[#allocation3 + $0x70] sm:$0xff]
        %v5647 = vld [vmem:[#allocation3 + $0x78] sm:$0xff]
        %v5648 = vld [vmem:[#allocation3 + $0x80] sm:$0xff]
        %v5649 = vld [vmem:[#allocation3 + $0x88] sm:$0xff]
        %v5650 = vld [vmem:[#allocation3 + $0x90] sm:$0xff]
        %v5651 = vld [vmem:[#allocation3 + $0x98] sm:$0xff]
        %v5652 = vld [vmem:[#allocation3 + $0xa0] sm:$0xff]
        %v5653 = vld [vmem:[#allocation3 + $0xa8] sm:$0xff]
        %v5654 = vld [vmem:[#allocation3 + $0xb0] sm:$0xff]
        %v5655 = vld [vmem:[#allocation3 + $0xb8] sm:$0xff]
        %v5656 = vld [vmem:[#allocation3 + $0xc0] sm:$0xff]
        %v5657 = vld [vmem:[#allocation3 + $0xc8] sm:$0xff]
        %v5659 = vshrl.u32 %v5633, 16
        %v5661 = vrot.slane %v5659, 7
        %v5663 = vshrl.u32 %v5634, 16
        %v5665 = vrot.slane %v5663, 7
        %v5666 = vshll.u32 %v5634, 16
        %v5668 = vor.u32 %v5665, %v5666
        %v5669 = vsel %vm1281, %v5661, %v5668
        %v5671 = vshrl.u32 %v5635, 16
        %v5673 = vrot.slane %v5671, 7
        %v5674 = vshll.u32 %v5635, 16
        %v5676 = vor.u32 %v5673, %v5674
        %v5677 = vsel %vm1281, %v5665, %v5676
        %v5679 = vshrl.u32 %v5636, 16
        %v5681 = vrot.slane %v5679, 7
        %v5682 = vshll.u32 %v5636, 16
        %v5684 = vor.u32 %v5681, %v5682
        %v5685 = vsel %vm1281, %v5673, %v5684
        %v5687 = vshrl.u32 %v5637, 16
        %v5689 = vrot.slane %v5687, 7
        %v5690 = vshll.u32 %v5637, 16
        %v5692 = vor.u32 %v5689, %v5690
        %v5693 = vsel %vm1281, %v5681, %v5692
        %v5695 = vshrl.u32 %v5638, 16
        %v5697 = vrot.slane %v5695, 7
        %v5698 = vshll.u32 %v5638, 16
        %v5700 = vor.u32 %v5697, %v5698
        %v5701 = vsel %vm1281, %v5689, %v5700
        %v5703 = vshrl.u32 %v5639, 16
        %v5705 = vrot.slane %v5703, 7
        %v5706 = vshll.u32 %v5639, 16
        %v5708 = vor.u32 %v5705, %v5706
        %v5709 = vsel %vm1281, %v5697, %v5708
        %v5711 = vshrl.u32 %v5640, 16
        %v5713 = vrot.slane %v5711, 7
        %v5714 = vshll.u32 %v5640, 16
        %v5716 = vor.u32 %v5713, %v5714
        %v5717 = vsel %vm1281, %v5705, %v5716
        %v5719 = vshrl.u32 %v5641, 16
        %v5721 = vrot.slane %v5719, 7
        %v5722 = vshll.u32 %v5641, 16
        %v5724 = vor.u32 %v5721, %v5722
        %v5725 = vsel %vm1281, %v5713, %v5724
        %v5727 = vshrl.u32 %v5642, 16
        %v5729 = vrot.slane %v5727, 7
        %v5730 = vshll.u32 %v5642, 16
        %v5732 = vor.u32 %v5729, %v5730
        %v5733 = vsel %vm1281, %v5721, %v5732
        %v5735 = vshrl.u32 %v5643, 16
        %v5737 = vrot.slane %v5735, 7
        %v5738 = vshll.u32 %v5643, 16
        %v5740 = vor.u32 %v5737, %v5738
        %v5741 = vsel %vm1281, %v5729, %v5740
        %v5743 = vshrl.u32 %v5644, 16
        %v5745 = vrot.slane %v5743, 7
        %v5746 = vshll.u32 %v5644, 16
        %v5748 = vor.u32 %v5745, %v5746
        %v5749 = vsel %vm1281, %v5737, %v5748
        %v5751 = vshrl.u32 %v5645, 16
        %v5753 = vrot.slane %v5751, 7
        %v5754 = vshll.u32 %v5645, 16
        %v5756 = vor.u32 %v5753, %v5754
        %v5757 = vsel %vm1281, %v5745, %v5756
        %v5759 = vshrl.u32 %v5646, 16
        %v5761 = vrot.slane %v5759, 7
        %v5762 = vshll.u32 %v5646, 16
        %v5764 = vor.u32 %v5761, %v5762
        %v5765 = vsel %vm1281, %v5753, %v5764
        %v5767 = vshrl.u32 %v5647, 16
        %v5769 = vrot.slane %v5767, 7
        %v5770 = vshll.u32 %v5647, 16
        %v5772 = vor.u32 %v5769, %v5770
        %v5773 = vsel %vm1281, %v5761, %v5772
        %v5775 = vshrl.u32 %v5648, 16
        %v5777 = vrot.slane %v5775, 7
        %v5778 = vshll.u32 %v5648, 16
        %v5780 = vor.u32 %v5777, %v5778
        %v5781 = vsel %vm1281, %v5769, %v5780
        %v5783 = vshrl.u32 %v5649, 16
        %v5785 = vrot.slane %v5783, 7
        %v5786 = vshll.u32 %v5649, 16
        %v5788 = vor.u32 %v5785, %v5786
        %v5789 = vsel %vm1281, %v5777, %v5788
        %v5791 = vshrl.u32 %v5650, 16
        %v5793 = vrot.slane %v5791, 7
        %v5794 = vshll.u32 %v5650, 16
        %v5796 = vor.u32 %v5793, %v5794
        %v5797 = vsel %vm1281, %v5785, %v5796
        %v5799 = vshrl.u32 %v5651, 16
        %v5801 = vrot.slane %v5799, 7
        %v5802 = vshll.u32 %v5651, 16
        %v5804 = vor.u32 %v5801, %v5802
        %v5805 = vsel %vm1281, %v5793, %v5804
        %v5807 = vshrl.u32 %v5652, 16
        %v5809 = vrot.slane %v5807, 7
        %v5810 = vshll.u32 %v5652, 16
        %v5812 = vor.u32 %v5809, %v5810
        %v5813 = vsel %vm1281, %v5801, %v5812
        %v5815 = vshrl.u32 %v5653, 16
        %v5817 = vrot.slane %v5815, 7
        %v5818 = vshll.u32 %v5653, 16
        %v5820 = vor.u32 %v5817, %v5818
        %v5821 = vsel %vm1281, %v5809, %v5820
        %v5823 = vshrl.u32 %v5654, 16
        %v5825 = vrot.slane %v5823, 7
        %v5826 = vshll.u32 %v5654, 16
        %v5828 = vor.u32 %v5825, %v5826
        %v5829 = vsel %vm1281, %v5817, %v5828
        %v5831 = vshrl.u32 %v5655, 16
        %v5833 = vrot.slane %v5831, 7
        %v5834 = vshll.u32 %v5655, 16
        %v5836 = vor.u32 %v5833, %v5834
        %v5837 = vsel %vm1281, %v5825, %v5836
        %v5839 = vshrl.u32 %v5656, 16
        %v5841 = vrot.slane %v5839, 7
        %v5842 = vshll.u32 %v5656, 16
        %v5844 = vor.u32 %v5841, %v5842
        %v5845 = vsel %vm1281, %v5833, %v5844
        %v5847 = vshrl.u32 %v5657, 16
        %v5849 = vrot.slane %v5847, 7
        %v5850 = vshll.u32 %v5657, 16
        %v5852 = vor.u32 %v5849, %v5850
        %v5853 = vsel %vm1281, %v5841, %v5852
        %5878 = vst [vmem:[#allocation4 + $0x18] sm:$0xff] %v5669
        %5879 = vst [vmem:[#allocation4 + $0x60] sm:$0xff] %v5677
        %5880 = vst [vmem:[#allocation4 + $0xa8] sm:$0xff] %v5685
        %5881 = vst [vmem:[#allocation4 + $0xf0] sm:$0xff] %v5693
        %5882 = vst [vmem:[#allocation4 + $0x138] sm:$0xff] %v5701
        %5883 = vst [vmem:[#allocation4 + $0x180] sm:$0xff] %v5709
        %5884 = vst [vmem:[#allocation4 + $0x1c8] sm:$0xff] %v5717
        %5885 = vst [vmem:[#allocation4 + $0x210] sm:$0xff] %v5725
        %5886 = vst [vmem:[#allocation4 + $0x258] sm:$0xff] %v5733
        %5887 = vst [vmem:[#allocation4 + $0x2a0] sm:$0xff] %v5741
        %5888 = vst [vmem:[#allocation4 + $0x2e8] sm:$0xff] %v5749
        %5889 = vst [vmem:[#allocation4 + $0x330] sm:$0xff] %v5757
        %5890 = vst [vmem:[#allocation4 + $0x378] sm:$0xff] %v5765
        %5891 = vst [vmem:[#allocation4 + $0x3c0] sm:$0xff] %v5773
        %5892 = vst [vmem:[#allocation4 + $0x408] sm:$0xff] %v5781
        %5893 = vst [vmem:[#allocation4 + $0x450] sm:$0xff] %v5789
        %5894 = vst [vmem:[#allocation4 + $0x498] sm:$0xff] %v5797
        %5895 = vst [vmem:[#allocation4 + $0x4e0] sm:$0xff] %v5805
        %5896 = vst [vmem:[#allocation4 + $0x528] sm:$0xff] %v5813
        %5897 = vst [vmem:[#allocation4 + $0x570] sm:$0xff] %v5821
        %5898 = vst [vmem:[#allocation4 + $0x5b8] sm:$0xff] %v5829
        %5899 = vst [vmem:[#allocation4 + $0x600] sm:$0xff] %v5837
        %5900 = vst [vmem:[#allocation4 + $0x648] sm:$0xff] %v5845
        %5901 = vst [vmem:[#allocation4 + $0x690] sm:$0xff] %v5853
        %v5902 = vld [vmem:[#allocation3 + $0x10] sm:$0xff]
        %v5903 = vld [vmem:[#allocation3 + $0x18] sm:$0xff]
        %v5904 = vld [vmem:[#allocation3 + $0x20] sm:$0xff]
        %v5905 = vld [vmem:[#allocation3 + $0x28] sm:$0xff]
        %v5906 = vld [vmem:[#allocation3 + $0x30] sm:$0xff]
        %v5907 = vld [vmem:[#allocation3 + $0x38] sm:$0xff]
        %v5908 = vld [vmem:[#allocation3 + $0x40] sm:$0xff]
        %v5909 = vld [vmem:[#allocation3 + $0x48] sm:$0xff]
        %v5910 = vld [vmem:[#allocation3 + $0x50] sm:$0xff]
        %v5911 = vld [vmem:[#allocation3 + $0x58] sm:$0xff]
        %v5912 = vld [vmem:[#allocation3 + $0x60] sm:$0xff]
        %v5913 = vld [vmem:[#allocation3 + $0x68] sm:$0xff]
        %v5914 = vld [vmem:[#allocation3 + $0x70] sm:$0xff]
        %v5915 = vld [vmem:[#allocation3 + $0x78] sm:$0xff]
        %v5916 = vld [vmem:[#allocation3 + $0x80] sm:$0xff]
        %v5917 = vld [vmem:[#allocation3 + $0x88] sm:$0xff]
        %v5918 = vld [vmem:[#allocation3 + $0x90] sm:$0xff]
        %v5919 = vld [vmem:[#allocation3 + $0x98] sm:$0xff]
        %v5920 = vld [vmem:[#allocation3 + $0xa0] sm:$0xff]
        %v5921 = vld [vmem:[#allocation3 + $0xa8] sm:$0xff]
        %v5922 = vld [vmem:[#allocation3 + $0xb0] sm:$0xff]
        %v5923 = vld [vmem:[#allocation3 + $0xb8] sm:$0xff]
        %v5924 = vld [vmem:[#allocation3 + $0xc0] sm:$0xff]
        %v5925 = vld [vmem:[#allocation3 + $0xc8] sm:$0xff]
        %5926 = vst [vmem:[#allocation4 + $0x20] sm:$0xff] %v5902
        %5927 = vst [vmem:[#allocation4 + $0x68] sm:$0xff] %v5903
        %5928 = vst [vmem:[#allocation4 + $0xb0] sm:$0xff] %v5904
        %5929 = vst [vmem:[#allocation4 + $0xf8] sm:$0xff] %v5905
        %5930 = vst [vmem:[#allocation4 + $0x140] sm:$0xff] %v5906
        %5931 = vst [vmem:[#allocation4 + $0x188] sm:$0xff] %v5907
        %5932 = vst [vmem:[#allocation4 + $0x1d0] sm:$0xff] %v5908
        %5933 = vst [vmem:[#allocation4 + $0x218] sm:$0xff] %v5909
        %5934 = vst [vmem:[#allocation4 + $0x260] sm:$0xff] %v5910
        %5935 = vst [vmem:[#allocation4 + $0x2a8] sm:$0xff] %v5911
        %5936 = vst [vmem:[#allocation4 + $0x2f0] sm:$0xff] %v5912
        %5937 = vst [vmem:[#allocation4 + $0x338] sm:$0xff] %v5913
        %5938 = vst [vmem:[#allocation4 + $0x380] sm:$0xff] %v5914
        %5939 = vst [vmem:[#allocation4 + $0x3c8] sm:$0xff] %v5915
        %5940 = vst [vmem:[#allocation4 + $0x410] sm:$0xff] %v5916
        %5941 = vst [vmem:[#allocation4 + $0x458] sm:$0xff] %v5917
        %5942 = vst [vmem:[#allocation4 + $0x4a0] sm:$0xff] %v5918
        %5943 = vst [vmem:[#allocation4 + $0x4e8] sm:$0xff] %v5919
        %5944 = vst [vmem:[#allocation4 + $0x530] sm:$0xff] %v5920
        %5945 = vst [vmem:[#allocation4 + $0x578] sm:$0xff] %v5921
        %5946 = vst [vmem:[#allocation4 + $0x5c0] sm:$0xff] %v5922
        %5947 = vst [vmem:[#allocation4 + $0x608] sm:$0xff] %v5923
        %5948 = vst [vmem:[#allocation4 + $0x650] sm:$0xff] %v5924
        %5949 = vst [vmem:[#allocation4 + $0x698] sm:$0xff] %v5925
        %v5950 = vld [vmem:[#allocation3 + $0x10] sm:$0xff]
        %v5951 = vld [vmem:[#allocation3 + $0x18] sm:$0xff]
        %v5952 = vld [vmem:[#allocation3 + $0x20] sm:$0xff]
        %v5953 = vld [vmem:[#allocation3 + $0x28] sm:$0xff]
        %v5954 = vld [vmem:[#allocation3 + $0x30] sm:$0xff]
        %v5955 = vld [vmem:[#allocation3 + $0x38] sm:$0xff]
        %v5956 = vld [vmem:[#allocation3 + $0x40] sm:$0xff]
        %v5957 = vld [vmem:[#allocation3 + $0x48] sm:$0xff]
        %v5958 = vld [vmem:[#allocation3 + $0x50] sm:$0xff]
        %v5959 = vld [vmem:[#allocation3 + $0x58] sm:$0xff]
        %v5960 = vld [vmem:[#allocation3 + $0x60] sm:$0xff]
        %v5961 = vld [vmem:[#allocation3 + $0x68] sm:$0xff]
        %v5962 = vld [vmem:[#allocation3 + $0x70] sm:$0xff]
        %v5963 = vld [vmem:[#allocation3 + $0x78] sm:$0xff]
        %v5964 = vld [vmem:[#allocation3 + $0x80] sm:$0xff]
        %v5965 = vld [vmem:[#allocation3 + $0x88] sm:$0xff]
        %v5966 = vld [vmem:[#allocation3 + $0x90] sm:$0xff]
        %v5967 = vld [vmem:[#allocation3 + $0x98] sm:$0xff]
        %v5968 = vld [vmem:[#allocation3 + $0xa0] sm:$0xff]
        %v5969 = vld [vmem:[#allocation3 + $0xa8] sm:$0xff]
        %v5970 = vld [vmem:[#allocation3 + $0xb0] sm:$0xff]
        %v5971 = vld [vmem:[#allocation3 + $0xb8] sm:$0xff]
        %v5972 = vld [vmem:[#allocation3 + $0xc0] sm:$0xff]
        %v5973 = vld [vmem:[#allocation3 + $0xc8] sm:$0xff]
        %v5974 = vld [vmem:[#allocation3 + $0xd0] sm:$0x1]
        %v5976 = vshrl.u32 %v5950, 16
        %v5978 = vshll.u32 %v5950, 16
        %v5980 = vrot.slane %v5978, 1
        %v5981 = vor.u32 %v5976, %v5980
        %v5983 = vshll.u32 %v5951, 16
        %v5985 = vrot.slane %v5983, 1
        %v5986 = vsel %vm1599, %v5981, %v5985
        %v5987 = vshrl.u32 %v5951, 16
        %v5989 = vor.u32 %v5987, %v5985
        %v5991 = vshll.u32 %v5952, 16
        %v5993 = vrot.slane %v5991, 1
        %v5994 = vsel %vm1599, %v5989, %v5993
        %v5995 = vshrl.u32 %v5952, 16
        %v5997 = vor.u32 %v5995, %v5993
        %v5999 = vshll.u32 %v5953, 16
        %v6001 = vrot.slane %v5999, 1
        %v6002 = vsel %vm1599, %v5997, %v6001
        %v6003 = vshrl.u32 %v5953, 16
        %v6005 = vor.u32 %v6003, %v6001
        %v6007 = vshll.u32 %v5954, 16
        %v6009 = vrot.slane %v6007, 1
        %v6010 = vsel %vm1599, %v6005, %v6009
        %v6011 = vshrl.u32 %v5954, 16
        %v6013 = vor.u32 %v6011, %v6009
        %v6015 = vshll.u32 %v5955, 16
        %v6017 = vrot.slane %v6015, 1
        %v6018 = vsel %vm1599, %v6013, %v6017
        %v6019 = vshrl.u32 %v5955, 16
        %v6021 = vor.u32 %v6019, %v6017
        %v6023 = vshll.u32 %v5956, 16
        %v6025 = vrot.slane %v6023, 1
        %v6026 = vsel %vm1599, %v6021, %v6025
        %v6027 = vshrl.u32 %v5956, 16
        %v6029 = vor.u32 %v6027, %v6025
        %v6031 = vshll.u32 %v5957, 16
        %v6033 = vrot.slane %v6031, 1
        %v6034 = vsel %vm1599, %v6029, %v6033
        %v6035 = vshrl.u32 %v5957, 16
        %v6037 = vor.u32 %v6035, %v6033
        %v6039 = vshll.u32 %v5958, 16
        %v6041 = vrot.slane %v6039, 1
        %v6042 = vsel %vm1599, %v6037, %v6041
        %v6043 = vshrl.u32 %v5958, 16
        %v6045 = vor.u32 %v6043, %v6041
        %v6047 = vshll.u32 %v5959, 16
        %v6049 = vrot.slane %v6047, 1
        %v6050 = vsel %vm1599, %v6045, %v6049
        %v6051 = vshrl.u32 %v5959, 16
        %v6053 = vor.u32 %v6051, %v6049
        %v6055 = vshll.u32 %v5960, 16
        %v6057 = vrot.slane %v6055, 1
        %v6058 = vsel %vm1599, %v6053, %v6057
        %v6059 = vshrl.u32 %v5960, 16
        %v6061 = vor.u32 %v6059, %v6057
        %v6063 = vshll.u32 %v5961, 16
        %v6065 = vrot.slane %v6063, 1
        %v6066 = vsel %vm1599, %v6061, %v6065
        %v6067 = vshrl.u32 %v5961, 16
        %v6069 = vor.u32 %v6067, %v6065
        %v6071 = vshll.u32 %v5962, 16
        %v6073 = vrot.slane %v6071, 1
        %v6074 = vsel %vm1599, %v6069, %v6073
        %v6075 = vshrl.u32 %v5962, 16
        %v6077 = vor.u32 %v6075, %v6073
        %v6079 = vshll.u32 %v5963, 16
        %v6081 = vrot.slane %v6079, 1
        %v6082 = vsel %vm1599, %v6077, %v6081
        %v6083 = vshrl.u32 %v5963, 16
        %v6085 = vor.u32 %v6083, %v6081
        %v6087 = vshll.u32 %v5964, 16
        %v6089 = vrot.slane %v6087, 1
        %v6090 = vsel %vm1599, %v6085, %v6089
        %v6091 = vshrl.u32 %v5964, 16
        %v6093 = vor.u32 %v6091, %v6089
        %v6095 = vshll.u32 %v5965, 16
        %v6097 = vrot.slane %v6095, 1
        %v6098 = vsel %vm1599, %v6093, %v6097
        %v6099 = vshrl.u32 %v5965, 16
        %v6101 = vor.u32 %v6099, %v6097
        %v6103 = vshll.u32 %v5966, 16
        %v6105 = vrot.slane %v6103, 1
        %v6106 = vsel %vm1599, %v6101, %v6105
        %v6107 = vshrl.u32 %v5966, 16
        %v6109 = vor.u32 %v6107, %v6105
        %v6111 = vshll.u32 %v5967, 16
        %v6113 = vrot.slane %v6111, 1
        %v6114 = vsel %vm1599, %v6109, %v6113
        %v6115 = vshrl.u32 %v5967, 16
        %v6117 = vor.u32 %v6115, %v6113
        %v6119 = vshll.u32 %v5968, 16
        %v6121 = vrot.slane %v6119, 1
        %v6122 = vsel %vm1599, %v6117, %v6121
        %v6123 = vshrl.u32 %v5968, 16
        %v6125 = vor.u32 %v6123, %v6121
        %v6127 = vshll.u32 %v5969, 16
        %v6129 = vrot.slane %v6127, 1
        %v6130 = vsel %vm1599, %v6125, %v6129
        %v6131 = vshrl.u32 %v5969, 16
        %v6133 = vor.u32 %v6131, %v6129
        %v6135 = vshll.u32 %v5970, 16
        %v6137 = vrot.slane %v6135, 1
        %v6138 = vsel %vm1599, %v6133, %v6137
        %v6139 = vshrl.u32 %v5970, 16
        %v6141 = vor.u32 %v6139, %v6137
        %v6143 = vshll.u32 %v5971, 16
        %v6145 = vrot.slane %v6143, 1
        %v6146 = vsel %vm1599, %v6141, %v6145
        %v6147 = vshrl.u32 %v5971, 16
        %v6149 = vor.u32 %v6147, %v6145
        %v6151 = vshll.u32 %v5972, 16
        %v6153 = vrot.slane %v6151, 1
        %v6154 = vsel %vm1599, %v6149, %v6153
        %v6155 = vshrl.u32 %v5972, 16
        %v6157 = vor.u32 %v6155, %v6153
        %v6159 = vshll.u32 %v5973, 16
        %v6161 = vrot.slane %v6159, 1
        %v6162 = vsel %vm1599, %v6157, %v6161
        %v6163 = vshrl.u32 %v5973, 16
        %v6165 = vor.u32 %v6163, %v6161
        %v6167 = vshll.u32 %v5974, 16
        %v6169 = vrot.slane %v6167, 1
        %v6170 = vsel %vm1599, %v6165, %v6169
        %6195 = vst [vmem:[#allocation4 + $0x28] sm:$0xff] %v5986
        %6196 = vst [vmem:[#allocation4 + $0x70] sm:$0xff] %v5994
        %6197 = vst [vmem:[#allocation4 + $0xb8] sm:$0xff] %v6002
        %6198 = vst [vmem:[#allocation4 + $0x100] sm:$0xff] %v6010
        %6199 = vst [vmem:[#allocation4 + $0x148] sm:$0xff] %v6018
        %6200 = vst [vmem:[#allocation4 + $0x190] sm:$0xff] %v6026
        %6201 = vst [vmem:[#allocation4 + $0x1d8] sm:$0xff] %v6034
        %6202 = vst [vmem:[#allocation4 + $0x220] sm:$0xff] %v6042
        %6203 = vst [vmem:[#allocation4 + $0x268] sm:$0xff] %v6050
        %6204 = vst [vmem:[#allocation4 + $0x2b0] sm:$0xff] %v6058
        %6205 = vst [vmem:[#allocation4 + $0x2f8] sm:$0xff] %v6066
        %6206 = vst [vmem:[#allocation4 + $0x340] sm:$0xff] %v6074
        %6207 = vst [vmem:[#allocation4 + $0x388] sm:$0xff] %v6082
        %6208 = vst [vmem:[#allocation4 + $0x3d0] sm:$0xff] %v6090
        %6209 = vst [vmem:[#allocation4 + $0x418] sm:$0xff] %v6098
        %6210 = vst [vmem:[#allocation4 + $0x460] sm:$0xff] %v6106
        %6211 = vst [vmem:[#allocation4 + $0x4a8] sm:$0xff] %v6114
        %6212 = vst [vmem:[#allocation4 + $0x4f0] sm:$0xff] %v6122
        %6213 = vst [vmem:[#allocation4 + $0x538] sm:$0xff] %v6130
        %6214 = vst [vmem:[#allocation4 + $0x580] sm:$0xff] %v6138
        %6215 = vst [vmem:[#allocation4 + $0x5c8] sm:$0xff] %v6146
        %6216 = vst [vmem:[#allocation4 + $0x610] sm:$0xff] %v6154
        %6217 = vst [vmem:[#allocation4 + $0x658] sm:$0xff] %v6162
        %6218 = vst [vmem:[#allocation4 + $0x6a0] sm:$0xff] %v6170
        %v6219 = vld [vmem:[#allocation3 + $0x18] sm:$0xf8]
        %v6220 = vld [vmem:[#allocation3 + $0x20] sm:$0xff]
        %v6221 = vld [vmem:[#allocation3 + $0x28] sm:$0xff]
        %v6222 = vld [vmem:[#allocation3 + $0x30] sm:$0xff]
        %v6223 = vld [vmem:[#allocation3 + $0x38] sm:$0xff]
        %v6224 = vld [vmem:[#allocation3 + $0x40] sm:$0xff]
        %v6225 = vld [vmem:[#allocation3 + $0x48] sm:$0xff]
        %v6226 = vld [vmem:[#allocation3 + $0x50] sm:$0xff]
        %v6227 = vld [vmem:[#allocation3 + $0x58] sm:$0xff]
        %v6228 = vld [vmem:[#allocation3 + $0x60] sm:$0xff]
        %v6229 = vld [vmem:[#allocation3 + $0x68] sm:$0xff]
        %v6230 = vld [vmem:[#allocation3 + $0x70] sm:$0xff]
        %v6231 = vld [vmem:[#allocation3 + $0x78] sm:$0xff]
        %v6232 = vld [vmem:[#allocation3 + $0x80] sm:$0xff]
        %v6233 = vld [vmem:[#allocation3 + $0x88] sm:$0xff]
        %v6234 = vld [vmem:[#allocation3 + $0x90] sm:$0xff]
        %v6235 = vld [vmem:[#allocation3 + $0x98] sm:$0xff]
        %v6236 = vld [vmem:[#allocation3 + $0xa0] sm:$0xff]
        %v6237 = vld [vmem:[#allocation3 + $0xa8] sm:$0xff]
        %v6238 = vld [vmem:[#allocation3 + $0xb0] sm:$0xff]
        %v6239 = vld [vmem:[#allocation3 + $0xb8] sm:$0xff]
        %v6240 = vld [vmem:[#allocation3 + $0xc0] sm:$0xff]
        %v6241 = vld [vmem:[#allocation3 + $0xc8] sm:$0xff]
        %v6242 = vld [vmem:[#allocation3 + $0xd0] sm:$0xff]
        %v6243 = vld [vmem:[#allocation3 + $0xd8] sm:$0xf]
        %v6245 = vshrl.u32 %v6219, 16
        %v6247 = vrot.slane %v6245, 3
        %v6248 = vshll.u32 %v6219, 16
        %v6250 = vrot.slane %v6248, 4
        %v6251 = vor.u32 %v6247, %v6250
        %v6253 = vshrl.u32 %v6220, 16
        %v6255 = vrot.slane %v6253, 3
        %v6256 = vshll.u32 %v6220, 16
        %v6258 = vrot.slane %v6256, 4
        %v6259 = vor.u32 %v6255, %v6258
        %v6260 = vsel %vm537, %v6251, %v6259
        %v6262 = vshrl.u32 %v6221, 16
        %v6264 = vrot.slane %v6262, 3
        %v6265 = vshll.u32 %v6221, 16
        %v6267 = vrot.slane %v6265, 4
        %v6268 = vor.u32 %v6264, %v6267
        %v6269 = vsel %vm537, %v6259, %v6268
        %v6271 = vshrl.u32 %v6222, 16
        %v6273 = vrot.slane %v6271, 3
        %v6274 = vshll.u32 %v6222, 16
        %v6276 = vrot.slane %v6274, 4
        %v6277 = vor.u32 %v6273, %v6276
        %v6278 = vsel %vm537, %v6268, %v6277
        %v6280 = vshrl.u32 %v6223, 16
        %v6282 = vrot.slane %v6280, 3
        %v6283 = vshll.u32 %v6223, 16
        %v6285 = vrot.slane %v6283, 4
        %v6286 = vor.u32 %v6282, %v6285
        %v6287 = vsel %vm537, %v6277, %v6286
        %v6289 = vshrl.u32 %v6224, 16
        %v6291 = vrot.slane %v6289, 3
        %v6292 = vshll.u32 %v6224, 16
        %v6294 = vrot.slane %v6292, 4
        %v6295 = vor.u32 %v6291, %v6294
        %v6296 = vsel %vm537, %v6286, %v6295
        %v6298 = vshrl.u32 %v6225, 16
        %v6300 = vrot.slane %v6298, 3
        %v6301 = vshll.u32 %v6225, 16
        %v6303 = vrot.slane %v6301, 4
        %v6304 = vor.u32 %v6300, %v6303
        %v6305 = vsel %vm537, %v6295, %v6304
        %v6307 = vshrl.u32 %v6226, 16
        %v6309 = vrot.slane %v6307, 3
        %v6310 = vshll.u32 %v6226, 16
        %v6312 = vrot.slane %v6310, 4
        %v6313 = vor.u32 %v6309, %v6312
        %v6314 = vsel %vm537, %v6304, %v6313
        %v6316 = vshrl.u32 %v6227, 16
        %v6318 = vrot.slane %v6316, 3
        %v6319 = vshll.u32 %v6227, 16
        %v6321 = vrot.slane %v6319, 4
        %v6322 = vor.u32 %v6318, %v6321
        %v6323 = vsel %vm537, %v6313, %v6322
        %v6325 = vshrl.u32 %v6228, 16
        %v6327 = vrot.slane %v6325, 3
        %v6328 = vshll.u32 %v6228, 16
        %v6330 = vrot.slane %v6328, 4
        %v6331 = vor.u32 %v6327, %v6330
        %v6332 = vsel %vm537, %v6322, %v6331
        %v6334 = vshrl.u32 %v6229, 16
        %v6336 = vrot.slane %v6334, 3
        %v6337 = vshll.u32 %v6229, 16
        %v6339 = vrot.slane %v6337, 4
        %v6340 = vor.u32 %v6336, %v6339
        %v6341 = vsel %vm537, %v6331, %v6340
        %v6343 = vshrl.u32 %v6230, 16
        %v6345 = vrot.slane %v6343, 3
        %v6346 = vshll.u32 %v6230, 16
        %v6348 = vrot.slane %v6346, 4
        %v6349 = vor.u32 %v6345, %v6348
        %v6350 = vsel %vm537, %v6340, %v6349
        %v6352 = vshrl.u32 %v6231, 16
        %v6354 = vrot.slane %v6352, 3
        %v6355 = vshll.u32 %v6231, 16
        %v6357 = vrot.slane %v6355, 4
        %v6358 = vor.u32 %v6354, %v6357
        %v6359 = vsel %vm537, %v6349, %v6358
        %v6361 = vshrl.u32 %v6232, 16
        %v6363 = vrot.slane %v6361, 3
        %v6364 = vshll.u32 %v6232, 16
        %v6366 = vrot.slane %v6364, 4
        %v6367 = vor.u32 %v6363, %v6366
        %v6368 = vsel %vm537, %v6358, %v6367
        %v6370 = vshrl.u32 %v6233, 16
        %v6372 = vrot.slane %v6370, 3
        %v6373 = vshll.u32 %v6233, 16
        %v6375 = vrot.slane %v6373, 4
        %v6376 = vor.u32 %v6372, %v6375
        %v6377 = vsel %vm537, %v6367, %v6376
        %v6379 = vshrl.u32 %v6234, 16
        %v6381 = vrot.slane %v6379, 3
        %v6382 = vshll.u32 %v6234, 16
        %v6384 = vrot.slane %v6382, 4
        %v6385 = vor.u32 %v6381, %v6384
        %v6386 = vsel %vm537, %v6376, %v6385
        %v6388 = vshrl.u32 %v6235, 16
        %v6390 = vrot.slane %v6388, 3
        %v6391 = vshll.u32 %v6235, 16
        %v6393 = vrot.slane %v6391, 4
        %v6394 = vor.u32 %v6390, %v6393
        %v6395 = vsel %vm537, %v6385, %v6394
        %v6397 = vshrl.u32 %v6236, 16
        %v6399 = vrot.slane %v6397, 3
        %v6400 = vshll.u32 %v6236, 16
        %v6402 = vrot.slane %v6400, 4
        %v6403 = vor.u32 %v6399, %v6402
        %v6404 = vsel %vm537, %v6394, %v6403
        %v6406 = vshrl.u32 %v6237, 16
        %v6408 = vrot.slane %v6406, 3
        %v6409 = vshll.u32 %v6237, 16
        %v6411 = vrot.slane %v6409, 4
        %v6412 = vor.u32 %v6408, %v6411
        %v6413 = vsel %vm537, %v6403, %v6412
        %v6415 = vshrl.u32 %v6238, 16
        %v6417 = vrot.slane %v6415, 3
        %v6418 = vshll.u32 %v6238, 16
        %v6420 = vrot.slane %v6418, 4
        %v6421 = vor.u32 %v6417, %v6420
        %v6422 = vsel %vm537, %v6412, %v6421
        %v6424 = vshrl.u32 %v6239, 16
        %v6426 = vrot.slane %v6424, 3
        %v6427 = vshll.u32 %v6239, 16
        %v6429 = vrot.slane %v6427, 4
        %v6430 = vor.u32 %v6426, %v6429
        %v6431 = vsel %vm537, %v6421, %v6430
        %v6433 = vshrl.u32 %v6240, 16
        %v6435 = vrot.slane %v6433, 3
        %v6436 = vshll.u32 %v6240, 16
        %v6438 = vrot.slane %v6436, 4
        %v6439 = vor.u32 %v6435, %v6438
        %v6440 = vsel %vm537, %v6430, %v6439
        %v6442 = vshrl.u32 %v6241, 16
        %v6444 = vrot.slane %v6442, 3
        %v6445 = vshll.u32 %v6241, 16
        %v6447 = vrot.slane %v6445, 4
        %v6448 = vor.u32 %v6444, %v6447
        %v6449 = vsel %vm537, %v6439, %v6448
        %v6451 = vshrl.u32 %v6242, 16
        %v6453 = vrot.slane %v6451, 3
        %v6454 = vshll.u32 %v6242, 16
        %v6456 = vrot.slane %v6454, 4
        %v6457 = vor.u32 %v6453, %v6456
        %v6458 = vsel %vm537, %v6448, %v6457
        %v6460 = vshrl.u32 %v6243, 16
        %v6462 = vrot.slane %v6460, 3
        %v6463 = vshll.u32 %v6243, 16
        %v6465 = vrot.slane %v6463, 4
        %v6466 = vor.u32 %v6462, %v6465
        %v6467 = vsel %vm537, %v6457, %v6466
        %6492 = vst [vmem:[#allocation4 + $0x30] sm:$0xff] %v6260
        %6493 = vst [vmem:[#allocation4 + $0x78] sm:$0xff] %v6269
        %6494 = vst [vmem:[#allocation4 + $0xc0] sm:$0xff] %v6278
        %6495 = vst [vmem:[#allocation4 + $0x108] sm:$0xff] %v6287
        %6496 = vst [vmem:[#allocation4 + $0x150] sm:$0xff] %v6296
        %6497 = vst [vmem:[#allocation4 + $0x198] sm:$0xff] %v6305
        %6498 = vst [vmem:[#allocation4 + $0x1e0] sm:$0xff] %v6314
        %6499 = vst [vmem:[#allocation4 + $0x228] sm:$0xff] %v6323
        %6500 = vst [vmem:[#allocation4 + $0x270] sm:$0xff] %v6332
        %6501 = vst [vmem:[#allocation4 + $0x2b8] sm:$0xff] %v6341
        %6502 = vst [vmem:[#allocation4 + $0x300] sm:$0xff] %v6350
        %6503 = vst [vmem:[#allocation4 + $0x348] sm:$0xff] %v6359
        %6504 = vst [vmem:[#allocation4 + $0x390] sm:$0xff] %v6368
        %6505 = vst [vmem:[#allocation4 + $0x3d8] sm:$0xff] %v6377
        %6506 = vst [vmem:[#allocation4 + $0x420] sm:$0xff] %v6386
        %6507 = vst [vmem:[#allocation4 + $0x468] sm:$0xff] %v6395
        %6508 = vst [vmem:[#allocation4 + $0x4b0] sm:$0xff] %v6404
        %6509 = vst [vmem:[#allocation4 + $0x4f8] sm:$0xff] %v6413
        %6510 = vst [vmem:[#allocation4 + $0x540] sm:$0xff] %v6422
        %6511 = vst [vmem:[#allocation4 + $0x588] sm:$0xff] %v6431
        %6512 = vst [vmem:[#allocation4 + $0x5d0] sm:$0xff] %v6440
        %6513 = vst [vmem:[#allocation4 + $0x618] sm:$0xff] %v6449
        %6514 = vst [vmem:[#allocation4 + $0x660] sm:$0xff] %v6458
        %6515 = vst [vmem:[#allocation4 + $0x6a8] sm:$0xff] %v6467
        %v6516 = vld [vmem:[#allocation3 + $0x18] sm:$0xf0]
        %v6517 = vld [vmem:[#allocation3 + $0x20] sm:$0xff]
        %v6518 = vld [vmem:[#allocation3 + $0x28] sm:$0xff]
        %v6519 = vld [vmem:[#allocation3 + $0x30] sm:$0xff]
        %v6520 = vld [vmem:[#allocation3 + $0x38] sm:$0xff]
        %v6521 = vld [vmem:[#allocation3 + $0x40] sm:$0xff]
        %v6522 = vld [vmem:[#allocation3 + $0x48] sm:$0xff]
        %v6523 = vld [vmem:[#allocation3 + $0x50] sm:$0xff]
        %v6524 = vld [vmem:[#allocation3 + $0x58] sm:$0xff]
        %v6525 = vld [vmem:[#allocation3 + $0x60] sm:$0xff]
        %v6526 = vld [vmem:[#allocation3 + $0x68] sm:$0xff]
        %v6527 = vld [vmem:[#allocation3 + $0x70] sm:$0xff]
        %v6528 = vld [vmem:[#allocation3 + $0x78] sm:$0xff]
        %v6529 = vld [vmem:[#allocation3 + $0x80] sm:$0xff]
        %v6530 = vld [vmem:[#allocation3 + $0x88] sm:$0xff]
        %v6531 = vld [vmem:[#allocation3 + $0x90] sm:$0xff]
        %v6532 = vld [vmem:[#allocation3 + $0x98] sm:$0xff]
        %v6533 = vld [vmem:[#allocation3 + $0xa0] sm:$0xff]
        %v6534 = vld [vmem:[#allocation3 + $0xa8] sm:$0xff]
        %v6535 = vld [vmem:[#allocation3 + $0xb0] sm:$0xff]
        %v6536 = vld [vmem:[#allocation3 + $0xb8] sm:$0xff]
        %v6537 = vld [vmem:[#allocation3 + $0xc0] sm:$0xff]
        %v6538 = vld [vmem:[#allocation3 + $0xc8] sm:$0xff]
        %v6539 = vld [vmem:[#allocation3 + $0xd0] sm:$0xff]
        %v6540 = vld [vmem:[#allocation3 + $0xd8] sm:$0xf]
        %v6566 = vrot.slane %v6516, 4
        %v6567 = vrot.slane %v6517, 4
        %v6568 = vsel %vm860, %v6566, %v6567
        %v6569 = vrot.slane %v6518, 4
        %v6570 = vsel %vm860, %v6567, %v6569
        %v6571 = vrot.slane %v6519, 4
        %v6572 = vsel %vm860, %v6569, %v6571
        %v6573 = vrot.slane %v6520, 4
        %v6574 = vsel %vm860, %v6571, %v6573
        %v6575 = vrot.slane %v6521, 4
        %v6576 = vsel %vm860, %v6573, %v6575
        %v6577 = vrot.slane %v6522, 4
        %v6578 = vsel %vm860, %v6575, %v6577
        %v6579 = vrot.slane %v6523, 4
        %v6580 = vsel %vm860, %v6577, %v6579
        %v6581 = vrot.slane %v6524, 4
        %v6582 = vsel %vm860, %v6579, %v6581
        %v6583 = vrot.slane %v6525, 4
        %v6584 = vsel %vm860, %v6581, %v6583
        %v6585 = vrot.slane %v6526, 4
        %v6586 = vsel %vm860, %v6583, %v6585
        %v6587 = vrot.slane %v6527, 4
        %v6588 = vsel %vm860, %v6585, %v6587
        %v6589 = vrot.slane %v6528, 4
        %v6590 = vsel %vm860, %v6587, %v6589
        %v6591 = vrot.slane %v6529, 4
        %v6592 = vsel %vm860, %v6589, %v6591
        %v6593 = vrot.slane %v6530, 4
        %v6594 = vsel %vm860, %v6591, %v6593
        %v6595 = vrot.slane %v6531, 4
        %v6596 = vsel %vm860, %v6593, %v6595
        %v6597 = vrot.slane %v6532, 4
        %v6598 = vsel %vm860, %v6595, %v6597
        %v6599 = vrot.slane %v6533, 4
        %v6600 = vsel %vm860, %v6597, %v6599
        %v6601 = vrot.slane %v6534, 4
        %v6602 = vsel %vm860, %v6599, %v6601
        %v6603 = vrot.slane %v6535, 4
        %v6604 = vsel %vm860, %v6601, %v6603
        %v6605 = vrot.slane %v6536, 4
        %v6606 = vsel %vm860, %v6603, %v6605
        %v6607 = vrot.slane %v6537, 4
        %v6608 = vsel %vm860, %v6605, %v6607
        %v6609 = vrot.slane %v6538, 4
        %v6610 = vsel %vm860, %v6607, %v6609
        %v6611 = vrot.slane %v6539, 4
        %v6612 = vsel %vm860, %v6609, %v6611
        %v6613 = vrot.slane %v6540, 4
        %v6614 = vsel %vm860, %v6611, %v6613
        %6639 = vst [vmem:[#allocation4 + $0x38] sm:$0xff] %v6568
        %6640 = vst [vmem:[#allocation4 + $0x80] sm:$0xff] %v6570
        %6641 = vst [vmem:[#allocation4 + $0xc8] sm:$0xff] %v6572
        %6642 = vst [vmem:[#allocation4 + $0x110] sm:$0xff] %v6574
        %6643 = vst [vmem:[#allocation4 + $0x158] sm:$0xff] %v6576
        %6644 = vst [vmem:[#allocation4 + $0x1a0] sm:$0xff] %v6578
        %6645 = vst [vmem:[#allocation4 + $0x1e8] sm:$0xff] %v6580
        %6646 = vst [vmem:[#allocation4 + $0x230] sm:$0xff] %v6582
        %6647 = vst [vmem:[#allocation4 + $0x278] sm:$0xff] %v6584
        %6648 = vst [vmem:[#allocation4 + $0x2c0] sm:$0xff] %v6586
        %6649 = vst [vmem:[#allocation4 + $0x308] sm:$0xff] %v6588
        %6650 = vst [vmem:[#allocation4 + $0x350] sm:$0xff] %v6590
        %6651 = vst [vmem:[#allocation4 + $0x398] sm:$0xff] %v6592
        %6652 = vst [vmem:[#allocation4 + $0x3e0] sm:$0xff] %v6594
        %6653 = vst [vmem:[#allocation4 + $0x428] sm:$0xff] %v6596
        %6654 = vst [vmem:[#allocation4 + $0x470] sm:$0xff] %v6598
        %6655 = vst [vmem:[#allocation4 + $0x4b8] sm:$0xff] %v6600
        %6656 = vst [vmem:[#allocation4 + $0x500] sm:$0xff] %v6602
        %6657 = vst [vmem:[#allocation4 + $0x548] sm:$0xff] %v6604
        %6658 = vst [vmem:[#allocation4 + $0x590] sm:$0xff] %v6606
        %6659 = vst [vmem:[#allocation4 + $0x5d8] sm:$0xff] %v6608
        %6660 = vst [vmem:[#allocation4 + $0x620] sm:$0xff] %v6610
        %6661 = vst [vmem:[#allocation4 + $0x668] sm:$0xff] %v6612
        %6662 = vst [vmem:[#allocation4 + $0x6b0] sm:$0xff] %v6614
        %v6663 = vld [vmem:[#allocation3 + $0x18] sm:$0xf0]
        %v6664 = vld [vmem:[#allocation3 + $0x20] sm:$0xff]
        %v6665 = vld [vmem:[#allocation3 + $0x28] sm:$0xff]
        %v6666 = vld [vmem:[#allocation3 + $0x30] sm:$0xff]
        %v6667 = vld [vmem:[#allocation3 + $0x38] sm:$0xff]
        %v6668 = vld [vmem:[#allocation3 + $0x40] sm:$0xff]
        %v6669 = vld [vmem:[#allocation3 + $0x48] sm:$0xff]
        %v6670 = vld [vmem:[#allocation3 + $0x50] sm:$0xff]
        %v6671 = vld [vmem:[#allocation3 + $0x58] sm:$0xff]
        %v6672 = vld [vmem:[#allocation3 + $0x60] sm:$0xff]
        %v6673 = vld [vmem:[#allocation3 + $0x68] sm:$0xff]
        %v6674 = vld [vmem:[#allocation3 + $0x70] sm:$0xff]
        %v6675 = vld [vmem:[#allocation3 + $0x78] sm:$0xff]
        %v6676 = vld [vmem:[#allocation3 + $0x80] sm:$0xff]
        %v6677 = vld [vmem:[#allocation3 + $0x88] sm:$0xff]
        %v6678 = vld [vmem:[#allocation3 + $0x90] sm:$0xff]
        %v6679 = vld [vmem:[#allocation3 + $0x98] sm:$0xff]
        %v6680 = vld [vmem:[#allocation3 + $0xa0] sm:$0xff]
        %v6681 = vld [vmem:[#allocation3 + $0xa8] sm:$0xff]
        %v6682 = vld [vmem:[#allocation3 + $0xb0] sm:$0xff]
        %v6683 = vld [vmem:[#allocation3 + $0xb8] sm:$0xff]
        %v6684 = vld [vmem:[#allocation3 + $0xc0] sm:$0xff]
        %v6685 = vld [vmem:[#allocation3 + $0xc8] sm:$0xff]
        %v6686 = vld [vmem:[#allocation3 + $0xd0] sm:$0xff]
        %v6687 = vld [vmem:[#allocation3 + $0xd8] sm:$0x1f]
        %v6689 = vshrl.u32 %v6663, 16
        %v6691 = vrot.slane %v6689, 4
        %v6692 = vshll.u32 %v6663, 16
        %v6694 = vrot.slane %v6692, 5
        %v6695 = vor.u32 %v6691, %v6694
        %v6697 = vshrl.u32 %v6664, 16
        %v6699 = vrot.slane %v6697, 4
        %v6700 = vshll.u32 %v6664, 16
        %v6702 = vrot.slane %v6700, 5
        %v6703 = vor.u32 %v6699, %v6702
        %v6704 = vsel %vm983, %v6695, %v6703
        %v6706 = vshrl.u32 %v6665, 16
        %v6708 = vrot.slane %v6706, 4
        %v6709 = vshll.u32 %v6665, 16
        %v6711 = vrot.slane %v6709, 5
        %v6712 = vor.u32 %v6708, %v6711
        %v6713 = vsel %vm983, %v6703, %v6712
        %v6715 = vshrl.u32 %v6666, 16
        %v6717 = vrot.slane %v6715, 4
        %v6718 = vshll.u32 %v6666, 16
        %v6720 = vrot.slane %v6718, 5
        %v6721 = vor.u32 %v6717, %v6720
        %v6722 = vsel %vm983, %v6712, %v6721
        %v6724 = vshrl.u32 %v6667, 16
        %v6726 = vrot.slane %v6724, 4
        %v6727 = vshll.u32 %v6667, 16
        %v6729 = vrot.slane %v6727, 5
        %v6730 = vor.u32 %v6726, %v6729
        %v6731 = vsel %vm983, %v6721, %v6730
        %v6733 = vshrl.u32 %v6668, 16
        %v6735 = vrot.slane %v6733, 4
        %v6736 = vshll.u32 %v6668, 16
        %v6738 = vrot.slane %v6736, 5
        %v6739 = vor.u32 %v6735, %v6738
        %v6740 = vsel %vm983, %v6730, %v6739
        %v6742 = vshrl.u32 %v6669, 16
        %v6744 = vrot.slane %v6742, 4
        %v6745 = vshll.u32 %v6669, 16
        %v6747 = vrot.slane %v6745, 5
        %v6748 = vor.u32 %v6744, %v6747
        %v6749 = vsel %vm983, %v6739, %v6748
        %v6751 = vshrl.u32 %v6670, 16
        %v6753 = vrot.slane %v6751, 4
        %v6754 = vshll.u32 %v6670, 16
        %v6756 = vrot.slane %v6754, 5
        %v6757 = vor.u32 %v6753, %v6756
        %v6758 = vsel %vm983, %v6748, %v6757
        %v6760 = vshrl.u32 %v6671, 16
        %v6762 = vrot.slane %v6760, 4
        %v6763 = vshll.u32 %v6671, 16
        %v6765 = vrot.slane %v6763, 5
        %v6766 = vor.u32 %v6762, %v6765
        %v6767 = vsel %vm983, %v6757, %v6766
        %v6769 = vshrl.u32 %v6672, 16
        %v6771 = vrot.slane %v6769, 4
        %v6772 = vshll.u32 %v6672, 16
        %v6774 = vrot.slane %v6772, 5
        %v6775 = vor.u32 %v6771, %v6774
        %v6776 = vsel %vm983, %v6766, %v6775
        %v6778 = vshrl.u32 %v6673, 16
        %v6780 = vrot.slane %v6778, 4
        %v6781 = vshll.u32 %v6673, 16
        %v6783 = vrot.slane %v6781, 5
        %v6784 = vor.u32 %v6780, %v6783
        %v6785 = vsel %vm983, %v6775, %v6784
        %v6787 = vshrl.u32 %v6674, 16
        %v6789 = vrot.slane %v6787, 4
        %v6790 = vshll.u32 %v6674, 16
        %v6792 = vrot.slane %v6790, 5
        %v6793 = vor.u32 %v6789, %v6792
        %v6794 = vsel %vm983, %v6784, %v6793
        %v6796 = vshrl.u32 %v6675, 16
        %v6798 = vrot.slane %v6796, 4
        %v6799 = vshll.u32 %v6675, 16
        %v6801 = vrot.slane %v6799, 5
        %v6802 = vor.u32 %v6798, %v6801
        %v6803 = vsel %vm983, %v6793, %v6802
        %v6805 = vshrl.u32 %v6676, 16
        %v6807 = vrot.slane %v6805, 4
        %v6808 = vshll.u32 %v6676, 16
        %v6810 = vrot.slane %v6808, 5
        %v6811 = vor.u32 %v6807, %v6810
        %v6812 = vsel %vm983, %v6802, %v6811
        %v6814 = vshrl.u32 %v6677, 16
        %v6816 = vrot.slane %v6814, 4
        %v6817 = vshll.u32 %v6677, 16
        %v6819 = vrot.slane %v6817, 5
        %v6820 = vor.u32 %v6816, %v6819
        %v6821 = vsel %vm983, %v6811, %v6820
        %v6823 = vshrl.u32 %v6678, 16
        %v6825 = vrot.slane %v6823, 4
        %v6826 = vshll.u32 %v6678, 16
        %v6828 = vrot.slane %v6826, 5
        %v6829 = vor.u32 %v6825, %v6828
        %v6830 = vsel %vm983, %v6820, %v6829
        %v6832 = vshrl.u32 %v6679, 16
        %v6834 = vrot.slane %v6832, 4
        %v6835 = vshll.u32 %v6679, 16
        %v6837 = vrot.slane %v6835, 5
        %v6838 = vor.u32 %v6834, %v6837
        %v6839 = vsel %vm983, %v6829, %v6838
        %v6841 = vshrl.u32 %v6680, 16
        %v6843 = vrot.slane %v6841, 4
        %v6844 = vshll.u32 %v6680, 16
        %v6846 = vrot.slane %v6844, 5
        %v6847 = vor.u32 %v6843, %v6846
        %v6848 = vsel %vm983, %v6838, %v6847
        %v6850 = vshrl.u32 %v6681, 16
        %v6852 = vrot.slane %v6850, 4
        %v6853 = vshll.u32 %v6681, 16
        %v6855 = vrot.slane %v6853, 5
        %v6856 = vor.u32 %v6852, %v6855
        %v6857 = vsel %vm983, %v6847, %v6856
        %v6859 = vshrl.u32 %v6682, 16
        %v6861 = vrot.slane %v6859, 4
        %v6862 = vshll.u32 %v6682, 16
        %v6864 = vrot.slane %v6862, 5
        %v6865 = vor.u32 %v6861, %v6864
        %v6866 = vsel %vm983, %v6856, %v6865
        %v6868 = vshrl.u32 %v6683, 16
        %v6870 = vrot.slane %v6868, 4
        %v6871 = vshll.u32 %v6683, 16
        %v6873 = vrot.slane %v6871, 5
        %v6874 = vor.u32 %v6870, %v6873
        %v6875 = vsel %vm983, %v6865, %v6874
        %v6877 = vshrl.u32 %v6684, 16
        %v6879 = vrot.slane %v6877, 4
        %v6880 = vshll.u32 %v6684, 16
        %v6882 = vrot.slane %v6880, 5
        %v6883 = vor.u32 %v6879, %v6882
        %v6884 = vsel %vm983, %v6874, %v6883
        %v6886 = vshrl.u32 %v6685, 16
        %v6888 = vrot.slane %v6886, 4
        %v6889 = vshll.u32 %v6685, 16
        %v6891 = vrot.slane %v6889, 5
        %v6892 = vor.u32 %v6888, %v6891
        %v6893 = vsel %vm983, %v6883, %v6892
        %v6895 = vshrl.u32 %v6686, 16
        %v6897 = vrot.slane %v6895, 4
        %v6898 = vshll.u32 %v6686, 16
        %v6900 = vrot.slane %v6898, 5
        %v6901 = vor.u32 %v6897, %v6900
        %v6902 = vsel %vm983, %v6892, %v6901
        %v6904 = vshrl.u32 %v6687, 16
        %v6906 = vrot.slane %v6904, 4
        %v6907 = vshll.u32 %v6687, 16
        %v6909 = vrot.slane %v6907, 5
        %v6910 = vor.u32 %v6906, %v6909
        %v6911 = vsel %vm983, %v6901, %v6910
        %6936 = vst [vmem:[#allocation4 + $0x40] sm:$0xff] %v6704
        %6937 = vst [vmem:[#allocation4 + $0x88] sm:$0xff] %v6713
        %6938 = vst [vmem:[#allocation4 + $0xd0] sm:$0xff] %v6722
        %6939 = vst [vmem:[#allocation4 + $0x118] sm:$0xff] %v6731
        %6940 = vst [vmem:[#allocation4 + $0x160] sm:$0xff] %v6740
        %6941 = vst [vmem:[#allocation4 + $0x1a8] sm:$0xff] %v6749
        %6942 = vst [vmem:[#allocation4 + $0x1f0] sm:$0xff] %v6758
        %6943 = vst [vmem:[#allocation4 + $0x238] sm:$0xff] %v6767
        %6944 = vst [vmem:[#allocation4 + $0x280] sm:$0xff] %v6776
        %6945 = vst [vmem:[#allocation4 + $0x2c8] sm:$0xff] %v6785
        %6946 = vst [vmem:[#allocation4 + $0x310] sm:$0xff] %v6794
        %6947 = vst [vmem:[#allocation4 + $0x358] sm:$0xff] %v6803
        %6948 = vst [vmem:[#allocation4 + $0x3a0] sm:$0xff] %v6812
        %6949 = vst [vmem:[#allocation4 + $0x3e8] sm:$0xff] %v6821
        %6950 = vst [vmem:[#allocation4 + $0x430] sm:$0xff] %v6830
        %6951 = vst [vmem:[#allocation4 + $0x478] sm:$0xff] %v6839
        %6952 = vst [vmem:[#allocation4 + $0x4c0] sm:$0xff] %v6848
        %6953 = vst [vmem:[#allocation4 + $0x508] sm:$0xff] %v6857
        %6954 = vst [vmem:[#allocation4 + $0x550] sm:$0xff] %v6866
        %6955 = vst [vmem:[#allocation4 + $0x598] sm:$0xff] %v6875
        %6956 = vst [vmem:[#allocation4 + $0x5e0] sm:$0xff] %v6884
        %6957 = vst [vmem:[#allocation4 + $0x628] sm:$0xff] %v6893
        %6958 = vst [vmem:[#allocation4 + $0x670] sm:$0xff] %v6902
        %6959 = vst [vmem:[#allocation4 + $0x6b8] sm:$0xff] %v6911
        %v6960 = vld [vmem:[#allocation4] sm:$0xff]
        %v6961 = vld [vmem:[#allocation4 + $0x8] sm:$0xff]
        %v6962 = vld [vmem:[#allocation4 + $0x10] sm:$0xff]
        %v6963 = vld [vmem:[#allocation4 + $0x18] sm:$0xff]
        %v6964 = vld [vmem:[#allocation4 + $0x20] sm:$0xff]
        %v6965 = vld [vmem:[#allocation4 + $0x28] sm:$0xff]
        %v6966 = vld [vmem:[#allocation4 + $0x30] sm:$0xff]
        %v6967 = vld [vmem:[#allocation4 + $0x38] sm:$0xff]
        %v6968 = vld [vmem:[#allocation4 + $0x40] sm:$0xff]
        %v6969 = vld [vmem:[#allocation4 + $0x48] sm:$0xff]
        %v6970 = vld [vmem:[#allocation4 + $0x50] sm:$0xff]
        %v6971 = vld [vmem:[#allocation4 + $0x58] sm:$0xff]
        %v6972 = vld [vmem:[#allocation4 + $0x60] sm:$0xff]
        %v6973 = vld [vmem:[#allocation4 + $0x68] sm:$0xff]
        %v6974 = vld [vmem:[#allocation4 + $0x70] sm:$0xff]
        %v6975 = vld [vmem:[#allocation4 + $0x78] sm:$0xff]
        %v6976 = vld [vmem:[#allocation4 + $0x80] sm:$0xff]
        %v6977 = vld [vmem:[#allocation4 + $0x88] sm:$0xff]
        %v6978 = vld [vmem:[#allocation4 + $0x90] sm:$0xff]
        %v6979 = vld [vmem:[#allocation4 + $0x98] sm:$0xff]
        %v6980 = vld [vmem:[#allocation4 + $0xa0] sm:$0xff]
        %v6981 = vld [vmem:[#allocation4 + $0xa8] sm:$0xff]
        %v6982 = vld [vmem:[#allocation4 + $0xb0] sm:$0xff]
        %v6983 = vld [vmem:[#allocation4 + $0xb8] sm:$0xff]
        %v6984 = vld [vmem:[#allocation4 + $0xc0] sm:$0xff]
        %v6985 = vld [vmem:[#allocation4 + $0xc8] sm:$0xff]
        %v6986 = vld [vmem:[#allocation4 + $0xd0] sm:$0xff]
        %v6987 = vld [vmem:[#allocation4 + $0xd8] sm:$0xff]
        %v6988 = vld [vmem:[#allocation4 + $0xe0] sm:$0xff]
        %v6989 = vld [vmem:[#allocation4 + $0xe8] sm:$0xff]
        %v6990 = vld [vmem:[#allocation4 + $0xf0] sm:$0xff]
        %v6991 = vld [vmem:[#allocation4 + $0xf8] sm:$0xff]
        %v6992 = vld [vmem:[#allocation4 + $0x100] sm:$0xff]
        %v6993 = vld [vmem:[#allocation4 + $0x108] sm:$0xff]
        %v6994 = vld [vmem:[#allocation4 + $0x110] sm:$0xff]
        %v6995 = vld [vmem:[#allocation4 + $0x118] sm:$0xff]
        %v6996 = vld [vmem:[#allocation4 + $0x120] sm:$0xff]
        %v6997 = vld [vmem:[#allocation4 + $0x128] sm:$0xff]
        %v6998 = vld [vmem:[#allocation4 + $0x130] sm:$0xff]
        %v6999 = vld [vmem:[#allocation4 + $0x138] sm:$0xff]
        %v7000 = vld [vmem:[#allocation4 + $0x140] sm:$0xff]
        %v7001 = vld [vmem:[#allocation4 + $0x148] sm:$0xff]
        %v7002 = vld [vmem:[#allocation4 + $0x150] sm:$0xff]
        %v7003 = vld [vmem:[#allocation4 + $0x158] sm:$0xff]
        %v7004 = vld [vmem:[#allocation4 + $0x160] sm:$0xff]
        %v7005 = vld [vmem:[#allocation4 + $0x168] sm:$0xff]
        %v7006 = vld [vmem:[#allocation4 + $0x170] sm:$0xff]
        %v7007 = vld [vmem:[#allocation4 + $0x178] sm:$0xff]
        %v7008 = vld [vmem:[#allocation4 + $0x180] sm:$0xff]
        %v7009 = vld [vmem:[#allocation4 + $0x188] sm:$0xff]
        %v7010 = vld [vmem:[#allocation4 + $0x190] sm:$0xff]
        %v7011 = vld [vmem:[#allocation4 + $0x198] sm:$0xff]
        %v7012 = vld [vmem:[#allocation4 + $0x1a0] sm:$0xff]
        %v7013 = vld [vmem:[#allocation4 + $0x1a8] sm:$0xff]
        %v7014 = vld [vmem:[#allocation4 + $0x1b0] sm:$0xff]
        %v7015 = vld [vmem:[#allocation4 + $0x1b8] sm:$0xff]
        %v7016 = vld [vmem:[#allocation4 + $0x1c0] sm:$0xff]
        %v7017 = vld [vmem:[#allocation4 + $0x1c8] sm:$0xff]
        %v7018 = vld [vmem:[#allocation4 + $0x1d0] sm:$0xff]
        %v7019 = vld [vmem:[#allocation4 + $0x1d8] sm:$0xff]
        %v7020 = vld [vmem:[#allocation4 + $0x1e0] sm:$0xff]
        %v7021 = vld [vmem:[#allocation4 + $0x1e8] sm:$0xff]
        %v7022 = vld [vmem:[#allocation4 + $0x1f0] sm:$0xff]
        %v7023 = vld [vmem:[#allocation4 + $0x1f8] sm:$0xff]
        %v7024 = vld [vmem:[#allocation4 + $0x200] sm:$0xff]
        %v7025 = vld [vmem:[#allocation4 + $0x208] sm:$0xff]
        %v7026 = vld [vmem:[#allocation4 + $0x210] sm:$0xff]
        %v7027 = vld [vmem:[#allocation4 + $0x218] sm:$0xff]
        %v7028 = vld [vmem:[#allocation4 + $0x220] sm:$0xff]
        %v7029 = vld [vmem:[#allocation4 + $0x228] sm:$0xff]
        %v7030 = vld [vmem:[#allocation4 + $0x230] sm:$0xff]
        %v7031 = vld [vmem:[#allocation4 + $0x238] sm:$0xff]
        %v7032 = vld [vmem:[#allocation4 + $0x240] sm:$0xff]
        %v7033 = vld [vmem:[#allocation4 + $0x248] sm:$0xff]
        %v7034 = vld [vmem:[#allocation4 + $0x250] sm:$0xff]
        %v7035 = vld [vmem:[#allocation4 + $0x258] sm:$0xff]
        %v7036 = vld [vmem:[#allocation4 + $0x260] sm:$0xff]
        %v7037 = vld [vmem:[#allocation4 + $0x268] sm:$0xff]
        %v7038 = vld [vmem:[#allocation4 + $0x270] sm:$0xff]
        %v7039 = vld [vmem:[#allocation4 + $0x278] sm:$0xff]
        %v7040 = vld [vmem:[#allocation4 + $0x280] sm:$0xff]
        %v7041 = vld [vmem:[#allocation4 + $0x288] sm:$0xff]
        %v7042 = vld [vmem:[#allocation4 + $0x290] sm:$0xff]
        %v7043 = vld [vmem:[#allocation4 + $0x298] sm:$0xff]
        %v7044 = vld [vmem:[#allocation4 + $0x2a0] sm:$0xff]
        %v7045 = vld [vmem:[#allocation4 + $0x2a8] sm:$0xff]
        %v7046 = vld [vmem:[#allocation4 + $0x2b0] sm:$0xff]
        %v7047 = vld [vmem:[#allocation4 + $0x2b8] sm:$0xff]
        %v7048 = vld [vmem:[#allocation4 + $0x2c0] sm:$0xff]
        %v7049 = vld [vmem:[#allocation4 + $0x2c8] sm:$0xff]
        %v7050 = vld [vmem:[#allocation4 + $0x2d0] sm:$0xff]
        %v7051 = vld [vmem:[#allocation4 + $0x2d8] sm:$0xff]
        %v7052 = vld [vmem:[#allocation4 + $0x2e0] sm:$0xff]
        %v7053 = vld [vmem:[#allocation4 + $0x2e8] sm:$0xff]
        %v7054 = vld [vmem:[#allocation4 + $0x2f0] sm:$0xff]
        %v7055 = vld [vmem:[#allocation4 + $0x2f8] sm:$0xff]
        %v7056 = vld [vmem:[#allocation4 + $0x300] sm:$0xff]
        %v7057 = vld [vmem:[#allocation4 + $0x308] sm:$0xff]
        %v7058 = vld [vmem:[#allocation4 + $0x310] sm:$0xff]
        %v7059 = vld [vmem:[#allocation4 + $0x318] sm:$0xff]
        %v7060 = vld [vmem:[#allocation4 + $0x320] sm:$0xff]
        %v7061 = vld [vmem:[#allocation4 + $0x328] sm:$0xff]
        %v7062 = vld [vmem:[#allocation4 + $0x330] sm:$0xff]
        %v7063 = vld [vmem:[#allocation4 + $0x338] sm:$0xff]
        %v7064 = vld [vmem:[#allocation4 + $0x340] sm:$0xff]
        %v7065 = vld [vmem:[#allocation4 + $0x348] sm:$0xff]
        %v7066 = vld [vmem:[#allocation4 + $0x350] sm:$0xff]
        %v7067 = vld [vmem:[#allocation4 + $0x358] sm:$0xff]
        %v7068 = vld [vmem:[#allocation4 + $0x360] sm:$0xff]
        %v7069 = vld [vmem:[#allocation4 + $0x368] sm:$0xff]
        %v7070 = vld [vmem:[#allocation4 + $0x370] sm:$0xff]
        %v7071 = vld [vmem:[#allocation4 + $0x378] sm:$0xff]
        %v7072 = vld [vmem:[#allocation4 + $0x380] sm:$0xff]
        %v7073 = vld [vmem:[#allocation4 + $0x388] sm:$0xff]
        %v7074 = vld [vmem:[#allocation4 + $0x390] sm:$0xff]
        %v7075 = vld [vmem:[#allocation4 + $0x398] sm:$0xff]
        %v7076 = vld [vmem:[#allocation4 + $0x3a0] sm:$0xff]
        %v7077 = vld [vmem:[#allocation4 + $0x3a8] sm:$0xff]
        %v7078 = vld [vmem:[#allocation4 + $0x3b0] sm:$0xff]
        %v7079 = vld [vmem:[#allocation4 + $0x3b8] sm:$0xff]
        %v7080 = vld [vmem:[#allocation4 + $0x3c0] sm:$0xff]
        %v7081 = vld [vmem:[#allocation4 + $0x3c8] sm:$0xff]
        %v7082 = vld [vmem:[#allocation4 + $0x3d0] sm:$0xff]
        %v7083 = vld [vmem:[#allocation4 + $0x3d8] sm:$0xff]
        %v7084 = vld [vmem:[#allocation4 + $0x3e0] sm:$0xff]
        %v7085 = vld [vmem:[#allocation4 + $0x3e8] sm:$0xff]
        %v7086 = vld [vmem:[#allocation4 + $0x3f0] sm:$0xff]
        %v7087 = vld [vmem:[#allocation4 + $0x3f8] sm:$0xff]
        %v7088 = vld [vmem:[#allocation4 + $0x400] sm:$0xff]
        %v7089 = vld [vmem:[#allocation4 + $0x408] sm:$0xff]
        %v7090 = vld [vmem:[#allocation4 + $0x410] sm:$0xff]
        %v7091 = vld [vmem:[#allocation4 + $0x418] sm:$0xff]
        %v7092 = vld [vmem:[#allocation4 + $0x420] sm:$0xff]
        %v7093 = vld [vmem:[#allocation4 + $0x428] sm:$0xff]
        %v7094 = vld [vmem:[#allocation4 + $0x430] sm:$0xff]
        %v7095 = vld [vmem:[#allocation4 + $0x438] sm:$0xff]
        %v7096 = vld [vmem:[#allocation4 + $0x440] sm:$0xff]
        %v7097 = vld [vmem:[#allocation4 + $0x448] sm:$0xff]
        %v7098 = vld [vmem:[#allocation4 + $0x450] sm:$0xff]
        %v7099 = vld [vmem:[#allocation4 + $0x458] sm:$0xff]
        %v7100 = vld [vmem:[#allocation4 + $0x460] sm:$0xff]
        %v7101 = vld [vmem:[#allocation4 + $0x468] sm:$0xff]
        %v7102 = vld [vmem:[#allocation4 + $0x470] sm:$0xff]
        %v7103 = vld [vmem:[#allocation4 + $0x478] sm:$0xff]
        %v7104 = vld [vmem:[#allocation4 + $0x480] sm:$0xff]
        %v7105 = vld [vmem:[#allocation4 + $0x488] sm:$0xff]
        %v7106 = vld [vmem:[#allocation4 + $0x490] sm:$0xff]
        %v7107 = vld [vmem:[#allocation4 + $0x498] sm:$0xff]
        %v7108 = vld [vmem:[#allocation4 + $0x4a0] sm:$0xff]
        %v7109 = vld [vmem:[#allocation4 + $0x4a8] sm:$0xff]
        %v7110 = vld [vmem:[#allocation4 + $0x4b0] sm:$0xff]
        %v7111 = vld [vmem:[#allocation4 + $0x4b8] sm:$0xff]
        %v7112 = vld [vmem:[#allocation4 + $0x4c0] sm:$0xff]
        %v7113 = vld [vmem:[#allocation4 + $0x4c8] sm:$0xff]
        %v7114 = vld [vmem:[#allocation4 + $0x4d0] sm:$0xff]
        %v7115 = vld [vmem:[#allocation4 + $0x4d8] sm:$0xff]
        %v7116 = vld [vmem:[#allocation4 + $0x4e0] sm:$0xff]
        %v7117 = vld [vmem:[#allocation4 + $0x4e8] sm:$0xff]
        %v7118 = vld [vmem:[#allocation4 + $0x4f0] sm:$0xff]
        %v7119 = vld [vmem:[#allocation4 + $0x4f8] sm:$0xff]
        %v7120 = vld [vmem:[#allocation4 + $0x500] sm:$0xff]
        %v7121 = vld [vmem:[#allocation4 + $0x508] sm:$0xff]
        %v7122 = vld [vmem:[#allocation4 + $0x510] sm:$0xff]
        %v7123 = vld [vmem:[#allocation4 + $0x518] sm:$0xff]
        %v7124 = vld [vmem:[#allocation4 + $0x520] sm:$0xff]
        %v7125 = vld [vmem:[#allocation4 + $0x528] sm:$0xff]
        %v7126 = vld [vmem:[#allocation4 + $0x530] sm:$0xff]
        %v7127 = vld [vmem:[#allocation4 + $0x538] sm:$0xff]
        %v7128 = vld [vmem:[#allocation4 + $0x540] sm:$0xff]
        %v7129 = vld [vmem:[#allocation4 + $0x548] sm:$0xff]
        %v7130 = vld [vmem:[#allocation4 + $0x550] sm:$0xff]
        %v7131 = vld [vmem:[#allocation4 + $0x558] sm:$0xff]
        %v7132 = vld [vmem:[#allocation4 + $0x560] sm:$0xff]
        %v7133 = vld [vmem:[#allocation4 + $0x568] sm:$0xff]
        %v7134 = vld [vmem:[#allocation4 + $0x570] sm:$0xff]
        %v7135 = vld [vmem:[#allocation4 + $0x578] sm:$0xff]
        %v7136 = vld [vmem:[#allocation4 + $0x580] sm:$0xff]
        %v7137 = vld [vmem:[#allocation4 + $0x588] sm:$0xff]
        %v7138 = vld [vmem:[#allocation4 + $0x590] sm:$0xff]
        %v7139 = vld [vmem:[#allocation4 + $0x598] sm:$0xff]
        %v7140 = vld [vmem:[#allocation4 + $0x5a0] sm:$0xff]
        %v7141 = vld [vmem:[#allocation4 + $0x5a8] sm:$0xff]
        %v7142 = vld [vmem:[#allocation4 + $0x5b0] sm:$0xff]
        %v7143 = vld [vmem:[#allocation4 + $0x5b8] sm:$0xff]
        %v7144 = vld [vmem:[#allocation4 + $0x5c0] sm:$0xff]
        %v7145 = vld [vmem:[#allocation4 + $0x5c8] sm:$0xff]
        %v7146 = vld [vmem:[#allocation4 + $0x5d0] sm:$0xff]
        %v7147 = vld [vmem:[#allocation4 + $0x5d8] sm:$0xff]
        %v7148 = vld [vmem:[#allocation4 + $0x5e0] sm:$0xff]
        %v7149 = vld [vmem:[#allocation4 + $0x5e8] sm:$0xff]
        %v7150 = vld [vmem:[#allocation4 + $0x5f0] sm:$0xff]
        %v7151 = vld [vmem:[#allocation4 + $0x5f8] sm:$0xff]
        %v7152 = vld [vmem:[#allocation4 + $0x600] sm:$0xff]
        %v7153 = vld [vmem:[#allocation4 + $0x608] sm:$0xff]
        %v7154 = vld [vmem:[#allocation4 + $0x610] sm:$0xff]
        %v7155 = vld [vmem:[#allocation4 + $0x618] sm:$0xff]
        %v7156 = vld [vmem:[#allocation4 + $0x620] sm:$0xff]
        %v7157 = vld [vmem:[#allocation4 + $0x628] sm:$0xff]
        %v7158 = vld [vmem:[#allocation4 + $0x630] sm:$0xff]
        %v7159 = vld [vmem:[#allocation4 + $0x638] sm:$0xff]
        %v7160 = vld [vmem:[#allocation4 + $0x640] sm:$0xff]
        %v7161 = vld [vmem:[#allocation4 + $0x648] sm:$0xff]
        %v7162 = vld [vmem:[#allocation4 + $0x650] sm:$0xff]
        %v7163 = vld [vmem:[#allocation4 + $0x658] sm:$0xff]
        %v7164 = vld [vmem:[#allocation4 + $0x660] sm:$0xff]
        %v7165 = vld [vmem:[#allocation4 + $0x668] sm:$0xff]
        %v7166 = vld [vmem:[#allocation4 + $0x670] sm:$0xff]
        %v7167 = vld [vmem:[#allocation4 + $0x678] sm:$0xff]
        %v7168 = vld [vmem:[#allocation4 + $0x680] sm:$0xff]
        %v7169 = vld [vmem:[#allocation4 + $0x688] sm:$0xff]
        %v7170 = vld [vmem:[#allocation4 + $0x690] sm:$0xff]
        %v7171 = vld [vmem:[#allocation4 + $0x698] sm:$0xff]
        %v7172 = vld [vmem:[#allocation4 + $0x6a0] sm:$0xff]
        %v7173 = vld [vmem:[#allocation4 + $0x6a8] sm:$0xff]
        %v7174 = vld [vmem:[#allocation4 + $0x6b0] sm:$0xff]
        %v7175 = vld [vmem:[#allocation4 + $0x6b8] sm:$0xff]
        %v7176 = vld [vmem:[#allocation10] sm:$0xf]
        %v7177 = vld [vmem:[#allocation10 + $0x4] sm:$0xf]
        %v7178 = vld [vmem:[#allocation10 + $0x8] sm:$0xf]
        %v7179 = vld [vmem:[#allocation10 + $0xc] sm:$0xf]
        %v7180 = vld [vmem:[#allocation10 + $0x10] sm:$0xf]
        %v7181 = vld [vmem:[#allocation10 + $0x14] sm:$0xf]
        %v7182 = vld [vmem:[#allocation10 + $0x18] sm:$0xf]
        %v7183 = vld [vmem:[#allocation10 + $0x1c] sm:$0xf]
        %v7184 = vld [vmem:[#allocation10 + $0x20] sm:$0xf]
        %v7185 = vld [vmem:[#allocation10 + $0x24] sm:$0xf]
        %v7186 = vld [vmem:[#allocation10 + $0x28] sm:$0xf]
        %v7187 = vld [vmem:[#allocation10 + $0x2c] sm:$0xf]
        %v7188 = vld [vmem:[#allocation10 + $0x30] sm:$0xf]
        %v7189 = vld [vmem:[#allocation10 + $0x34] sm:$0xf]
        %v7190 = vld [vmem:[#allocation10 + $0x38] sm:$0xf]
        %v7191 = vld [vmem:[#allocation10 + $0x3c] sm:$0xf]
        %v7192 = vld [vmem:[#allocation10 + $0x40] sm:$0xf]
        %v7193 = vld [vmem:[#allocation10 + $0x44] sm:$0xf]
        %v7194 = vld [vmem:[#allocation10 + $0x48] sm:$0xf]
        %v7195 = vld [vmem:[#allocation10 + $0x4c] sm:$0xf]
        %v7196 = vld [vmem:[#allocation10 + $0x50] sm:$0xf]
        %v7197 = vld [vmem:[#allocation10 + $0x54] sm:$0xf]
        %v7198 = vld [vmem:[#allocation10 + $0x58] sm:$0xf]
        %v7199 = vld [vmem:[#allocation10 + $0x5c] sm:$0xf]
        %v7200 = vld [vmem:[#allocation10 + $0x60] sm:$0xf]
        %v7201 = vld [vmem:[#allocation10 + $0x64] sm:$0xf]
        %v7202 = vld [vmem:[#allocation10 + $0x68] sm:$0xf]
        %v7203 = vld [vmem:[#allocation10 + $0x6c] sm:$0xf]
        %v7204 = vld [vmem:[#allocation10 + $0x70] sm:$0xf]
        %v7205 = vld [vmem:[#allocation10 + $0x74] sm:$0xf]
        %v7206 = vld [vmem:[#allocation10 + $0x78] sm:$0xf]
        %v7207 = vld [vmem:[#allocation10 + $0x7c] sm:$0xf]
        %v7208 = vld [vmem:[#allocation10 + $0x80] sm:$0xf]
        %v7209 = vld [vmem:[#allocation10 + $0x84] sm:$0xf]
        %v7210 = vld [vmem:[#allocation10 + $0x88] sm:$0xf]
        %v7211 = vld [vmem:[#allocation10 + $0x8c] sm:$0xf]
        %v7212 = vld [vmem:[#allocation10 + $0x90] sm:$0xf]
        %v7213 = vld [vmem:[#allocation10 + $0x94] sm:$0xf]
        %v7214 = vld [vmem:[#allocation10 + $0x98] sm:$0xf]
        %v7215 = vld [vmem:[#allocation10 + $0x9c] sm:$0xf]
        %v7216 = vld [vmem:[#allocation10 + $0xa0] sm:$0xf]
        %v7217 = vld [vmem:[#allocation10 + $0xa4] sm:$0xf]
        %v7218 = vld [vmem:[#allocation10 + $0xa8] sm:$0xf]
        %v7219 = vld [vmem:[#allocation10 + $0xac] sm:$0xf]
        %v7220 = vld [vmem:[#allocation10 + $0xb0] sm:$0xf]
        %v7221 = vld [vmem:[#allocation10 + $0xb4] sm:$0xf]
        %v7222 = vld [vmem:[#allocation10 + $0xb8] sm:$0xf]
        %v7223 = vld [vmem:[#allocation10 + $0xbc] sm:$0xf]
        %v7224 = vld [vmem:[#allocation10 + $0xc0] sm:$0xf]
        %v7225 = vld [vmem:[#allocation10 + $0xc4] sm:$0xf]
        %v7226 = vld [vmem:[#allocation10 + $0xc8] sm:$0xf]
        %v7227 = vld [vmem:[#allocation10 + $0xcc] sm:$0xf]
        %v7228 = vld [vmem:[#allocation10 + $0xd0] sm:$0xf]
        %v7229 = vld [vmem:[#allocation10 + $0xd4] sm:$0xf]
        %v7230 = vld [vmem:[#allocation10 + $0xd8] sm:$0xf]
        %v7231 = vld [vmem:[#allocation10 + $0xdc] sm:$0xf]
        %v7232 = vld [vmem:[#allocation10 + $0xe0] sm:$0xf]
        %v7233 = vld [vmem:[#allocation10 + $0xe4] sm:$0xf]
        %v7234 = vld [vmem:[#allocation10 + $0xe8] sm:$0xf]
        %v7235 = vld [vmem:[#allocation10 + $0xec] sm:$0xf]
        %v7236 = vld [vmem:[#allocation10 + $0xf0] sm:$0xf]
        %v7237 = vld [vmem:[#allocation10 + $0xf4] sm:$0xf]
        %v7238 = vld [vmem:[#allocation10 + $0xf8] sm:$0xf]
        %v7239 = vld [vmem:[#allocation10 + $0xfc] sm:$0xf]
        %v7240 = vld [vmem:[#allocation10 + $0x100] sm:$0xf]
        %v7241 = vld [vmem:[#allocation10 + $0x104] sm:$0xf]
        %v7242 = vld [vmem:[#allocation10 + $0x108] sm:$0xf]
        %v7243 = vld [vmem:[#allocation10 + $0x10c] sm:$0xf]
        %v7244 = vld [vmem:[#allocation10 + $0x110] sm:$0xf]
        %v7245 = vld [vmem:[#allocation10 + $0x114] sm:$0xf]
        %v7246 = vld [vmem:[#allocation10 + $0x118] sm:$0xf]
        %v7247 = vld [vmem:[#allocation10 + $0x11c] sm:$0xf]
        %v7248 = vld [vmem:[#allocation10 + $0x120] sm:$0xf]
        %v7249 = vld [vmem:[#allocation10 + $0x124] sm:$0xf]
        %v7250 = vld [vmem:[#allocation10 + $0x128] sm:$0xf]
        %v7251 = vld [vmem:[#allocation10 + $0x12c] sm:$0xf]
        %v7252 = vld [vmem:[#allocation10 + $0x130] sm:$0xf]
        %v7253 = vld [vmem:[#allocation10 + $0x134] sm:$0xf]
        %v7254 = vld [vmem:[#allocation10 + $0x138] sm:$0xf]
        %v7255 = vld [vmem:[#allocation10 + $0x13c] sm:$0xf]
        %v7256 = vld [vmem:[#allocation10 + $0x140] sm:$0xf]
        %v7257 = vld [vmem:[#allocation10 + $0x144] sm:$0xf]
        %v7258 = vld [vmem:[#allocation10 + $0x148] sm:$0xf]
        %v7259 = vld [vmem:[#allocation10 + $0x14c] sm:$0xf]
        %v7260 = vld [vmem:[#allocation10 + $0x150] sm:$0xf]
        %v7261 = vld [vmem:[#allocation10 + $0x154] sm:$0xf]
        %v7262 = vld [vmem:[#allocation10 + $0x158] sm:$0xf]
        %v7263 = vld [vmem:[#allocation10 + $0x15c] sm:$0xf]
        %v7264 = vld [vmem:[#allocation10 + $0x160] sm:$0xf]
        %v7265 = vld [vmem:[#allocation10 + $0x164] sm:$0xf]
        %v7266 = vld [vmem:[#allocation10 + $0x168] sm:$0xf]
        %v7267 = vld [vmem:[#allocation10 + $0x16c] sm:$0xf]
        %v7268 = vld [vmem:[#allocation10 + $0x170] sm:$0xf]
        %v7269 = vld [vmem:[#allocation10 + $0x174] sm:$0xf]
        %v7270 = vld [vmem:[#allocation10 + $0x178] sm:$0xf]
        %v7271 = vld [vmem:[#allocation10 + $0x17c] sm:$0xf]
        %v7272 = vld [vmem:[#allocation10 + $0x180] sm:$0xf]
        %v7273 = vld [vmem:[#allocation10 + $0x184] sm:$0xf]
        %v7274 = vld [vmem:[#allocation10 + $0x188] sm:$0xf]
        %v7275 = vld [vmem:[#allocation10 + $0x18c] sm:$0xf]
        %v7276 = vld [vmem:[#allocation10 + $0x190] sm:$0xf]
        %v7277 = vld [vmem:[#allocation10 + $0x194] sm:$0xf]
        %v7278 = vld [vmem:[#allocation10 + $0x198] sm:$0xf]
        %v7279 = vld [vmem:[#allocation10 + $0x19c] sm:$0xf]
        %v7280 = vld [vmem:[#allocation10 + $0x1a0] sm:$0xf]
        %v7281 = vld [vmem:[#allocation10 + $0x1a4] sm:$0xf]
        %v7282 = vld [vmem:[#allocation10 + $0x1a8] sm:$0xf]
        %v7283 = vld [vmem:[#allocation10 + $0x1ac] sm:$0xf]
        %v7284 = vld [vmem:[#allocation10 + $0x1b0] sm:$0xf]
        %v7285 = vld [vmem:[#allocation10 + $0x1b4] sm:$0xf]
        %v7286 = vld [vmem:[#allocation10 + $0x1b8] sm:$0xf]
        %v7287 = vld [vmem:[#allocation10 + $0x1bc] sm:$0xf]
        %v7288 = vld [vmem:[#allocation10 + $0x1c0] sm:$0xf]
        %v7289 = vld [vmem:[#allocation10 + $0x1c4] sm:$0xf]
        %v7290 = vld [vmem:[#allocation10 + $0x1c8] sm:$0xf]
        %v7291 = vld [vmem:[#allocation10 + $0x1cc] sm:$0xf]
        %v7292 = vld [vmem:[#allocation10 + $0x1d0] sm:$0xf]
        %v7293 = vld [vmem:[#allocation10 + $0x1d4] sm:$0xf]
        %v7294 = vld [vmem:[#allocation10 + $0x1d8] sm:$0xf]
        %v7295 = vld [vmem:[#allocation10 + $0x1dc] sm:$0xf]
        %v7296 = vld [vmem:[#allocation10 + $0x1e0] sm:$0xf]
        %v7297 = vld [vmem:[#allocation10 + $0x1e4] sm:$0xf]
        %v7298 = vld [vmem:[#allocation10 + $0x1e8] sm:$0xf]
        %v7299 = vld [vmem:[#allocation10 + $0x1ec] sm:$0xf]
        %v7300 = vld [vmem:[#allocation10 + $0x1f0] sm:$0xf]
        %v7301 = vld [vmem:[#allocation10 + $0x1f4] sm:$0xf]
        %v7302 = vld [vmem:[#allocation10 + $0x1f8] sm:$0xf]
        %v7303 = vld [vmem:[#allocation10 + $0x1fc] sm:$0xf]
        %v7304 = vld [vmem:[#allocation10 + $0x200] sm:$0xf]
        %v7305 = vld [vmem:[#allocation10 + $0x204] sm:$0xf]
        %v7306 = vld [vmem:[#allocation10 + $0x208] sm:$0xf]
        %v7307 = vld [vmem:[#allocation10 + $0x20c] sm:$0xf]
        %v7308 = vld [vmem:[#allocation10 + $0x210] sm:$0xf]
        %v7309 = vld [vmem:[#allocation10 + $0x214] sm:$0xf]
        %v7310 = vld [vmem:[#allocation10 + $0x218] sm:$0xf]
        %v7311 = vld [vmem:[#allocation10 + $0x21c] sm:$0xf]
        %v7312 = vld [vmem:[#allocation10 + $0x220] sm:$0xf]
        %v7313 = vld [vmem:[#allocation10 + $0x224] sm:$0xf]
        %v7314 = vld [vmem:[#allocation10 + $0x228] sm:$0xf]
        %v7315 = vld [vmem:[#allocation10 + $0x22c] sm:$0xf]
        %v7316 = vld [vmem:[#allocation10 + $0x230] sm:$0xf]
        %v7317 = vld [vmem:[#allocation10 + $0x234] sm:$0xf]
        %v7318 = vld [vmem:[#allocation10 + $0x238] sm:$0xf]
        %v7319 = vld [vmem:[#allocation10 + $0x23c] sm:$0xf]
        %v7464 = vunpack.c.l.b16 %v7176
        %v7465 = vunpack.c.l.b16 %v7177
        %v7466 = vunpack.c.l.b16 %v7178
        %v7467 = vunpack.c.l.b16 %v7179
        %v7468 = vunpack.c.l.b16 %v7180
        %v7469 = vunpack.c.l.b16 %v7181
        %v7470 = vunpack.c.l.b16 %v7182
        %v7471 = vunpack.c.l.b16 %v7183
        %v7472 = vunpack.c.l.b16 %v7184
        %v7473 = vunpack.c.l.b16 %v7185
        %v7474 = vunpack.c.l.b16 %v7186
        %v7475 = vunpack.c.l.b16 %v7187
        %v7476 = vunpack.c.l.b16 %v7188
        %v7477 = vunpack.c.l.b16 %v7189
        %v7478 = vunpack.c.l.b16 %v7190
        %v7479 = vunpack.c.l.b16 %v7191
        %v7480 = vunpack.c.l.b16 %v7192
        %v7481 = vunpack.c.l.b16 %v7193
        %v7482 = vunpack.c.l.b16 %v7194
        %v7483 = vunpack.c.l.b16 %v7195
        %v7484 = vunpack.c.l.b16 %v7196
        %v7485 = vunpack.c.l.b16 %v7197
        %v7486 = vunpack.c.l.b16 %v7198
        %v7487 = vunpack.c.l.b16 %v7199
        %v7488 = vunpack.c.l.b16 %v7200
        %v7489 = vunpack.c.l.b16 %v7201
        %v7490 = vunpack.c.l.b16 %v7202
        %v7491 = vunpack.c.l.b16 %v7203
        %v7492 = vunpack.c.l.b16 %v7204
        %v7493 = vunpack.c.l.b16 %v7205
        %v7494 = vunpack.c.l.b16 %v7206
        %v7495 = vunpack.c.l.b16 %v7207
        %v7496 = vunpack.c.l.b16 %v7208
        %v7497 = vunpack.c.l.b16 %v7209
        %v7498 = vunpack.c.l.b16 %v7210
        %v7499 = vunpack.c.l.b16 %v7211
        %v7500 = vunpack.c.l.b16 %v7212
        %v7501 = vunpack.c.l.b16 %v7213
        %v7502 = vunpack.c.l.b16 %v7214
        %v7503 = vunpack.c.l.b16 %v7215
        %v7504 = vunpack.c.l.b16 %v7216
        %v7505 = vunpack.c.l.b16 %v7217
        %v7506 = vunpack.c.l.b16 %v7218
        %v7507 = vunpack.c.l.b16 %v7219
        %v7508 = vunpack.c.l.b16 %v7220
        %v7509 = vunpack.c.l.b16 %v7221
        %v7510 = vunpack.c.l.b16 %v7222
        %v7511 = vunpack.c.l.b16 %v7223
        %v7512 = vunpack.c.l.b16 %v7224
        %v7513 = vunpack.c.l.b16 %v7225
        %v7514 = vunpack.c.l.b16 %v7226
        %v7515 = vunpack.c.l.b16 %v7227
        %v7516 = vunpack.c.l.b16 %v7228
        %v7517 = vunpack.c.l.b16 %v7229
        %v7518 = vunpack.c.l.b16 %v7230
        %v7519 = vunpack.c.l.b16 %v7231
        %v7520 = vunpack.c.l.b16 %v7232
        %v7521 = vunpack.c.l.b16 %v7233
        %v7522 = vunpack.c.l.b16 %v7234
        %v7523 = vunpack.c.l.b16 %v7235
        %v7524 = vunpack.c.l.b16 %v7236
        %v7525 = vunpack.c.l.b16 %v7237
        %v7526 = vunpack.c.l.b16 %v7238
        %v7527 = vunpack.c.l.b16 %v7239
        %v7528 = vunpack.c.l.b16 %v7240
        %v7529 = vunpack.c.l.b16 %v7241
        %v7530 = vunpack.c.l.b16 %v7242
        %v7531 = vunpack.c.l.b16 %v7243
        %v7532 = vunpack.c.l.b16 %v7244
        %v7533 = vunpack.c.l.b16 %v7245
        %v7534 = vunpack.c.l.b16 %v7246
        %v7535 = vunpack.c.l.b16 %v7247
        %v7536 = vunpack.c.l.b16 %v7248
        %v7537 = vunpack.c.l.b16 %v7249
        %v7538 = vunpack.c.l.b16 %v7250
        %v7539 = vunpack.c.l.b16 %v7251
        %v7540 = vunpack.c.l.b16 %v7252
        %v7541 = vunpack.c.l.b16 %v7253
        %v7542 = vunpack.c.l.b16 %v7254
        %v7543 = vunpack.c.l.b16 %v7255
        %v7544 = vunpack.c.l.b16 %v7256
        %v7545 = vunpack.c.l.b16 %v7257
        %v7546 = vunpack.c.l.b16 %v7258
        %v7547 = vunpack.c.l.b16 %v7259
        %v7548 = vunpack.c.l.b16 %v7260
        %v7549 = vunpack.c.l.b16 %v7261
        %v7550 = vunpack.c.l.b16 %v7262
        %v7551 = vunpack.c.l.b16 %v7263
        %v7552 = vunpack.c.l.b16 %v7264
        %v7553 = vunpack.c.l.b16 %v7265
        %v7554 = vunpack.c.l.b16 %v7266
        %v7555 = vunpack.c.l.b16 %v7267
        %v7556 = vunpack.c.l.b16 %v7268
        %v7557 = vunpack.c.l.b16 %v7269
        %v7558 = vunpack.c.l.b16 %v7270
        %v7559 = vunpack.c.l.b16 %v7271
        %v7560 = vunpack.c.l.b16 %v7272
        %v7561 = vunpack.c.l.b16 %v7273
        %v7562 = vunpack.c.l.b16 %v7274
        %v7563 = vunpack.c.l.b16 %v7275
        %v7564 = vunpack.c.l.b16 %v7276
        %v7565 = vunpack.c.l.b16 %v7277
        %v7566 = vunpack.c.l.b16 %v7278
        %v7567 = vunpack.c.l.b16 %v7279
        %v7568 = vunpack.c.l.b16 %v7280
        %v7569 = vunpack.c.l.b16 %v7281
        %v7570 = vunpack.c.l.b16 %v7282
        %v7571 = vunpack.c.l.b16 %v7283
        %v7572 = vunpack.c.l.b16 %v7284
        %v7573 = vunpack.c.l.b16 %v7285
        %v7574 = vunpack.c.l.b16 %v7286
        %v7575 = vunpack.c.l.b16 %v7287
        %v7576 = vunpack.c.l.b16 %v7288
        %v7577 = vunpack.c.l.b16 %v7289
        %v7578 = vunpack.c.l.b16 %v7290
        %v7579 = vunpack.c.l.b16 %v7291
        %v7580 = vunpack.c.l.b16 %v7292
        %v7581 = vunpack.c.l.b16 %v7293
        %v7582 = vunpack.c.l.b16 %v7294
        %v7583 = vunpack.c.l.b16 %v7295
        %v7584 = vunpack.c.l.b16 %v7296
        %v7585 = vunpack.c.l.b16 %v7297
        %v7586 = vunpack.c.l.b16 %v7298
        %v7587 = vunpack.c.l.b16 %v7299
        %v7588 = vunpack.c.l.b16 %v7300
        %v7589 = vunpack.c.l.b16 %v7301
        %v7590 = vunpack.c.l.b16 %v7302
        %v7591 = vunpack.c.l.b16 %v7303
        %v7592 = vunpack.c.l.b16 %v7304
        %v7593 = vunpack.c.l.b16 %v7305
        %v7594 = vunpack.c.l.b16 %v7306
        %v7595 = vunpack.c.l.b16 %v7307
        %v7596 = vunpack.c.l.b16 %v7308
        %v7597 = vunpack.c.l.b16 %v7309
        %v7598 = vunpack.c.l.b16 %v7310
        %v7599 = vunpack.c.l.b16 %v7311
        %v7600 = vunpack.c.l.b16 %v7312
        %v7601 = vunpack.c.l.b16 %v7313
        %v7602 = vunpack.c.l.b16 %v7314
        %v7603 = vunpack.c.l.b16 %v7315
        %v7604 = vunpack.c.l.b16 %v7316
        %v7605 = vunpack.c.l.b16 %v7317
        %v7606 = vunpack.c.l.b16 %v7318
        %v7607 = vunpack.c.l.b16 %v7319
        %v7608 = vpack.c.b16 %v7465, %v7464
        %v7609 = vpack.c.b16 %v7467, %v7466
        %v7610 = vpack.c.b16 %v7469, %v7468
        %v7611 = vpack.c.b16 %v7471, %v7470
        %v7612 = vpack.c.b16 %v7473, %v7472
        %v7613 = vpack.c.b16 %v7475, %v7474
        %v7614 = vpack.c.b16 %v7477, %v7476
        %v7615 = vpack.c.b16 %v7479, %v7478
        %v7616 = vpack.c.b16 %v7481, %v7480
        %v7617 = vpack.c.b16 %v7483, %v7482
        %v7618 = vpack.c.b16 %v7485, %v7484
        %v7619 = vpack.c.b16 %v7487, %v7486
        %v7620 = vpack.c.b16 %v7489, %v7488
        %v7621 = vpack.c.b16 %v7491, %v7490
        %v7622 = vpack.c.b16 %v7493, %v7492
        %v7623 = vpack.c.b16 %v7495, %v7494
        %v7624 = vpack.c.b16 %v7497, %v7496
        %v7625 = vpack.c.b16 %v7499, %v7498
        %v7626 = vpack.c.b16 %v7501, %v7500
        %v7627 = vpack.c.b16 %v7503, %v7502
        %v7628 = vpack.c.b16 %v7505, %v7504
        %v7629 = vpack.c.b16 %v7507, %v7506
        %v7630 = vpack.c.b16 %v7509, %v7508
        %v7631 = vpack.c.b16 %v7511, %v7510
        %v7632 = vpack.c.b16 %v7513, %v7512
        %v7633 = vpack.c.b16 %v7515, %v7514
        %v7634 = vpack.c.b16 %v7517, %v7516
        %v7635 = vpack.c.b16 %v7519, %v7518
        %v7636 = vpack.c.b16 %v7521, %v7520
        %v7637 = vpack.c.b16 %v7523, %v7522
        %v7638 = vpack.c.b16 %v7525, %v7524
        %v7639 = vpack.c.b16 %v7527, %v7526
        %v7640 = vpack.c.b16 %v7529, %v7528
        %v7641 = vpack.c.b16 %v7531, %v7530
        %v7642 = vpack.c.b16 %v7533, %v7532
        %v7643 = vpack.c.b16 %v7535, %v7534
        %v7644 = vpack.c.b16 %v7537, %v7536
        %v7645 = vpack.c.b16 %v7539, %v7538
        %v7646 = vpack.c.b16 %v7541, %v7540
        %v7647 = vpack.c.b16 %v7543, %v7542
        %v7648 = vpack.c.b16 %v7545, %v7544
        %v7649 = vpack.c.b16 %v7547, %v7546
        %v7650 = vpack.c.b16 %v7549, %v7548
        %v7651 = vpack.c.b16 %v7551, %v7550
        %v7652 = vpack.c.b16 %v7553, %v7552
        %v7653 = vpack.c.b16 %v7555, %v7554
        %v7654 = vpack.c.b16 %v7557, %v7556
        %v7655 = vpack.c.b16 %v7559, %v7558
        %v7656 = vpack.c.b16 %v7561, %v7560
        %v7657 = vpack.c.b16 %v7563, %v7562
        %v7658 = vpack.c.b16 %v7565, %v7564
        %v7659 = vpack.c.b16 %v7567, %v7566
        %v7660 = vpack.c.b16 %v7569, %v7568
        %v7661 = vpack.c.b16 %v7571, %v7570
        %v7662 = vpack.c.b16 %v7573, %v7572
        %v7663 = vpack.c.b16 %v7575, %v7574
        %v7664 = vpack.c.b16 %v7577, %v7576
        %v7665 = vpack.c.b16 %v7579, %v7578
        %v7666 = vpack.c.b16 %v7581, %v7580
        %v7667 = vpack.c.b16 %v7583, %v7582
        %v7668 = vpack.c.b16 %v7585, %v7584
        %v7669 = vpack.c.b16 %v7587, %v7586
        %v7670 = vpack.c.b16 %v7589, %v7588
        %v7671 = vpack.c.b16 %v7591, %v7590
        %v7672 = vpack.c.b16 %v7593, %v7592
        %v7673 = vpack.c.b16 %v7595, %v7594
        %v7674 = vpack.c.b16 %v7597, %v7596
        %v7675 = vpack.c.b16 %v7599, %v7598
        %v7676 = vpack.c.b16 %v7601, %v7600
        %v7677 = vpack.c.b16 %v7603, %v7602
        %v7678 = vpack.c.b16 %v7605, %v7604
        %v7679 = vpack.c.b16 %v7607, %v7606
        %7752 = vmatprep.subr.bf16.mxu0 0
        %7753 = vmatpush1.bf16.msra.mxu0 %v7608
        %7754 = vmatprep.subr.bf16.mxu0 0
        %7755 = vmatpush1.bf16.msra.mxu0 %v7609
        %7756 = vmatprep.subr.bf16.mxu0 0
        %7757 = vmatpush1.bf16.msra.mxu0 %v7610
        %7758 = vmatprep.subr.bf16.mxu0 0
        %7759 = vmatpush1.bf16.msra.mxu0 %v7611
        %7760 = vmatprep.subr.bf16.mxu0 0
        %7761 = vmatpush1.bf16.msra.mxu0 %v7612
        %7762 = vmatprep.subr.bf16.mxu0 0
        %7763 = vmatpush1.bf16.msra.mxu0 %v7613
        %7764 = vmatprep.subr.bf16.mxu0 0
        %7765 = vmatpush1.bf16.msra.mxu0 %v7614
        %7766 = vmatprep.subr.bf16.mxu0 0
        %7767 = vmatpush1.bf16.msra.mxu0 %v7615
        %7768 = vmatprep.subr.bf16.mxu0 0
        %7769 = vmatpush1.bf16.msra.mxu0 %v7616
        %7770 = vmatprep.subr.bf16.mxu0 0
        %7771 = vmatpush1.bf16.msra.mxu0 %v7617
        %7772 = vmatprep.subr.bf16.mxu0 0
        %7773 = vmatpush1.bf16.msra.mxu0 %v7618
        %7774 = vmatprep.subr.bf16.mxu0 0
        %7775 = vmatpush1.bf16.msra.mxu0 %v7619
        %7776 = vmatprep.subr.bf16.mxu0 0
        %7777 = vmatpush1.bf16.msra.mxu0 %v7620
        %7778 = vmatprep.subr.bf16.mxu0 0
        %7779 = vmatpush1.bf16.msra.mxu0 %v7621
        %7780 = vmatprep.subr.bf16.mxu0 0
        %7781 = vmatpush1.bf16.msra.mxu0 %v7622
        %7782 = vmatprep.subr.bf16.mxu0 0
        %7783 = vmatpush1.bf16.msra.mxu0 %v7623
        %7784 = vmatprep.mubr.bf16.mxu0 %v6961
        %7785 = vmatmul.mubr.bf16.gmra.mrb[0].mxu0 %v6960
        %v7786 = vpop.f32.mrb[0].mxu0
        %v7787 = vadd.f32 0.0, %v7786
        %v7788 = vpop.f32.mrb[0].mxu0
        %v7789 = vpop.f32.mrb[0].mxu0
        %v7790 = vadd.f32 0.0, %v7789
        %v7791 = vpop.f32.mrb[0].mxu0
        %7792 = vmatprep.mubr.bf16.mxu0 %v6970
        %7793 = vmatmul.mubr.bf16.gmra.mrb[0].mxu0 %v6969
        %v7794 = vpop.f32.mrb[0].mxu0
        %v7795 = vpop.f32.mrb[0].mxu0
        %v7796 = vpop.f32.mrb[0].mxu0
        %v7797 = vadd.f32 0.0, %v7796
        %v7798 = vpop.f32.mrb[0].mxu0
        %7799 = vmatprep.mubr.bf16.mxu0 %v6979
        %7800 = vmatmul.mubr.bf16.gmra.mrb[0].mxu0 %v6978
        %v7801 = vpop.f32.mrb[0].mxu0
        %v7802 = vadd.f32 0.0, %v7801
        %v7803 = vpop.f32.mrb[0].mxu0
        %v7804 = vpop.f32.mrb[0].mxu0
        %v7805 = vpop.f32.mrb[0].mxu0
        %7806 = vmatprep.mubr.bf16.mxu0 %v6988
        %7807 = vmatmul.mubr.bf16.gmra.mrb[0].mxu0 %v6987
        %v7808 = vpop.f32.mrb[0].mxu0
        %v7809 = vadd.f32 0.0, %v7808
        %v7810 = vpop.f32.mrb[0].mxu0
        %v7811 = vpop.f32.mrb[0].mxu0
        %v7812 = vadd.f32 0.0, %v7811
        %v7813 = vpop.f32.mrb[0].mxu0
        %7814 = vmatprep.mubr.bf16.mxu0 %v6997
        %7815 = vmatmul.mubr.bf16.gmra.mrb[0].mxu0 %v6996
        %v7816 = vpop.f32.mrb[0].mxu0
        %v7817 = vpop.f32.mrb[0].mxu0
        %v7818 = vpop.f32.mrb[0].mxu0
        %v7819 = vadd.f32 0.0, %v7818
        %v7820 = vpop.f32.mrb[0].mxu0
        %7821 = vmatprep.mubr.bf16.mxu0 %v7006
        %7822 = vmatmul.mubr.bf16.gmra.mrb[0].mxu0 %v7005
        %v7823 = vpop.f32.mrb[0].mxu0
        %v7824 = vadd.f32 0.0, %v7823
        %v7825 = vpop.f32.mrb[0].mxu0
        %v7826 = vpop.f32.mrb[0].mxu0
        %v7827 = vpop.f32.mrb[0].mxu0
        %7828 = vmatprep.mubr.bf16.mxu0 %v7015
        %7829 = vmatmul.mubr.bf16.gmra.mrb[0].mxu0 %v7014
        %v7830 = vpop.f32.mrb[0].mxu0
        %v7831 = vadd.f32 0.0, %v7830
        %v7832 = vpop.f32.mrb[0].mxu0
        %v7833 = vpop.f32.mrb[0].mxu0
        %v7834 = vadd.f32 0.0, %v7833
        %v7835 = vpop.f32.mrb[0].mxu0
        %7836 = vmatprep.mubr.bf16.mxu0 %v7024
        %7837 = vmatmul.mubr.bf16.gmra.mrb[0].mxu0 %v7023
        %v7838 = vpop.f32.mrb[0].mxu0
        %v7839 = vpop.f32.mrb[0].mxu0
        %v7840 = vpop.f32.mrb[0].mxu0
        %v7841 = vadd.f32 0.0, %v7840
        %v7842 = vpop.f32.mrb[0].mxu0
        %7843 = vmatprep.mubr.bf16.mxu0 %v7033
        %7844 = vmatmul.mubr.bf16.gmra.mrb[0].mxu0 %v7032
        %v7845 = vpop.f32.mrb[0].mxu0
        %v7846 = vadd.f32 0.0, %v7845
        %v7847 = vpop.f32.mrb[0].mxu0
        %v7848 = vpop.f32.mrb[0].mxu0
        %v7849 = vpop.f32.mrb[0].mxu0
        %7850 = vmatprep.mubr.bf16.mxu0 %v7042
        %7851 = vmatmul.mubr.bf16.gmra.mrb[0].mxu0 %v7041
        %v7852 = vpop.f32.mrb[0].mxu0
        %v7853 = vadd.f32 0.0, %v7852
        %v7854 = vpop.f32.mrb[0].mxu0
        %v7855 = vpop.f32.mrb[0].mxu0
        %v7856 = vadd.f32 0.0, %v7855
        %v7857 = vpop.f32.mrb[0].mxu0
        %7858 = vmatprep.mubr.bf16.mxu0 %v7051
        %7859 = vmatmul.mubr.bf16.gmra.mrb[0].mxu0 %v7050
        %v7860 = vpop.f32.mrb[0].mxu0
        %v7861 = vpop.f32.mrb[0].mxu0
        %v7862 = vpop.f32.mrb[0].mxu0
        %v7863 = vadd.f32 0.0, %v7862
        %v7864 = vpop.f32.mrb[0].mxu0
        %7865 = vmatprep.mubr.bf16.mxu0 %v7060
        %7866 = vmatmul.mubr.bf16.gmra.mrb[0].mxu0 %v7059
        %v7867 = vpop.f32.mrb[0].mxu0
        %v7868 = vadd.f32 0.0, %v7867
        %v7869 = vpop.f32.mrb[0].mxu0
        %v7870 = vpop.f32.mrb[0].mxu0
        %v7871 = vpop.f32.mrb[0].mxu0
        %7872 = vmatprep.mubr.bf16.mxu0 %v7069
        %7873 = vmatmul.mubr.bf16.gmra.mrb[0].mxu0 %v7068
        %v7874 = vpop.f32.mrb[0].mxu0
        %v7875 = vadd.f32 0.0, %v7874
        %v7876 = vpop.f32.mrb[0].mxu0
        %v7877 = vpop.f32.mrb[0].mxu0
        %v7878 = vadd.f32 0.0, %v7877
        %v7879 = vpop.f32.mrb[0].mxu0
        %7880 = vmatprep.mubr.bf16.mxu0 %v7078
        %7881 = vmatmul.mubr.bf16.gmra.mrb[0].mxu0 %v7077
        %v7882 = vpop.f32.mrb[0].mxu0
        %v7883 = vpop.f32.mrb[0].mxu0
        %v7884 = vpop.f32.mrb[0].mxu0
        %v7885 = vadd.f32 0.0, %v7884
        %v7886 = vpop.f32.mrb[0].mxu0
        %7887 = vmatprep.mubr.bf16.mxu0 %v7087
        %7888 = vmatmul.mubr.bf16.gmra.mrb[0].mxu0 %v7086
        %v7889 = vpop.f32.mrb[0].mxu0
        %v7890 = vadd.f32 0.0, %v7889
        %v7891 = vpop.f32.mrb[0].mxu0
        %v7892 = vpop.f32.mrb[0].mxu0
        %v7893 = vpop.f32.mrb[0].mxu0
        %7894 = vmatprep.mubr.bf16.mxu0 %v7096
        %7895 = vmatmul.mubr.bf16.gmra.mrb[0].mxu0 %v7095
        %v7896 = vpop.f32.mrb[0].mxu0
        %v7897 = vadd.f32 0.0, %v7896
        %v7898 = vpop.f32.mrb[0].mxu0
        %v7899 = vpop.f32.mrb[0].mxu0
        %v7900 = vadd.f32 0.0, %v7899
        %v7901 = vpop.f32.mrb[0].mxu0
        %7902 = vmatprep.mubr.bf16.mxu0 %v7105
        %7903 = vmatmul.mubr.bf16.gmra.mrb[0].mxu0 %v7104
        %v7904 = vpop.f32.mrb[0].mxu0
        %v7905 = vpop.f32.mrb[0].mxu0
        %v7906 = vpop.f32.mrb[0].mxu0
        %v7907 = vadd.f32 0.0, %v7906
        %v7908 = vpop.f32.mrb[0].mxu0
        %7909 = vmatprep.mubr.bf16.mxu0 %v7114
        %7910 = vmatmul.mubr.bf16.gmra.mrb[0].mxu0 %v7113
        %v7911 = vpop.f32.mrb[0].mxu0
        %v7912 = vadd.f32 0.0, %v7911
        %v7913 = vpop.f32.mrb[0].mxu0
        %v7914 = vpop.f32.mrb[0].mxu0
        %v7915 = vpop.f32.mrb[0].mxu0
        %7916 = vmatprep.mubr.bf16.mxu0 %v7123
        %7917 = vmatmul.mubr.bf16.gmra.mrb[0].mxu0 %v7122
        %v7918 = vpop.f32.mrb[0].mxu0
        %v7919 = vadd.f32 0.0, %v7918
        %v7920 = vpop.f32.mrb[0].mxu0
        %v7921 = vpop.f32.mrb[0].mxu0
        %v7922 = vadd.f32 0.0, %v7921
        %v7923 = vpop.f32.mrb[0].mxu0
        %7924 = vmatprep.mubr.bf16.mxu0 %v7132
        %7925 = vmatmul.mubr.bf16.gmra.mrb[0].mxu0 %v7131
        %v7926 = vpop.f32.mrb[0].mxu0
        %v7927 = vpop.f32.mrb[0].mxu0
        %v7928 = vpop.f32.mrb[0].mxu0
        %v7929 = vadd.f32 0.0, %v7928
        %v7930 = vpop.f32.mrb[0].mxu0
        %7931 = vmatprep.mubr.bf16.mxu0 %v7141
        %7932 = vmatmul.mubr.bf16.gmra.mrb[0].mxu0 %v7140
        %v7933 = vpop.f32.mrb[0].mxu0
        %v7934 = vadd.f32 0.0, %v7933
        %v7935 = vpop.f32.mrb[0].mxu0
        %v7936 = vpop.f32.mrb[0].mxu0
        %v7937 = vpop.f32.mrb[0].mxu0
        %7938 = vmatprep.mubr.bf16.mxu0 %v7150
        %7939 = vmatmul.mubr.bf16.gmra.mrb[0].mxu0 %v7149
        %v7940 = vpop.f32.mrb[0].mxu0
        %v7941 = vadd.f32 0.0, %v7940
        %v7942 = vpop.f32.mrb[0].mxu0
        %v7943 = vpop.f32.mrb[0].mxu0
        %v7944 = vadd.f32 0.0, %v7943
        %v7945 = vpop.f32.mrb[0].mxu0
        %7946 = vmatprep.mubr.bf16.mxu0 %v7159
        %7947 = vmatmul.mubr.bf16.gmra.mrb[0].mxu0 %v7158
        %v7948 = vpop.f32.mrb[0].mxu0
        %v7949 = vpop.f32.mrb[0].mxu0
        %v7950 = vpop.f32.mrb[0].mxu0
        %v7951 = vadd.f32 0.0, %v7950
        %v7952 = vpop.f32.mrb[0].mxu0
        %7953 = vmatprep.mubr.bf16.mxu0 %v7168
        %7954 = vmatmul.mubr.bf16.gmra.mrb[0].mxu0 %v7167
        %v7955 = vpop.f32.mrb[0].mxu0
        %v7956 = vadd.f32 0.0, %v7955
        %v7957 = vpop.f32.mrb[0].mxu0
        %v7958 = vpop.f32.mrb[0].mxu0
        %v7959 = vpop.f32.mrb[0].mxu0
        %7960 = vdwg.mxu0
        %7961 = vmatprep.subr.bf16.mxu0 0
        %7962 = vmatpush1.bf16.msra.mxu0 %v7624
        %7963 = vmatprep.subr.bf16.mxu0 0
        %7964 = vmatpush1.bf16.msra.mxu0 %v7625
        %7965 = vmatprep.subr.bf16.mxu0 0
        %7966 = vmatpush1.bf16.msra.mxu0 %v7626
        %7967 = vmatprep.subr.bf16.mxu0 0
        %7968 = vmatpush1.bf16.msra.mxu0 %v7627
        %7969 = vmatprep.subr.bf16.mxu0 0
        %7970 = vmatpush1.bf16.msra.mxu0 %v7628
        %7971 = vmatprep.subr.bf16.mxu0 0
        %7972 = vmatpush1.bf16.msra.mxu0 %v7629
        %7973 = vmatprep.subr.bf16.mxu0 0
        %7974 = vmatpush1.bf16.msra.mxu0 %v7630
        %7975 = vmatprep.subr.bf16.mxu0 0
        %7976 = vmatpush1.bf16.msra.mxu0 %v7631
        %7977 = vmatprep.subr.bf16.mxu0 0
        %7978 = vmatpush1.bf16.msra.mxu0 %v7632
        %7979 = vmatprep.subr.bf16.mxu0 0
        %7980 = vmatpush1.bf16.msra.mxu0 %v7633
        %7981 = vmatprep.subr.bf16.mxu0 0
        %7982 = vmatpush1.bf16.msra.mxu0 %v7634
        %7983 = vmatprep.subr.bf16.mxu0 0
        %7984 = vmatpush1.bf16.msra.mxu0 %v7635
        %7985 = vmatprep.subr.bf16.mxu0 0
        %7986 = vmatpush1.bf16.msra.mxu0 %v7636
        %7987 = vmatprep.subr.bf16.mxu0 0
        %7988 = vmatpush1.bf16.msra.mxu0 %v7637
        %7989 = vmatprep.subr.bf16.mxu0 0
        %7990 = vmatpush1.bf16.msra.mxu0 %v7638
        %7991 = vmatprep.subr.bf16.mxu0 0
        %7992 = vmatpush1.bf16.msra.mxu0 %v7639
        %7993 = vmatprep.mubr.bf16.mxu0 %v6963
        %7994 = vmatmul.mubr.bf16.gmra.mrb[0].mxu0 %v6962
        %v7995 = vpop.f32.mrb[0].mxu0
        %v7996 = vadd.f32 %v7787, %v7995
        %v7997 = vpop.f32.mrb[0].mxu0
        %v7998 = vpop.f32.mrb[0].mxu0
        %v7999 = vadd.f32 %v7790, %v7998
        %v8000 = vpop.f32.mrb[0].mxu0
        %8001 = vmatprep.mubr.bf16.mxu0 %v6972
        %8002 = vmatmul.mubr.bf16.gmra.mrb[0].mxu0 %v6971
        %v8003 = vpop.f32.mrb[0].mxu0
        %v8004 = vpop.f32.mrb[0].mxu0
        %v8005 = vpop.f32.mrb[0].mxu0
        %v8006 = vadd.f32 %v7797, %v8005
        %v8007 = vpop.f32.mrb[0].mxu0
        %8008 = vmatprep.mubr.bf16.mxu0 %v6981
        %8009 = vmatmul.mubr.bf16.gmra.mrb[0].mxu0 %v6980
        %v8010 = vpop.f32.mrb[0].mxu0
        %v8011 = vadd.f32 %v7802, %v8010
        %v8012 = vpop.f32.mrb[0].mxu0
        %v8013 = vpop.f32.mrb[0].mxu0
        %v8014 = vpop.f32.mrb[0].mxu0
        %8015 = vmatprep.mubr.bf16.mxu0 %v6990
        %8016 = vmatmul.mubr.bf16.gmra.mrb[0].mxu0 %v6989
        %v8017 = vpop.f32.mrb[0].mxu0
        %v8018 = vadd.f32 %v7809, %v8017
        %v8019 = vpop.f32.mrb[0].mxu0
        %v8020 = vpop.f32.mrb[0].mxu0
        %v8021 = vadd.f32 %v7812, %v8020
        %v8022 = vpop.f32.mrb[0].mxu0
        %8023 = vmatprep.mubr.bf16.mxu0 %v6999
        %8024 = vmatmul.mubr.bf16.gmra.mrb[0].mxu0 %v6998
        %v8025 = vpop.f32.mrb[0].mxu0
        %v8026 = vpop.f32.mrb[0].mxu0
        %v8027 = vpop.f32.mrb[0].mxu0
        %v8028 = vadd.f32 %v7819, %v8027
        %v8029 = vpop.f32.mrb[0].mxu0
        %8030 = vmatprep.mubr.bf16.mxu0 %v7008
        %8031 = vmatmul.mubr.bf16.gmra.mrb[0].mxu0 %v7007
        %v8032 = vpop.f32.mrb[0].mxu0
        %v8033 = vadd.f32 %v7824, %v8032
        %v8034 = vpop.f32.mrb[0].mxu0
        %v8035 = vpop.f32.mrb[0].mxu0
        %v8036 = vpop.f32.mrb[0].mxu0
        %8037 = vmatprep.mubr.bf16.mxu0 %v7017
        %8038 = vmatmul.mubr.bf16.gmra.mrb[0].mxu0 %v7016
        %v8039 = vpop.f32.mrb[0].mxu0
        %v8040 = vadd.f32 %v7831, %v8039
        %v8041 = vpop.f32.mrb[0].mxu0
        %v8042 = vpop.f32.mrb[0].mxu0
        %v8043 = vadd.f32 %v7834, %v8042
        %v8044 = vpop.f32.mrb[0].mxu0
        %8045 = vmatprep.mubr.bf16.mxu0 %v7026
        %8046 = vmatmul.mubr.bf16.gmra.mrb[0].mxu0 %v7025
        %v8047 = vpop.f32.mrb[0].mxu0
        %v8048 = vpop.f32.mrb[0].mxu0
        %v8049 = vpop.f32.mrb[0].mxu0
        %v8050 = vadd.f32 %v7841, %v8049
        %v8051 = vpop.f32.mrb[0].mxu0
        %8052 = vmatprep.mubr.bf16.mxu0 %v7035
        %8053 = vmatmul.mubr.bf16.gmra.mrb[0].mxu0 %v7034
        %v8054 = vpop.f32.mrb[0].mxu0
        %v8055 = vadd.f32 %v7846, %v8054
        %v8056 = vpop.f32.mrb[0].mxu0
        %v8057 = vpop.f32.mrb[0].mxu0
        %v8058 = vpop.f32.mrb[0].mxu0
        %8059 = vmatprep.mubr.bf16.mxu0 %v7044
        %8060 = vmatmul.mubr.bf16.gmra.mrb[0].mxu0 %v7043
        %v8061 = vpop.f32.mrb[0].mxu0
        %v8062 = vadd.f32 %v7853, %v8061
        %v8063 = vpop.f32.mrb[0].mxu0
        %v8064 = vpop.f32.mrb[0].mxu0
        %v8065 = vadd.f32 %v7856, %v8064
        %v8066 = vpop.f32.mrb[0].mxu0
        %8067 = vmatprep.mubr.bf16.mxu0 %v7053
        %8068 = vmatmul.mubr.bf16.gmra.mrb[0].mxu0 %v7052
        %v8069 = vpop.f32.mrb[0].mxu0
        %v8070 = vpop.f32.mrb[0].mxu0
        %v8071 = vpop.f32.mrb[0].mxu0
        %v8072 = vadd.f32 %v7863, %v8071
        %v8073 = vpop.f32.mrb[0].mxu0
        %8074 = vmatprep.mubr.bf16.mxu0 %v7062
        %8075 = vmatmul.mubr.bf16.gmra.mrb[0].mxu0 %v7061
        %v8076 = vpop.f32.mrb[0].mxu0
        %v8077 = vadd.f32 %v7868, %v8076
        %v8078 = vpop.f32.mrb[0].mxu0
        %v8079 = vpop.f32.mrb[0].mxu0
        %v8080 = vpop.f32.mrb[0].mxu0
        %8081 = vmatprep.mubr.bf16.mxu0 %v7071
        %8082 = vmatmul.mubr.bf16.gmra.mrb[0].mxu0 %v7070
        %v8083 = vpop.f32.mrb[0].mxu0
        %v8084 = vadd.f32 %v7875, %v8083
        %v8085 = vpop.f32.mrb[0].mxu0
        %v8086 = vpop.f32.mrb[0].mxu0
        %v8087 = vadd.f32 %v7878, %v8086
        %v8088 = vpop.f32.mrb[0].mxu0
        %8089 = vmatprep.mubr.bf16.mxu0 %v7080
        %8090 = vmatmul.mubr.bf16.gmra.mrb[0].mxu0 %v7079
        %v8091 = vpop.f32.mrb[0].mxu0
        %v8092 = vpop.f32.mrb[0].mxu0
        %v8093 = vpop.f32.mrb[0].mxu0
        %v8094 = vadd.f32 %v7885, %v8093
        %v8095 = vpop.f32.mrb[0].mxu0
        %8096 = vmatprep.mubr.bf16.mxu0 %v7089
        %8097 = vmatmul.mubr.bf16.gmra.mrb[0].mxu0 %v7088
        %v8098 = vpop.f32.mrb[0].mxu0
        %v8099 = vadd.f32 %v7890, %v8098
        %v8100 = vpop.f32.mrb[0].mxu0
        %v8101 = vpop.f32.mrb[0].mxu0
        %v8102 = vpop.f32.mrb[0].mxu0
        %8103 = vmatprep.mubr.bf16.mxu0 %v7098
        %8104 = vmatmul.mubr.bf16.gmra.mrb[0].mxu0 %v7097
        %v8105 = vpop.f32.mrb[0].mxu0
        %v8106 = vadd.f32 %v7897, %v8105
        %v8107 = vpop.f32.mrb[0].mxu0
        %v8108 = vpop.f32.mrb[0].mxu0
        %v8109 = vadd.f32 %v7900, %v8108
        %v8110 = vpop.f32.mrb[0].mxu0
        %8111 = vmatprep.mubr.bf16.mxu0 %v7107
        %8112 = vmatmul.mubr.bf16.gmra.mrb[0].mxu0 %v7106
        %v8113 = vpop.f32.mrb[0].mxu0
        %v8114 = vpop.f32.mrb[0].mxu0
        %v8115 = vpop.f32.mrb[0].mxu0
        %v8116 = vadd.f32 %v7907, %v8115
        %v8117 = vpop.f32.mrb[0].mxu0
        %8118 = vmatprep.mubr.bf16.mxu0 %v7116
        %8119 = vmatmul.mubr.bf16.gmra.mrb[0].mxu0 %v7115
        %v8120 = vpop.f32.mrb[0].mxu0
        %v8121 = vadd.f32 %v7912, %v8120
        %v8122 = vpop.f32.mrb[0].mxu0
        %v8123 = vpop.f32.mrb[0].mxu0
        %v8124 = vpop.f32.mrb[0].mxu0
        %8125 = vmatprep.mubr.bf16.mxu0 %v7125
        %8126 = vmatmul.mubr.bf16.gmra.mrb[0].mxu0 %v7124
        %v8127 = vpop.f32.mrb[0].mxu0
        %v8128 = vadd.f32 %v7919, %v8127
        %v8129 = vpop.f32.mrb[0].mxu0
        %v8130 = vpop.f32.mrb[0].mxu0
        %v8131 = vadd.f32 %v7922, %v8130
        %v8132 = vpop.f32.mrb[0].mxu0
        %8133 = vmatprep.mubr.bf16.mxu0 %v7134
        %8134 = vmatmul.mubr.bf16.gmra.mrb[0].mxu0 %v7133
        %v8135 = vpop.f32.mrb[0].mxu0
        %v8136 = vpop.f32.mrb[0].mxu0
        %v8137 = vpop.f32.mrb[0].mxu0
        %v8138 = vadd.f32 %v7929, %v8137
        %v8139 = vpop.f32.mrb[0].mxu0
        %8140 = vmatprep.mubr.bf16.mxu0 %v7143
        %8141 = vmatmul.mubr.bf16.gmra.mrb[0].mxu0 %v7142
        %v8142 = vpop.f32.mrb[0].mxu0
        %v8143 = vadd.f32 %v7934, %v8142
        %v8144 = vpop.f32.mrb[0].mxu0
        %v8145 = vpop.f32.mrb[0].mxu0
        %v8146 = vpop.f32.mrb[0].mxu0
        %8147 = vmatprep.mubr.bf16.mxu0 %v7152
        %8148 = vmatmul.mubr.bf16.gmra.mrb[0].mxu0 %v7151
        %v8149 = vpop.f32.mrb[0].mxu0
        %v8150 = vadd.f32 %v7941, %v8149
        %v8151 = vpop.f32.mrb[0].mxu0
        %v8152 = vpop.f32.mrb[0].mxu0
        %v8153 = vadd.f32 %v7944, %v8152
        %v8154 = vpop.f32.mrb[0].mxu0
        %8155 = vmatprep.mubr.bf16.mxu0 %v7161
        %8156 = vmatmul.mubr.bf16.gmra.mrb[0].mxu0 %v7160
        %v8157 = vpop.f32.mrb[0].mxu0
        %v8158 = vpop.f32.mrb[0].mxu0
        %v8159 = vpop.f32.mrb[0].mxu0
        %v8160 = vadd.f32 %v7951, %v8159
        %v8161 = vpop.f32.mrb[0].mxu0
        %8162 = vmatprep.mubr.bf16.mxu0 %v7170
        %8163 = vmatmul.mubr.bf16.gmra.mrb[0].mxu0 %v7169
        %v8164 = vpop.f32.mrb[0].mxu0
        %v8165 = vadd.f32 %v7956, %v8164
        %v8166 = vpop.f32.mrb[0].mxu0
        %v8167 = vpop.f32.mrb[0].mxu0
        %v8168 = vpop.f32.mrb[0].mxu0
        %8169 = vdwg.mxu0
        %8170 = vmatprep.subr.bf16.mxu0 0
        %8171 = vmatpush1.bf16.msra.mxu0 %v7640
        %8172 = vmatprep.subr.bf16.mxu0 0
        %8173 = vmatpush1.bf16.msra.mxu0 %v7641
        %8174 = vmatprep.subr.bf16.mxu0 0
        %8175 = vmatpush1.bf16.msra.mxu0 %v7642
        %8176 = vmatprep.subr.bf16.mxu0 0
        %8177 = vmatpush1.bf16.msra.mxu0 %v7643
        %8178 = vmatprep.subr.bf16.mxu0 0
        %8179 = vmatpush1.bf16.msra.mxu0 %v7644
        %8180 = vmatprep.subr.bf16.mxu0 0
        %8181 = vmatpush1.bf16.msra.mxu0 %v7645
        %8182 = vmatprep.subr.bf16.mxu0 0
        %8183 = vmatpush1.bf16.msra.mxu0 %v7646
        %8184 = vmatprep.subr.bf16.mxu0 0
        %8185 = vmatpush1.bf16.msra.mxu0 %v7647
        %8186 = vmatprep.subr.bf16.mxu0 0
        %8187 = vmatpush1.bf16.msra.mxu0 %v7648
        %8188 = vmatprep.subr.bf16.mxu0 0
        %8189 = vmatpush1.bf16.msra.mxu0 %v7649
        %8190 = vmatprep.subr.bf16.mxu0 0
        %8191 = vmatpush1.bf16.msra.mxu0 %v7650
        %8192 = vmatprep.subr.bf16.mxu0 0
        %8193 = vmatpush1.bf16.msra.mxu0 %v7651
        %8194 = vmatprep.subr.bf16.mxu0 0
        %8195 = vmatpush1.bf16.msra.mxu0 %v7652
        %8196 = vmatprep.subr.bf16.mxu0 0
        %8197 = vmatpush1.bf16.msra.mxu0 %v7653
        %8198 = vmatprep.subr.bf16.mxu0 0
        %8199 = vmatpush1.bf16.msra.mxu0 %v7654
        %8200 = vmatprep.subr.bf16.mxu0 0
        %8201 = vmatpush1.bf16.msra.mxu0 %v7655
        %8202 = vmatprep.mubr.bf16.mxu0 %v6965
        %8203 = vmatmul.mubr.bf16.gmra.mrb[0].mxu0 %v6964
        %v8204 = vpop.f32.mrb[0].mxu0
        %v8205 = vadd.f32 %v7996, %v8204
        %v8206 = vpop.f32.mrb[0].mxu0
        %v8207 = vpop.f32.mrb[0].mxu0
        %v8208 = vadd.f32 %v7999, %v8207
        %v8209 = vpop.f32.mrb[0].mxu0
        %8210 = vmatprep.mubr.bf16.mxu0 %v6974
        %8211 = vmatmul.mubr.bf16.gmra.mrb[0].mxu0 %v6973
        %v8212 = vpop.f32.mrb[0].mxu0
        %v8213 = vpop.f32.mrb[0].mxu0
        %v8214 = vpop.f32.mrb[0].mxu0
        %v8215 = vadd.f32 %v8006, %v8214
        %v8216 = vpop.f32.mrb[0].mxu0
        %8217 = vmatprep.mubr.bf16.mxu0 %v6983
        %8218 = vmatmul.mubr.bf16.gmra.mrb[0].mxu0 %v6982
        %v8219 = vpop.f32.mrb[0].mxu0
        %v8220 = vadd.f32 %v8011, %v8219
        %v8221 = vpop.f32.mrb[0].mxu0
        %v8222 = vpop.f32.mrb[0].mxu0
        %v8223 = vpop.f32.mrb[0].mxu0
        %8224 = vmatprep.mubr.bf16.mxu0 %v6992
        %8225 = vmatmul.mubr.bf16.gmra.mrb[0].mxu0 %v6991
        %v8226 = vpop.f32.mrb[0].mxu0
        %v8227 = vadd.f32 %v8018, %v8226
        %v8228 = vpop.f32.mrb[0].mxu0
        %v8229 = vpop.f32.mrb[0].mxu0
        %v8230 = vadd.f32 %v8021, %v8229
        %v8231 = vpop.f32.mrb[0].mxu0
        %8232 = vmatprep.mubr.bf16.mxu0 %v7001
        %8233 = vmatmul.mubr.bf16.gmra.mrb[0].mxu0 %v7000
        %v8234 = vpop.f32.mrb[0].mxu0
        %v8235 = vpop.f32.mrb[0].mxu0
        %v8236 = vpop.f32.mrb[0].mxu0
        %v8237 = vadd.f32 %v8028, %v8236
        %v8238 = vpop.f32.mrb[0].mxu0
        %8239 = vmatprep.mubr.bf16.mxu0 %v7010
        %8240 = vmatmul.mubr.bf16.gmra.mrb[0].mxu0 %v7009
        %v8241 = vpop.f32.mrb[0].mxu0
        %v8242 = vadd.f32 %v8033, %v8241
        %v8243 = vpop.f32.mrb[0].mxu0
        %v8244 = vpop.f32.mrb[0].mxu0
        %v8245 = vpop.f32.mrb[0].mxu0
        %8246 = vmatprep.mubr.bf16.mxu0 %v7019
        %8247 = vmatmul.mubr.bf16.gmra.mrb[0].mxu0 %v7018
        %v8248 = vpop.f32.mrb[0].mxu0
        %v8249 = vadd.f32 %v8040, %v8248
        %v8250 = vpop.f32.mrb[0].mxu0
        %v8251 = vpop.f32.mrb[0].mxu0
        %v8252 = vadd.f32 %v8043, %v8251
        %v8253 = vpop.f32.mrb[0].mxu0
        %8254 = vmatprep.mubr.bf16.mxu0 %v7028
        %8255 = vmatmul.mubr.bf16.gmra.mrb[0].mxu0 %v7027
        %v8256 = vpop.f32.mrb[0].mxu0
        %v8257 = vpop.f32.mrb[0].mxu0
        %v8258 = vpop.f32.mrb[0].mxu0
        %v8259 = vadd.f32 %v8050, %v8258
        %v8260 = vpop.f32.mrb[0].mxu0
        %8261 = vmatprep.mubr.bf16.mxu0 %v7037
        %8262 = vmatmul.mubr.bf16.gmra.mrb[0].mxu0 %v7036
        %v8263 = vpop.f32.mrb[0].mxu0
        %v8264 = vadd.f32 %v8055, %v8263
        %v8265 = vpop.f32.mrb[0].mxu0
        %v8266 = vpop.f32.mrb[0].mxu0
        %v8267 = vpop.f32.mrb[0].mxu0
        %8268 = vmatprep.mubr.bf16.mxu0 %v7046
        %8269 = vmatmul.mubr.bf16.gmra.mrb[0].mxu0 %v7045
        %v8270 = vpop.f32.mrb[0].mxu0
        %v8271 = vadd.f32 %v8062, %v8270
        %v8272 = vpop.f32.mrb[0].mxu0
        %v8273 = vpop.f32.mrb[0].mxu0
        %v8274 = vadd.f32 %v8065, %v8273
        %v8275 = vpop.f32.mrb[0].mxu0
        %8276 = vmatprep.mubr.bf16.mxu0 %v7055
        %8277 = vmatmul.mubr.bf16.gmra.mrb[0].mxu0 %v7054
        %v8278 = vpop.f32.mrb[0].mxu0
        %v8279 = vpop.f32.mrb[0].mxu0
        %v8280 = vpop.f32.mrb[0].mxu0
        %v8281 = vadd.f32 %v8072, %v8280
        %v8282 = vpop.f32.mrb[0].mxu0
        %8283 = vmatprep.mubr.bf16.mxu0 %v7064
        %8284 = vmatmul.mubr.bf16.gmra.mrb[0].mxu0 %v7063
        %v8285 = vpop.f32.mrb[0].mxu0
        %v8286 = vadd.f32 %v8077, %v8285
        %v8287 = vpop.f32.mrb[0].mxu0
        %v8288 = vpop.f32.mrb[0].mxu0
        %v8289 = vpop.f32.mrb[0].mxu0
        %8290 = vmatprep.mubr.bf16.mxu0 %v7073
        %8291 = vmatmul.mubr.bf16.gmra.mrb[0].mxu0 %v7072
        %v8292 = vpop.f32.mrb[0].mxu0
        %v8293 = vadd.f32 %v8084, %v8292
        %v8294 = vpop.f32.mrb[0].mxu0
        %v8295 = vpop.f32.mrb[0].mxu0
        %v8296 = vadd.f32 %v8087, %v8295
        %v8297 = vpop.f32.mrb[0].mxu0
        %8298 = vmatprep.mubr.bf16.mxu0 %v7082
        %8299 = vmatmul.mubr.bf16.gmra.mrb[0].mxu0 %v7081
        %v8300 = vpop.f32.mrb[0].mxu0
        %v8301 = vpop.f32.mrb[0].mxu0
        %v8302 = vpop.f32.mrb[0].mxu0
        %v8303 = vadd.f32 %v8094, %v8302
        %v8304 = vpop.f32.mrb[0].mxu0
        %8305 = vmatprep.mubr.bf16.mxu0 %v7091
        %8306 = vmatmul.mubr.bf16.gmra.mrb[0].mxu0 %v7090
        %v8307 = vpop.f32.mrb[0].mxu0
        %v8308 = vadd.f32 %v8099, %v8307
        %v8309 = vpop.f32.mrb[0].mxu0
        %v8310 = vpop.f32.mrb[0].mxu0
        %v8311 = vpop.f32.mrb[0].mxu0
        %8312 = vmatprep.mubr.bf16.mxu0 %v7100
        %8313 = vmatmul.mubr.bf16.gmra.mrb[0].mxu0 %v7099
        %v8314 = vpop.f32.mrb[0].mxu0
        %v8315 = vadd.f32 %v8106, %v8314
        %v8316 = vpop.f32.mrb[0].mxu0
        %v8317 = vpop.f32.mrb[0].mxu0
        %v8318 = vadd.f32 %v8109, %v8317
        %v8319 = vpop.f32.mrb[0].mxu0
        %8320 = vmatprep.mubr.bf16.mxu0 %v7109
        %8321 = vmatmul.mubr.bf16.gmra.mrb[0].mxu0 %v7108
        %v8322 = vpop.f32.mrb[0].mxu0
        %v8323 = vpop.f32.mrb[0].mxu0
        %v8324 = vpop.f32.mrb[0].mxu0
        %v8325 = vadd.f32 %v8116, %v8324
        %v8326 = vpop.f32.mrb[0].mxu0
        %8327 = vmatprep.mubr.bf16.mxu0 %v7118
        %8328 = vmatmul.mubr.bf16.gmra.mrb[0].mxu0 %v7117
        %v8329 = vpop.f32.mrb[0].mxu0
        %v8330 = vadd.f32 %v8121, %v8329
        %v8331 = vpop.f32.mrb[0].mxu0
        %v8332 = vpop.f32.mrb[0].mxu0
        %v8333 = vpop.f32.mrb[0].mxu0
        %8334 = vmatprep.mubr.bf16.mxu0 %v7127
        %8335 = vmatmul.mubr.bf16.gmra.mrb[0].mxu0 %v7126
        %v8336 = vpop.f32.mrb[0].mxu0
        %v8337 = vadd.f32 %v8128, %v8336
        %v8338 = vpop.f32.mrb[0].mxu0
        %v8339 = vpop.f32.mrb[0].mxu0
        %v8340 = vadd.f32 %v8131, %v8339
        %v8341 = vpop.f32.mrb[0].mxu0
        %8342 = vmatprep.mubr.bf16.mxu0 %v7136
        %8343 = vmatmul.mubr.bf16.gmra.mrb[0].mxu0 %v7135
        %v8344 = vpop.f32.mrb[0].mxu0
        %v8345 = vpop.f32.mrb[0].mxu0
        %v8346 = vpop.f32.mrb[0].mxu0
        %v8347 = vadd.f32 %v8138, %v8346
        %v8348 = vpop.f32.mrb[0].mxu0
        %8349 = vmatprep.mubr.bf16.mxu0 %v7145
        %8350 = vmatmul.mubr.bf16.gmra.mrb[0].mxu0 %v7144
        %v8351 = vpop.f32.mrb[0].mxu0
        %v8352 = vadd.f32 %v8143, %v8351
        %v8353 = vpop.f32.mrb[0].mxu0
        %v8354 = vpop.f32.mrb[0].mxu0
        %v8355 = vpop.f32.mrb[0].mxu0
        %8356 = vmatprep.mubr.bf16.mxu0 %v7154
        %8357 = vmatmul.mubr.bf16.gmra.mrb[0].mxu0 %v7153
        %v8358 = vpop.f32.mrb[0].mxu0
        %v8359 = vadd.f32 %v8150, %v8358
        %v8360 = vpop.f32.mrb[0].mxu0
        %v8361 = vpop.f32.mrb[0].mxu0
        %v8362 = vadd.f32 %v8153, %v8361
        %v8363 = vpop.f32.mrb[0].mxu0
        %8364 = vmatprep.mubr.bf16.mxu0 %v7163
        %8365 = vmatmul.mubr.bf16.gmra.mrb[0].mxu0 %v7162
        %v8366 = vpop.f32.mrb[0].mxu0
        %v8367 = vpop.f32.mrb[0].mxu0
        %v8368 = vpop.f32.mrb[0].mxu0
        %v8369 = vadd.f32 %v8160, %v8368
        %v8370 = vpop.f32.mrb[0].mxu0
        %8371 = vmatprep.mubr.bf16.mxu0 %v7172
        %8372 = vmatmul.mubr.bf16.gmra.mrb[0].mxu0 %v7171
        %v8373 = vpop.f32.mrb[0].mxu0
        %v8374 = vadd.f32 %v8165, %v8373
        %v8375 = vpop.f32.mrb[0].mxu0
        %v8376 = vpop.f32.mrb[0].mxu0
        %v8377 = vpop.f32.mrb[0].mxu0
        %8378 = vdwg.mxu0
        %8379 = vmatprep.subr.bf16.mxu0 0
        %8380 = vmatpush1.bf16.msra.mxu0 %v7656
        %8381 = vmatprep.subr.bf16.mxu0 0
        %8382 = vmatpush1.bf16.msra.mxu0 %v7657
        %8383 = vmatprep.subr.bf16.mxu0 0
        %8384 = vmatpush1.bf16.msra.mxu0 %v7658
        %8385 = vmatprep.subr.bf16.mxu0 0
        %8386 = vmatpush1.bf16.msra.mxu0 %v7659
        %8387 = vmatprep.subr.bf16.mxu0 0
        %8388 = vmatpush1.bf16.msra.mxu0 %v7660
        %8389 = vmatprep.subr.bf16.mxu0 0
        %8390 = vmatpush1.bf16.msra.mxu0 %v7661
        %8391 = vmatprep.subr.bf16.mxu0 0
        %8392 = vmatpush1.bf16.msra.mxu0 %v7662
        %8393 = vmatprep.subr.bf16.mxu0 0
        %8394 = vmatpush1.bf16.msra.mxu0 %v7663
        %8395 = vmatprep.subr.bf16.mxu0 0
        %8396 = vmatpush1.bf16.msra.mxu0 %v7664
        %8397 = vmatprep.subr.bf16.mxu0 0
        %8398 = vmatpush1.bf16.msra.mxu0 %v7665
        %8399 = vmatprep.subr.bf16.mxu0 0
        %8400 = vmatpush1.bf16.msra.mxu0 %v7666
        %8401 = vmatprep.subr.bf16.mxu0 0
        %8402 = vmatpush1.bf16.msra.mxu0 %v7667
        %8403 = vmatprep.subr.bf16.mxu0 0
        %8404 = vmatpush1.bf16.msra.mxu0 %v7668
        %8405 = vmatprep.subr.bf16.mxu0 0
        %8406 = vmatpush1.bf16.msra.mxu0 %v7669
        %8407 = vmatprep.subr.bf16.mxu0 0
        %8408 = vmatpush1.bf16.msra.mxu0 %v7670
        %8409 = vmatprep.subr.bf16.mxu0 0
        %8410 = vmatpush1.bf16.msra.mxu0 %v7671
        %8411 = vmatprep.mubr.bf16.mxu0 %v6967
        %8412 = vmatmul.mubr.bf16.gmra.mrb[0].mxu0 %v6966
        %v8413 = vpop.f32.mrb[0].mxu0
        %v8414 = vadd.f32 %v8205, %v8413
        %v8415 = vpop.f32.mrb[0].mxu0
        %v8416 = vpop.f32.mrb[0].mxu0
        %v8417 = vadd.f32 %v8208, %v8416
        %v8418 = vpop.f32.mrb[0].mxu0
        %8419 = vmatprep.mubr.bf16.mxu0 %v6976
        %8420 = vmatmul.mubr.bf16.gmra.mrb[0].mxu0 %v6975
        %v8421 = vpop.f32.mrb[0].mxu0
        %v8422 = vpop.f32.mrb[0].mxu0
        %v8423 = vpop.f32.mrb[0].mxu0
        %v8424 = vadd.f32 %v8215, %v8423
        %v8425 = vpop.f32.mrb[0].mxu0
        %8426 = vmatprep.mubr.bf16.mxu0 %v6985
        %8427 = vmatmul.mubr.bf16.gmra.mrb[0].mxu0 %v6984
        %v8428 = vpop.f32.mrb[0].mxu0
        %v8429 = vadd.f32 %v8220, %v8428
        %v8430 = vpop.f32.mrb[0].mxu0
        %v8431 = vpop.f32.mrb[0].mxu0
        %v8432 = vpop.f32.mrb[0].mxu0
        %8433 = vmatprep.mubr.bf16.mxu0 %v6994
        %8434 = vmatmul.mubr.bf16.gmra.mrb[0].mxu0 %v6993
        %v8435 = vpop.f32.mrb[0].mxu0
        %v8436 = vadd.f32 %v8227, %v8435
        %v8437 = vpop.f32.mrb[0].mxu0
        %v8438 = vpop.f32.mrb[0].mxu0
        %v8439 = vadd.f32 %v8230, %v8438
        %v8440 = vpop.f32.mrb[0].mxu0
        %8441 = vmatprep.mubr.bf16.mxu0 %v7003
        %8442 = vmatmul.mubr.bf16.gmra.mrb[0].mxu0 %v7002
        %v8443 = vpop.f32.mrb[0].mxu0
        %v8444 = vpop.f32.mrb[0].mxu0
        %v8445 = vpop.f32.mrb[0].mxu0
        %v8446 = vadd.f32 %v8237, %v8445
        %v8447 = vpop.f32.mrb[0].mxu0
        %8448 = vmatprep.mubr.bf16.mxu0 %v7012
        %8449 = vmatmul.mubr.bf16.gmra.mrb[0].mxu0 %v7011
        %v8450 = vpop.f32.mrb[0].mxu0
        %v8451 = vadd.f32 %v8242, %v8450
        %v8452 = vpop.f32.mrb[0].mxu0
        %v8453 = vpop.f32.mrb[0].mxu0
        %v8454 = vpop.f32.mrb[0].mxu0
        %8455 = vmatprep.mubr.bf16.mxu0 %v7021
        %8456 = vmatmul.mubr.bf16.gmra.mrb[0].mxu0 %v7020
        %v8457 = vpop.f32.mrb[0].mxu0
        %v8458 = vadd.f32 %v8249, %v8457
        %v8459 = vpop.f32.mrb[0].mxu0
        %v8460 = vpop.f32.mrb[0].mxu0
        %v8461 = vadd.f32 %v8252, %v8460
        %v8462 = vpop.f32.mrb[0].mxu0
        %8463 = vmatprep.mubr.bf16.mxu0 %v7030
        %8464 = vmatmul.mubr.bf16.gmra.mrb[0].mxu0 %v7029
        %v8465 = vpop.f32.mrb[0].mxu0
        %v8466 = vpop.f32.mrb[0].mxu0
        %v8467 = vpop.f32.mrb[0].mxu0
        %v8468 = vadd.f32 %v8259, %v8467
        %v8469 = vpop.f32.mrb[0].mxu0
        %8470 = vmatprep.mubr.bf16.mxu0 %v7039
        %8471 = vmatmul.mubr.bf16.gmra.mrb[0].mxu0 %v7038
        %v8472 = vpop.f32.mrb[0].mxu0
        %v8473 = vadd.f32 %v8264, %v8472
        %v8474 = vpop.f32.mrb[0].mxu0
        %v8475 = vpop.f32.mrb[0].mxu0
        %v8476 = vpop.f32.mrb[0].mxu0
        %8477 = vmatprep.mubr.bf16.mxu0 %v7048
        %8478 = vmatmul.mubr.bf16.gmra.mrb[0].mxu0 %v7047
        %v8479 = vpop.f32.mrb[0].mxu0
        %v8480 = vadd.f32 %v8271, %v8479
        %v8481 = vpop.f32.mrb[0].mxu0
        %v8482 = vpop.f32.mrb[0].mxu0
        %v8483 = vadd.f32 %v8274, %v8482
        %v8484 = vpop.f32.mrb[0].mxu0
        %8485 = vmatprep.mubr.bf16.mxu0 %v7057
        %8486 = vmatmul.mubr.bf16.gmra.mrb[0].mxu0 %v7056
        %v8487 = vpop.f32.mrb[0].mxu0
        %v8488 = vpop.f32.mrb[0].mxu0
        %v8489 = vpop.f32.mrb[0].mxu0
        %v8490 = vadd.f32 %v8281, %v8489
        %v8491 = vpop.f32.mrb[0].mxu0
        %8492 = vmatprep.mubr.bf16.mxu0 %v7066
        %8493 = vmatmul.mubr.bf16.gmra.mrb[0].mxu0 %v7065
        %v8494 = vpop.f32.mrb[0].mxu0
        %v8495 = vadd.f32 %v8286, %v8494
        %v8496 = vpop.f32.mrb[0].mxu0
        %v8497 = vpop.f32.mrb[0].mxu0
        %v8498 = vpop.f32.mrb[0].mxu0
        %8499 = vmatprep.mubr.bf16.mxu0 %v7075
        %8500 = vmatmul.mubr.bf16.gmra.mrb[0].mxu0 %v7074
        %v8501 = vpop.f32.mrb[0].mxu0
        %v8502 = vadd.f32 %v8293, %v8501
        %v8503 = vpop.f32.mrb[0].mxu0
        %v8504 = vpop.f32.mrb[0].mxu0
        %v8505 = vadd.f32 %v8296, %v8504
        %v8506 = vpop.f32.mrb[0].mxu0
        %8507 = vmatprep.mubr.bf16.mxu0 %v7084
        %8508 = vmatmul.mubr.bf16.gmra.mrb[0].mxu0 %v7083
        %v8509 = vpop.f32.mrb[0].mxu0
        %v8510 = vpop.f32.mrb[0].mxu0
        %v8511 = vpop.f32.mrb[0].mxu0
        %v8512 = vadd.f32 %v8303, %v8511
        %v8513 = vpop.f32.mrb[0].mxu0
        %8514 = vmatprep.mubr.bf16.mxu0 %v7093
        %8515 = vmatmul.mubr.bf16.gmra.mrb[0].mxu0 %v7092
        %v8516 = vpop.f32.mrb[0].mxu0
        %v8517 = vadd.f32 %v8308, %v8516
        %v8518 = vpop.f32.mrb[0].mxu0
        %v8519 = vpop.f32.mrb[0].mxu0
        %v8520 = vpop.f32.mrb[0].mxu0
        %8521 = vmatprep.mubr.bf16.mxu0 %v7102
        %8522 = vmatmul.mubr.bf16.gmra.mrb[0].mxu0 %v7101
        %v8523 = vpop.f32.mrb[0].mxu0
        %v8524 = vadd.f32 %v8315, %v8523
        %v8525 = vpop.f32.mrb[0].mxu0
        %v8526 = vpop.f32.mrb[0].mxu0
        %v8527 = vadd.f32 %v8318, %v8526
        %v8528 = vpop.f32.mrb[0].mxu0
        %8529 = vmatprep.mubr.bf16.mxu0 %v7111
        %8530 = vmatmul.mubr.bf16.gmra.mrb[0].mxu0 %v7110
        %v8531 = vpop.f32.mrb[0].mxu0
        %v8532 = vpop.f32.mrb[0].mxu0
        %v8533 = vpop.f32.mrb[0].mxu0
        %v8534 = vadd.f32 %v8325, %v8533
        %v8535 = vpop.f32.mrb[0].mxu0
        %8536 = vmatprep.mubr.bf16.mxu0 %v7120
        %8537 = vmatmul.mubr.bf16.gmra.mrb[0].mxu0 %v7119
        %v8538 = vpop.f32.mrb[0].mxu0
        %v8539 = vadd.f32 %v8330, %v8538
        %v8540 = vpop.f32.mrb[0].mxu0
        %v8541 = vpop.f32.mrb[0].mxu0
        %v8542 = vpop.f32.mrb[0].mxu0
        %8543 = vmatprep.mubr.bf16.mxu0 %v7129
        %8544 = vmatmul.mubr.bf16.gmra.mrb[0].mxu0 %v7128
        %v8545 = vpop.f32.mrb[0].mxu0
        %v8546 = vadd.f32 %v8337, %v8545
        %v8547 = vpop.f32.mrb[0].mxu0
        %v8548 = vpop.f32.mrb[0].mxu0
        %v8549 = vadd.f32 %v8340, %v8548
        %v8550 = vpop.f32.mrb[0].mxu0
        %8551 = vmatprep.mubr.bf16.mxu0 %v7138
        %8552 = vmatmul.mubr.bf16.gmra.mrb[0].mxu0 %v7137
        %v8553 = vpop.f32.mrb[0].mxu0
        %v8554 = vpop.f32.mrb[0].mxu0
        %v8555 = vpop.f32.mrb[0].mxu0
        %v8556 = vadd.f32 %v8347, %v8555
        %v8557 = vpop.f32.mrb[0].mxu0
        %8558 = vmatprep.mubr.bf16.mxu0 %v7147
        %8559 = vmatmul.mubr.bf16.gmra.mrb[0].mxu0 %v7146
        %v8560 = vpop.f32.mrb[0].mxu0
        %v8561 = vadd.f32 %v8352, %v8560
        %v8562 = vpop.f32.mrb[0].mxu0
        %v8563 = vpop.f32.mrb[0].mxu0
        %v8564 = vpop.f32.mrb[0].mxu0
        %8565 = vmatprep.mubr.bf16.mxu0 %v7156
        %8566 = vmatmul.mubr.bf16.gmra.mrb[0].mxu0 %v7155
        %v8567 = vpop.f32.mrb[0].mxu0
        %v8568 = vadd.f32 %v8359, %v8567
        %v8569 = vpop.f32.mrb[0].mxu0
        %v8570 = vpop.f32.mrb[0].mxu0
        %v8571 = vadd.f32 %v8362, %v8570
        %v8572 = vpop.f32.mrb[0].mxu0
        %8573 = vmatprep.mubr.bf16.mxu0 %v7165
        %8574 = vmatmul.mubr.bf16.gmra.mrb[0].mxu0 %v7164
        %v8575 = vpop.f32.mrb[0].mxu0
        %v8576 = vpop.f32.mrb[0].mxu0
        %v8577 = vpop.f32.mrb[0].mxu0
        %v8578 = vadd.f32 %v8369, %v8577
        %v8579 = vpop.f32.mrb[0].mxu0
        %8580 = vmatprep.mubr.bf16.mxu0 %v7174
        %8581 = vmatmul.mubr.bf16.gmra.mrb[0].mxu0 %v7173
        %v8582 = vpop.f32.mrb[0].mxu0
        %v8583 = vadd.f32 %v8374, %v8582
        %v8584 = vpop.f32.mrb[0].mxu0
        %v8585 = vpop.f32.mrb[0].mxu0
        %v8586 = vpop.f32.mrb[0].mxu0
        %8587 = vdwg.mxu0
        %8588 = vmatprep.subr.bf16.mxu0 0
        %8589 = vmatpush1.bf16.msra.mxu0 %v7672
        %8590 = vmatprep.subr.bf16.mxu0 0
        %8591 = vmatpush1.bf16.msra.mxu0 %v7673
        %8592 = vmatprep.subr.bf16.mxu0 0
        %8593 = vmatpush1.bf16.msra.mxu0 %v7674
        %8594 = vmatprep.subr.bf16.mxu0 0
        %8595 = vmatpush1.bf16.msra.mxu0 %v7675
        %8596 = vmatprep.subr.bf16.mxu0 0
        %8597 = vmatpush1.bf16.msra.mxu0 %v7676
        %8598 = vmatprep.subr.bf16.mxu0 0
        %8599 = vmatpush1.bf16.msra.mxu0 %v7677
        %8600 = vmatprep.subr.bf16.mxu0 0
        %8601 = vmatpush1.bf16.msra.mxu0 %v7678
        %8602 = vmatprep.subr.bf16.mxu0 0
        %8603 = vmatpush1.bf16.msra.mxu0 %v7679
        %8604 = vmatprep.subr.bf16.mxu0 0
        %8605 = vmatpush1.bf16.msra.mxu0 0
        %8606 = vmatprep.subr.bf16.mxu0 0
        %8607 = vmatpush1.bf16.msra.mxu0 0
        %8608 = vmatprep.subr.bf16.mxu0 0
        %8609 = vmatpush1.bf16.msra.mxu0 0
        %8610 = vmatprep.subr.bf16.mxu0 0
        %8611 = vmatpush1.bf16.msra.mxu0 0
        %8612 = vmatprep.subr.bf16.mxu0 0
        %8613 = vmatpush1.bf16.msra.mxu0 0
        %8614 = vmatprep.subr.bf16.mxu0 0
        %8615 = vmatpush1.bf16.msra.mxu0 0
        %8616 = vmatprep.subr.bf16.mxu0 0
        %8617 = vmatpush1.bf16.msra.mxu0 0
        %8618 = vmatprep.subr.bf16.mxu0 0
        %8619 = vmatpush1.bf16.msra.mxu0 0
        %8620 = vmatprep.mubr.bf16.mxu0 0
        %8621 = vmatmul.mubr.bf16.gmra.mrb[0].mxu0 %v6968
        %v8622 = vpop.f32.mrb[0].mxu0
        %v8623 = vadd.f32 %v8414, %v8622
        %v8624 = vpop.f32.mrb[0].mxu0
        %v8625 = vpop.f32.mrb[0].mxu0
        %v8626 = vadd.f32 %v8417, %v8625
        %v8627 = vpop.f32.mrb[0].mxu0
        %8628 = vmatprep.mubr.bf16.mxu0 0
        %8629 = vmatmul.mubr.bf16.gmra.mrb[0].mxu0 %v6977
        %v8630 = vpop.f32.mrb[0].mxu0
        %v8631 = vpop.f32.mrb[0].mxu0
        %v8632 = vpop.f32.mrb[0].mxu0
        %v8633 = vadd.f32 %v8424, %v8632
        %v8634 = vpop.f32.mrb[0].mxu0
        %8635 = vmatprep.mubr.bf16.mxu0 0
        %8636 = vmatmul.mubr.bf16.gmra.mrb[0].mxu0 %v6986
        %v8637 = vpop.f32.mrb[0].mxu0
        %v8638 = vadd.f32 %v8429, %v8637
        %v8639 = vpop.f32.mrb[0].mxu0
        %v8640 = vpop.f32.mrb[0].mxu0
        %v8641 = vpop.f32.mrb[0].mxu0
        %8642 = vmatprep.mubr.bf16.mxu0 0
        %8643 = vmatmul.mubr.bf16.gmra.mrb[0].mxu0 %v6995
        %v8644 = vpop.f32.mrb[0].mxu0
        %v8645 = vadd.f32 %v8436, %v8644
        %v8646 = vpop.f32.mrb[0].mxu0
        %v8647 = vpop.f32.mrb[0].mxu0
        %v8648 = vadd.f32 %v8439, %v8647
        %v8649 = vpop.f32.mrb[0].mxu0
        %8650 = vmatprep.mubr.bf16.mxu0 0
        %8651 = vmatmul.mubr.bf16.gmra.mrb[0].mxu0 %v7004
        %v8652 = vpop.f32.mrb[0].mxu0
        %v8653 = vpop.f32.mrb[0].mxu0
        %v8654 = vpop.f32.mrb[0].mxu0
        %v8655 = vadd.f32 %v8446, %v8654
        %v8656 = vpop.f32.mrb[0].mxu0
        %8657 = vmatprep.mubr.bf16.mxu0 0
        %8658 = vmatmul.mubr.bf16.gmra.mrb[0].mxu0 %v7013
        %v8659 = vpop.f32.mrb[0].mxu0
        %v8660 = vadd.f32 %v8451, %v8659
        %v8661 = vpop.f32.mrb[0].mxu0
        %v8662 = vpop.f32.mrb[0].mxu0
        %v8663 = vpop.f32.mrb[0].mxu0
        %8664 = vmatprep.mubr.bf16.mxu0 0
        %8665 = vmatmul.mubr.bf16.gmra.mrb[0].mxu0 %v7022
        %v8666 = vpop.f32.mrb[0].mxu0
        %v8667 = vadd.f32 %v8458, %v8666
        %v8668 = vpop.f32.mrb[0].mxu0
        %v8669 = vpop.f32.mrb[0].mxu0
        %v8670 = vadd.f32 %v8461, %v8669
        %v8671 = vpop.f32.mrb[0].mxu0
        %8672 = vmatprep.mubr.bf16.mxu0 0
        %8673 = vmatmul.mubr.bf16.gmra.mrb[0].mxu0 %v7031
        %v8674 = vpop.f32.mrb[0].mxu0
        %v8675 = vpop.f32.mrb[0].mxu0
        %v8676 = vpop.f32.mrb[0].mxu0
        %v8677 = vadd.f32 %v8468, %v8676
        %v8678 = vpop.f32.mrb[0].mxu0
        %8679 = vmatprep.mubr.bf16.mxu0 0
        %8680 = vmatmul.mubr.bf16.gmra.mrb[0].mxu0 %v7040
        %v8681 = vpop.f32.mrb[0].mxu0
        %v8682 = vadd.f32 %v8473, %v8681
        %v8683 = vpop.f32.mrb[0].mxu0
        %v8684 = vpop.f32.mrb[0].mxu0
        %v8685 = vpop.f32.mrb[0].mxu0
        %8686 = vmatprep.mubr.bf16.mxu0 0
        %8687 = vmatmul.mubr.bf16.gmra.mrb[0].mxu0 %v7049
        %v8688 = vpop.f32.mrb[0].mxu0
        %v8689 = vadd.f32 %v8480, %v8688
        %v8690 = vpop.f32.mrb[0].mxu0
        %v8691 = vpop.f32.mrb[0].mxu0
        %v8692 = vadd.f32 %v8483, %v8691
        %v8693 = vpop.f32.mrb[0].mxu0
        %8694 = vmatprep.mubr.bf16.mxu0 0
        %8695 = vmatmul.mubr.bf16.gmra.mrb[0].mxu0 %v7058
        %v8696 = vpop.f32.mrb[0].mxu0
        %v8697 = vpop.f32.mrb[0].mxu0
        %v8698 = vpop.f32.mrb[0].mxu0
        %v8699 = vadd.f32 %v8490, %v8698
        %v8700 = vpop.f32.mrb[0].mxu0
        %8701 = vmatprep.mubr.bf16.mxu0 0
        %8702 = vmatmul.mubr.bf16.gmra.mrb[0].mxu0 %v7067
        %v8703 = vpop.f32.mrb[0].mxu0
        %v8704 = vadd.f32 %v8495, %v8703
        %v8705 = vpop.f32.mrb[0].mxu0
        %v8706 = vpop.f32.mrb[0].mxu0
        %v8707 = vpop.f32.mrb[0].mxu0
        %8708 = vmatprep.mubr.bf16.mxu0 0
        %8709 = vmatmul.mubr.bf16.gmra.mrb[0].mxu0 %v7076
        %v8710 = vpop.f32.mrb[0].mxu0
        %v8711 = vadd.f32 %v8502, %v8710
        %v8712 = vpop.f32.mrb[0].mxu0
        %v8713 = vpop.f32.mrb[0].mxu0
        %v8714 = vadd.f32 %v8505, %v8713
        %v8715 = vpop.f32.mrb[0].mxu0
        %8716 = vmatprep.mubr.bf16.mxu0 0
        %8717 = vmatmul.mubr.bf16.gmra.mrb[0].mxu0 %v7085
        %v8718 = vpop.f32.mrb[0].mxu0
        %v8719 = vpop.f32.mrb[0].mxu0
        %v8720 = vpop.f32.mrb[0].mxu0
        %v8721 = vadd.f32 %v8512, %v8720
        %v8722 = vpop.f32.mrb[0].mxu0
        %8723 = vmatprep.mubr.bf16.mxu0 0
        %8724 = vmatmul.mubr.bf16.gmra.mrb[0].mxu0 %v7094
        %v8725 = vpop.f32.mrb[0].mxu0
        %v8726 = vadd.f32 %v8517, %v8725
        %v8727 = vpop.f32.mrb[0].mxu0
        %v8728 = vpop.f32.mrb[0].mxu0
        %v8729 = vpop.f32.mrb[0].mxu0
        %8730 = vmatprep.mubr.bf16.mxu0 0
        %8731 = vmatmul.mubr.bf16.gmra.mrb[0].mxu0 %v7103
        %v8732 = vpop.f32.mrb[0].mxu0
        %v8733 = vadd.f32 %v8524, %v8732
        %v8734 = vpop.f32.mrb[0].mxu0
        %v8735 = vpop.f32.mrb[0].mxu0
        %v8736 = vadd.f32 %v8527, %v8735
        %v8737 = vpop.f32.mrb[0].mxu0
        %8738 = vmatprep.mubr.bf16.mxu0 0
        %8739 = vmatmul.mubr.bf16.gmra.mrb[0].mxu0 %v7112
        %v8740 = vpop.f32.mrb[0].mxu0
        %v8741 = vpop.f32.mrb[0].mxu0
        %v8742 = vpop.f32.mrb[0].mxu0
        %v8743 = vadd.f32 %v8534, %v8742
        %v8744 = vpop.f32.mrb[0].mxu0
        %8745 = vmatprep.mubr.bf16.mxu0 0
        %8746 = vmatmul.mubr.bf16.gmra.mrb[0].mxu0 %v7121
        %v8747 = vpop.f32.mrb[0].mxu0
        %v8748 = vadd.f32 %v8539, %v8747
        %v8749 = vpop.f32.mrb[0].mxu0
        %v8750 = vpop.f32.mrb[0].mxu0
        %v8751 = vpop.f32.mrb[0].mxu0
        %8752 = vmatprep.mubr.bf16.mxu0 0
        %8753 = vmatmul.mubr.bf16.gmra.mrb[0].mxu0 %v7130
        %v8754 = vpop.f32.mrb[0].mxu0
        %v8755 = vadd.f32 %v8546, %v8754
        %v8756 = vpop.f32.mrb[0].mxu0
        %v8757 = vpop.f32.mrb[0].mxu0
        %v8758 = vadd.f32 %v8549, %v8757
        %v8759 = vpop.f32.mrb[0].mxu0
        %8760 = vmatprep.mubr.bf16.mxu0 0
        %8761 = vmatmul.mubr.bf16.gmra.mrb[0].mxu0 %v7139
        %v8762 = vpop.f32.mrb[0].mxu0
        %v8763 = vpop.f32.mrb[0].mxu0
        %v8764 = vpop.f32.mrb[0].mxu0
        %v8765 = vadd.f32 %v8556, %v8764
        %v8766 = vpop.f32.mrb[0].mxu0
        %8767 = vmatprep.mubr.bf16.mxu0 0
        %8768 = vmatmul.mubr.bf16.gmra.mrb[0].mxu0 %v7148
        %v8769 = vpop.f32.mrb[0].mxu0
        %v8770 = vadd.f32 %v8561, %v8769
        %v8771 = vpop.f32.mrb[0].mxu0
        %v8772 = vpop.f32.mrb[0].mxu0
        %v8773 = vpop.f32.mrb[0].mxu0
        %8774 = vmatprep.mubr.bf16.mxu0 0
        %8775 = vmatmul.mubr.bf16.gmra.mrb[0].mxu0 %v7157
        %v8776 = vpop.f32.mrb[0].mxu0
        %v8777 = vadd.f32 %v8568, %v8776
        %v8778 = vpop.f32.mrb[0].mxu0
        %v8779 = vpop.f32.mrb[0].mxu0
        %v8780 = vadd.f32 %v8571, %v8779
        %v8781 = vpop.f32.mrb[0].mxu0
        %8782 = vmatprep.mubr.bf16.mxu0 0
        %8783 = vmatmul.mubr.bf16.gmra.mrb[0].mxu0 %v7166
        %v8784 = vpop.f32.mrb[0].mxu0
        %v8785 = vpop.f32.mrb[0].mxu0
        %v8786 = vpop.f32.mrb[0].mxu0
        %v8787 = vadd.f32 %v8578, %v8786
        %v8788 = vpop.f32.mrb[0].mxu0
        %8789 = vmatprep.mubr.bf16.mxu0 0
        %8790 = vmatmul.mubr.bf16.gmra.mrb[0].mxu0 %v7175
        %v8791 = vpop.f32.mrb[0].mxu0
        %v8792 = vadd.f32 %v8583, %v8791
        %v8793 = vpop.f32.mrb[0].mxu0
        %v8794 = vpop.f32.mrb[0].mxu0
        %v8795 = vpop.f32.mrb[0].mxu0
        %8796 = vdwg.mxu0
        %v8797 = vld [vmem:[%s5] sm:$0x1]
        %v8799 = vlaneseq
        %v8800 = vshrl.u32 %v8799, 7
        %v8801 = vsub.s32 0, %v8800
        %v8802 = vrot.slane %v8797, %v8801
        %v8804 = vmul.f32 %v8623, %v8802
        %v8805 = vmul.f32 %v8626, %v8802
        %v8806 = vmul.f32 %v8633, %v8802
        %v8807 = vmul.f32 %v8638, %v8802
        %v8808 = vmul.f32 %v8645, %v8802
        %v8809 = vmul.f32 %v8648, %v8802
        %v8810 = vmul.f32 %v8655, %v8802
        %v8811 = vmul.f32 %v8660, %v8802
        %v8812 = vmul.f32 %v8667, %v8802
        %v8813 = vmul.f32 %v8670, %v8802
        %v8814 = vmul.f32 %v8677, %v8802
        %v8815 = vmul.f32 %v8682, %v8802
        %v8816 = vmul.f32 %v8689, %v8802
        %v8817 = vmul.f32 %v8692, %v8802
        %v8818 = vmul.f32 %v8699, %v8802
        %v8819 = vmul.f32 %v8704, %v8802
        %v8820 = vmul.f32 %v8711, %v8802
        %v8821 = vmul.f32 %v8714, %v8802
        %v8822 = vmul.f32 %v8721, %v8802
        %v8823 = vmul.f32 %v8726, %v8802
        %v8824 = vmul.f32 %v8733, %v8802
        %v8825 = vmul.f32 %v8736, %v8802
        %v8826 = vmul.f32 %v8743, %v8802
        %v8827 = vmul.f32 %v8748, %v8802
        %v8828 = vmul.f32 %v8755, %v8802
        %v8829 = vmul.f32 %v8758, %v8802
        %v8830 = vmul.f32 %v8765, %v8802
        %v8831 = vmul.f32 %v8770, %v8802
        %v8832 = vmul.f32 %v8777, %v8802
        %v8833 = vmul.f32 %v8780, %v8802
        %v8834 = vmul.f32 %v8787, %v8802
        %v8835 = vmul.f32 %v8792, %v8802
        %v8836 = vld [vmem:[%s6] sm:$0x1]
        %v8838 = vlaneseq
        %v8839 = vshrl.u32 %v8838, 7
        %v8840 = vsub.s32 0, %v8839
        %v8841 = vrot.slane %v8836, %v8840
        %v8843 = vadd.f32 %v8804, %v8841
        %v8844 = vadd.f32 %v8805, %v8841
        %v8845 = vadd.f32 %v8806, %v8841
        %v8846 = vadd.f32 %v8807, %v8841
        %v8847 = vadd.f32 %v8808, %v8841
        %v8848 = vadd.f32 %v8809, %v8841
        %v8849 = vadd.f32 %v8810, %v8841
        %v8850 = vadd.f32 %v8811, %v8841
        %v8851 = vadd.f32 %v8812, %v8841
        %v8852 = vadd.f32 %v8813, %v8841
        %v8853 = vadd.f32 %v8814, %v8841
        %v8854 = vadd.f32 %v8815, %v8841
        %v8855 = vadd.f32 %v8816, %v8841
        %v8856 = vadd.f32 %v8817, %v8841
        %v8857 = vadd.f32 %v8818, %v8841
        %v8858 = vadd.f32 %v8819, %v8841
        %v8859 = vadd.f32 %v8820, %v8841
        %v8860 = vadd.f32 %v8821, %v8841
        %v8861 = vadd.f32 %v8822, %v8841
        %v8862 = vadd.f32 %v8823, %v8841
        %v8863 = vadd.f32 %v8824, %v8841
        %v8864 = vadd.f32 %v8825, %v8841
        %v8865 = vadd.f32 %v8826, %v8841
        %v8866 = vadd.f32 %v8827, %v8841
        %v8867 = vadd.f32 %v8828, %v8841
        %v8868 = vadd.f32 %v8829, %v8841
        %v8869 = vadd.f32 %v8830, %v8841
        %v8870 = vadd.f32 %v8831, %v8841
        %v8871 = vadd.f32 %v8832, %v8841
        %v8872 = vadd.f32 %v8833, %v8841
        %v8873 = vadd.f32 %v8834, %v8841
        %v8874 = vadd.f32 %v8835, %v8841
        %v8875 = vunpack.c.l.bf16 %v342
        %v8876 = vunpack.c.l.bf16 %v343
        %v8877 = vunpack.c.l.bf16 %v344
        %v8878 = vunpack.c.l.bf16 %v345
        %v8879 = vunpack.c.l.bf16 %v346
        %v8880 = vunpack.c.l.bf16 %v347
        %v8881 = vunpack.c.l.bf16 %v348
        %v8882 = vunpack.c.l.bf16 %v349
        %v8883 = vunpack.c.l.bf16 %v350
        %v8884 = vunpack.c.l.bf16 %v351
        %v8885 = vunpack.c.l.bf16 %v352
        %v8886 = vunpack.c.l.bf16 %v353
        %v8887 = vunpack.c.l.bf16 %v354
        %v8888 = vunpack.c.l.bf16 %v355
        %v8889 = vunpack.c.l.bf16 %v356
        %v8890 = vunpack.c.l.bf16 %v357
        %v8891 = vunpack.c.l.bf16 %v358
        %v8892 = vunpack.c.l.bf16 %v359
        %v8893 = vunpack.c.l.bf16 %v360
        %v8894 = vunpack.c.l.bf16 %v361
        %v8895 = vunpack.c.l.bf16 %v362
        %v8896 = vunpack.c.l.bf16 %v363
        %v8897 = vunpack.c.l.bf16 %v364
        %v8898 = vunpack.c.l.bf16 %v365
        %v8899 = vunpack.c.l.bf16 %v366
        %v8900 = vunpack.c.l.bf16 %v367
        %v8901 = vunpack.c.l.bf16 %v368
        %v8902 = vunpack.c.l.bf16 %v369
        %v8903 = vunpack.c.l.bf16 %v370
        %v8904 = vunpack.c.l.bf16 %v371
        %v8905 = vunpack.c.l.bf16 %v372
        %v8906 = vunpack.c.l.bf16 %v373
        %v8907 = vadd.f32 %v8843, %v8875
        %v8908 = vadd.f32 %v8844, %v8876
        %v8909 = vadd.f32 %v8845, %v8877
        %v8910 = vadd.f32 %v8846, %v8878
        %v8911 = vadd.f32 %v8847, %v8879
        %v8912 = vadd.f32 %v8848, %v8880
        %v8913 = vadd.f32 %v8849, %v8881
        %v8914 = vadd.f32 %v8850, %v8882
        %v8915 = vadd.f32 %v8851, %v8883
        %v8916 = vadd.f32 %v8852, %v8884
        %v8917 = vadd.f32 %v8853, %v8885
        %v8918 = vadd.f32 %v8854, %v8886
        %v8919 = vadd.f32 %v8855, %v8887
        %v8920 = vadd.f32 %v8856, %v8888
        %v8921 = vadd.f32 %v8857, %v8889
        %v8922 = vadd.f32 %v8858, %v8890
        %v8923 = vadd.f32 %v8859, %v8891
        %v8924 = vadd.f32 %v8860, %v8892
        %v8925 = vadd.f32 %v8861, %v8893
        %v8926 = vadd.f32 %v8862, %v8894
        %v8927 = vadd.f32 %v8863, %v8895
        %v8928 = vadd.f32 %v8864, %v8896
        %v8929 = vadd.f32 %v8865, %v8897
        %v8930 = vadd.f32 %v8866, %v8898
        %v8931 = vadd.f32 %v8867, %v8899
        %v8932 = vadd.f32 %v8868, %v8900
        %v8933 = vadd.f32 %v8869, %v8901
        %v8934 = vadd.f32 %v8870, %v8902
        %v8935 = vadd.f32 %v8871, %v8903
        %v8936 = vadd.f32 %v8872, %v8904
        %v8937 = vadd.f32 %v8873, %v8905
        %v8938 = vadd.f32 %v8874, %v8906
        %v8939 = vpack.c.bf16 %v8908, %v8907
        %v8940 = vpack.c.bf16 %v8910, %v8909
        %v8941 = vpack.c.bf16 %v8912, %v8911
        %v8942 = vpack.c.bf16 %v8914, %v8913
        %v8943 = vpack.c.bf16 %v8916, %v8915
        %v8944 = vpack.c.bf16 %v8918, %v8917
        %v8945 = vpack.c.bf16 %v8920, %v8919
        %v8946 = vpack.c.bf16 %v8922, %v8921
        %v8947 = vpack.c.bf16 %v8924, %v8923
        %v8948 = vpack.c.bf16 %v8926, %v8925
        %v8949 = vpack.c.bf16 %v8928, %v8927
        %v8950 = vpack.c.bf16 %v8930, %v8929
        %v8951 = vpack.c.bf16 %v8932, %v8931
        %v8952 = vpack.c.bf16 %v8934, %v8933
        %v8953 = vpack.c.bf16 %v8936, %v8935
        %v8954 = vpack.c.bf16 %v8938, %v8937
        %v8971 = vunpack.c.l.b16 %v8939
        %v8972 = vunpack.c.h.b16 %v8939
        %v8973 = vunpack.c.l.b16 %v8940
        %v8974 = vunpack.c.h.b16 %v8940
        %v8975 = vunpack.c.l.b16 %v8941
        %v8976 = vunpack.c.h.b16 %v8941
        %v8977 = vunpack.c.l.b16 %v8942
        %v8978 = vunpack.c.h.b16 %v8942
        %v8979 = vunpack.c.l.b16 %v8943
        %v8980 = vunpack.c.h.b16 %v8943
        %v8981 = vunpack.c.l.b16 %v8944
        %v8982 = vunpack.c.h.b16 %v8944
        %v8983 = vunpack.c.l.b16 %v8945
        %v8984 = vunpack.c.h.b16 %v8945
        %v8985 = vunpack.c.l.b16 %v8946
        %v8986 = vunpack.c.h.b16 %v8946
        %v8987 = vunpack.c.l.b16 %v8947
        %v8988 = vunpack.c.h.b16 %v8947
        %v8989 = vunpack.c.l.b16 %v8948
        %v8990 = vunpack.c.h.b16 %v8948
        %v8991 = vunpack.c.l.b16 %v8949
        %v8992 = vunpack.c.h.b16 %v8949
        %v8993 = vunpack.c.l.b16 %v8950
        %v8994 = vunpack.c.h.b16 %v8950
        %v8995 = vunpack.c.l.b16 %v8951
        %v8996 = vunpack.c.h.b16 %v8951
        %v8997 = vunpack.c.l.b16 %v8952
        %v8998 = vunpack.c.h.b16 %v8952
        %v8999 = vunpack.c.l.b16 %v8953
        %v9000 = vunpack.c.h.b16 %v8953
        %v9001 = vunpack.c.l.b16 %v8954
        %v9002 = vunpack.c.h.b16 %v8954
        %v9003 = vpack.c.b16 %v8971, %v8971
        %v9004 = vpack.c.b16 %v8972, %v8972
        %v9005 = vpack.c.b16 %v8973, %v8973
        %v9006 = vpack.c.b16 %v8974, %v8974
        %v9007 = vpack.c.b16 %v8975, %v8975
        %v9008 = vpack.c.b16 %v8976, %v8976
        %v9009 = vpack.c.b16 %v8977, %v8977
        %v9010 = vpack.c.b16 %v8978, %v8978
        %v9011 = vpack.c.b16 %v8979, %v8979
        %v9012 = vpack.c.b16 %v8980, %v8980
        %v9013 = vpack.c.b16 %v8981, %v8981
        %v9014 = vpack.c.b16 %v8982, %v8982
        %v9015 = vpack.c.b16 %v8983, %v8983
        %v9016 = vpack.c.b16 %v8984, %v8984
        %v9017 = vpack.c.b16 %v8985, %v8985
        %v9018 = vpack.c.b16 %v8986, %v8986
        %v9019 = vpack.c.b16 %v8987, %v8987
        %v9020 = vpack.c.b16 %v8988, %v8988
        %v9021 = vpack.c.b16 %v8989, %v8989
        %v9022 = vpack.c.b16 %v8990, %v8990
        %v9023 = vpack.c.b16 %v8991, %v8991
        %v9024 = vpack.c.b16 %v8992, %v8992
        %v9025 = vpack.c.b16 %v8993, %v8993
        %v9026 = vpack.c.b16 %v8994, %v8994
        %v9027 = vpack.c.b16 %v8995, %v8995
        %v9028 = vpack.c.b16 %v8996, %v8996
        %v9029 = vpack.c.b16 %v8997, %v8997
        %v9030 = vpack.c.b16 %v8998, %v8998
        %v9031 = vpack.c.b16 %v8999, %v8999
        %v9032 = vpack.c.b16 %v9000, %v9000
        %v9033 = vpack.c.b16 %v9001, %v9001
        %v9034 = vpack.c.b16 %v9002, %v9002
        %9067 = vst [vmem:[%s325] sm:$0xf] %v9003
        %9068 = vst [vmem:[%s325 + $0x4] sm:$0xf] %v9004
        %9069 = vst [vmem:[%s325 + $0x8] sm:$0xf] %v9005
        %9070 = vst [vmem:[%s325 + $0xc] sm:$0xf] %v9006
        %9071 = vst [vmem:[%s325 + $0x10] sm:$0xf] %v9007
        %9072 = vst [vmem:[%s325 + $0x14] sm:$0xf] %v9008
        %9073 = vst [vmem:[%s325 + $0x18] sm:$0xf] %v9009
        %9074 = vst [vmem:[%s325 + $0x1c] sm:$0xf] %v9010
        %9075 = vst [vmem:[%s325 + $0x20] sm:$0xf] %v9011
        %9076 = vst [vmem:[%s325 + $0x24] sm:$0xf] %v9012
        %9077 = vst [vmem:[%s325 + $0x28] sm:$0xf] %v9013
        %9078 = vst [vmem:[%s325 + $0x2c] sm:$0xf] %v9014
        %9079 = vst [vmem:[%s325 + $0x30] sm:$0xf] %v9015
        %9080 = vst [vmem:[%s325 + $0x34] sm:$0xf] %v9016
        %9081 = vst [vmem:[%s325 + $0x38] sm:$0xf] %v9017
        %9082 = vst [vmem:[%s325 + $0x3c] sm:$0xf] %v9018
        %9083 = vst [vmem:[%s325 + $0x40] sm:$0xf] %v9019
        %9084 = vst [vmem:[%s325 + $0x44] sm:$0xf] %v9020
        %9085 = vst [vmem:[%s325 + $0x48] sm:$0xf] %v9021
        %9086 = vst [vmem:[%s325 + $0x4c] sm:$0xf] %v9022
        %9087 = vst [vmem:[%s325 + $0x50] sm:$0xf] %v9023
        %9088 = vst [vmem:[%s325 + $0x54] sm:$0xf] %v9024
        %9089 = vst [vmem:[%s325 + $0x58] sm:$0xf] %v9025
        %9090 = vst [vmem:[%s325 + $0x5c] sm:$0xf] %v9026
        %9091 = vst [vmem:[%s325 + $0x60] sm:$0xf] %v9027
        %9092 = vst [vmem:[%s325 + $0x64] sm:$0xf] %v9028
        %9093 = vst [vmem:[%s325 + $0x68] sm:$0xf] %v9029
        %9094 = vst [vmem:[%s325 + $0x6c] sm:$0xf] %v9030
        %9095 = vst [vmem:[%s325 + $0x70] sm:$0xf] %v9031
        %9096 = vst [vmem:[%s325 + $0x74] sm:$0xf] %v9032
        %9097 = vst [vmem:[%s325 + $0x78] sm:$0xf] %v9033
        %9098 = vst [vmem:[%s325 + $0x7c] sm:$0xf] %v9034
        %s9099 = sand.u32 %s185, 1
        %s9100 = scalar_lea.sflag [#allocation7], %s9099
        %s9101 = sand.u32 %s185, 1
        %s9102 = smul.addr %s9101, 128
        %s9103 = scalar_lea.vmem [#allocation11], %s9102
        // Predicated region
        $region61: #{tpu_custom_call.1} parent=47 // pred_check
          %p9104 = pneg %p195
        $region62: #{tpu_custom_call.1} parent=47 // pred_check_branch
          %9106 = sbr.rel (%p9104) target = $region64
        $region63: #{tpu_custom_call.1} parent=47 // pred_region
          %s9108 = ssub.s32 2048, 2048
          %9109 = vsyncadd %s9100, %s9108
          %s9110 = smul.addr %s25, 32
          %s9111 = smul.addr %s9110, 64
          %s9112 = scalar_lea.hbm %s7, %s9111
          %s9113 = sshll.u32 %s9103, 4
          %s9114 = int_to_ptr.vmem [resolvable:$true] %s9113
          %9119 = dma.vmem_to_hbm [thread:$0]  %s9114, 2048, %s9112, %s9100, 64, 64, 4
        $region64: #{tpu_custom_call.1} parent=47 // pred_fallthru
          _
      $region48: #{tpu_custom_call.1} parent=5 // pred_fallthru
        _
      %p9120 = scmp.le.s32.totalorder 2, %s20
      // Predicated region
      $region65: #{tpu_custom_call.1} parent=5 // pred_check
        %p9121 = pneg %p9120
      $region66: #{tpu_custom_call.1} parent=5 // pred_check_branch
        %9123 = sbr.rel (%p9121) target = $region68
      $region67: #{tpu_custom_call.1} parent=5 // pred_region
        %s9124 = ssub.s32 %s20, 2
        // Predicated region
        $region69: #{tpu_custom_call.1} parent=67 // pred_check
          %p9125 = pneg %p201
        $region70: #{tpu_custom_call.1} parent=67 // pred_check_branch
          %9127 = sbr.rel (%p9125) target = $region72
        $region71: #{tpu_custom_call.1} parent=67 // pred_region
          %s9128 = sand.u32 %s186, 1
          %s9129 = scalar_lea.sflag [#allocation7], %s9128
          %s9130 = sand.u32 %s186, 1
          %s9131 = smul.addr %s9130, 128
          %s9132 = scalar_lea.vmem [#allocation11], %s9131
          %9133 = dma.done %s9129, 2048
        $region72: #{tpu_custom_call.1} parent=67 // pred_fallthru
          _
      $region68: #{tpu_custom_call.1} parent=5 // pred_fallthru
        _
    $region6: #{tpu_custom_call.1} parent=1 // loop_footer
      %s24 = sadd.s32 1, %s20
    $region7: #{tpu_custom_call.1} parent=1 // loop_footer_branch
      %19 = sbr.rel target = $region3
    $region8: #{tpu_custom_call.1} parent=1 // loop_exit
      _
    %9134 = vsyncpa [#allocation6], 1
    %s9135 = scalar_lea.sflag [#allocation6], 1
    %9136 = vsyncpa %s9135, 1
    %9137 = vsyncpa [#allocation9], 1
    %9138 = vsyncpa [#allocation7], 1
    %s9139 = scalar_lea.sflag [#allocation7], 1
    %9140 = vsyncpa %s9139, 1

</llo_original>
